<compile_context>
chip_gen: v5e
topology: v5e:2x2
jax: 0.10.0
libtpu: 0.0.40
codegen_flags: <defaults>
</compile_context>

<pallas_src>
import functools

import jax
import jax.numpy as jnp
from jax.experimental import pallas as pl
from jax.experimental.pallas import tpu as pltpu


_SQRT_HALF = 0.7071067811865476

# Scoped-VMEM budget: explicit so v5e (16 MiB default) gets enough, and well
# under v7x's 64 MiB per-TC physical VMEM.
_VMEM_LIMIT = 32 * 1024 * 1024


def _round_up(x, m):
    return ((x + m - 1) // m) * m


def _erf(x, *, approx_recip=False):
    # Abramowitz & Stegun 7.1.26 polynomial erf (max abs err ~1.5e-7).
    # Uses only exp / mul / add / recip / where, so it lowers cleanly in Mosaic.
    p = 0.3275911
    a1, a2, a3, a4, a5 = (0.254829592, -0.284496736, 1.421413741,
                          -1.453152027, 1.061405429)
    sgn = jnp.where(x >= 0.0, 1.0, -1.0)
    ax = jnp.abs(x)
    denom = 1.0 + p * ax
    if approx_recip:
        # EUP reciprocal: frees VALU slots inside kernels.
        t = pl.reciprocal(denom, approx=True)
    else:
        t = 1.0 / denom
    poly = ((((a5 * t + a4) * t + a3) * t + a2) * t + a1) * t
    return sgn * (1.0 - poly * jnp.exp(-ax * ax))


def _gelu(x, *, approx_recip=False):
    # Exact (erf-based) GELU, matching PyTorch F.gelu default (approximate='none').
    return 0.5 * x * (1.0 + _erf(x * _SQRT_HALF, approx_recip=approx_recip))


# ----------------------------------------------------------------------------
# Kernel 1: fused 2-layer MLP over channels (lifting / projection).
#   y = (GELU(x @ W1 + b1)) @ W2 + b2
# The (rows, hidden_mlp) intermediate lives only in VMEM.
# ----------------------------------------------------------------------------
def mlp_kernel(x_ref, w1_ref, b1_ref, w2_ref, b2_ref, o_ref):
    x = x_ref[...].astype(jnp.bfloat16)
    h = jnp.dot(x, w1_ref[...], preferred_element_type=jnp.float32) + b1_ref[...]
    h = _gelu(h, approx_recip=True)
    y = jnp.dot(h.astype(jnp.bfloat16), w2_ref[...],
                preferred_element_type=jnp.float32) + b2_ref[...]
    o_ref[...] = y.astype(o_ref.dtype)


def fused_mlp(x2d, w1, b1, w2, b2, *, tile_rows=512):
    r, cin = x2d.shape
    chid = w1.shape[1]
    cout = w2.shape[1]
    n_tiles = -(-r // tile_rows)
    rp = n_tiles * tile_rows
    if rp != r:
        # Handle R not divisible by the tile: zero-pad rows, slice after.
        x2d = jnp.pad(x2d, ((0, rp - r), (0, 0)))
    out = pl.pallas_call(
        mlp_kernel,
        out_shape=jax.ShapeDtypeStruct((rp, cout), jnp.float32),
        grid_spec=pltpu.PrefetchScalarGridSpec(
            num_scalar_prefetch=0,
            grid=(n_tiles,),
            in_specs=[
                pl.BlockSpec((tile_rows, cin), lambda i: (i, 0)),
                pl.BlockSpec((cin, chid), lambda i: (0, 0)),
                pl.BlockSpec((1, chid), lambda i: (0, 0)),
                pl.BlockSpec((chid, cout), lambda i: (0, 0)),
                pl.BlockSpec((1, cout), lambda i: (0, 0)),
            ],
            out_specs=pl.BlockSpec((tile_rows, cout), lambda i: (i, 0)),
        ),
        compiler_params=pltpu.CompilerParams(
            dimension_semantics=("parallel",),
            vmem_limit_bytes=_VMEM_LIMIT),
    )(x2d, w1, b1, w2, b2)
    return out[:r] if rp != r else out


# ----------------------------------------------------------------------------
# Kernel 2: ALL DDNO layers fused into one pallas_call.
# Grid = (batch, layer); the activation is carried in VMEM scratch across the
# layer axis (loaded from HBM at l==0, stored at l==L-1).
# Per layer:
#   y      = x @ [wop | wskip]        (one bf16 matmul, 2C-wide MXU N)
#   h      = y[:, :C] + bop           (ddop stand-in output)
#   h      = GroupNorm(h)             (groups of 8 channels, biased var, eps=1e-5,
#                                      two-pass: mean, then centered variance)
#   x_next = GELU(h) + y[:, C:]       (skip_type='linear' -> bias-free 1x1 conv)
# GroupNorm stats are reduced with a sublane column-sum followed by a
# (1,C)@(C,C) matmul against a block one-hot "same group" matrix A, which both
# pools over the group and broadcasts back per channel (no mT input needed).
# ----------------------------------------------------------------------------
def ddno_layers_kernel(x_ref, wcat_ref, bop_ref, gamma_ref, beta_ref, a_ref,
                       o_ref, act_ref, *, eps, group_size):
    l = pl.program_id(1)
    n_layers = pl.num_programs(1)

    @pl.when(l == 0)
    def _():
        act_ref[...] = x_ref[0]

    x = act_ref[...]                                                 # (P, C) f32
    c = x.shape[1]
    p_rows = x.shape[0]

    # TODO(synk): build_op_from_cfg(op_cfg, ...) is not specified here; the
    # domain-decomposed operator (ddop) is stood in by a pointwise linear map.
    y = jnp.dot(x.astype(jnp.bfloat16), wcat_ref[...],
                preferred_element_type=jnp.float32)                  # (P, 2C)
    h = y[:, :c] + bop_ref[...]                                      # ddop path
    skip = y[:, c:]                                                  # skip path

    # GroupNorm over (all pixels, channels-in-group) of the sample.
    inv_cnt = 1.0 / float(p_rows * group_size)
    s1 = jnp.sum(h, axis=0, keepdims=True)                           # (1, C)
    mean_c = jnp.dot(s1, a_ref[...],
                     preferred_element_type=jnp.float32) * inv_cnt   # (1, C)
    d = h - mean_c
    s2 = jnp.sum(d * d, axis=0, keepdims=True)                       # (1, C)
    var_c = jnp.dot(s2, a_ref[...],
                    preferred_element_type=jnp.float32) * inv_cnt    # (1, C)
    hn = d * jax.lax.rsqrt(var_c + eps)
    hn = hn * gamma_ref[...] + beta_ref[...]

    act_ref[...] = _gelu(hn, approx_recip=True) + skip

    @pl.when(l == n_layers - 1)
    def _():
        o_ref[0] = act_ref[...].astype(o_ref.dtype)


def ddno_layers(x, wcat_all, bop_all, gamma_all, beta_all, a_mat,
                *, eps=1e-5, group_size=8):
    # NOTE: GroupNorm needs whole-sample stats, so one sample (H*W, C) stays
    # resident per grid step.  For very large H*W this should be P-tiled with a
    # two-pass reduction; at the block sizes used here it fits every generation.
    n, p, c = x.shape
    n_layers = wcat_all.shape[0]
    kern = functools.partial(ddno_layers_kernel, eps=eps, group_size=group_size)
    return pl.pallas_call(
        kern,
        out_shape=jax.ShapeDtypeStruct((n, p, c), x.dtype),
        grid_spec=pltpu.PrefetchScalarGridSpec(
            num_scalar_prefetch=0,
            grid=(n, n_layers),
            in_specs=[
                pl.BlockSpec((1, p, c), lambda b, l: (b, 0, 0)),
                pl.BlockSpec((None, c, 2 * c), lambda b, l: (l, 0, 0)),
                pl.BlockSpec((None, 1, c), lambda b, l: (l, 0, 0)),
                pl.BlockSpec((None, 1, c), lambda b, l: (l, 0, 0)),
                pl.BlockSpec((None, 1, c), lambda b, l: (l, 0, 0)),
                pl.BlockSpec((c, c), lambda b, l: (0, 0)),
            ],
            out_specs=pl.BlockSpec((1, p, c), lambda b, l: (b, 0, 0)),
            scratch_shapes=[pltpu.VMEM((p, c), jnp.float32)],
        ),
        compiler_params=pltpu.CompilerParams(
            dimension_semantics=("parallel", "arbitrary"),
            vmem_limit_bytes=_VMEM_LIMIT),
    )(x, wcat_all, bop_all, gamma_all, beta_all, a_mat)


# ----------------------------------------------------------------------------
# Full DDNO forward (glue in plain JAX; hot path is in the two kernels above).
# ----------------------------------------------------------------------------
def ddno_forward(x_nchw, kp, out_channels):
    n, cin, h, w = x_nchw.shape
    r = n * h * w
    x = jnp.transpose(x_nchw, (0, 2, 3, 1)).reshape(r, cin)

    # Lane-dense padding of the tiny input-channel dim (zeros contribute 0).
    cin_pad = kp["lift_w1"].shape[0]
    if cin_pad != cin:
        x = jnp.pad(x, ((0, 0), (0, cin_pad - cin)))

    # lifting: Conv1x1(in -> 256) -> GELU -> Conv1x1(256 -> hidden), fused.
    x = fused_mlp(x, kp["lift_w1"], kp["lift_b1"], kp["lift_w2"], kp["lift_b2"])
    chid = x.shape[1]

    # all DDNO layers in one pallas_call (activation stays in VMEM between layers)
    x = ddno_layers(x.reshape(n, h * w, chid), kp["wcat"], kp["bop"],
                    kp["gamma"], kp["beta"], kp["A"])
    x = x.reshape(r, chid)

    # projection: Conv1x1(hidden -> 256) -> GELU -> Conv1x1(256 -> out), fused;
    # output channels are zero-padded to a lane-dense width, sliced here.
    x = fused_mlp(x, kp["proj_w1"], kp["proj_b1"], kp["proj_w2"], kp["proj_b2"])
    x = x[:, :out_channels]
    return jnp.transpose(x.reshape(n, h, w, out_channels), (0, 3, 1, 2))


# ----------------------------------------------------------------------------
# Parameter prep: pad boundary channels to 128 lanes, concat wop|wskip, stack
# per-layer weights, cast matmul weights to bf16, build the group matrix A.
# ----------------------------------------------------------------------------
def prepare_params(params, in_channels, out_channels, hidden):
    bf16 = jnp.bfloat16
    cin_pad = _round_up(max(in_channels, 1), 128)
    cout_pad = _round_up(max(out_channels, 1), 128)

    def pad_rows(a, rows):
        return jnp.pad(a, ((0, rows - a.shape[0]), (0, 0)))

    def pad_cols(a, cols):
        return jnp.pad(a, ((0, 0), (0, cols - a.shape[1])))

    kp = {
        "lift_w1": pad_rows(params["lift_w1"], cin_pad).astype(bf16),
        "lift_b1": params["lift_b1"],
        "lift_w2": params["lift_w2"].astype(bf16),
        "lift_b2": params["lift_b2"],
        "proj_w1": params["proj_w1"].astype(bf16),
        "proj_b1": params["proj_b1"],
        "proj_w2": pad_cols(params["proj_w2"], cout_pad).astype(bf16),
        "proj_b2": pad_cols(params["proj_b2"], cout_pad),
    }
    kp["wcat"] = jnp.stack(
        [jnp.concatenate([lp["wop"], lp["wskip"]], axis=1)
         for lp in params["layers"]], axis=0).astype(bf16)           # (L, C, 2C)
    kp["bop"] = jnp.stack([lp["bop"] for lp in params["layers"]], axis=0)
    kp["gamma"] = jnp.stack([lp["gamma"] for lp in params["layers"]], axis=0)
    kp["beta"] = jnp.stack([lp["beta"] for lp in params["layers"]], axis=0)
    cidx = jnp.arange(hidden)
    kp["A"] = (cidx[:, None] // 8 == cidx[None, :] // 8).astype(jnp.float32)
    return kp


# Pure-JAX f32 reference (same math as the PyTorch module, no Pallas).
def ddno_reference(x_nchw, params, hidden, eps=1e-5):
    n, cin, h, w = x_nchw.shape
    g = hidden // 8
    x = jnp.transpose(x_nchw, (0, 2, 3, 1)).reshape(n, h * w, cin)
    x = _gelu(x @ params["lift_w1"] + params["lift_b1"])
    x = x @ params["lift_w2"] + params["lift_b2"]
    for lp in params["layers"]:
        hh = x @ lp["wop"] + lp["bop"]                         # (N, P, C)
        hg = hh.reshape(n, h * w, g, 8)
        mean = hg.mean(axis=(1, 3), keepdims=True)
        var = ((hg - mean) ** 2).mean(axis=(1, 3), keepdims=True)
        hn = ((hg - mean) / jnp.sqrt(var + eps)).reshape(n, h * w, hidden)
        hn = hn * lp["gamma"] + lp["beta"]
        x = _gelu(hn) + x @ lp["wskip"]
    x = _gelu(x @ params["proj_w1"] + params["proj_b1"])
    x = x @ params["proj_w2"] + params["proj_b2"]
    cout = x.shape[-1]
    return jnp.transpose(x.reshape(n, h, w, cout), (0, 3, 1, 2))


def init_params(key, in_channels, out_channels, hidden, layers,
                lifting_channels=256, projection_channels=256):
    n_keys = 8 + 5 * layers
    ks = list(jax.random.split(key, n_keys))

    def wmat(k, ci, co):
        return jax.random.normal(k, (ci, co), jnp.float32) / jnp.sqrt(ci)

    def bvec(k, co):
        return jax.random.normal(k, (1, co), jnp.float32) * 0.01

    params = {
        "lift_w1": wmat(ks[0], in_channels, lifting_channels),
        "lift_b1": bvec(ks[1], lifting_channels),
        "lift_w2": wmat(ks[2], lifting_channels, hidden),
        "lift_b2": bvec(ks[3], hidden),
        "proj_w1": wmat(ks[4], hidden, projection_channels),
        "proj_b1": bvec(ks[5], projection_channels),
        "proj_w2": wmat(ks[6], projection_channels, out_channels),
        "proj_b2": bvec(ks[7], out_channels),
        "layers": [],
    }
    ki = 8
    for _ in range(layers):
        params["layers"].append({
            "wop": wmat(ks[ki + 0], hidden, hidden),
            "bop": bvec(ks[ki + 1], hidden),
            "gamma": 1.0 + 0.1 * jax.random.normal(ks[ki + 2], (1, hidden), jnp.float32),
            "beta": 0.1 * jax.random.normal(ks[ki + 3], (1, hidden), jnp.float32),
            "wskip": wmat(ks[ki + 4], hidden, hidden),   # skip_type='linear', no bias
        })
        ki += 5
    return params


if __name__ == "__main__":
    # Small, module-consistent shapes.
    N, IN_C, OUT_C = 2, 4, 3
    H = W = 16
    HIDDEN = 32            # num_groups = 32 // 8 = 4
    LAYERS = 2

    key = jax.random.PRNGKey(0)
    kx, kparam = jax.random.split(key)
    x = jax.random.normal(kx, (N, IN_C, H, W), jnp.float32)
    params = init_params(kparam, IN_C, OUT_C, HIDDEN, LAYERS)
    kparams = prepare_params(params, IN_C, OUT_C, HIDDEN)

    fwd = jax.jit(ddno_forward, static_argnums=(2,))
    out = jax.block_until_ready(fwd(x, kparams, OUT_C))

    ref = jax.block_until_ready(ddno_reference(x, params, HIDDEN))
    assert out.shape == (N, OUT_C, H, W), out.shape
    # Tolerance accounts for bf16 matmul operands + approx EUP reciprocal in the
    # kernel vs the pure-f32 reference (structural errors would be O(1)).
    max_err = float(jnp.max(jnp.abs(out - ref)))
    scale = max(1.0, float(jnp.max(jnp.abs(ref))))
    assert max_err < 7.5e-2 * scale, f"mismatch vs reference: {max_err} (scale {scale})"

    print("KERNEL_OK")
</pallas_src>

<mosaic_0001>
module attributes {stable_mosaic.version = 11 : i64} {
  func.func @mlp_kernel(%arg0: i32, %arg1: memref<512x128xf32, #tpu.memory_space<vmem>>, %arg2: memref<128x256xbf16, #tpu.memory_space<vmem>>, %arg3: memref<1x256xf32, #tpu.memory_space<vmem>>, %arg4: memref<256x32xbf16, #tpu.memory_space<vmem>>, %arg5: memref<1x32xf32, #tpu.memory_space<vmem>>, %arg6: memref<512x32xf32, #tpu.memory_space<vmem>>) attributes {dimension_semantics = [#tpu.dimension_semantics<parallel>], iteration_bounds = array<i64: 1>, scalar_prefetch = 0 : i64, scratch_operands = 0 : i64, tpu.core_type = #tpu.core_type<tc>, window_params = [{transform_indices = @transform_0, window_bounds = array<i64: 512, 128>}, {pipeline_mode = #tpu.pipeline_mode<synchronous>, transform_indices = @transform_1, window_bounds = array<i64: 128, 256>}, {pipeline_mode = #tpu.pipeline_mode<synchronous>, transform_indices = @transform_2, window_bounds = array<i64: 1, 256>}, {pipeline_mode = #tpu.pipeline_mode<synchronous>, transform_indices = @transform_3, window_bounds = array<i64: 256, 32>}, {pipeline_mode = #tpu.pipeline_mode<synchronous>, transform_indices = @transform_4, window_bounds = array<i64: 1, 32>}, {transform_indices = @transform_5, window_bounds = array<i64: 512, 32>}]} {
    %c0 = arith.constant 0 : index
    %c0_0 = arith.constant 0 : index
    %0 = vector.load %arg1[%c0, %c0_0] : memref<512x128xf32, #tpu.memory_space<vmem>>, vector<512x128xf32>
    %1 = arith.truncf %0 : vector<512x128xf32> to vector<512x128xbf16>
    %c0_1 = arith.constant 0 : index
    %c0_2 = arith.constant 0 : index
    %2 = vector.load %arg2[%c0_1, %c0_2] : memref<128x256xbf16, #tpu.memory_space<vmem>>, vector<128x256xbf16>
    %cst = arith.constant dense<0.000000e+00> : vector<512x256xf32>
    %3 = tpu.matmul %1, %2, %cst {dimension_numbers = #tpu.dot_dimension_numbers<[1], [0], [0], [1], [0, 0, 1, 1], [], []>} : vector<512x128xbf16>, vector<128x256xbf16>, vector<512x256xf32> -> vector<512x256xf32>
    %c0_3 = arith.constant 0 : index
    %c0_4 = arith.constant 0 : index
    %4 = vector.load %arg3[%c0_3, %c0_4] : memref<1x256xf32, #tpu.memory_space<vmem>>, vector<1x256xf32>
    %5 = vector.broadcast %4 : vector<1x256xf32> to vector<512x256xf32>
    %6 = arith.addf %3, %5 : vector<512x256xf32>
    %cst_5 = arith.constant 5.000000e-01 : f32
    %7 = vector.broadcast %cst_5 : f32 to vector<512x256xf32>
    %8 = arith.mulf %7, %6 : vector<512x256xf32>
    %cst_6 = arith.constant 0.707106769 : f32
    %9 = vector.broadcast %cst_6 : f32 to vector<512x256xf32>
    %10 = arith.mulf %6, %9 : vector<512x256xf32>
    %cst_7 = arith.constant 0.000000e+00 : f32
    %11 = vector.broadcast %cst_7 : f32 to vector<512x256xf32>
    %12 = arith.cmpf oge, %10, %11 : vector<512x256xf32>
    %cst_8 = arith.constant 1.000000e+00 : f32
    %cst_9 = arith.constant -1.000000e+00 : f32
    %13 = vector.broadcast %cst_8 : f32 to vector<512x256xf32>
    %14 = vector.broadcast %cst_9 : f32 to vector<512x256xf32>
    %15 = arith.select %12, %13, %14 : vector<512x256xi1>, vector<512x256xf32>
    %16 = math.absf %10 : vector<512x256xf32>
    %cst_10 = arith.constant 0.327591091 : f32
    %17 = vector.broadcast %cst_10 : f32 to vector<512x256xf32>
    %18 = arith.mulf %17, %16 : vector<512x256xf32>
    %cst_11 = arith.constant 1.000000e+00 : f32
    %19 = vector.broadcast %cst_11 : f32 to vector<512x256xf32>
    %20 = arith.addf %19, %18 : vector<512x256xf32>
    %21 = tpu.reciprocal %20 {approx = true} : vector<512x256xf32> -> vector<512x256xf32>
    %cst_12 = arith.constant 1.06140542 : f32
    %22 = vector.broadcast %cst_12 : f32 to vector<512x256xf32>
    %23 = arith.mulf %22, %21 : vector<512x256xf32>
    %cst_13 = arith.constant -1.45315206 : f32
    %24 = vector.broadcast %cst_13 : f32 to vector<512x256xf32>
    %25 = arith.addf %23, %24 : vector<512x256xf32>
    %26 = arith.mulf %25, %21 : vector<512x256xf32>
    %cst_14 = arith.constant 1.42141378 : f32
    %27 = vector.broadcast %cst_14 : f32 to vector<512x256xf32>
    %28 = arith.addf %26, %27 : vector<512x256xf32>
    %29 = arith.mulf %28, %21 : vector<512x256xf32>
    %cst_15 = arith.constant -0.284496725 : f32
    %30 = vector.broadcast %cst_15 : f32 to vector<512x256xf32>
    %31 = arith.addf %29, %30 : vector<512x256xf32>
    %32 = arith.mulf %31, %21 : vector<512x256xf32>
    %cst_16 = arith.constant 0.254829586 : f32
    %33 = vector.broadcast %cst_16 : f32 to vector<512x256xf32>
    %34 = arith.addf %32, %33 : vector<512x256xf32>
    %35 = arith.mulf %34, %21 : vector<512x256xf32>
    %cst_17 = arith.constant 0.000000e+00 : f32
    %36 = vector.broadcast %cst_17 : f32 to vector<512x256xf32>
    %37 = arith.subf %36, %16 : vector<512x256xf32>
    %38 = arith.mulf %37, %16 : vector<512x256xf32>
    %39 = math.exp %38 : vector<512x256xf32>
    %40 = arith.mulf %35, %39 : vector<512x256xf32>
    %cst_18 = arith.constant 1.000000e+00 : f32
    %41 = vector.broadcast %cst_18 : f32 to vector<512x256xf32>
    %42 = arith.subf %41, %40 : vector<512x256xf32>
    %43 = arith.mulf %15, %42 : vector<512x256xf32>
    %cst_19 = arith.constant 1.000000e+00 : f32
    %44 = vector.broadcast %cst_19 : f32 to vector<512x256xf32>
    %45 = arith.addf %44, %43 : vector<512x256xf32>
    %46 = arith.mulf %8, %45 : vector<512x256xf32>
    %47 = arith.truncf %46 : vector<512x256xf32> to vector<512x256xbf16>
    %c0_20 = arith.constant 0 : index
    %c0_21 = arith.constant 0 : index
    %48 = vector.load %arg4[%c0_20, %c0_21] : memref<256x32xbf16, #tpu.memory_space<vmem>>, vector<256x32xbf16>
    %cst_22 = arith.constant dense<0.000000e+00> : vector<512x32xf32>
    %49 = tpu.matmul %47, %48, %cst_22 {dimension_numbers = #tpu.dot_dimension_numbers<[1], [0], [0], [1], [0, 0, 1, 1], [], []>} : vector<512x256xbf16>, vector<256x32xbf16>, vector<512x32xf32> -> vector<512x32xf32>
    %c0_23 = arith.constant 0 : index
    %c0_24 = arith.constant 0 : index
    %50 = vector.load %arg5[%c0_23, %c0_24] : memref<1x32xf32, #tpu.memory_space<vmem>>, vector<1x32xf32>
    %51 = vector.broadcast %50 : vector<1x32xf32> to vector<512x32xf32>
    %52 = arith.addf %49, %51 : vector<512x32xf32>
    %c0_25 = arith.constant 0 : index
    %c0_26 = arith.constant 0 : index
    %53 = vector.load %arg6[%c0_25, %c0_26] : memref<512x32xf32, #tpu.memory_space<vmem>>, vector<512x32xf32>
    tpu.vector_store %arg6[%c0_25, %c0_26], %52 {strides = array<i32>} : memref<512x32xf32, #tpu.memory_space<vmem>>, vector<512x32xf32>,
    return
  }
  func.func @transform_0(%arg0: i32) -> (i32, i32) {
    %c0_i32 = arith.constant 0 : i32
    %c0_i32_0 = arith.constant 0 : i32
    return %arg0, %c0_i32 : i32, i32
  }
  func.func @transform_1(%arg0: i32) -> (i32, i32) {
    %c0_i32 = arith.constant 0 : i32
    %c0_i32_0 = arith.constant 0 : i32
    %c0_i32_1 = arith.constant 0 : i32
    return %c0_i32, %c0_i32_0 : i32, i32
  }
  func.func @transform_2(%arg0: i32) -> (i32, i32) {
    %c0_i32 = arith.constant 0 : i32
    %c0_i32_0 = arith.constant 0 : i32
    %c0_i32_1 = arith.constant 0 : i32
    return %c0_i32, %c0_i32_0 : i32, i32
  }
  func.func @transform_3(%arg0: i32) -> (i32, i32) {
    %c0_i32 = arith.constant 0 : i32
    %c0_i32_0 = arith.constant 0 : i32
    %c0_i32_1 = arith.constant 0 : i32
    return %c0_i32, %c0_i32_0 : i32, i32
  }
  func.func @transform_4(%arg0: i32) -> (i32, i32) {
    %c0_i32 = arith.constant 0 : i32
    %c0_i32_0 = arith.constant 0 : i32
    %c0_i32_1 = arith.constant 0 : i32
    return %c0_i32, %c0_i32_0 : i32, i32
  }
  func.func @transform_5(%arg0: i32) -> (i32, i32) {
    %c0_i32 = arith.constant 0 : i32
    %c0_i32_0 = arith.constant 0 : i32
    return %arg0, %c0_i32 : i32, i32
  }
}

module attributes {stable_mosaic.version = 11 : i64} {
  func.func @ddno_layers_kernel(%arg0: i32, %arg1: i32, %arg2: memref<1x256x32xf32, #tpu.memory_space<vmem>>, %arg3: memref<1x32x64xbf16, #tpu.memory_space<vmem>>, %arg4: memref<1x1x32xf32, #tpu.memory_space<vmem>>, %arg5: memref<1x1x32xf32, #tpu.memory_space<vmem>>, %arg6: memref<1x1x32xf32, #tpu.memory_space<vmem>>, %arg7: memref<32x32xf32, #tpu.memory_space<vmem>>, %arg8: memref<1x256x32xf32, #tpu.memory_space<vmem>>, %arg9: memref<256x32xf32, #tpu.memory_space<vmem>>) attributes {dimension_semantics = [#tpu.dimension_semantics<parallel>, #tpu.dimension_semantics<arbitrary>], iteration_bounds = array<i64: 2, 2>, scalar_prefetch = 0 : i64, scratch_operands = 1 : i64, tpu.core_type = #tpu.core_type<tc>, window_params = [{transform_indices = @transform_0, window_bounds = array<i64: 1, 256, 32>}, {transform_indices = @transform_1, window_bounds = array<i64: 1, 32, 64>}, {transform_indices = @transform_2, window_bounds = array<i64: 1, 1, 32>}, {transform_indices = @transform_3, window_bounds = array<i64: 1, 1, 32>}, {transform_indices = @transform_4, window_bounds = array<i64: 1, 1, 32>}, {pipeline_mode = #tpu.pipeline_mode<synchronous>, transform_indices = @transform_5, window_bounds = array<i64: 32, 32>}, {transform_indices = @transform_6, window_bounds = array<i64: 1, 256, 32>}]} {
    %c0_i32 = arith.constant 0 : i32
    %0 = arith.cmpi eq, %arg1, %c0_i32 : i32
    %1 = arith.extui %0 : i1 to i32
    %c0_i32_0 = arith.constant 0 : i32
    %2 = arith.cmpi ne, %1, %c0_i32_0 : i32
    scf.if %2 {
      %c0_43 = arith.constant 0 : index
      %c0_44 = arith.constant 0 : index
      %c0_45 = arith.constant 0 : index
      %87 = vector.load %arg2[%c0_43, %c0_44, %c0_45] : memref<1x256x32xf32, #tpu.memory_space<vmem>>, vector<1x256x32xf32>
      %88 = vector.shape_cast %87 : vector<1x256x32xf32> to vector<256x32xf32>
      %c0_46 = arith.constant 0 : index
      %c0_47 = arith.constant 0 : index
      %89 = vector.load %arg9[%c0_46, %c0_47] : memref<256x32xf32, #tpu.memory_space<vmem>>, vector<256x32xf32>
      tpu.vector_store %arg9[%c0_46, %c0_47], %88 {strides = array<i32>} : memref<256x32xf32, #tpu.memory_space<vmem>>, vector<256x32xf32>,
    } else {
    }
    %c0 = arith.constant 0 : index
    %c0_1 = arith.constant 0 : index
    %3 = vector.load %arg9[%c0, %c0_1] : memref<256x32xf32, #tpu.memory_space<vmem>>, vector<256x32xf32>
    %4 = arith.truncf %3 : vector<256x32xf32> to vector<256x32xbf16>
    %c0_2 = arith.constant 0 : index
    %c0_3 = arith.constant 0 : index
    %c0_4 = arith.constant 0 : index
    %5 = vector.load %arg3[%c0_2, %c0_3, %c0_4] : memref<1x32x64xbf16, #tpu.memory_space<vmem>>, vector<1x32x64xbf16>
    %6 = vector.shape_cast %5 : vector<1x32x64xbf16> to vector<32x64xbf16>
    %cst = arith.constant dense<0.000000e+00> : vector<256x64xf32>
    %7 = tpu.matmul %4, %6, %cst {dimension_numbers = #tpu.dot_dimension_numbers<[1], [0], [0], [1], [0, 0, 1, 1], [], []>} : vector<256x32xbf16>, vector<32x64xbf16>, vector<256x64xf32> -> vector<256x64xf32>
    %8 = vector.extract_strided_slice %7 {offsets = [0, 0], sizes = [256, 32], strides = [1, 1]} : vector<256x64xf32> to vector<256x32xf32>
    %c0_5 = arith.constant 0 : index
    %c0_6 = arith.constant 0 : index
    %c0_7 = arith.constant 0 : index
    %9 = vector.load %arg4[%c0_5, %c0_6, %c0_7] : memref<1x1x32xf32, #tpu.memory_space<vmem>>, vector<1x1x32xf32>
    %10 = vector.shape_cast %9 : vector<1x1x32xf32> to vector<1x32xf32>
    %11 = vector.broadcast %10 : vector<1x32xf32> to vector<256x32xf32>
    %12 = arith.addf %8, %11 : vector<256x32xf32>
    %13 = vector.extract_strided_slice %7 {offsets = [0, 32], sizes = [256, 32], strides = [1, 1]} : vector<256x64xf32> to vector<256x32xf32>
    %cst_8 = arith.constant dense<0.000000e+00> : vector<32xf32>
    %14 = vector.multi_reduction <add>, %12, %cst_8 [0] : vector<256x32xf32> to vector<32xf32>
    %15 = vector.shape_cast %14 : vector<32xf32> to vector<1x32xf32>
    %c0_9 = arith.constant 0 : index
    %c0_10 = arith.constant 0 : index
    %16 = vector.load %arg7[%c0_9, %c0_10] : memref<32x32xf32, #tpu.memory_space<vmem>>, vector<32x32xf32>
    %cst_11 = arith.constant dense<0.000000e+00> : vector<1x32xf32>
    %17 = tpu.matmul %15, %16, %cst_11 {dimension_numbers = #tpu.dot_dimension_numbers<[1], [0], [0], [1], [0, 0, 1, 1], [], []>} : vector<1x32xf32>, vector<32x32xf32>, vector<1x32xf32> -> vector<1x32xf32>
    %cst_12 = arith.constant 4.8828125E-4 : f32
    %18 = vector.broadcast %cst_12 : f32 to vector<1x32xf32>
    %19 = arith.mulf %17, %18 : vector<1x32xf32>
    %20 = vector.broadcast %19 : vector<1x32xf32> to vector<256x32xf32>
    %21 = arith.subf %12, %20 : vector<256x32xf32>
    %22 = arith.mulf %21, %21 : vector<256x32xf32>
    %cst_13 = arith.constant dense<0.000000e+00> : vector<32xf32>
    %23 = vector.multi_reduction <add>, %22, %cst_13 [0] : vector<256x32xf32> to vector<32xf32>
    %24 = vector.shape_cast %23 : vector<32xf32> to vector<1x32xf32>
    %c0_14 = arith.constant 0 : index
    %c0_15 = arith.constant 0 : index
    %25 = vector.load %arg7[%c0_14, %c0_15] : memref<32x32xf32, #tpu.memory_space<vmem>>, vector<32x32xf32>
    %cst_16 = arith.constant dense<0.000000e+00> : vector<1x32xf32>
    %26 = tpu.matmul %24, %25, %cst_16 {dimension_numbers = #tpu.dot_dimension_numbers<[1], [0], [0], [1], [0, 0, 1, 1], [], []>} : vector<1x32xf32>, vector<32x32xf32>, vector<1x32xf32> -> vector<1x32xf32>
    %cst_17 = arith.constant 4.8828125E-4 : f32
    %27 = vector.broadcast %cst_17 : f32 to vector<1x32xf32>
    %28 = arith.mulf %26, %27 : vector<1x32xf32>
    %cst_18 = arith.constant 9.99999974E-6 : f32
    %29 = vector.broadcast %cst_18 : f32 to vector<1x32xf32>
    %30 = arith.addf %28, %29 : vector<1x32xf32>
    %31 = math.rsqrt %30 : vector<1x32xf32>
    %32 = vector.broadcast %31 : vector<1x32xf32> to vector<256x32xf32>
    %33 = arith.mulf %21, %32 : vector<256x32xf32>
    %c0_19 = arith.constant 0 : index
    %c0_20 = arith.constant 0 : index
    %c0_21 = arith.constant 0 : index
    %34 = vector.load %arg5[%c0_19, %c0_20, %c0_21] : memref<1x1x32xf32, #tpu.memory_space<vmem>>, vector<1x1x32xf32>
    %35 = vector.shape_cast %34 : vector<1x1x32xf32> to vector<1x32xf32>
    %36 = vector.broadcast %35 : vector<1x32xf32> to vector<256x32xf32>
    %37 = arith.mulf %33, %36 : vector<256x32xf32>
    %c0_22 = arith.constant 0 : index
    %c0_23 = arith.constant 0 : index
    %c0_24 = arith.constant 0 : index
    %38 = vector.load %arg6[%c0_22, %c0_23, %c0_24] : memref<1x1x32xf32, #tpu.memory_space<vmem>>, vector<1x1x32xf32>
    %39 = vector.shape_cast %38 : vector<1x1x32xf32> to vector<1x32xf32>
    %40 = vector.broadcast %39 : vector<1x32xf32> to vector<256x32xf32>
    %41 = arith.addf %37, %40 : vector<256x32xf32>
    %cst_25 = arith.constant 5.000000e-01 : f32
    %42 = vector.broadcast %cst_25 : f32 to vector<256x32xf32>
    %43 = arith.mulf %42, %41 : vector<256x32xf32>
    %cst_26 = arith.constant 0.707106769 : f32
    %44 = vector.broadcast %cst_26 : f32 to vector<256x32xf32>
    %45 = arith.mulf %41, %44 : vector<256x32xf32>
    %cst_27 = arith.constant 0.000000e+00 : f32
    %46 = vector.broadcast %cst_27 : f32 to vector<256x32xf32>
    %47 = arith.cmpf oge, %45, %46 : vector<256x32xf32>
    %cst_28 = arith.constant 1.000000e+00 : f32
    %cst_29 = arith.constant -1.000000e+00 : f32
    %48 = vector.broadcast %cst_28 : f32 to vector<256x32xf32>
    %49 = vector.broadcast %cst_29 : f32 to vector<256x32xf32>
    %50 = arith.select %47, %48, %49 : vector<256x32xi1>, vector<256x32xf32>
    %51 = math.absf %45 : vector<256x32xf32>
    %cst_30 = arith.constant 0.327591091 : f32
    %52 = vector.broadcast %cst_30 : f32 to vector<256x32xf32>
    %53 = arith.mulf %52, %51 : vector<256x32xf32>
    %cst_31 = arith.constant 1.000000e+00 : f32
    %54 = vector.broadcast %cst_31 : f32 to vector<256x32xf32>
    %55 = arith.addf %54, %53 : vector<256x32xf32>
    %56 = tpu.reciprocal %55 {approx = true} : vector<256x32xf32> -> vector<256x32xf32>
    %cst_32 = arith.constant 1.06140542 : f32
    %57 = vector.broadcast %cst_32 : f32 to vector<256x32xf32>
    %58 = arith.mulf %57, %56 : vector<256x32xf32>
    %cst_33 = arith.constant -1.45315206 : f32
    %59 = vector.broadcast %cst_33 : f32 to vector<256x32xf32>
    %60 = arith.addf %58, %59 : vector<256x32xf32>
    %61 = arith.mulf %60, %56 : vector<256x32xf32>
    %cst_34 = arith.constant 1.42141378 : f32
    %62 = vector.broadcast %cst_34 : f32 to vector<256x32xf32>
    %63 = arith.addf %61, %62 : vector<256x32xf32>
    %64 = arith.mulf %63, %56 : vector<256x32xf32>
    %cst_35 = arith.constant -0.284496725 : f32
    %65 = vector.broadcast %cst_35 : f32 to vector<256x32xf32>
    %66 = arith.addf %64, %65 : vector<256x32xf32>
    %67 = arith.mulf %66, %56 : vector<256x32xf32>
    %cst_36 = arith.constant 0.254829586 : f32
    %68 = vector.broadcast %cst_36 : f32 to vector<256x32xf32>
    %69 = arith.addf %67, %68 : vector<256x32xf32>
    %70 = arith.mulf %69, %56 : vector<256x32xf32>
    %cst_37 = arith.constant 0.000000e+00 : f32
    %71 = vector.broadcast %cst_37 : f32 to vector<256x32xf32>
    %72 = arith.subf %71, %51 : vector<256x32xf32>
    %73 = arith.mulf %72, %51 : vector<256x32xf32>
    %74 = math.exp %73 : vector<256x32xf32>
    %75 = arith.mulf %70, %74 : vector<256x32xf32>
    %cst_38 = arith.constant 1.000000e+00 : f32
    %76 = vector.broadcast %cst_38 : f32 to vector<256x32xf32>
    %77 = arith.subf %76, %75 : vector<256x32xf32>
    %78 = arith.mulf %50, %77 : vector<256x32xf32>
    %cst_39 = arith.constant 1.000000e+00 : f32
    %79 = vector.broadcast %cst_39 : f32 to vector<256x32xf32>
    %80 = arith.addf %79, %78 : vector<256x32xf32>
    %81 = arith.mulf %43, %80 : vector<256x32xf32>
    %82 = arith.addf %81, %13 : vector<256x32xf32>
    %c0_40 = arith.constant 0 : index
    %c0_41 = arith.constant 0 : index
    %83 = vector.load %arg9[%c0_40, %c0_41] : memref<256x32xf32, #tpu.memory_space<vmem>>, vector<256x32xf32>
    tpu.vector_store %arg9[%c0_40, %c0_41], %82 {strides = array<i32>} : memref<256x32xf32, #tpu.memory_space<vmem>>, vector<256x32xf32>,
    %c1_i32 = arith.constant 1 : i32
    %84 = arith.cmpi eq, %arg1, %c1_i32 : i32
    %85 = arith.extui %84 : i1 to i32
    %c0_i32_42 = arith.constant 0 : i32
    %86 = arith.cmpi ne, %85, %c0_i32_42 : i32
    scf.if %86 {
      %c0_43 = arith.constant 0 : index
      %c0_44 = arith.constant 0 : index
      %87 = vector.load %arg9[%c0_43, %c0_44] : memref<256x32xf32, #tpu.memory_space<vmem>>, vector<256x32xf32>
      %c0_45 = arith.constant 0 : index
      %c0_46 = arith.constant 0 : index
      %c0_47 = arith.constant 0 : index
      %88 = vector.load %arg8[%c0_45, %c0_46, %c0_47] : memref<1x256x32xf32, #tpu.memory_space<vmem>>, vector<1x256x32xf32>
      %89 = vector.shape_cast %88 : vector<1x256x32xf32> to vector<256x32xf32>
      %90 = vector.shape_cast %87 : vector<256x32xf32> to vector<1x256x32xf32>
      tpu.vector_store %arg8[%c0_45, %c0_46, %c0_47], %90 {strides = array<i32>} : memref<1x256x32xf32, #tpu.memory_space<vmem>>, vector<1x256x32xf32>,
    } else {
    }
    return
  }
  func.func @transform_0(%arg0: i32, %arg1: i32) -> (i32, i32, i32) {
    %c0_i32 = arith.constant 0 : i32
    %c0_i32_0 = arith.constant 0 : i32
    %c0_i32_1 = arith.constant 0 : i32
    return %arg0, %c0_i32, %c0_i32_0 : i32, i32, i32
  }
  func.func @transform_1(%arg0: i32, %arg1: i32) -> (i32, i32, i32) {
    %c0_i32 = arith.constant 0 : i32
    %c0_i32_0 = arith.constant 0 : i32
    %c0_i32_1 = arith.constant 0 : i32
    return %arg1, %c0_i32, %c0_i32_0 : i32, i32, i32
  }
  func.func @transform_2(%arg0: i32, %arg1: i32) -> (i32, i32, i32) {
    %c0_i32 = arith.constant 0 : i32
    %c0_i32_0 = arith.constant 0 : i32
    %c0_i32_1 = arith.constant 0 : i32
    return %arg1, %c0_i32, %c0_i32_0 : i32, i32, i32
  }
  func.func @transform_3(%arg0: i32, %arg1: i32) -> (i32, i32, i32) {
    %c0_i32 = arith.constant 0 : i32
    %c0_i32_0 = arith.constant 0 : i32
    %c0_i32_1 = arith.constant 0 : i32
    return %arg1, %c0_i32, %c0_i32_0 : i32, i32, i32
  }
  func.func @transform_4(%arg0: i32, %arg1: i32) -> (i32, i32, i32) {
    %c0_i32 = arith.constant 0 : i32
    %c0_i32_0 = arith.constant 0 : i32
    %c0_i32_1 = arith.constant 0 : i32
    return %arg1, %c0_i32, %c0_i32_0 : i32, i32, i32
  }
  func.func @transform_5(%arg0: i32, %arg1: i32) -> (i32, i32) {
    %c0_i32 = arith.constant 0 : i32
    %c0_i32_0 = arith.constant 0 : i32
    %c0_i32_1 = arith.constant 0 : i32
    return %c0_i32, %c0_i32_0 : i32, i32
  }
  func.func @transform_6(%arg0: i32, %arg1: i32) -> (i32, i32, i32) {
    %c0_i32 = arith.constant 0 : i32
    %c0_i32_0 = arith.constant 0 : i32
    %c0_i32_1 = arith.constant 0 : i32
    return %arg0, %c0_i32, %c0_i32_0 : i32, i32, i32
  }
}

module attributes {stable_mosaic.version = 11 : i64} {
  func.func @mlp_kernel(%arg0: i32, %arg1: memref<512x32xf32, #tpu.memory_space<vmem>>, %arg2: memref<32x256xbf16, #tpu.memory_space<vmem>>, %arg3: memref<1x256xf32, #tpu.memory_space<vmem>>, %arg4: memref<256x128xbf16, #tpu.memory_space<vmem>>, %arg5: memref<1x128xf32, #tpu.memory_space<vmem>>, %arg6: memref<512x128xf32, #tpu.memory_space<vmem>>) attributes {dimension_semantics = [#tpu.dimension_semantics<parallel>], iteration_bounds = array<i64: 1>, scalar_prefetch = 0 : i64, scratch_operands = 0 : i64, tpu.core_type = #tpu.core_type<tc>, window_params = [{transform_indices = @transform_0, window_bounds = array<i64: 512, 32>}, {pipeline_mode = #tpu.pipeline_mode<synchronous>, transform_indices = @transform_1, window_bounds = array<i64: 32, 256>}, {pipeline_mode = #tpu.pipeline_mode<synchronous>, transform_indices = @transform_2, window_bounds = array<i64: 1, 256>}, {pipeline_mode = #tpu.pipeline_mode<synchronous>, transform_indices = @transform_3, window_bounds = array<i64: 256, 128>}, {pipeline_mode = #tpu.pipeline_mode<synchronous>, transform_indices = @transform_4, window_bounds = array<i64: 1, 128>}, {transform_indices = @transform_5, window_bounds = array<i64: 512, 128>}]} {
    %c0 = arith.constant 0 : index
    %c0_0 = arith.constant 0 : index
    %0 = vector.load %arg1[%c0, %c0_0] : memref<512x32xf32, #tpu.memory_space<vmem>>, vector<512x32xf32>
    %1 = arith.truncf %0 : vector<512x32xf32> to vector<512x32xbf16>
    %c0_1 = arith.constant 0 : index
    %c0_2 = arith.constant 0 : index
    %2 = vector.load %arg2[%c0_1, %c0_2] : memref<32x256xbf16, #tpu.memory_space<vmem>>, vector<32x256xbf16>
    %cst = arith.constant dense<0.000000e+00> : vector<512x256xf32>
    %3 = tpu.matmul %1, %2, %cst {dimension_numbers = #tpu.dot_dimension_numbers<[1], [0], [0], [1], [0, 0, 1, 1], [], []>} : vector<512x32xbf16>, vector<32x256xbf16>, vector<512x256xf32> -> vector<512x256xf32>
    %c0_3 = arith.constant 0 : index
    %c0_4 = arith.constant 0 : index
    %4 = vector.load %arg3[%c0_3, %c0_4] : memref<1x256xf32, #tpu.memory_space<vmem>>, vector<1x256xf32>
    %5 = vector.broadcast %4 : vector<1x256xf32> to vector<512x256xf32>
    %6 = arith.addf %3, %5 : vector<512x256xf32>
    %cst_5 = arith.constant 5.000000e-01 : f32
    %7 = vector.broadcast %cst_5 : f32 to vector<512x256xf32>
    %8 = arith.mulf %7, %6 : vector<512x256xf32>
    %cst_6 = arith.constant 0.707106769 : f32
    %9 = vector.broadcast %cst_6 : f32 to vector<512x256xf32>
    %10 = arith.mulf %6, %9 : vector<512x256xf32>
    %cst_7 = arith.constant 0.000000e+00 : f32
    %11 = vector.broadcast %cst_7 : f32 to vector<512x256xf32>
    %12 = arith.cmpf oge, %10, %11 : vector<512x256xf32>
    %cst_8 = arith.constant 1.000000e+00 : f32
    %cst_9 = arith.constant -1.000000e+00 : f32
    %13 = vector.broadcast %cst_8 : f32 to vector<512x256xf32>
    %14 = vector.broadcast %cst_9 : f32 to vector<512x256xf32>
    %15 = arith.select %12, %13, %14 : vector<512x256xi1>, vector<512x256xf32>
    %16 = math.absf %10 : vector<512x256xf32>
    %cst_10 = arith.constant 0.327591091 : f32
    %17 = vector.broadcast %cst_10 : f32 to vector<512x256xf32>
    %18 = arith.mulf %17, %16 : vector<512x256xf32>
    %cst_11 = arith.constant 1.000000e+00 : f32
    %19 = vector.broadcast %cst_11 : f32 to vector<512x256xf32>
    %20 = arith.addf %19, %18 : vector<512x256xf32>
    %21 = tpu.reciprocal %20 {approx = true} : vector<512x256xf32> -> vector<512x256xf32>
    %cst_12 = arith.constant 1.06140542 : f32
    %22 = vector.broadcast %cst_12 : f32 to vector<512x256xf32>
    %23 = arith.mulf %22, %21 : vector<512x256xf32>
    %cst_13 = arith.constant -1.45315206 : f32
    %24 = vector.broadcast %cst_13 : f32 to vector<512x256xf32>
    %25 = arith.addf %23, %24 : vector<512x256xf32>
    %26 = arith.mulf %25, %21 : vector<512x256xf32>
    %cst_14 = arith.constant 1.42141378 : f32
    %27 = vector.broadcast %cst_14 : f32 to vector<512x256xf32>
    %28 = arith.addf %26, %27 : vector<512x256xf32>
    %29 = arith.mulf %28, %21 : vector<512x256xf32>
    %cst_15 = arith.constant -0.284496725 : f32
    %30 = vector.broadcast %cst_15 : f32 to vector<512x256xf32>
    %31 = arith.addf %29, %30 : vector<512x256xf32>
    %32 = arith.mulf %31, %21 : vector<512x256xf32>
    %cst_16 = arith.constant 0.254829586 : f32
    %33 = vector.broadcast %cst_16 : f32 to vector<512x256xf32>
    %34 = arith.addf %32, %33 : vector<512x256xf32>
    %35 = arith.mulf %34, %21 : vector<512x256xf32>
    %cst_17 = arith.constant 0.000000e+00 : f32
    %36 = vector.broadcast %cst_17 : f32 to vector<512x256xf32>
    %37 = arith.subf %36, %16 : vector<512x256xf32>
    %38 = arith.mulf %37, %16 : vector<512x256xf32>
    %39 = math.exp %38 : vector<512x256xf32>
    %40 = arith.mulf %35, %39 : vector<512x256xf32>
    %cst_18 = arith.constant 1.000000e+00 : f32
    %41 = vector.broadcast %cst_18 : f32 to vector<512x256xf32>
    %42 = arith.subf %41, %40 : vector<512x256xf32>
    %43 = arith.mulf %15, %42 : vector<512x256xf32>
    %cst_19 = arith.constant 1.000000e+00 : f32
    %44 = vector.broadcast %cst_19 : f32 to vector<512x256xf32>
    %45 = arith.addf %44, %43 : vector<512x256xf32>
    %46 = arith.mulf %8, %45 : vector<512x256xf32>
    %47 = arith.truncf %46 : vector<512x256xf32> to vector<512x256xbf16>
    %c0_20 = arith.constant 0 : index
    %c0_21 = arith.constant 0 : index
    %48 = vector.load %arg4[%c0_20, %c0_21] : memref<256x128xbf16, #tpu.memory_space<vmem>>, vector<256x128xbf16>
    %cst_22 = arith.constant dense<0.000000e+00> : vector<512x128xf32>
    %49 = tpu.matmul %47, %48, %cst_22 {dimension_numbers = #tpu.dot_dimension_numbers<[1], [0], [0], [1], [0, 0, 1, 1], [], []>} : vector<512x256xbf16>, vector<256x128xbf16>, vector<512x128xf32> -> vector<512x128xf32>
    %c0_23 = arith.constant 0 : index
    %c0_24 = arith.constant 0 : index
    %50 = vector.load %arg5[%c0_23, %c0_24] : memref<1x128xf32, #tpu.memory_space<vmem>>, vector<1x128xf32>
    %51 = vector.broadcast %50 : vector<1x128xf32> to vector<512x128xf32>
    %52 = arith.addf %49, %51 : vector<512x128xf32>
    %c0_25 = arith.constant 0 : index
    %c0_26 = arith.constant 0 : index
    %53 = vector.load %arg6[%c0_25, %c0_26] : memref<512x128xf32, #tpu.memory_space<vmem>>, vector<512x128xf32>
    tpu.vector_store %arg6[%c0_25, %c0_26], %52 {strides = array<i32>} : memref<512x128xf32, #tpu.memory_space<vmem>>, vector<512x128xf32>,
    return
  }
  func.func @transform_0(%arg0: i32) -> (i32, i32) {
    %c0_i32 = arith.constant 0 : i32
    %c0_i32_0 = arith.constant 0 : i32
    return %arg0, %c0_i32 : i32, i32
  }
  func.func @transform_1(%arg0: i32) -> (i32, i32) {
    %c0_i32 = arith.constant 0 : i32
    %c0_i32_0 = arith.constant 0 : i32
    %c0_i32_1 = arith.constant 0 : i32
    return %c0_i32, %c0_i32_0 : i32, i32
  }
  func.func @transform_2(%arg0: i32) -> (i32, i32) {
    %c0_i32 = arith.constant 0 : i32
    %c0_i32_0 = arith.constant 0 : i32
    %c0_i32_1 = arith.constant 0 : i32
    return %c0_i32, %c0_i32_0 : i32, i32
  }
  func.func @transform_3(%arg0: i32) -> (i32, i32) {
    %c0_i32 = arith.constant 0 : i32
    %c0_i32_0 = arith.constant 0 : i32
    %c0_i32_1 = arith.constant 0 : i32
    return %c0_i32, %c0_i32_0 : i32, i32
  }
  func.func @transform_4(%arg0: i32) -> (i32, i32) {
    %c0_i32 = arith.constant 0 : i32
    %c0_i32_0 = arith.constant 0 : i32
    %c0_i32_1 = arith.constant 0 : i32
    return %c0_i32, %c0_i32_0 : i32, i32
  }
  func.func @transform_5(%arg0: i32) -> (i32, i32) {
    %c0_i32 = arith.constant 0 : i32
    %c0_i32_0 = arith.constant 0 : i32
    return %arg0, %c0_i32 : i32, i32
  }
}

</mosaic_0001>

<llo_original>
// kernel: ddno_forward.4
$region0: #{ddno_forward.4}
  #allocation0 [shape = 'u32[]', space=smem, size = 0x4, offset = 0x4, fixed_abs, tag = 'smem constant byte address 0x4 - core index']
  #allocation1 [shape = 'u32[72,128]{1,0:T(1,128)}', space=vmem, size = 0x9000, scoped, tag = 'internal scratch']
  #allocation2 [shape = 'f32[256,32]{1,0:T(8,128)}', space=vmem, size = 0x20000, scoped, tag = 'scratch operand']
  %s0 = inlined_call_operand.vmem [shape: f32[2,256,32], index: 0, kind: input, shape index: {}]
  %s1 = inlined_call_operand.vmem [shape: bf16[2,32,64], index: 1, kind: input, shape index: {}]
  %s2 = inlined_call_operand.vmem [shape: f32[2,1,32], index: 2, kind: input, shape index: {}]
  %s3 = inlined_call_operand.vmem [shape: f32[2,1,32], index: 3, kind: input, shape index: {}]
  %s4 = inlined_call_operand.vmem [shape: f32[2,1,32], index: 4, kind: input, shape index: {}]
  %s5 = inlined_call_operand.vmem [shape: f32[32,32], index: 5, kind: input, shape index: {}]
  %s6 = inlined_call_operand.vmem [shape: f32[2,256,32], index: 6, kind: output, shape index: {}]
  %s7 = sld [smem:[#allocation0]]
  $region65: #{ddno_forward.4} parent=0
    _
  %s9 = ssub.s32 1, %s7
  %s10 = scalar_select 0, %s9, %s7
  loop: start=0, step=1, limit=6
  $region2: #{ddno_forward.4} parent=0 // loop_pre_header
    _
  $region3: #{ddno_forward.4} parent=0 // loop_header
    %s12 = sphi 0, %s16
    %p13 = scmp.ge.s32.totalorder %s12, 6
    %s19 = sphi 0, %s31
    %s20 = sphi 0, %s27
    %s21 = sphi 0, %s19
    %s22 = sphi 0, %s20
    %s23 = sphi 0, %s21
    %s24 = sphi 0, %s22
    %s34 = sphi 0, %s36
    %s37 = sphi 0, %s34
    %s38 = sphi 0, %s37
    %s54 = sphi 0, %s38
    %s60 = sphi 0, %s62
    %s63 = sphi 0, %s60
    %s64 = sphi 0, %s63
    %s80 = sphi 0, %s64
    %s86 = sphi 0, %s88
    %s89 = sphi 0, %s86
    %s90 = sphi 0, %s89
    %s106 = sphi 0, %s90
    %s112 = sphi 0, %s114
    %s115 = sphi 0, %s112
    %s116 = sphi 0, %s115
    %s132 = sphi 0, %s116
    %s138 = sphi 0, %s140
    %s141 = sphi 0, %s138
    %s142 = sphi 0, %s141
    %s158 = sphi 0, %s142
    %s162 = sphi 0, %s162
    %s164 = sphi 0, %s162
    %s165 = sphi 0, %s164
    %s179 = sphi 0, %s165
    %s185 = sphi 0, %s187
    %s188 = sphi 0, %s185
    %s189 = sphi 0, %s188
    %s205 = sphi 0, %s189
  $region4: #{ddno_forward.4} parent=0 // loop_header_branch
    %15 = sbr.rel (%p13) target = $region8
  $region5: #{ddno_forward.4} parent=0 // loop_body
    %s17 = ssub.s32 %s12, 1
    %s18 = ssub.s32 %s12, 2
    %s25 = sadd.s32 1, %s20
    %p26 = scmp.ge.s32.totalorder %s25, 2
    %s27 = scalar_select %p26, 0, %s25
    %s28 = sadd.s32 1, %s19
    %s29 = scalar_select %p26, %s28, %s19
    %p30 = scmp.ge.s32.totalorder %s29, 2
    %s31 = scalar_select %p30, 0, %s29
    %s32 = ssub.s32 %s19, %s31
    %p33 = scmp.eq.s32.totalorder %s32, 0
    %s35 = sadd.s32 %s34, 1
    %s36 = scalar_select %p33, %s34, %s35
    %p39 = pneg %p33
    %p40 = scmp.eq.s32.totalorder %s12, 3
    %p41 = por %p39, %p40
    %p42 = scmp.ne.s32.totalorder %s34, %s37
    %p43 = scmp.eq.s32.totalorder %s12, 0
    %p44 = por %p42, %p43
    %p45 = scmp.ne.s32.totalorder %s34, %s37
    %p46 = scmp.eq.s32.totalorder %s17, 3
    %p47 = por %p45, %p46
    %p48 = scmp.ne.s32.totalorder %s37, %s38
    %p49 = scmp.eq.s32.totalorder %s17, 0
    %p50 = por %p48, %p49
    %p51 = scmp.ne.s32.totalorder %s37, %s38
    %p52 = scmp.eq.s32.totalorder %s18, 3
    %p53 = por %p51, %p52
    %p55 = scmp.ne.s32.totalorder %s38, %s54
    %p56 = scmp.eq.s32.totalorder %s18, 0
    %p57 = por %p55, %p56
    %s58 = ssub.s32 %s20, %s27
    %p59 = scmp.eq.s32.totalorder %s58, 0
    %s61 = sadd.s32 %s60, 1
    %s62 = scalar_select %p59, %s60, %s61
    %p65 = pneg %p59
    %p66 = scmp.eq.s32.totalorder %s12, 3
    %p67 = por %p65, %p66
    %p68 = scmp.ne.s32.totalorder %s60, %s63
    %p69 = scmp.eq.s32.totalorder %s12, 0
    %p70 = por %p68, %p69
    %p71 = scmp.ne.s32.totalorder %s60, %s63
    %p72 = scmp.eq.s32.totalorder %s17, 3
    %p73 = por %p71, %p72
    %p74 = scmp.ne.s32.totalorder %s63, %s64
    %p75 = scmp.eq.s32.totalorder %s17, 0
    %p76 = por %p74, %p75
    %p77 = scmp.ne.s32.totalorder %s63, %s64
    %p78 = scmp.eq.s32.totalorder %s18, 3
    %p79 = por %p77, %p78
    %p81 = scmp.ne.s32.totalorder %s64, %s80
    %p82 = scmp.eq.s32.totalorder %s18, 0
    %p83 = por %p81, %p82
    %s84 = ssub.s32 %s20, %s27
    %p85 = scmp.eq.s32.totalorder %s84, 0
    %s87 = sadd.s32 %s86, 1
    %s88 = scalar_select %p85, %s86, %s87
    %p91 = pneg %p85
    %p92 = scmp.eq.s32.totalorder %s12, 3
    %p93 = por %p91, %p92
    %p94 = scmp.ne.s32.totalorder %s86, %s89
    %p95 = scmp.eq.s32.totalorder %s12, 0
    %p96 = por %p94, %p95
    %p97 = scmp.ne.s32.totalorder %s86, %s89
    %p98 = scmp.eq.s32.totalorder %s17, 3
    %p99 = por %p97, %p98
    %p100 = scmp.ne.s32.totalorder %s89, %s90
    %p101 = scmp.eq.s32.totalorder %s17, 0
    %p102 = por %p100, %p101
    %p103 = scmp.ne.s32.totalorder %s89, %s90
    %p104 = scmp.eq.s32.totalorder %s18, 3
    %p105 = por %p103, %p104
    %p107 = scmp.ne.s32.totalorder %s90, %s106
    %p108 = scmp.eq.s32.totalorder %s18, 0
    %p109 = por %p107, %p108
    %s110 = ssub.s32 %s20, %s27
    %p111 = scmp.eq.s32.totalorder %s110, 0
    %s113 = sadd.s32 %s112, 1
    %s114 = scalar_select %p111, %s112, %s113
    %p117 = pneg %p111
    %p118 = scmp.eq.s32.totalorder %s12, 3
    %p119 = por %p117, %p118
    %p120 = scmp.ne.s32.totalorder %s112, %s115
    %p121 = scmp.eq.s32.totalorder %s12, 0
    %p122 = por %p120, %p121
    %p123 = scmp.ne.s32.totalorder %s112, %s115
    %p124 = scmp.eq.s32.totalorder %s17, 3
    %p125 = por %p123, %p124
    %p126 = scmp.ne.s32.totalorder %s115, %s116
    %p127 = scmp.eq.s32.totalorder %s17, 0
    %p128 = por %p126, %p127
    %p129 = scmp.ne.s32.totalorder %s115, %s116
    %p130 = scmp.eq.s32.totalorder %s18, 3
    %p131 = por %p129, %p130
    %p133 = scmp.ne.s32.totalorder %s116, %s132
    %p134 = scmp.eq.s32.totalorder %s18, 0
    %p135 = por %p133, %p134
    %s136 = ssub.s32 %s20, %s27
    %p137 = scmp.eq.s32.totalorder %s136, 0
    %s139 = sadd.s32 %s138, 1
    %s140 = scalar_select %p137, %s138, %s139
    %p143 = pneg %p137
    %p144 = scmp.eq.s32.totalorder %s12, 3
    %p145 = por %p143, %p144
    %p146 = scmp.ne.s32.totalorder %s138, %s141
    %p147 = scmp.eq.s32.totalorder %s12, 0
    %p148 = por %p146, %p147
    %p149 = scmp.ne.s32.totalorder %s138, %s141
    %p150 = scmp.eq.s32.totalorder %s17, 3
    %p151 = por %p149, %p150
    %p152 = scmp.ne.s32.totalorder %s141, %s142
    %p153 = scmp.eq.s32.totalorder %s17, 0
    %p154 = por %p152, %p153
    %p155 = scmp.ne.s32.totalorder %s141, %s142
    %p156 = scmp.eq.s32.totalorder %s18, 3
    %p157 = por %p155, %p156
    %p159 = scmp.ne.s32.totalorder %s142, %s158
    %p160 = scmp.eq.s32.totalorder %s18, 0
    %p161 = por %p159, %p160
    %s163 = sadd.s32 %s162, 1
    %p166 = scmp.eq.s32.totalorder %s12, 3
    %p167 = scmp.ne.s32.totalorder %s162, %s164
    %p168 = scmp.eq.s32.totalorder %s12, 0
    %p169 = por %p167, %p168
    %p170 = scmp.ne.s32.totalorder %s162, %s164
    %p171 = scmp.eq.s32.totalorder %s17, 3
    %p172 = por %p170, %p171
    %p173 = scmp.ne.s32.totalorder %s164, %s165
    %p174 = scmp.eq.s32.totalorder %s17, 0
    %p175 = por %p173, %p174
    %p176 = scmp.ne.s32.totalorder %s164, %s165
    %p177 = scmp.eq.s32.totalorder %s18, 3
    %p178 = por %p176, %p177
    %p180 = scmp.ne.s32.totalorder %s165, %s179
    %p181 = scmp.eq.s32.totalorder %s18, 0
    %p182 = por %p180, %p181
    %s183 = ssub.s32 %s19, %s31
    %p184 = scmp.eq.s32.totalorder %s183, 0
    %s186 = sadd.s32 %s185, 1
    %s187 = scalar_select %p184, %s185, %s186
    %p190 = pneg %p184
    %p191 = scmp.eq.s32.totalorder %s12, 3
    %p192 = por %p190, %p191
    %p193 = scmp.ne.s32.totalorder %s185, %s188
    %p194 = scmp.eq.s32.totalorder %s12, 0
    %p195 = por %p193, %p194
    %p196 = scmp.ne.s32.totalorder %s185, %s188
    %p197 = scmp.eq.s32.totalorder %s17, 3
    %p198 = por %p196, %p197
    %p199 = scmp.ne.s32.totalorder %s188, %s189
    %p200 = scmp.eq.s32.totalorder %s17, 0
    %p201 = por %p199, %p200
    %p202 = scmp.ne.s32.totalorder %s188, %s189
    %p203 = scmp.eq.s32.totalorder %s18, 3
    %p204 = por %p202, %p203
    %p206 = scmp.ne.s32.totalorder %s189, %s205
    %p207 = scmp.eq.s32.totalorder %s18, 0
    %p208 = por %p206, %p207
    %p209 = scmp.le.s32.totalorder 1, %s12
    %p210 = scmp.lt.s32.totalorder %s12, 5
    %p211 = pnand %p209, %p210
    %p212 = pneg %p211
    // Predicated region
    $region9: #{ddno_forward.4} parent=5 // pred_check
      _
    $region10: #{ddno_forward.4} parent=5 // pred_check_branch
      %214 = sbr.rel (%p211) target = $region12
    $region11: #{ddno_forward.4} parent=5 // pred_region
      %s215 = ssub.s32 %s12, 1
      // Predicated region
      $region13: #{ddno_forward.4} parent=11 // pred_check
        %p216 = pneg %p175
      $region14: #{ddno_forward.4} parent=11 // pred_check_branch
        %218 = sbr.rel (%p216) target = $region16
      $region15: #{ddno_forward.4} parent=11 // pred_region
        _
      $region16: #{ddno_forward.4} parent=11 // pred_fallthru
        _
    $region12: #{ddno_forward.4} parent=5 // pred_fallthru
      _
    %p219 = scmp.lt.s32.totalorder %s12, 4
    // Predicated region
    $region17: #{ddno_forward.4} parent=5 // pred_check
      %p220 = pneg %p219
    $region18: #{ddno_forward.4} parent=5 // pred_check_branch
      %222 = sbr.rel (%p220) target = $region20
    $region19: #{ddno_forward.4} parent=5 // pred_region
      // Predicated region
      $region21: #{ddno_forward.4} parent=19 // pred_check
        %p223 = pneg %p44
      $region22: #{ddno_forward.4} parent=19 // pred_check_branch
        %225 = sbr.rel (%p223) target = $region24
      $region23: #{ddno_forward.4} parent=19 // pred_region
        %p226 = scmp.lt.s32.totalorder %s19, 1
        %s227 = scalar_select %p226, %s19, 1
        %s228 = smul.addr %s227, 32
        %s229 = smul.addr %s228, 8
        %s230 = scalar_lea.vmem %s0, %s229
      $region24: #{ddno_forward.4} parent=19 // pred_fallthru
        _
      // Predicated region
      $region25: #{ddno_forward.4} parent=19 // pred_check
        %p231 = pneg %p70
      $region26: #{ddno_forward.4} parent=19 // pred_check_branch
        %233 = sbr.rel (%p231) target = $region28
      $region27: #{ddno_forward.4} parent=19 // pred_region
        %p234 = scmp.lt.s32.totalorder %s20, 1
        %s235 = scalar_select %p234, %s20, 1
        %s236 = smul.addr %s235, 4
        %s237 = smul.addr %s236, 4
        %s238 = scalar_lea.vmem %s1, %s237
      $region28: #{ddno_forward.4} parent=19 // pred_fallthru
        _
      // Predicated region
      $region29: #{ddno_forward.4} parent=19 // pred_check
        %p239 = pneg %p96
      $region30: #{ddno_forward.4} parent=19 // pred_check_branch
        %241 = sbr.rel (%p239) target = $region32
      $region31: #{ddno_forward.4} parent=19 // pred_region
        %p242 = scmp.lt.s32.totalorder %s20, 1
        %s243 = scalar_select %p242, %s20, 1
        %s244 = scalar_lea.vmem %s2, %s243
      $region32: #{ddno_forward.4} parent=19 // pred_fallthru
        _
      // Predicated region
      $region33: #{ddno_forward.4} parent=19 // pred_check
        %p245 = pneg %p122
      $region34: #{ddno_forward.4} parent=19 // pred_check_branch
        %247 = sbr.rel (%p245) target = $region36
      $region35: #{ddno_forward.4} parent=19 // pred_region
        %p248 = scmp.lt.s32.totalorder %s20, 1
        %s249 = scalar_select %p248, %s20, 1
        %s250 = scalar_lea.vmem %s3, %s249
      $region36: #{ddno_forward.4} parent=19 // pred_fallthru
        _
      // Predicated region
      $region37: #{ddno_forward.4} parent=19 // pred_check
        %p251 = pneg %p148
      $region38: #{ddno_forward.4} parent=19 // pred_check_branch
        %253 = sbr.rel (%p251) target = $region40
      $region39: #{ddno_forward.4} parent=19 // pred_region
        %p254 = scmp.lt.s32.totalorder %s20, 1
        %s255 = scalar_select %p254, %s20, 1
        %s256 = scalar_lea.vmem %s4, %s255
      $region40: #{ddno_forward.4} parent=19 // pred_fallthru
        _
    $region20: #{ddno_forward.4} parent=5 // pred_fallthru
      _
    %p257 = scmp.le.s32.totalorder 1, %s12
    %p258 = scmp.lt.s32.totalorder %s12, 5
    %p259 = pnand %p257, %p258
    %p260 = pneg %p259
    // Predicated region
    $region41: #{ddno_forward.4} parent=5 // pred_check
      _
    $region42: #{ddno_forward.4} parent=5 // pred_check_branch
      %262 = sbr.rel (%p259) target = $region44
    $region43: #{ddno_forward.4} parent=5 // pred_region
      %s263 = ssub.s32 %s12, 1
      %p264 = scmp.lt.s32.totalorder %s21, 1
      %s265 = scalar_select %p264, %s21, 1
      %s266 = smul.addr %s265, 32
      %s267 = smul.addr %s266, 8
      %s268 = scalar_lea.vmem %s0, %s267
      %p269 = pneg %p50
      %p270 = pneg %p47
      %p271 = scmp.lt.s32.totalorder %s22, 1
      %s272 = scalar_select %p271, %s22, 1
      %s273 = smul.addr %s272, 4
      %s274 = smul.addr %s273, 4
      %s275 = scalar_lea.vmem %s1, %s274
      %p276 = pneg %p76
      %p277 = pneg %p73
      %p278 = scmp.lt.s32.totalorder %s22, 1
      %s279 = scalar_select %p278, %s22, 1
      %s280 = scalar_lea.vmem %s2, %s279
      %p281 = pneg %p102
      %p282 = pneg %p99
      %p283 = scmp.lt.s32.totalorder %s22, 1
      %s284 = scalar_select %p283, %s22, 1
      %s285 = scalar_lea.vmem %s3, %s284
      %p286 = pneg %p128
      %p287 = pneg %p125
      %p288 = scmp.lt.s32.totalorder %s22, 1
      %s289 = scalar_select %p288, %s22, 1
      %s290 = scalar_lea.vmem %s4, %s289
      %p291 = pneg %p154
      %p292 = pneg %p151
      %p293 = pneg %p175
      %p294 = pneg %p172
      %p295 = pneg %p201
      %p296 = pneg %p198
      %p297 = scmp.lt.s32.totalorder %s21, 1
      %s298 = scalar_select %p297, %s21, 1
      %s299 = smul.addr %s298, 32
      %s300 = smul.addr %s299, 8
      %s301 = scalar_lea.vmem %s6, %s300
      %p302 = scmp.lt.s32.totalorder %s21, 1
      %s303 = scalar_select %p302, %s21, 1
      %s304 = smul.addr %s303, 32
      %s305 = smul.addr %s304, 8
      %s306 = scalar_lea.vmem %s0, %s305
      %p307 = scmp.lt.s32.totalorder %s22, 1
      %s308 = scalar_select %p307, %s22, 1
      %s309 = smul.addr %s308, 4
      %s310 = smul.addr %s309, 4
      %s311 = scalar_lea.vmem %s1, %s310
      %p312 = scmp.lt.s32.totalorder %s22, 1
      %s313 = scalar_select %p312, %s22, 1
      %s314 = scalar_lea.vmem %s2, %s313
      %p315 = scmp.lt.s32.totalorder %s22, 1
      %s316 = scalar_select %p315, %s22, 1
      %s317 = scalar_lea.vmem %s3, %s316
      %p318 = scmp.lt.s32.totalorder %s22, 1
      %s319 = scalar_select %p318, %s22, 1
      %s320 = scalar_lea.vmem %s4, %s319
      %p321 = scmp.lt.s32.totalorder %s21, 1
      %s322 = scalar_select %p321, %s21, 1
      %s323 = smul.addr %s322, 32
      %s324 = smul.addr %s323, 8
      %s325 = scalar_lea.vmem %s6, %s324
      %p327 = scmp.eq.s32.totalorder %s22, 0
      // Predicated region
      $region45: #{ddno_forward.4} parent=43 // pred_check
        %p328 = pneg %p327
      $region46: #{ddno_forward.4} parent=43 // pred_check_branch
        %330 = sbr.rel (%p328) target = $region48
      $region47: #{ddno_forward.4} parent=43 // pred_region
        %v331 = vld [vmem:[%s306] sm:$0xff]
        %v332 = vld [vmem:[%s306 + $0x8] sm:$0xff]
        %v333 = vld [vmem:[%s306 + $0x10] sm:$0xff]
        %v334 = vld [vmem:[%s306 + $0x18] sm:$0xff]
        %v335 = vld [vmem:[%s306 + $0x20] sm:$0xff]
        %v336 = vld [vmem:[%s306 + $0x28] sm:$0xff]
        %v337 = vld [vmem:[%s306 + $0x30] sm:$0xff]
        %v338 = vld [vmem:[%s306 + $0x38] sm:$0xff]
        %v339 = vld [vmem:[%s306 + $0x40] sm:$0xff]
        %v340 = vld [vmem:[%s306 + $0x48] sm:$0xff]
        %v341 = vld [vmem:[%s306 + $0x50] sm:$0xff]
        %v342 = vld [vmem:[%s306 + $0x58] sm:$0xff]
        %v343 = vld [vmem:[%s306 + $0x60] sm:$0xff]
        %v344 = vld [vmem:[%s306 + $0x68] sm:$0xff]
        %v345 = vld [vmem:[%s306 + $0x70] sm:$0xff]
        %v346 = vld [vmem:[%s306 + $0x78] sm:$0xff]
        %v347 = vld [vmem:[%s306 + $0x80] sm:$0xff]
        %v348 = vld [vmem:[%s306 + $0x88] sm:$0xff]
        %v349 = vld [vmem:[%s306 + $0x90] sm:$0xff]
        %v350 = vld [vmem:[%s306 + $0x98] sm:$0xff]
        %v351 = vld [vmem:[%s306 + $0xa0] sm:$0xff]
        %v352 = vld [vmem:[%s306 + $0xa8] sm:$0xff]
        %v353 = vld [vmem:[%s306 + $0xb0] sm:$0xff]
        %v354 = vld [vmem:[%s306 + $0xb8] sm:$0xff]
        %v355 = vld [vmem:[%s306 + $0xc0] sm:$0xff]
        %v356 = vld [vmem:[%s306 + $0xc8] sm:$0xff]
        %v357 = vld [vmem:[%s306 + $0xd0] sm:$0xff]
        %v358 = vld [vmem:[%s306 + $0xd8] sm:$0xff]
        %v359 = vld [vmem:[%s306 + $0xe0] sm:$0xff]
        %v360 = vld [vmem:[%s306 + $0xe8] sm:$0xff]
        %v361 = vld [vmem:[%s306 + $0xf0] sm:$0xff]
        %v362 = vld [vmem:[%s306 + $0xf8] sm:$0xff]
        %vm363 = vcmask 261120
        %364 = vst.msk [vmem:[#allocation2] sm:$0xff] %vm363, %v331
        %365 = vst.msk [vmem:[#allocation2 + $0x8] sm:$0xff] %vm363, %v332
        %366 = vst.msk [vmem:[#allocation2 + $0x10] sm:$0xff] %vm363, %v333
        %367 = vst.msk [vmem:[#allocation2 + $0x18] sm:$0xff] %vm363, %v334
        %368 = vst.msk [vmem:[#allocation2 + $0x20] sm:$0xff] %vm363, %v335
        %369 = vst.msk [vmem:[#allocation2 + $0x28] sm:$0xff] %vm363, %v336
        %370 = vst.msk [vmem:[#allocation2 + $0x30] sm:$0xff] %vm363, %v337
        %371 = vst.msk [vmem:[#allocation2 + $0x38] sm:$0xff] %vm363, %v338
        %372 = vst.msk [vmem:[#allocation2 + $0x40] sm:$0xff] %vm363, %v339
        %373 = vst.msk [vmem:[#allocation2 + $0x48] sm:$0xff] %vm363, %v340
        %374 = vst.msk [vmem:[#allocation2 + $0x50] sm:$0xff] %vm363, %v341
        %375 = vst.msk [vmem:[#allocation2 + $0x58] sm:$0xff] %vm363, %v342
        %376 = vst.msk [vmem:[#allocation2 + $0x60] sm:$0xff] %vm363, %v343
        %377 = vst.msk [vmem:[#allocation2 + $0x68] sm:$0xff] %vm363, %v344
        %378 = vst.msk [vmem:[#allocation2 + $0x70] sm:$0xff] %vm363, %v345
        %379 = vst.msk [vmem:[#allocation2 + $0x78] sm:$0xff] %vm363, %v346
        %380 = vst.msk [vmem:[#allocation2 + $0x80] sm:$0xff] %vm363, %v347
        %381 = vst.msk [vmem:[#allocation2 + $0x88] sm:$0xff] %vm363, %v348
        %382 = vst.msk [vmem:[#allocation2 + $0x90] sm:$0xff] %vm363, %v349
        %383 = vst.msk [vmem:[#allocation2 + $0x98] sm:$0xff] %vm363, %v350
        %384 = vst.msk [vmem:[#allocation2 + $0xa0] sm:$0xff] %vm363, %v351
        %385 = vst.msk [vmem:[#allocation2 + $0xa8] sm:$0xff] %vm363, %v352
        %386 = vst.msk [vmem:[#allocation2 + $0xb0] sm:$0xff] %vm363, %v353
        %387 = vst.msk [vmem:[#allocation2 + $0xb8] sm:$0xff] %vm363, %v354
        %388 = vst.msk [vmem:[#allocation2 + $0xc0] sm:$0xff] %vm363, %v355
        %389 = vst.msk [vmem:[#allocation2 + $0xc8] sm:$0xff] %vm363, %v356
        %390 = vst.msk [vmem:[#allocation2 + $0xd0] sm:$0xff] %vm363, %v357
        %391 = vst.msk [vmem:[#allocation2 + $0xd8] sm:$0xff] %vm363, %v358
        %392 = vst.msk [vmem:[#allocation2 + $0xe0] sm:$0xff] %vm363, %v359
        %393 = vst.msk [vmem:[#allocation2 + $0xe8] sm:$0xff] %vm363, %v360
        %394 = vst.msk [vmem:[#allocation2 + $0xf0] sm:$0xff] %vm363, %v361
        %395 = vst.msk [vmem:[#allocation2 + $0xf8] sm:$0xff] %vm363, %v362
      $region48: #{ddno_forward.4} parent=43 // pred_fallthru
        _
      %v396 = vld [vmem:[#allocation2] sm:$0xff]
      %v397 = vld [vmem:[#allocation2 + $0x8] sm:$0xff]
      %v398 = vld [vmem:[#allocation2 + $0x10] sm:$0xff]
      %v399 = vld [vmem:[#allocation2 + $0x18] sm:$0xff]
      %v400 = vld [vmem:[#allocation2 + $0x20] sm:$0xff]
      %v401 = vld [vmem:[#allocation2 + $0x28] sm:$0xff]
      %v402 = vld [vmem:[#allocation2 + $0x30] sm:$0xff]
      %v403 = vld [vmem:[#allocation2 + $0x38] sm:$0xff]
      %v404 = vld [vmem:[#allocation2 + $0x40] sm:$0xff]
      %v405 = vld [vmem:[#allocation2 + $0x48] sm:$0xff]
      %v406 = vld [vmem:[#allocation2 + $0x50] sm:$0xff]
      %v407 = vld [vmem:[#allocation2 + $0x58] sm:$0xff]
      %v408 = vld [vmem:[#allocation2 + $0x60] sm:$0xff]
      %v409 = vld [vmem:[#allocation2 + $0x68] sm:$0xff]
      %v410 = vld [vmem:[#allocation2 + $0x70] sm:$0xff]
      %v411 = vld [vmem:[#allocation2 + $0x78] sm:$0xff]
      %v412 = vld [vmem:[#allocation2 + $0x80] sm:$0xff]
      %v413 = vld [vmem:[#allocation2 + $0x88] sm:$0xff]
      %v414 = vld [vmem:[#allocation2 + $0x90] sm:$0xff]
      %v415 = vld [vmem:[#allocation2 + $0x98] sm:$0xff]
      %v416 = vld [vmem:[#allocation2 + $0xa0] sm:$0xff]
      %v417 = vld [vmem:[#allocation2 + $0xa8] sm:$0xff]
      %v418 = vld [vmem:[#allocation2 + $0xb0] sm:$0xff]
      %v419 = vld [vmem:[#allocation2 + $0xb8] sm:$0xff]
      %v420 = vld [vmem:[#allocation2 + $0xc0] sm:$0xff]
      %v421 = vld [vmem:[#allocation2 + $0xc8] sm:$0xff]
      %v422 = vld [vmem:[#allocation2 + $0xd0] sm:$0xff]
      %v423 = vld [vmem:[#allocation2 + $0xd8] sm:$0xff]
      %v424 = vld [vmem:[#allocation2 + $0xe0] sm:$0xff]
      %v425 = vld [vmem:[#allocation2 + $0xe8] sm:$0xff]
      %v426 = vld [vmem:[#allocation2 + $0xf0] sm:$0xff]
      %v427 = vld [vmem:[#allocation2 + $0xf8] sm:$0xff]
      %v428 = vpack.c.bf16 %v397, %v396
      %v429 = vpack.c.bf16 %v399, %v398
      %v430 = vpack.c.bf16 %v401, %v400
      %v431 = vpack.c.bf16 %v403, %v402
      %v432 = vpack.c.bf16 %v405, %v404
      %v433 = vpack.c.bf16 %v407, %v406
      %v434 = vpack.c.bf16 %v409, %v408
      %v435 = vpack.c.bf16 %v411, %v410
      %v436 = vpack.c.bf16 %v413, %v412
      %v437 = vpack.c.bf16 %v415, %v414
      %v438 = vpack.c.bf16 %v417, %v416
      %v439 = vpack.c.bf16 %v419, %v418
      %v440 = vpack.c.bf16 %v421, %v420
      %v441 = vpack.c.bf16 %v423, %v422
      %v442 = vpack.c.bf16 %v425, %v424
      %v443 = vpack.c.bf16 %v427, %v426
      %v444 = vld [vmem:[%s311] sm:$0xf]
      %v445 = vld [vmem:[%s311 + $0x4] sm:$0xf]
      %v446 = vld [vmem:[%s311 + $0x8] sm:$0xf]
      %v447 = vld [vmem:[%s311 + $0xc] sm:$0xf]
      %v452 = vunpack.c.l.b16 %v444
      %v453 = vunpack.c.l.b16 %v445
      %v454 = vunpack.c.l.b16 %v446
      %v455 = vunpack.c.l.b16 %v447
      %v456 = vpack.c.b16 %v453, %v452
      %v457 = vpack.c.b16 %v455, %v454
      %vm460 = vcmask 261120
      %v462 = vsel %vm460, %v428, 0
      %v465 = vsel %vm460, %v429, 0
      %v468 = vsel %vm460, %v430, 0
      %v471 = vsel %vm460, %v431, 0
      %v474 = vsel %vm460, %v432, 0
      %v477 = vsel %vm460, %v433, 0
      %v480 = vsel %vm460, %v434, 0
      %v483 = vsel %vm460, %v435, 0
      %v486 = vsel %vm460, %v436, 0
      %v489 = vsel %vm460, %v437, 0
      %v492 = vsel %vm460, %v438, 0
      %v495 = vsel %vm460, %v439, 0
      %v498 = vsel %vm460, %v440, 0
      %v501 = vsel %vm460, %v441, 0
      %v504 = vsel %vm460, %v442, 0
      %v507 = vsel %vm460, %v443, 0
      %509 = vmatpush.bf16.msra.mxu0 0
      %510 = vmatpush.bf16.msra.mxu0 0
      %511 = vmatpush.bf16.msra.mxu0 0
      %512 = vmatpush.bf16.msra.mxu0 0
      %513 = vmatpush.bf16.msra.mxu0 0
      %514 = vmatpush.bf16.msra.mxu0 0
      %515 = vmatpush.bf16.msra.mxu0 %v457
      %516 = vmatpush.bf16.msra.mxu0 %v456
      %517 = vmatmul.bf16.gmra.mxu0 %v462
      %v518 = vpop.f32.mrf.mxu0
      %v519 = vadd.f32 0.0, %v518
      %v520 = vpop.f32.mrf.mxu0
      %v521 = vadd.f32 0.0, %v520
      %522 = vmatmul.bf16.gmra.mxu0 %v465
      %v523 = vpop.f32.mrf.mxu0
      %v524 = vadd.f32 0.0, %v523
      %v525 = vpop.f32.mrf.mxu0
      %v526 = vadd.f32 0.0, %v525
      %527 = vmatmul.bf16.gmra.mxu0 %v468
      %v528 = vpop.f32.mrf.mxu0
      %v529 = vadd.f32 0.0, %v528
      %v530 = vpop.f32.mrf.mxu0
      %v531 = vadd.f32 0.0, %v530
      %532 = vmatmul.bf16.gmra.mxu0 %v471
      %v533 = vpop.f32.mrf.mxu0
      %v534 = vadd.f32 0.0, %v533
      %v535 = vpop.f32.mrf.mxu0
      %v536 = vadd.f32 0.0, %v535
      %537 = vmatmul.bf16.gmra.mxu0 %v474
      %v538 = vpop.f32.mrf.mxu0
      %v539 = vadd.f32 0.0, %v538
      %v540 = vpop.f32.mrf.mxu0
      %v541 = vadd.f32 0.0, %v540
      %542 = vmatmul.bf16.gmra.mxu0 %v477
      %v543 = vpop.f32.mrf.mxu0
      %v544 = vadd.f32 0.0, %v543
      %v545 = vpop.f32.mrf.mxu0
      %v546 = vadd.f32 0.0, %v545
      %547 = vmatmul.bf16.gmra.mxu0 %v480
      %v548 = vpop.f32.mrf.mxu0
      %v549 = vadd.f32 0.0, %v548
      %v550 = vpop.f32.mrf.mxu0
      %v551 = vadd.f32 0.0, %v550
      %552 = vmatmul.bf16.gmra.mxu0 %v483
      %v553 = vpop.f32.mrf.mxu0
      %v554 = vadd.f32 0.0, %v553
      %v555 = vpop.f32.mrf.mxu0
      %v556 = vadd.f32 0.0, %v555
      %557 = vmatmul.bf16.gmra.mxu0 %v486
      %v558 = vpop.f32.mrf.mxu0
      %v559 = vadd.f32 0.0, %v558
      %v560 = vpop.f32.mrf.mxu0
      %v561 = vadd.f32 0.0, %v560
      %562 = vmatmul.bf16.gmra.mxu0 %v489
      %v563 = vpop.f32.mrf.mxu0
      %v564 = vadd.f32 0.0, %v563
      %v565 = vpop.f32.mrf.mxu0
      %v566 = vadd.f32 0.0, %v565
      %567 = vmatmul.bf16.gmra.mxu0 %v492
      %v568 = vpop.f32.mrf.mxu0
      %v569 = vadd.f32 0.0, %v568
      %v570 = vpop.f32.mrf.mxu0
      %v571 = vadd.f32 0.0, %v570
      %572 = vmatmul.bf16.gmra.mxu0 %v495
      %v573 = vpop.f32.mrf.mxu0
      %v574 = vadd.f32 0.0, %v573
      %v575 = vpop.f32.mrf.mxu0
      %v576 = vadd.f32 0.0, %v575
      %577 = vmatmul.bf16.gmra.mxu0 %v498
      %v578 = vpop.f32.mrf.mxu0
      %v579 = vadd.f32 0.0, %v578
      %v580 = vpop.f32.mrf.mxu0
      %v581 = vadd.f32 0.0, %v580
      %582 = vmatmul.bf16.gmra.mxu0 %v501
      %v583 = vpop.f32.mrf.mxu0
      %v584 = vadd.f32 0.0, %v583
      %v585 = vpop.f32.mrf.mxu0
      %v586 = vadd.f32 0.0, %v585
      %587 = vmatmul.bf16.gmra.mxu0 %v504
      %v588 = vpop.f32.mrf.mxu0
      %v589 = vadd.f32 0.0, %v588
      %v590 = vpop.f32.mrf.mxu0
      %v591 = vadd.f32 0.0, %v590
      %592 = vmatmul.bf16.gmra.mxu0 %v507
      %v593 = vpop.f32.mrf.mxu0
      %v594 = vadd.f32 0.0, %v593
      %v595 = vpop.f32.mrf.mxu0
      %v596 = vadd.f32 0.0, %v595
      %597 = vdwg.mxu0
      %v598 = vld [vmem:[%s314] sm:$0x1]
      %v600 = vperm.slane %v598, 0
      %v602 = vadd.f32 %v519, %v600
      %v603 = vadd.f32 %v521, %v600
      %v604 = vadd.f32 %v524, %v600
      %v605 = vadd.f32 %v526, %v600
      %v606 = vadd.f32 %v529, %v600
      %v607 = vadd.f32 %v531, %v600
      %v608 = vadd.f32 %v534, %v600
      %v609 = vadd.f32 %v536, %v600
      %v610 = vadd.f32 %v539, %v600
      %v611 = vadd.f32 %v541, %v600
      %v612 = vadd.f32 %v544, %v600
      %v613 = vadd.f32 %v546, %v600
      %v614 = vadd.f32 %v549, %v600
      %v615 = vadd.f32 %v551, %v600
      %v616 = vadd.f32 %v554, %v600
      %v617 = vadd.f32 %v556, %v600
      %v618 = vadd.f32 %v559, %v600
      %v619 = vadd.f32 %v561, %v600
      %v620 = vadd.f32 %v564, %v600
      %v621 = vadd.f32 %v566, %v600
      %v622 = vadd.f32 %v569, %v600
      %v623 = vadd.f32 %v571, %v600
      %v624 = vadd.f32 %v574, %v600
      %v625 = vadd.f32 %v576, %v600
      %v626 = vadd.f32 %v579, %v600
      %v627 = vadd.f32 %v581, %v600
      %v628 = vadd.f32 %v584, %v600
      %v629 = vadd.f32 %v586, %v600
      %v630 = vadd.f32 %v589, %v600
      %v631 = vadd.f32 %v591, %v600
      %v632 = vadd.f32 %v594, %v600
      %v633 = vadd.f32 %v596, %v600
      %v634 = vsel %vm460, %v602, 0.0
      %v635 = vsel %vm460, %v603, 0.0
      %v636 = vadd.f32 %v634, %v635
      %v637 = vsel %vm460, %v604, 0.0
      %v638 = vadd.f32 %v636, %v637
      %v639 = vsel %vm460, %v605, 0.0
      %v640 = vadd.f32 %v638, %v639
      %v641 = vsel %vm460, %v606, 0.0
      %v642 = vadd.f32 %v640, %v641
      %v643 = vsel %vm460, %v607, 0.0
      %v644 = vadd.f32 %v642, %v643
      %v645 = vsel %vm460, %v608, 0.0
      %v646 = vadd.f32 %v644, %v645
      %v647 = vsel %vm460, %v609, 0.0
      %v648 = vadd.f32 %v646, %v647
      %v649 = vsel %vm460, %v610, 0.0
      %v650 = vadd.f32 %v648, %v649
      %v651 = vsel %vm460, %v611, 0.0
      %v652 = vadd.f32 %v650, %v651
      %v653 = vsel %vm460, %v612, 0.0
      %v654 = vadd.f32 %v652, %v653
      %v655 = vsel %vm460, %v613, 0.0
      %v656 = vadd.f32 %v654, %v655
      %v657 = vsel %vm460, %v614, 0.0
      %v658 = vadd.f32 %v656, %v657
      %v659 = vsel %vm460, %v615, 0.0
      %v660 = vadd.f32 %v658, %v659
      %v661 = vsel %vm460, %v616, 0.0
      %v662 = vadd.f32 %v660, %v661
      %v663 = vsel %vm460, %v617, 0.0
      %v664 = vadd.f32 %v662, %v663
      %v665 = vsel %vm460, %v618, 0.0
      %v666 = vadd.f32 %v664, %v665
      %v667 = vsel %vm460, %v619, 0.0
      %v668 = vadd.f32 %v666, %v667
      %v669 = vsel %vm460, %v620, 0.0
      %v670 = vadd.f32 %v668, %v669
      %v671 = vsel %vm460, %v621, 0.0
      %v672 = vadd.f32 %v670, %v671
      %v673 = vsel %vm460, %v622, 0.0
      %v674 = vadd.f32 %v672, %v673
      %v675 = vsel %vm460, %v623, 0.0
      %v676 = vadd.f32 %v674, %v675
      %v677 = vsel %vm460, %v624, 0.0
      %v678 = vadd.f32 %v676, %v677
      %v679 = vsel %vm460, %v625, 0.0
      %v680 = vadd.f32 %v678, %v679
      %v681 = vsel %vm460, %v626, 0.0
      %v682 = vadd.f32 %v680, %v681
      %v683 = vsel %vm460, %v627, 0.0
      %v684 = vadd.f32 %v682, %v683
      %v685 = vsel %vm460, %v628, 0.0
      %v686 = vadd.f32 %v684, %v685
      %v687 = vsel %vm460, %v629, 0.0
      %v688 = vadd.f32 %v686, %v687
      %v689 = vsel %vm460, %v630, 0.0
      %v690 = vadd.f32 %v688, %v689
      %v691 = vsel %vm460, %v631, 0.0
      %v692 = vadd.f32 %v690, %v691
      %v693 = vsel %vm460, %v632, 0.0
      %v694 = vadd.f32 %v692, %v693
      %v695 = vsel %vm460, %v633, 0.0
      %v696 = vadd.f32 %v694, %v695
      %v697 = vrot.slane %v696, 4
      %v698 = vadd.f32 %v696, %v697
      %v699 = vrot.slane %v698, 2
      %v700 = vadd.f32 %v698, %v699
      %v701 = vrot.slane %v700, 1
      %v702 = vadd.f32 %v700, %v701
      %v703 = vld [vmem:[%s5] sm:$0xff]
      %v704 = vld [vmem:[%s5 + $0x8] sm:$0xff]
      %v705 = vld [vmem:[%s5 + $0x10] sm:$0xff]
      %v706 = vld [vmem:[%s5 + $0x18] sm:$0xff]
      %v708 = vsel %vm460, %v702, 0
      %710 = vmatpush.msra.mxu0 0.0
      %711 = vmatpush.msra.mxu0 0.0
      %712 = vmatpush.msra.mxu0 0.0
      %713 = vmatpush.msra.mxu0 0.0
      %714 = vmatpush.msra.mxu0 0.0
      %715 = vmatpush.msra.mxu0 0.0
      %716 = vmatpush.msra.mxu0 0.0
      %717 = vmatpush.msra.mxu0 0.0
      %718 = vmatpush.msra.mxu0 0.0
      %719 = vmatpush.msra.mxu0 0.0
      %720 = vmatpush.msra.mxu0 0.0
      %721 = vmatpush.msra.mxu0 0.0
      %722 = vmatpush.msra.mxu0 %v706
      %723 = vmatpush.msra.mxu0 %v705
      %724 = vmatpush.msra.mxu0 %v704
      %725 = vmatpush.msra.mxu0 %v703
      %726 = vmatmul.f32.gmra.mxu0 %v708
      %v727 = vpop.f32.mrf.mxu0
      %v728 = vadd.f32 0.0, %v727
      %729 = vdwg.mxu0
      %v730 = vmul.f32 %v728, 0.00048828125
      %v731 = vperm.slane %v730, 0
      %v732 = vsub.f32 %v602, %v731
      %v733 = vsub.f32 %v603, %v731
      %v734 = vsub.f32 %v604, %v731
      %v735 = vsub.f32 %v605, %v731
      %v736 = vsub.f32 %v606, %v731
      %v737 = vsub.f32 %v607, %v731
      %v738 = vsub.f32 %v608, %v731
      %v739 = vsub.f32 %v609, %v731
      %v740 = vsub.f32 %v610, %v731
      %v741 = vsub.f32 %v611, %v731
      %v742 = vsub.f32 %v612, %v731
      %v743 = vsub.f32 %v613, %v731
      %v744 = vsub.f32 %v614, %v731
      %v745 = vsub.f32 %v615, %v731
      %v746 = vsub.f32 %v616, %v731
      %v747 = vsub.f32 %v617, %v731
      %v748 = vsub.f32 %v618, %v731
      %v749 = vsub.f32 %v619, %v731
      %v750 = vsub.f32 %v620, %v731
      %v751 = vsub.f32 %v621, %v731
      %v752 = vsub.f32 %v622, %v731
      %v753 = vsub.f32 %v623, %v731
      %v754 = vsub.f32 %v624, %v731
      %v755 = vsub.f32 %v625, %v731
      %v756 = vsub.f32 %v626, %v731
      %v757 = vsub.f32 %v627, %v731
      %v758 = vsub.f32 %v628, %v731
      %v759 = vsub.f32 %v629, %v731
      %v760 = vsub.f32 %v630, %v731
      %v761 = vsub.f32 %v631, %v731
      %v762 = vsub.f32 %v632, %v731
      %v763 = vsub.f32 %v633, %v731
      %v764 = vmul.f32 %v732, %v732
      %v765 = vmul.f32 %v733, %v733
      %v766 = vmul.f32 %v734, %v734
      %v767 = vmul.f32 %v735, %v735
      %v768 = vmul.f32 %v736, %v736
      %v769 = vmul.f32 %v737, %v737
      %v770 = vmul.f32 %v738, %v738
      %v771 = vmul.f32 %v739, %v739
      %v772 = vmul.f32 %v740, %v740
      %v773 = vmul.f32 %v741, %v741
      %v774 = vmul.f32 %v742, %v742
      %v775 = vmul.f32 %v743, %v743
      %v776 = vmul.f32 %v744, %v744
      %v777 = vmul.f32 %v745, %v745
      %v778 = vmul.f32 %v746, %v746
      %v779 = vmul.f32 %v747, %v747
      %v780 = vmul.f32 %v748, %v748
      %v781 = vmul.f32 %v749, %v749
      %v782 = vmul.f32 %v750, %v750
      %v783 = vmul.f32 %v751, %v751
      %v784 = vmul.f32 %v752, %v752
      %v785 = vmul.f32 %v753, %v753
      %v786 = vmul.f32 %v754, %v754
      %v787 = vmul.f32 %v755, %v755
      %v788 = vmul.f32 %v756, %v756
      %v789 = vmul.f32 %v757, %v757
      %v790 = vmul.f32 %v758, %v758
      %v791 = vmul.f32 %v759, %v759
      %v792 = vmul.f32 %v760, %v760
      %v793 = vmul.f32 %v761, %v761
      %v794 = vmul.f32 %v762, %v762
      %v795 = vmul.f32 %v763, %v763
      %v796 = vsel %vm460, %v764, 0.0
      %v797 = vsel %vm460, %v765, 0.0
      %v798 = vadd.f32 %v796, %v797
      %v799 = vsel %vm460, %v766, 0.0
      %v800 = vadd.f32 %v798, %v799
      %v801 = vsel %vm460, %v767, 0.0
      %v802 = vadd.f32 %v800, %v801
      %v803 = vsel %vm460, %v768, 0.0
      %v804 = vadd.f32 %v802, %v803
      %v805 = vsel %vm460, %v769, 0.0
      %v806 = vadd.f32 %v804, %v805
      %v807 = vsel %vm460, %v770, 0.0
      %v808 = vadd.f32 %v806, %v807
      %v809 = vsel %vm460, %v771, 0.0
      %v810 = vadd.f32 %v808, %v809
      %v811 = vsel %vm460, %v772, 0.0
      %v812 = vadd.f32 %v810, %v811
      %v813 = vsel %vm460, %v773, 0.0
      %v814 = vadd.f32 %v812, %v813
      %v815 = vsel %vm460, %v774, 0.0
      %v816 = vadd.f32 %v814, %v815
      %v817 = vsel %vm460, %v775, 0.0
      %v818 = vadd.f32 %v816, %v817
      %v819 = vsel %vm460, %v776, 0.0
      %v820 = vadd.f32 %v818, %v819
      %v821 = vsel %vm460, %v777, 0.0
      %v822 = vadd.f32 %v820, %v821
      %v823 = vsel %vm460, %v778, 0.0
      %v824 = vadd.f32 %v822, %v823
      %v825 = vsel %vm460, %v779, 0.0
      %v826 = vadd.f32 %v824, %v825
      %v827 = vsel %vm460, %v780, 0.0
      %v828 = vadd.f32 %v826, %v827
      %v829 = vsel %vm460, %v781, 0.0
      %v830 = vadd.f32 %v828, %v829
      %v831 = vsel %vm460, %v782, 0.0
      %v832 = vadd.f32 %v830, %v831
      %v833 = vsel %vm460, %v783, 0.0
      %v834 = vadd.f32 %v832, %v833
      %v835 = vsel %vm460, %v784, 0.0
      %v836 = vadd.f32 %v834, %v835
      %v837 = vsel %vm460, %v785, 0.0
      %v838 = vadd.f32 %v836, %v837
      %v839 = vsel %vm460, %v786, 0.0
      %v840 = vadd.f32 %v838, %v839
      %v841 = vsel %vm460, %v787, 0.0
      %v842 = vadd.f32 %v840, %v841
      %v843 = vsel %vm460, %v788, 0.0
      %v844 = vadd.f32 %v842, %v843
      %v845 = vsel %vm460, %v789, 0.0
      %v846 = vadd.f32 %v844, %v845
      %v847 = vsel %vm460, %v790, 0.0
      %v848 = vadd.f32 %v846, %v847
      %v849 = vsel %vm460, %v791, 0.0
      %v850 = vadd.f32 %v848, %v849
      %v851 = vsel %vm460, %v792, 0.0
      %v852 = vadd.f32 %v850, %v851
      %v853 = vsel %vm460, %v793, 0.0
      %v854 = vadd.f32 %v852, %v853
      %v855 = vsel %vm460, %v794, 0.0
      %v856 = vadd.f32 %v854, %v855
      %v857 = vsel %vm460, %v795, 0.0
      %v858 = vadd.f32 %v856, %v857
      %v859 = vrot.slane %v858, 4
      %v860 = vadd.f32 %v858, %v859
      %v861 = vrot.slane %v860, 2
      %v862 = vadd.f32 %v860, %v861
      %v863 = vrot.slane %v862, 1
      %v864 = vadd.f32 %v862, %v863
      %v866 = vsel %vm460, %v864, 0
      %868 = vmatpush.msra.mxu0 0.0
      %869 = vmatpush.msra.mxu0 0.0
      %870 = vmatpush.msra.mxu0 0.0
      %871 = vmatpush.msra.mxu0 0.0
      %872 = vmatpush.msra.mxu0 0.0
      %873 = vmatpush.msra.mxu0 0.0
      %874 = vmatpush.msra.mxu0 0.0
      %875 = vmatpush.msra.mxu0 0.0
      %876 = vmatpush.msra.mxu0 0.0
      %877 = vmatpush.msra.mxu0 0.0
      %878 = vmatpush.msra.mxu0 0.0
      %879 = vmatpush.msra.mxu0 0.0
      %880 = vmatpush.msra.mxu0 %v706
      %881 = vmatpush.msra.mxu0 %v705
      %882 = vmatpush.msra.mxu0 %v704
      %883 = vmatpush.msra.mxu0 %v703
      %884 = vmatmul.f32.gmra.mxu0 %v866
      %v885 = vpop.f32.mrf.mxu0
      %v886 = vadd.f32 0.0, %v885
      %887 = vdwg.mxu0
      %v888 = vmul.f32 %v886, 0.00048828125
      %v889 = vadd.f32 %v888, 1e-05
      %v890 = vrsqrt.pop %v889
      %v891 = vmul.f32 %v890, %v889
      %v892 = vmul.f32 %v891, %v890
      %v893 = vmul.f32 0.5, %v892
      %v894 = vsub.f32 1.5, %v893
      %v895 = vmul.f32 %v890, %v894
      %vm896 = vweird.f32 %v889
      %vm897 = vweird.f32 %v890
      %vm898 = vmor %vm896, %vm897
      %v899 = vsel %vm898, %v890, %v895
      %v900 = vperm.slane %v899, 0
      %v901 = vmul.f32 %v732, %v900
      %v902 = vmul.f32 %v733, %v900
      %v903 = vmul.f32 %v734, %v900
      %v904 = vmul.f32 %v735, %v900
      %v905 = vmul.f32 %v736, %v900
      %v906 = vmul.f32 %v737, %v900
      %v907 = vmul.f32 %v738, %v900
      %v908 = vmul.f32 %v739, %v900
      %v909 = vmul.f32 %v740, %v900
      %v910 = vmul.f32 %v741, %v900
      %v911 = vmul.f32 %v742, %v900
      %v912 = vmul.f32 %v743, %v900
      %v913 = vmul.f32 %v744, %v900
      %v914 = vmul.f32 %v745, %v900
      %v915 = vmul.f32 %v746, %v900
      %v916 = vmul.f32 %v747, %v900
      %v917 = vmul.f32 %v748, %v900
      %v918 = vmul.f32 %v749, %v900
      %v919 = vmul.f32 %v750, %v900
      %v920 = vmul.f32 %v751, %v900
      %v921 = vmul.f32 %v752, %v900
      %v922 = vmul.f32 %v753, %v900
      %v923 = vmul.f32 %v754, %v900
      %v924 = vmul.f32 %v755, %v900
      %v925 = vmul.f32 %v756, %v900
      %v926 = vmul.f32 %v757, %v900
      %v927 = vmul.f32 %v758, %v900
      %v928 = vmul.f32 %v759, %v900
      %v929 = vmul.f32 %v760, %v900
      %v930 = vmul.f32 %v761, %v900
      %v931 = vmul.f32 %v762, %v900
      %v932 = vmul.f32 %v763, %v900
      %v933 = vld [vmem:[%s317] sm:$0x1]
      %v935 = vperm.slane %v933, 0
      %v937 = vmul.f32 %v901, %v935
      %v938 = vmul.f32 %v902, %v935
      %v939 = vmul.f32 %v903, %v935
      %v940 = vmul.f32 %v904, %v935
      %v941 = vmul.f32 %v905, %v935
      %v942 = vmul.f32 %v906, %v935
      %v943 = vmul.f32 %v907, %v935
      %v944 = vmul.f32 %v908, %v935
      %v945 = vmul.f32 %v909, %v935
      %v946 = vmul.f32 %v910, %v935
      %v947 = vmul.f32 %v911, %v935
      %v948 = vmul.f32 %v912, %v935
      %v949 = vmul.f32 %v913, %v935
      %v950 = vmul.f32 %v914, %v935
      %v951 = vmul.f32 %v915, %v935
      %v952 = vmul.f32 %v916, %v935
      %v953 = vmul.f32 %v917, %v935
      %v954 = vmul.f32 %v918, %v935
      %v955 = vmul.f32 %v919, %v935
      %v956 = vmul.f32 %v920, %v935
      %v957 = vmul.f32 %v921, %v935
      %v958 = vmul.f32 %v922, %v935
      %v959 = vmul.f32 %v923, %v935
      %v960 = vmul.f32 %v924, %v935
      %v961 = vmul.f32 %v925, %v935
      %v962 = vmul.f32 %v926, %v935
      %v963 = vmul.f32 %v927, %v935
      %v964 = vmul.f32 %v928, %v935
      %v965 = vmul.f32 %v929, %v935
      %v966 = vmul.f32 %v930, %v935
      %v967 = vmul.f32 %v931, %v935
      %v968 = vmul.f32 %v932, %v935
      %v969 = vld [vmem:[%s320] sm:$0x1]
      %v971 = vperm.slane %v969, 0
      %v973 = vadd.f32 %v937, %v971
      %v974 = vadd.f32 %v938, %v971
      %v975 = vadd.f32 %v939, %v971
      %v976 = vadd.f32 %v940, %v971
      %v977 = vadd.f32 %v941, %v971
      %v978 = vadd.f32 %v942, %v971
      %v979 = vadd.f32 %v943, %v971
      %v980 = vadd.f32 %v944, %v971
      %v981 = vadd.f32 %v945, %v971
      %v982 = vadd.f32 %v946, %v971
      %v983 = vadd.f32 %v947, %v971
      %v984 = vadd.f32 %v948, %v971
      %v985 = vadd.f32 %v949, %v971
      %v986 = vadd.f32 %v950, %v971
      %v987 = vadd.f32 %v951, %v971
      %v988 = vadd.f32 %v952, %v971
      %v989 = vadd.f32 %v953, %v971
      %v990 = vadd.f32 %v954, %v971
      %v991 = vadd.f32 %v955, %v971
      %v992 = vadd.f32 %v956, %v971
      %v993 = vadd.f32 %v957, %v971
      %v994 = vadd.f32 %v958, %v971
      %v995 = vadd.f32 %v959, %v971
      %v996 = vadd.f32 %v960, %v971
      %v997 = vadd.f32 %v961, %v971
      %v998 = vadd.f32 %v962, %v971
      %v999 = vadd.f32 %v963, %v971
      %v1000 = vadd.f32 %v964, %v971
      %v1001 = vadd.f32 %v965, %v971
      %v1002 = vadd.f32 %v966, %v971
      %v1003 = vadd.f32 %v967, %v971
      %v1004 = vadd.f32 %v968, %v971
      %v1005 = vmul.f32 %v973, 0.5
      %v1006 = vmul.f32 %v974, 0.5
      %v1007 = vmul.f32 %v975, 0.5
      %v1008 = vmul.f32 %v976, 0.5
      %v1009 = vmul.f32 %v977, 0.5
      %v1010 = vmul.f32 %v978, 0.5
      %v1011 = vmul.f32 %v979, 0.5
      %v1012 = vmul.f32 %v980, 0.5
      %v1013 = vmul.f32 %v981, 0.5
      %v1014 = vmul.f32 %v982, 0.5
      %v1015 = vmul.f32 %v983, 0.5
      %v1016 = vmul.f32 %v984, 0.5
      %v1017 = vmul.f32 %v985, 0.5
      %v1018 = vmul.f32 %v986, 0.5
      %v1019 = vmul.f32 %v987, 0.5
      %v1020 = vmul.f32 %v988, 0.5
      %v1021 = vmul.f32 %v989, 0.5
      %v1022 = vmul.f32 %v990, 0.5
      %v1023 = vmul.f32 %v991, 0.5
      %v1024 = vmul.f32 %v992, 0.5
      %v1025 = vmul.f32 %v993, 0.5
      %v1026 = vmul.f32 %v994, 0.5
      %v1027 = vmul.f32 %v995, 0.5
      %v1028 = vmul.f32 %v996, 0.5
      %v1029 = vmul.f32 %v997, 0.5
      %v1030 = vmul.f32 %v998, 0.5
      %v1031 = vmul.f32 %v999, 0.5
      %v1032 = vmul.f32 %v1000, 0.5
      %v1033 = vmul.f32 %v1001, 0.5
      %v1034 = vmul.f32 %v1002, 0.5
      %v1035 = vmul.f32 %v1003, 0.5
      %v1036 = vmul.f32 %v1004, 0.5
      %v1037 = vmul.f32 %v973, 0.70710677
      %v1038 = vmul.f32 %v974, 0.70710677
      %v1039 = vmul.f32 %v975, 0.70710677
      %v1040 = vmul.f32 %v976, 0.70710677
      %v1041 = vmul.f32 %v977, 0.70710677
      %v1042 = vmul.f32 %v978, 0.70710677
      %v1043 = vmul.f32 %v979, 0.70710677
      %v1044 = vmul.f32 %v980, 0.70710677
      %v1045 = vmul.f32 %v981, 0.70710677
      %v1046 = vmul.f32 %v982, 0.70710677
      %v1047 = vmul.f32 %v983, 0.70710677
      %v1048 = vmul.f32 %v984, 0.70710677
      %v1049 = vmul.f32 %v985, 0.70710677
      %v1050 = vmul.f32 %v986, 0.70710677
      %v1051 = vmul.f32 %v987, 0.70710677
      %v1052 = vmul.f32 %v988, 0.70710677
      %v1053 = vmul.f32 %v989, 0.70710677
      %v1054 = vmul.f32 %v990, 0.70710677
      %v1055 = vmul.f32 %v991, 0.70710677
      %v1056 = vmul.f32 %v992, 0.70710677
      %v1057 = vmul.f32 %v993, 0.70710677
      %v1058 = vmul.f32 %v994, 0.70710677
      %v1059 = vmul.f32 %v995, 0.70710677
      %v1060 = vmul.f32 %v996, 0.70710677
      %v1061 = vmul.f32 %v997, 0.70710677
      %v1062 = vmul.f32 %v998, 0.70710677
      %v1063 = vmul.f32 %v999, 0.70710677
      %v1064 = vmul.f32 %v1000, 0.70710677
      %v1065 = vmul.f32 %v1001, 0.70710677
      %v1066 = vmul.f32 %v1002, 0.70710677
      %v1067 = vmul.f32 %v1003, 0.70710677
      %v1068 = vmul.f32 %v1004, 0.70710677
      %vm1069 = vcmp.ge.f32.partialorder %v1037, 0.0
      %vm1070 = vcmp.ge.f32.partialorder %v1038, 0.0
      %vm1071 = vcmp.ge.f32.partialorder %v1039, 0.0
      %vm1072 = vcmp.ge.f32.partialorder %v1040, 0.0
      %vm1073 = vcmp.ge.f32.partialorder %v1041, 0.0
      %vm1074 = vcmp.ge.f32.partialorder %v1042, 0.0
      %vm1075 = vcmp.ge.f32.partialorder %v1043, 0.0
      %vm1076 = vcmp.ge.f32.partialorder %v1044, 0.0
      %vm1077 = vcmp.ge.f32.partialorder %v1045, 0.0
      %vm1078 = vcmp.ge.f32.partialorder %v1046, 0.0
      %vm1079 = vcmp.ge.f32.partialorder %v1047, 0.0
      %vm1080 = vcmp.ge.f32.partialorder %v1048, 0.0
      %vm1081 = vcmp.ge.f32.partialorder %v1049, 0.0
      %vm1082 = vcmp.ge.f32.partialorder %v1050, 0.0
      %vm1083 = vcmp.ge.f32.partialorder %v1051, 0.0
      %vm1084 = vcmp.ge.f32.partialorder %v1052, 0.0
      %vm1085 = vcmp.ge.f32.partialorder %v1053, 0.0
      %vm1086 = vcmp.ge.f32.partialorder %v1054, 0.0
      %vm1087 = vcmp.ge.f32.partialorder %v1055, 0.0
      %vm1088 = vcmp.ge.f32.partialorder %v1056, 0.0
      %vm1089 = vcmp.ge.f32.partialorder %v1057, 0.0
      %vm1090 = vcmp.ge.f32.partialorder %v1058, 0.0
      %vm1091 = vcmp.ge.f32.partialorder %v1059, 0.0
      %vm1092 = vcmp.ge.f32.partialorder %v1060, 0.0
      %vm1093 = vcmp.ge.f32.partialorder %v1061, 0.0
      %vm1094 = vcmp.ge.f32.partialorder %v1062, 0.0
      %vm1095 = vcmp.ge.f32.partialorder %v1063, 0.0
      %vm1096 = vcmp.ge.f32.partialorder %v1064, 0.0
      %vm1097 = vcmp.ge.f32.partialorder %v1065, 0.0
      %vm1098 = vcmp.ge.f32.partialorder %v1066, 0.0
      %vm1099 = vcmp.ge.f32.partialorder %v1067, 0.0
      %vm1100 = vcmp.ge.f32.partialorder %v1068, 0.0
      %v1101 = vsel %vm1069, 1.0, -1.0
      %v1102 = vsel %vm1070, 1.0, -1.0
      %v1103 = vsel %vm1071, 1.0, -1.0
      %v1104 = vsel %vm1072, 1.0, -1.0
      %v1105 = vsel %vm1073, 1.0, -1.0
      %v1106 = vsel %vm1074, 1.0, -1.0
      %v1107 = vsel %vm1075, 1.0, -1.0
      %v1108 = vsel %vm1076, 1.0, -1.0
      %v1109 = vsel %vm1077, 1.0, -1.0
      %v1110 = vsel %vm1078, 1.0, -1.0
      %v1111 = vsel %vm1079, 1.0, -1.0
      %v1112 = vsel %vm1080, 1.0, -1.0
      %v1113 = vsel %vm1081, 1.0, -1.0
      %v1114 = vsel %vm1082, 1.0, -1.0
      %v1115 = vsel %vm1083, 1.0, -1.0
      %v1116 = vsel %vm1084, 1.0, -1.0
      %v1117 = vsel %vm1085, 1.0, -1.0
      %v1118 = vsel %vm1086, 1.0, -1.0
      %v1119 = vsel %vm1087, 1.0, -1.0
      %v1120 = vsel %vm1088, 1.0, -1.0
      %v1121 = vsel %vm1089, 1.0, -1.0
      %v1122 = vsel %vm1090, 1.0, -1.0
      %v1123 = vsel %vm1091, 1.0, -1.0
      %v1124 = vsel %vm1092, 1.0, -1.0
      %v1125 = vsel %vm1093, 1.0, -1.0
      %v1126 = vsel %vm1094, 1.0, -1.0
      %v1127 = vsel %vm1095, 1.0, -1.0
      %v1128 = vsel %vm1096, 1.0, -1.0
      %v1129 = vsel %vm1097, 1.0, -1.0
      %v1130 = vsel %vm1098, 1.0, -1.0
      %v1131 = vsel %vm1099, 1.0, -1.0
      %v1132 = vsel %vm1100, 1.0, -1.0
      %v1133 = vand.u32 2147483647, %v1037
      %v1134 = vand.u32 2147483647, %v1038
      %v1135 = vand.u32 2147483647, %v1039
      %v1136 = vand.u32 2147483647, %v1040
      %v1137 = vand.u32 2147483647, %v1041
      %v1138 = vand.u32 2147483647, %v1042
      %v1139 = vand.u32 2147483647, %v1043
      %v1140 = vand.u32 2147483647, %v1044
      %v1141 = vand.u32 2147483647, %v1045
      %v1142 = vand.u32 2147483647, %v1046
      %v1143 = vand.u32 2147483647, %v1047
      %v1144 = vand.u32 2147483647, %v1048
      %v1145 = vand.u32 2147483647, %v1049
      %v1146 = vand.u32 2147483647, %v1050
      %v1147 = vand.u32 2147483647, %v1051
      %v1148 = vand.u32 2147483647, %v1052
      %v1149 = vand.u32 2147483647, %v1053
      %v1150 = vand.u32 2147483647, %v1054
      %v1151 = vand.u32 2147483647, %v1055
      %v1152 = vand.u32 2147483647, %v1056
      %v1153 = vand.u32 2147483647, %v1057
      %v1154 = vand.u32 2147483647, %v1058
      %v1155 = vand.u32 2147483647, %v1059
      %v1156 = vand.u32 2147483647, %v1060
      %v1157 = vand.u32 2147483647, %v1061
      %v1158 = vand.u32 2147483647, %v1062
      %v1159 = vand.u32 2147483647, %v1063
      %v1160 = vand.u32 2147483647, %v1064
      %v1161 = vand.u32 2147483647, %v1065
      %v1162 = vand.u32 2147483647, %v1066
      %v1163 = vand.u32 2147483647, %v1067
      %v1164 = vand.u32 2147483647, %v1068
      %v1165 = vmul.f32 %v1133, 0.3275911
      %v1166 = vmul.f32 %v1134, 0.3275911
      %v1167 = vmul.f32 %v1135, 0.3275911
      %v1168 = vmul.f32 %v1136, 0.3275911
      %v1169 = vmul.f32 %v1137, 0.3275911
      %v1170 = vmul.f32 %v1138, 0.3275911
      %v1171 = vmul.f32 %v1139, 0.3275911
      %v1172 = vmul.f32 %v1140, 0.3275911
      %v1173 = vmul.f32 %v1141, 0.3275911
      %v1174 = vmul.f32 %v1142, 0.3275911
      %v1175 = vmul.f32 %v1143, 0.3275911
      %v1176 = vmul.f32 %v1144, 0.3275911
      %v1177 = vmul.f32 %v1145, 0.3275911
      %v1178 = vmul.f32 %v1146, 0.3275911
      %v1179 = vmul.f32 %v1147, 0.3275911
      %v1180 = vmul.f32 %v1148, 0.3275911
      %v1181 = vmul.f32 %v1149, 0.3275911
      %v1182 = vmul.f32 %v1150, 0.3275911
      %v1183 = vmul.f32 %v1151, 0.3275911
      %v1184 = vmul.f32 %v1152, 0.3275911
      %v1185 = vmul.f32 %v1153, 0.3275911
      %v1186 = vmul.f32 %v1154, 0.3275911
      %v1187 = vmul.f32 %v1155, 0.3275911
      %v1188 = vmul.f32 %v1156, 0.3275911
      %v1189 = vmul.f32 %v1157, 0.3275911
      %v1190 = vmul.f32 %v1158, 0.3275911
      %v1191 = vmul.f32 %v1159, 0.3275911
      %v1192 = vmul.f32 %v1160, 0.3275911
      %v1193 = vmul.f32 %v1161, 0.3275911
      %v1194 = vmul.f32 %v1162, 0.3275911
      %v1195 = vmul.f32 %v1163, 0.3275911
      %v1196 = vmul.f32 %v1164, 0.3275911
      %v1197 = vadd.f32 %v1165, 1.0
      %v1198 = vadd.f32 %v1166, 1.0
      %v1199 = vadd.f32 %v1167, 1.0
      %v1200 = vadd.f32 %v1168, 1.0
      %v1201 = vadd.f32 %v1169, 1.0
      %v1202 = vadd.f32 %v1170, 1.0
      %v1203 = vadd.f32 %v1171, 1.0
      %v1204 = vadd.f32 %v1172, 1.0
      %v1205 = vadd.f32 %v1173, 1.0
      %v1206 = vadd.f32 %v1174, 1.0
      %v1207 = vadd.f32 %v1175, 1.0
      %v1208 = vadd.f32 %v1176, 1.0
      %v1209 = vadd.f32 %v1177, 1.0
      %v1210 = vadd.f32 %v1178, 1.0
      %v1211 = vadd.f32 %v1179, 1.0
      %v1212 = vadd.f32 %v1180, 1.0
      %v1213 = vadd.f32 %v1181, 1.0
      %v1214 = vadd.f32 %v1182, 1.0
      %v1215 = vadd.f32 %v1183, 1.0
      %v1216 = vadd.f32 %v1184, 1.0
      %v1217 = vadd.f32 %v1185, 1.0
      %v1218 = vadd.f32 %v1186, 1.0
      %v1219 = vadd.f32 %v1187, 1.0
      %v1220 = vadd.f32 %v1188, 1.0
      %v1221 = vadd.f32 %v1189, 1.0
      %v1222 = vadd.f32 %v1190, 1.0
      %v1223 = vadd.f32 %v1191, 1.0
      %v1224 = vadd.f32 %v1192, 1.0
      %v1225 = vadd.f32 %v1193, 1.0
      %v1226 = vadd.f32 %v1194, 1.0
      %v1227 = vadd.f32 %v1195, 1.0
      %v1228 = vadd.f32 %v1196, 1.0
      %v1229 = vrcp.pop %v1197
      %v1230 = vrcp.pop %v1198
      %v1231 = vrcp.pop %v1199
      %v1232 = vrcp.pop %v1200
      %v1233 = vrcp.pop %v1201
      %v1234 = vrcp.pop %v1202
      %v1235 = vrcp.pop %v1203
      %v1236 = vrcp.pop %v1204
      %v1237 = vrcp.pop %v1205
      %v1238 = vrcp.pop %v1206
      %v1239 = vrcp.pop %v1207
      %v1240 = vrcp.pop %v1208
      %v1241 = vrcp.pop %v1209
      %v1242 = vrcp.pop %v1210
      %v1243 = vrcp.pop %v1211
      %v1244 = vrcp.pop %v1212
      %v1245 = vrcp.pop %v1213
      %v1246 = vrcp.pop %v1214
      %v1247 = vrcp.pop %v1215
      %v1248 = vrcp.pop %v1216
      %v1249 = vrcp.pop %v1217
      %v1250 = vrcp.pop %v1218
      %v1251 = vrcp.pop %v1219
      %v1252 = vrcp.pop %v1220
      %v1253 = vrcp.pop %v1221
      %v1254 = vrcp.pop %v1222
      %v1255 = vrcp.pop %v1223
      %v1256 = vrcp.pop %v1224
      %v1257 = vrcp.pop %v1225
      %v1258 = vrcp.pop %v1226
      %v1259 = vrcp.pop %v1227
      %v1260 = vrcp.pop %v1228
      %v1261 = vmul.f32 %v1229, 1.0614054
      %v1262 = vmul.f32 %v1230, 1.0614054
      %v1263 = vmul.f32 %v1231, 1.0614054
      %v1264 = vmul.f32 %v1232, 1.0614054
      %v1265 = vmul.f32 %v1233, 1.0614054
      %v1266 = vmul.f32 %v1234, 1.0614054
      %v1267 = vmul.f32 %v1235, 1.0614054
      %v1268 = vmul.f32 %v1236, 1.0614054
      %v1269 = vmul.f32 %v1237, 1.0614054
      %v1270 = vmul.f32 %v1238, 1.0614054
      %v1271 = vmul.f32 %v1239, 1.0614054
      %v1272 = vmul.f32 %v1240, 1.0614054
      %v1273 = vmul.f32 %v1241, 1.0614054
      %v1274 = vmul.f32 %v1242, 1.0614054
      %v1275 = vmul.f32 %v1243, 1.0614054
      %v1276 = vmul.f32 %v1244, 1.0614054
      %v1277 = vmul.f32 %v1245, 1.0614054
      %v1278 = vmul.f32 %v1246, 1.0614054
      %v1279 = vmul.f32 %v1247, 1.0614054
      %v1280 = vmul.f32 %v1248, 1.0614054
      %v1281 = vmul.f32 %v1249, 1.0614054
      %v1282 = vmul.f32 %v1250, 1.0614054
      %v1283 = vmul.f32 %v1251, 1.0614054
      %v1284 = vmul.f32 %v1252, 1.0614054
      %v1285 = vmul.f32 %v1253, 1.0614054
      %v1286 = vmul.f32 %v1254, 1.0614054
      %v1287 = vmul.f32 %v1255, 1.0614054
      %v1288 = vmul.f32 %v1256, 1.0614054
      %v1289 = vmul.f32 %v1257, 1.0614054
      %v1290 = vmul.f32 %v1258, 1.0614054
      %v1291 = vmul.f32 %v1259, 1.0614054
      %v1292 = vmul.f32 %v1260, 1.0614054
      %v1293 = vadd.f32 %v1261, -1.4531521
      %v1294 = vadd.f32 %v1262, -1.4531521
      %v1295 = vadd.f32 %v1263, -1.4531521
      %v1296 = vadd.f32 %v1264, -1.4531521
      %v1297 = vadd.f32 %v1265, -1.4531521
      %v1298 = vadd.f32 %v1266, -1.4531521
      %v1299 = vadd.f32 %v1267, -1.4531521
      %v1300 = vadd.f32 %v1268, -1.4531521
      %v1301 = vadd.f32 %v1269, -1.4531521
      %v1302 = vadd.f32 %v1270, -1.4531521
      %v1303 = vadd.f32 %v1271, -1.4531521
      %v1304 = vadd.f32 %v1272, -1.4531521
      %v1305 = vadd.f32 %v1273, -1.4531521
      %v1306 = vadd.f32 %v1274, -1.4531521
      %v1307 = vadd.f32 %v1275, -1.4531521
      %v1308 = vadd.f32 %v1276, -1.4531521
      %v1309 = vadd.f32 %v1277, -1.4531521
      %v1310 = vadd.f32 %v1278, -1.4531521
      %v1311 = vadd.f32 %v1279, -1.4531521
      %v1312 = vadd.f32 %v1280, -1.4531521
      %v1313 = vadd.f32 %v1281, -1.4531521
      %v1314 = vadd.f32 %v1282, -1.4531521
      %v1315 = vadd.f32 %v1283, -1.4531521
      %v1316 = vadd.f32 %v1284, -1.4531521
      %v1317 = vadd.f32 %v1285, -1.4531521
      %v1318 = vadd.f32 %v1286, -1.4531521
      %v1319 = vadd.f32 %v1287, -1.4531521
      %v1320 = vadd.f32 %v1288, -1.4531521
      %v1321 = vadd.f32 %v1289, -1.4531521
      %v1322 = vadd.f32 %v1290, -1.4531521
      %v1323 = vadd.f32 %v1291, -1.4531521
      %v1324 = vadd.f32 %v1292, -1.4531521
      %v1325 = vmul.f32 %v1293, %v1229
      %v1326 = vmul.f32 %v1294, %v1230
      %v1327 = vmul.f32 %v1295, %v1231
      %v1328 = vmul.f32 %v1296, %v1232
      %v1329 = vmul.f32 %v1297, %v1233
      %v1330 = vmul.f32 %v1298, %v1234
      %v1331 = vmul.f32 %v1299, %v1235
      %v1332 = vmul.f32 %v1300, %v1236
      %v1333 = vmul.f32 %v1301, %v1237
      %v1334 = vmul.f32 %v1302, %v1238
      %v1335 = vmul.f32 %v1303, %v1239
      %v1336 = vmul.f32 %v1304, %v1240
      %v1337 = vmul.f32 %v1305, %v1241
      %v1338 = vmul.f32 %v1306, %v1242
      %v1339 = vmul.f32 %v1307, %v1243
      %v1340 = vmul.f32 %v1308, %v1244
      %v1341 = vmul.f32 %v1309, %v1245
      %v1342 = vmul.f32 %v1310, %v1246
      %v1343 = vmul.f32 %v1311, %v1247
      %v1344 = vmul.f32 %v1312, %v1248
      %v1345 = vmul.f32 %v1313, %v1249
      %v1346 = vmul.f32 %v1314, %v1250
      %v1347 = vmul.f32 %v1315, %v1251
      %v1348 = vmul.f32 %v1316, %v1252
      %v1349 = vmul.f32 %v1317, %v1253
      %v1350 = vmul.f32 %v1318, %v1254
      %v1351 = vmul.f32 %v1319, %v1255
      %v1352 = vmul.f32 %v1320, %v1256
      %v1353 = vmul.f32 %v1321, %v1257
      %v1354 = vmul.f32 %v1322, %v1258
      %v1355 = vmul.f32 %v1323, %v1259
      %v1356 = vmul.f32 %v1324, %v1260
      %v1357 = vadd.f32 %v1325, 1.4214138
      %v1358 = vadd.f32 %v1326, 1.4214138
      %v1359 = vadd.f32 %v1327, 1.4214138
      %v1360 = vadd.f32 %v1328, 1.4214138
      %v1361 = vadd.f32 %v1329, 1.4214138
      %v1362 = vadd.f32 %v1330, 1.4214138
      %v1363 = vadd.f32 %v1331, 1.4214138
      %v1364 = vadd.f32 %v1332, 1.4214138
      %v1365 = vadd.f32 %v1333, 1.4214138
      %v1366 = vadd.f32 %v1334, 1.4214138
      %v1367 = vadd.f32 %v1335, 1.4214138
      %v1368 = vadd.f32 %v1336, 1.4214138
      %v1369 = vadd.f32 %v1337, 1.4214138
      %v1370 = vadd.f32 %v1338, 1.4214138
      %v1371 = vadd.f32 %v1339, 1.4214138
      %v1372 = vadd.f32 %v1340, 1.4214138
      %v1373 = vadd.f32 %v1341, 1.4214138
      %v1374 = vadd.f32 %v1342, 1.4214138
      %v1375 = vadd.f32 %v1343, 1.4214138
      %v1376 = vadd.f32 %v1344, 1.4214138
      %v1377 = vadd.f32 %v1345, 1.4214138
      %v1378 = vadd.f32 %v1346, 1.4214138
      %v1379 = vadd.f32 %v1347, 1.4214138
      %v1380 = vadd.f32 %v1348, 1.4214138
      %v1381 = vadd.f32 %v1349, 1.4214138
      %v1382 = vadd.f32 %v1350, 1.4214138
      %v1383 = vadd.f32 %v1351, 1.4214138
      %v1384 = vadd.f32 %v1352, 1.4214138
      %v1385 = vadd.f32 %v1353, 1.4214138
      %v1386 = vadd.f32 %v1354, 1.4214138
      %v1387 = vadd.f32 %v1355, 1.4214138
      %v1388 = vadd.f32 %v1356, 1.4214138
      %v1389 = vmul.f32 %v1357, %v1229
      %v1390 = vmul.f32 %v1358, %v1230
      %v1391 = vmul.f32 %v1359, %v1231
      %v1392 = vmul.f32 %v1360, %v1232
      %v1393 = vmul.f32 %v1361, %v1233
      %v1394 = vmul.f32 %v1362, %v1234
      %v1395 = vmul.f32 %v1363, %v1235
      %v1396 = vmul.f32 %v1364, %v1236
      %v1397 = vmul.f32 %v1365, %v1237
      %v1398 = vmul.f32 %v1366, %v1238
      %v1399 = vmul.f32 %v1367, %v1239
      %v1400 = vmul.f32 %v1368, %v1240
      %v1401 = vmul.f32 %v1369, %v1241
      %v1402 = vmul.f32 %v1370, %v1242
      %v1403 = vmul.f32 %v1371, %v1243
      %v1404 = vmul.f32 %v1372, %v1244
      %v1405 = vmul.f32 %v1373, %v1245
      %v1406 = vmul.f32 %v1374, %v1246
      %v1407 = vmul.f32 %v1375, %v1247
      %v1408 = vmul.f32 %v1376, %v1248
      %v1409 = vmul.f32 %v1377, %v1249
      %v1410 = vmul.f32 %v1378, %v1250
      %v1411 = vmul.f32 %v1379, %v1251
      %v1412 = vmul.f32 %v1380, %v1252
      %v1413 = vmul.f32 %v1381, %v1253
      %v1414 = vmul.f32 %v1382, %v1254
      %v1415 = vmul.f32 %v1383, %v1255
      %v1416 = vmul.f32 %v1384, %v1256
      %v1417 = vmul.f32 %v1385, %v1257
      %v1418 = vmul.f32 %v1386, %v1258
      %v1419 = vmul.f32 %v1387, %v1259
      %v1420 = vmul.f32 %v1388, %v1260
      %v1421 = vadd.f32 %v1389, -0.28449672
      %v1422 = vadd.f32 %v1390, -0.28449672
      %v1423 = vadd.f32 %v1391, -0.28449672
      %v1424 = vadd.f32 %v1392, -0.28449672
      %v1425 = vadd.f32 %v1393, -0.28449672
      %v1426 = vadd.f32 %v1394, -0.28449672
      %v1427 = vadd.f32 %v1395, -0.28449672
      %v1428 = vadd.f32 %v1396, -0.28449672
      %v1429 = vadd.f32 %v1397, -0.28449672
      %v1430 = vadd.f32 %v1398, -0.28449672
      %v1431 = vadd.f32 %v1399, -0.28449672
      %v1432 = vadd.f32 %v1400, -0.28449672
      %v1433 = vadd.f32 %v1401, -0.28449672
      %v1434 = vadd.f32 %v1402, -0.28449672
      %v1435 = vadd.f32 %v1403, -0.28449672
      %v1436 = vadd.f32 %v1404, -0.28449672
      %v1437 = vadd.f32 %v1405, -0.28449672
      %v1438 = vadd.f32 %v1406, -0.28449672
      %v1439 = vadd.f32 %v1407, -0.28449672
      %v1440 = vadd.f32 %v1408, -0.28449672
      %v1441 = vadd.f32 %v1409, -0.28449672
      %v1442 = vadd.f32 %v1410, -0.28449672
      %v1443 = vadd.f32 %v1411, -0.28449672
      %v1444 = vadd.f32 %v1412, -0.28449672
      %v1445 = vadd.f32 %v1413, -0.28449672
      %v1446 = vadd.f32 %v1414, -0.28449672
      %v1447 = vadd.f32 %v1415, -0.28449672
      %v1448 = vadd.f32 %v1416, -0.28449672
      %v1449 = vadd.f32 %v1417, -0.28449672
      %v1450 = vadd.f32 %v1418, -0.28449672
      %v1451 = vadd.f32 %v1419, -0.28449672
      %v1452 = vadd.f32 %v1420, -0.28449672
      %v1453 = vmul.f32 %v1421, %v1229
      %v1454 = vmul.f32 %v1422, %v1230
      %v1455 = vmul.f32 %v1423, %v1231
      %v1456 = vmul.f32 %v1424, %v1232
      %v1457 = vmul.f32 %v1425, %v1233
      %v1458 = vmul.f32 %v1426, %v1234
      %v1459 = vmul.f32 %v1427, %v1235
      %v1460 = vmul.f32 %v1428, %v1236
      %v1461 = vmul.f32 %v1429, %v1237
      %v1462 = vmul.f32 %v1430, %v1238
      %v1463 = vmul.f32 %v1431, %v1239
      %v1464 = vmul.f32 %v1432, %v1240
      %v1465 = vmul.f32 %v1433, %v1241
      %v1466 = vmul.f32 %v1434, %v1242
      %v1467 = vmul.f32 %v1435, %v1243
      %v1468 = vmul.f32 %v1436, %v1244
      %v1469 = vmul.f32 %v1437, %v1245
      %v1470 = vmul.f32 %v1438, %v1246
      %v1471 = vmul.f32 %v1439, %v1247
      %v1472 = vmul.f32 %v1440, %v1248
      %v1473 = vmul.f32 %v1441, %v1249
      %v1474 = vmul.f32 %v1442, %v1250
      %v1475 = vmul.f32 %v1443, %v1251
      %v1476 = vmul.f32 %v1444, %v1252
      %v1477 = vmul.f32 %v1445, %v1253
      %v1478 = vmul.f32 %v1446, %v1254
      %v1479 = vmul.f32 %v1447, %v1255
      %v1480 = vmul.f32 %v1448, %v1256
      %v1481 = vmul.f32 %v1449, %v1257
      %v1482 = vmul.f32 %v1450, %v1258
      %v1483 = vmul.f32 %v1451, %v1259
      %v1484 = vmul.f32 %v1452, %v1260
      %v1485 = vadd.f32 %v1453, 0.2548296
      %v1486 = vadd.f32 %v1454, 0.2548296
      %v1487 = vadd.f32 %v1455, 0.2548296
      %v1488 = vadd.f32 %v1456, 0.2548296
      %v1489 = vadd.f32 %v1457, 0.2548296
      %v1490 = vadd.f32 %v1458, 0.2548296
      %v1491 = vadd.f32 %v1459, 0.2548296
      %v1492 = vadd.f32 %v1460, 0.2548296
      %v1493 = vadd.f32 %v1461, 0.2548296
      %v1494 = vadd.f32 %v1462, 0.2548296
      %v1495 = vadd.f32 %v1463, 0.2548296
      %v1496 = vadd.f32 %v1464, 0.2548296
      %v1497 = vadd.f32 %v1465, 0.2548296
      %v1498 = vadd.f32 %v1466, 0.2548296
      %v1499 = vadd.f32 %v1467, 0.2548296
      %v1500 = vadd.f32 %v1468, 0.2548296
      %v1501 = vadd.f32 %v1469, 0.2548296
      %v1502 = vadd.f32 %v1470, 0.2548296
      %v1503 = vadd.f32 %v1471, 0.2548296
      %v1504 = vadd.f32 %v1472, 0.2548296
      %v1505 = vadd.f32 %v1473, 0.2548296
      %v1506 = vadd.f32 %v1474, 0.2548296
      %v1507 = vadd.f32 %v1475, 0.2548296
      %v1508 = vadd.f32 %v1476, 0.2548296
      %v1509 = vadd.f32 %v1477, 0.2548296
      %v1510 = vadd.f32 %v1478, 0.2548296
      %v1511 = vadd.f32 %v1479, 0.2548296
      %v1512 = vadd.f32 %v1480, 0.2548296
      %v1513 = vadd.f32 %v1481, 0.2548296
      %v1514 = vadd.f32 %v1482, 0.2548296
      %v1515 = vadd.f32 %v1483, 0.2548296
      %v1516 = vadd.f32 %v1484, 0.2548296
      %v1517 = vmul.f32 %v1485, %v1229
      %v1518 = vmul.f32 %v1486, %v1230
      %v1519 = vmul.f32 %v1487, %v1231
      %v1520 = vmul.f32 %v1488, %v1232
      %v1521 = vmul.f32 %v1489, %v1233
      %v1522 = vmul.f32 %v1490, %v1234
      %v1523 = vmul.f32 %v1491, %v1235
      %v1524 = vmul.f32 %v1492, %v1236
      %v1525 = vmul.f32 %v1493, %v1237
      %v1526 = vmul.f32 %v1494, %v1238
      %v1527 = vmul.f32 %v1495, %v1239
      %v1528 = vmul.f32 %v1496, %v1240
      %v1529 = vmul.f32 %v1497, %v1241
      %v1530 = vmul.f32 %v1498, %v1242
      %v1531 = vmul.f32 %v1499, %v1243
      %v1532 = vmul.f32 %v1500, %v1244
      %v1533 = vmul.f32 %v1501, %v1245
      %v1534 = vmul.f32 %v1502, %v1246
      %v1535 = vmul.f32 %v1503, %v1247
      %v1536 = vmul.f32 %v1504, %v1248
      %v1537 = vmul.f32 %v1505, %v1249
      %v1538 = vmul.f32 %v1506, %v1250
      %v1539 = vmul.f32 %v1507, %v1251
      %v1540 = vmul.f32 %v1508, %v1252
      %v1541 = vmul.f32 %v1509, %v1253
      %v1542 = vmul.f32 %v1510, %v1254
      %v1543 = vmul.f32 %v1511, %v1255
      %v1544 = vmul.f32 %v1512, %v1256
      %v1545 = vmul.f32 %v1513, %v1257
      %v1546 = vmul.f32 %v1514, %v1258
      %v1547 = vmul.f32 %v1515, %v1259
      %v1548 = vmul.f32 %v1516, %v1260
      %v1549 = vsub.f32 0.0, %v1133
      %v1550 = vsub.f32 0.0, %v1134
      %v1551 = vsub.f32 0.0, %v1135
      %v1552 = vsub.f32 0.0, %v1136
      %v1553 = vsub.f32 0.0, %v1137
      %v1554 = vsub.f32 0.0, %v1138
      %v1555 = vsub.f32 0.0, %v1139
      %v1556 = vsub.f32 0.0, %v1140
      %v1557 = vsub.f32 0.0, %v1141
      %v1558 = vsub.f32 0.0, %v1142
      %v1559 = vsub.f32 0.0, %v1143
      %v1560 = vsub.f32 0.0, %v1144
      %v1561 = vsub.f32 0.0, %v1145
      %v1562 = vsub.f32 0.0, %v1146
      %v1563 = vsub.f32 0.0, %v1147
      %v1564 = vsub.f32 0.0, %v1148
      %v1565 = vsub.f32 0.0, %v1149
      %v1566 = vsub.f32 0.0, %v1150
      %v1567 = vsub.f32 0.0, %v1151
      %v1568 = vsub.f32 0.0, %v1152
      %v1569 = vsub.f32 0.0, %v1153
      %v1570 = vsub.f32 0.0, %v1154
      %v1571 = vsub.f32 0.0, %v1155
      %v1572 = vsub.f32 0.0, %v1156
      %v1573 = vsub.f32 0.0, %v1157
      %v1574 = vsub.f32 0.0, %v1158
      %v1575 = vsub.f32 0.0, %v1159
      %v1576 = vsub.f32 0.0, %v1160
      %v1577 = vsub.f32 0.0, %v1161
      %v1578 = vsub.f32 0.0, %v1162
      %v1579 = vsub.f32 0.0, %v1163
      %v1580 = vsub.f32 0.0, %v1164
      %v1581 = vmul.f32 %v1549, %v1133
      %v1582 = vmul.f32 %v1550, %v1134
      %v1583 = vmul.f32 %v1551, %v1135
      %v1584 = vmul.f32 %v1552, %v1136
      %v1585 = vmul.f32 %v1553, %v1137
      %v1586 = vmul.f32 %v1554, %v1138
      %v1587 = vmul.f32 %v1555, %v1139
      %v1588 = vmul.f32 %v1556, %v1140
      %v1589 = vmul.f32 %v1557, %v1141
      %v1590 = vmul.f32 %v1558, %v1142
      %v1591 = vmul.f32 %v1559, %v1143
      %v1592 = vmul.f32 %v1560, %v1144
      %v1593 = vmul.f32 %v1561, %v1145
      %v1594 = vmul.f32 %v1562, %v1146
      %v1595 = vmul.f32 %v1563, %v1147
      %v1596 = vmul.f32 %v1564, %v1148
      %v1597 = vmul.f32 %v1565, %v1149
      %v1598 = vmul.f32 %v1566, %v1150
      %v1599 = vmul.f32 %v1567, %v1151
      %v1600 = vmul.f32 %v1568, %v1152
      %v1601 = vmul.f32 %v1569, %v1153
      %v1602 = vmul.f32 %v1570, %v1154
      %v1603 = vmul.f32 %v1571, %v1155
      %v1604 = vmul.f32 %v1572, %v1156
      %v1605 = vmul.f32 %v1573, %v1157
      %v1606 = vmul.f32 %v1574, %v1158
      %v1607 = vmul.f32 %v1575, %v1159
      %v1608 = vmul.f32 %v1576, %v1160
      %v1609 = vmul.f32 %v1577, %v1161
      %v1610 = vmul.f32 %v1578, %v1162
      %v1611 = vmul.f32 %v1579, %v1163
      %v1612 = vmul.f32 %v1580, %v1164
      %v1613 = vmul.f32 %v1581, 1.442695
      %v1614 = vpow.pop %v1613
      %v1615 = vmul.f32 %v1582, 1.442695
      %v1616 = vpow.pop %v1615
      %v1617 = vmul.f32 %v1583, 1.442695
      %v1618 = vpow.pop %v1617
      %v1619 = vmul.f32 %v1584, 1.442695
      %v1620 = vpow.pop %v1619
      %v1621 = vmul.f32 %v1585, 1.442695
      %v1622 = vpow.pop %v1621
      %v1623 = vmul.f32 %v1586, 1.442695
      %v1624 = vpow.pop %v1623
      %v1625 = vmul.f32 %v1587, 1.442695
      %v1626 = vpow.pop %v1625
      %v1627 = vmul.f32 %v1588, 1.442695
      %v1628 = vpow.pop %v1627
      %v1629 = vmul.f32 %v1589, 1.442695
      %v1630 = vpow.pop %v1629
      %v1631 = vmul.f32 %v1590, 1.442695
      %v1632 = vpow.pop %v1631
      %v1633 = vmul.f32 %v1591, 1.442695
      %v1634 = vpow.pop %v1633
      %v1635 = vmul.f32 %v1592, 1.442695
      %v1636 = vpow.pop %v1635
      %v1637 = vmul.f32 %v1593, 1.442695
      %v1638 = vpow.pop %v1637
      %v1639 = vmul.f32 %v1594, 1.442695
      %v1640 = vpow.pop %v1639
      %v1641 = vmul.f32 %v1595, 1.442695
      %v1642 = vpow.pop %v1641
      %v1643 = vmul.f32 %v1596, 1.442695
      %v1644 = vpow.pop %v1643
      %v1645 = vmul.f32 %v1597, 1.442695
      %v1646 = vpow.pop %v1645
      %v1647 = vmul.f32 %v1598, 1.442695
      %v1648 = vpow.pop %v1647
      %v1649 = vmul.f32 %v1599, 1.442695
      %v1650 = vpow.pop %v1649
      %v1651 = vmul.f32 %v1600, 1.442695
      %v1652 = vpow.pop %v1651
      %v1653 = vmul.f32 %v1601, 1.442695
      %v1654 = vpow.pop %v1653
      %v1655 = vmul.f32 %v1602, 1.442695
      %v1656 = vpow.pop %v1655
      %v1657 = vmul.f32 %v1603, 1.442695
      %v1658 = vpow.pop %v1657
      %v1659 = vmul.f32 %v1604, 1.442695
      %v1660 = vpow.pop %v1659
      %v1661 = vmul.f32 %v1605, 1.442695
      %v1662 = vpow.pop %v1661
      %v1663 = vmul.f32 %v1606, 1.442695
      %v1664 = vpow.pop %v1663
      %v1665 = vmul.f32 %v1607, 1.442695
      %v1666 = vpow.pop %v1665
      %v1667 = vmul.f32 %v1608, 1.442695
      %v1668 = vpow.pop %v1667
      %v1669 = vmul.f32 %v1609, 1.442695
      %v1670 = vpow.pop %v1669
      %v1671 = vmul.f32 %v1610, 1.442695
      %v1672 = vpow.pop %v1671
      %v1673 = vmul.f32 %v1611, 1.442695
      %v1674 = vpow.pop %v1673
      %v1675 = vmul.f32 %v1612, 1.442695
      %v1676 = vpow.pop %v1675
      %v1677 = vmul.f32 %v1517, %v1614
      %v1678 = vmul.f32 %v1518, %v1616
      %v1679 = vmul.f32 %v1519, %v1618
      %v1680 = vmul.f32 %v1520, %v1620
      %v1681 = vmul.f32 %v1521, %v1622
      %v1682 = vmul.f32 %v1522, %v1624
      %v1683 = vmul.f32 %v1523, %v1626
      %v1684 = vmul.f32 %v1524, %v1628
      %v1685 = vmul.f32 %v1525, %v1630
      %v1686 = vmul.f32 %v1526, %v1632
      %v1687 = vmul.f32 %v1527, %v1634
      %v1688 = vmul.f32 %v1528, %v1636
      %v1689 = vmul.f32 %v1529, %v1638
      %v1690 = vmul.f32 %v1530, %v1640
      %v1691 = vmul.f32 %v1531, %v1642
      %v1692 = vmul.f32 %v1532, %v1644
      %v1693 = vmul.f32 %v1533, %v1646
      %v1694 = vmul.f32 %v1534, %v1648
      %v1695 = vmul.f32 %v1535, %v1650
      %v1696 = vmul.f32 %v1536, %v1652
      %v1697 = vmul.f32 %v1537, %v1654
      %v1698 = vmul.f32 %v1538, %v1656
      %v1699 = vmul.f32 %v1539, %v1658
      %v1700 = vmul.f32 %v1540, %v1660
      %v1701 = vmul.f32 %v1541, %v1662
      %v1702 = vmul.f32 %v1542, %v1664
      %v1703 = vmul.f32 %v1543, %v1666
      %v1704 = vmul.f32 %v1544, %v1668
      %v1705 = vmul.f32 %v1545, %v1670
      %v1706 = vmul.f32 %v1546, %v1672
      %v1707 = vmul.f32 %v1547, %v1674
      %v1708 = vmul.f32 %v1548, %v1676
      %v1709 = vsub.f32 1.0, %v1677
      %v1710 = vsub.f32 1.0, %v1678
      %v1711 = vsub.f32 1.0, %v1679
      %v1712 = vsub.f32 1.0, %v1680
      %v1713 = vsub.f32 1.0, %v1681
      %v1714 = vsub.f32 1.0, %v1682
      %v1715 = vsub.f32 1.0, %v1683
      %v1716 = vsub.f32 1.0, %v1684
      %v1717 = vsub.f32 1.0, %v1685
      %v1718 = vsub.f32 1.0, %v1686
      %v1719 = vsub.f32 1.0, %v1687
      %v1720 = vsub.f32 1.0, %v1688
      %v1721 = vsub.f32 1.0, %v1689
      %v1722 = vsub.f32 1.0, %v1690
      %v1723 = vsub.f32 1.0, %v1691
      %v1724 = vsub.f32 1.0, %v1692
      %v1725 = vsub.f32 1.0, %v1693
      %v1726 = vsub.f32 1.0, %v1694
      %v1727 = vsub.f32 1.0, %v1695
      %v1728 = vsub.f32 1.0, %v1696
      %v1729 = vsub.f32 1.0, %v1697
      %v1730 = vsub.f32 1.0, %v1698
      %v1731 = vsub.f32 1.0, %v1699
      %v1732 = vsub.f32 1.0, %v1700
      %v1733 = vsub.f32 1.0, %v1701
      %v1734 = vsub.f32 1.0, %v1702
      %v1735 = vsub.f32 1.0, %v1703
      %v1736 = vsub.f32 1.0, %v1704
      %v1737 = vsub.f32 1.0, %v1705
      %v1738 = vsub.f32 1.0, %v1706
      %v1739 = vsub.f32 1.0, %v1707
      %v1740 = vsub.f32 1.0, %v1708
      %v1741 = vmul.f32 %v1101, %v1709
      %v1742 = vmul.f32 %v1102, %v1710
      %v1743 = vmul.f32 %v1103, %v1711
      %v1744 = vmul.f32 %v1104, %v1712
      %v1745 = vmul.f32 %v1105, %v1713
      %v1746 = vmul.f32 %v1106, %v1714
      %v1747 = vmul.f32 %v1107, %v1715
      %v1748 = vmul.f32 %v1108, %v1716
      %v1749 = vmul.f32 %v1109, %v1717
      %v1750 = vmul.f32 %v1110, %v1718
      %v1751 = vmul.f32 %v1111, %v1719
      %v1752 = vmul.f32 %v1112, %v1720
      %v1753 = vmul.f32 %v1113, %v1721
      %v1754 = vmul.f32 %v1114, %v1722
      %v1755 = vmul.f32 %v1115, %v1723
      %v1756 = vmul.f32 %v1116, %v1724
      %v1757 = vmul.f32 %v1117, %v1725
      %v1758 = vmul.f32 %v1118, %v1726
      %v1759 = vmul.f32 %v1119, %v1727
      %v1760 = vmul.f32 %v1120, %v1728
      %v1761 = vmul.f32 %v1121, %v1729
      %v1762 = vmul.f32 %v1122, %v1730
      %v1763 = vmul.f32 %v1123, %v1731
      %v1764 = vmul.f32 %v1124, %v1732
      %v1765 = vmul.f32 %v1125, %v1733
      %v1766 = vmul.f32 %v1126, %v1734
      %v1767 = vmul.f32 %v1127, %v1735
      %v1768 = vmul.f32 %v1128, %v1736
      %v1769 = vmul.f32 %v1129, %v1737
      %v1770 = vmul.f32 %v1130, %v1738
      %v1771 = vmul.f32 %v1131, %v1739
      %v1772 = vmul.f32 %v1132, %v1740
      %v1773 = vadd.f32 %v1741, 1.0
      %v1774 = vadd.f32 %v1742, 1.0
      %v1775 = vadd.f32 %v1743, 1.0
      %v1776 = vadd.f32 %v1744, 1.0
      %v1777 = vadd.f32 %v1745, 1.0
      %v1778 = vadd.f32 %v1746, 1.0
      %v1779 = vadd.f32 %v1747, 1.0
      %v1780 = vadd.f32 %v1748, 1.0
      %v1781 = vadd.f32 %v1749, 1.0
      %v1782 = vadd.f32 %v1750, 1.0
      %v1783 = vadd.f32 %v1751, 1.0
      %v1784 = vadd.f32 %v1752, 1.0
      %v1785 = vadd.f32 %v1753, 1.0
      %v1786 = vadd.f32 %v1754, 1.0
      %v1787 = vadd.f32 %v1755, 1.0
      %v1788 = vadd.f32 %v1756, 1.0
      %v1789 = vadd.f32 %v1757, 1.0
      %v1790 = vadd.f32 %v1758, 1.0
      %v1791 = vadd.f32 %v1759, 1.0
      %v1792 = vadd.f32 %v1760, 1.0
      %v1793 = vadd.f32 %v1761, 1.0
      %v1794 = vadd.f32 %v1762, 1.0
      %v1795 = vadd.f32 %v1763, 1.0
      %v1796 = vadd.f32 %v1764, 1.0
      %v1797 = vadd.f32 %v1765, 1.0
      %v1798 = vadd.f32 %v1766, 1.0
      %v1799 = vadd.f32 %v1767, 1.0
      %v1800 = vadd.f32 %v1768, 1.0
      %v1801 = vadd.f32 %v1769, 1.0
      %v1802 = vadd.f32 %v1770, 1.0
      %v1803 = vadd.f32 %v1771, 1.0
      %v1804 = vadd.f32 %v1772, 1.0
      %v1805 = vmul.f32 %v1005, %v1773
      %v1806 = vmul.f32 %v1006, %v1774
      %v1807 = vmul.f32 %v1007, %v1775
      %v1808 = vmul.f32 %v1008, %v1776
      %v1809 = vmul.f32 %v1009, %v1777
      %v1810 = vmul.f32 %v1010, %v1778
      %v1811 = vmul.f32 %v1011, %v1779
      %v1812 = vmul.f32 %v1012, %v1780
      %v1813 = vmul.f32 %v1013, %v1781
      %v1814 = vmul.f32 %v1014, %v1782
      %v1815 = vmul.f32 %v1015, %v1783
      %v1816 = vmul.f32 %v1016, %v1784
      %v1817 = vmul.f32 %v1017, %v1785
      %v1818 = vmul.f32 %v1018, %v1786
      %v1819 = vmul.f32 %v1019, %v1787
      %v1820 = vmul.f32 %v1020, %v1788
      %v1821 = vmul.f32 %v1021, %v1789
      %v1822 = vmul.f32 %v1022, %v1790
      %v1823 = vmul.f32 %v1023, %v1791
      %v1824 = vmul.f32 %v1024, %v1792
      %v1825 = vmul.f32 %v1025, %v1793
      %v1826 = vmul.f32 %v1026, %v1794
      %v1827 = vmul.f32 %v1027, %v1795
      %v1828 = vmul.f32 %v1028, %v1796
      %v1829 = vmul.f32 %v1029, %v1797
      %v1830 = vmul.f32 %v1030, %v1798
      %v1831 = vmul.f32 %v1031, %v1799
      %v1832 = vmul.f32 %v1032, %v1800
      %v1833 = vmul.f32 %v1033, %v1801
      %v1834 = vmul.f32 %v1034, %v1802
      %v1835 = vmul.f32 %v1035, %v1803
      %v1836 = vmul.f32 %v1036, %v1804
      %1869 = vrot.lane.b32.xlu0 %v519, 96
      %v1870 = vpop.permute.xlu0 %1869
      %1871 = vrot.lane.b32.xlu0 %v521, 96
      %v1872 = vpop.permute.xlu0 %1871
      %1873 = vrot.lane.b32.xlu0 %v524, 96
      %v1874 = vpop.permute.xlu0 %1873
      %1875 = vrot.lane.b32.xlu0 %v526, 96
      %v1876 = vpop.permute.xlu0 %1875
      %1877 = vrot.lane.b32.xlu0 %v529, 96
      %v1878 = vpop.permute.xlu0 %1877
      %1879 = vrot.lane.b32.xlu0 %v531, 96
      %v1880 = vpop.permute.xlu0 %1879
      %1881 = vrot.lane.b32.xlu0 %v534, 96
      %v1882 = vpop.permute.xlu0 %1881
      %1883 = vrot.lane.b32.xlu0 %v536, 96
      %v1884 = vpop.permute.xlu0 %1883
      %1885 = vrot.lane.b32.xlu0 %v539, 96
      %v1886 = vpop.permute.xlu0 %1885
      %1887 = vrot.lane.b32.xlu0 %v541, 96
      %v1888 = vpop.permute.xlu0 %1887
      %1889 = vrot.lane.b32.xlu0 %v544, 96
      %v1890 = vpop.permute.xlu0 %1889
      %1891 = vrot.lane.b32.xlu0 %v546, 96
      %v1892 = vpop.permute.xlu0 %1891
      %1893 = vrot.lane.b32.xlu0 %v549, 96
      %v1894 = vpop.permute.xlu0 %1893
      %1895 = vrot.lane.b32.xlu0 %v551, 96
      %v1896 = vpop.permute.xlu0 %1895
      %1897 = vrot.lane.b32.xlu0 %v554, 96
      %v1898 = vpop.permute.xlu0 %1897
      %1899 = vrot.lane.b32.xlu0 %v556, 96
      %v1900 = vpop.permute.xlu0 %1899
      %1901 = vrot.lane.b32.xlu0 %v559, 96
      %v1902 = vpop.permute.xlu0 %1901
      %1903 = vrot.lane.b32.xlu0 %v561, 96
      %v1904 = vpop.permute.xlu0 %1903
      %1905 = vrot.lane.b32.xlu0 %v564, 96
      %v1906 = vpop.permute.xlu0 %1905
      %1907 = vrot.lane.b32.xlu0 %v566, 96
      %v1908 = vpop.permute.xlu0 %1907
      %1909 = vrot.lane.b32.xlu0 %v569, 96
      %v1910 = vpop.permute.xlu0 %1909
      %1911 = vrot.lane.b32.xlu0 %v571, 96
      %v1912 = vpop.permute.xlu0 %1911
      %1913 = vrot.lane.b32.xlu0 %v574, 96
      %v1914 = vpop.permute.xlu0 %1913
      %1915 = vrot.lane.b32.xlu0 %v576, 96
      %v1916 = vpop.permute.xlu0 %1915
      %1917 = vrot.lane.b32.xlu0 %v579, 96
      %v1918 = vpop.permute.xlu0 %1917
      %1919 = vrot.lane.b32.xlu0 %v581, 96
      %v1920 = vpop.permute.xlu0 %1919
      %1921 = vrot.lane.b32.xlu0 %v584, 96
      %v1922 = vpop.permute.xlu0 %1921
      %1923 = vrot.lane.b32.xlu0 %v586, 96
      %v1924 = vpop.permute.xlu0 %1923
      %1925 = vrot.lane.b32.xlu0 %v589, 96
      %v1926 = vpop.permute.xlu0 %1925
      %1927 = vrot.lane.b32.xlu0 %v591, 96
      %v1928 = vpop.permute.xlu0 %1927
      %1929 = vrot.lane.b32.xlu0 %v594, 96
      %v1930 = vpop.permute.xlu0 %1929
      %1931 = vrot.lane.b32.xlu0 %v596, 96
      %v1932 = vpop.permute.xlu0 %1931
      %v1965 = vadd.f32 %v1805, %v1870
      %v1966 = vadd.f32 %v1806, %v1872
      %v1967 = vadd.f32 %v1807, %v1874
      %v1968 = vadd.f32 %v1808, %v1876
      %v1969 = vadd.f32 %v1809, %v1878
      %v1970 = vadd.f32 %v1810, %v1880
      %v1971 = vadd.f32 %v1811, %v1882
      %v1972 = vadd.f32 %v1812, %v1884
      %v1973 = vadd.f32 %v1813, %v1886
      %v1974 = vadd.f32 %v1814, %v1888
      %v1975 = vadd.f32 %v1815, %v1890
      %v1976 = vadd.f32 %v1816, %v1892
      %v1977 = vadd.f32 %v1817, %v1894
      %v1978 = vadd.f32 %v1818, %v1896
      %v1979 = vadd.f32 %v1819, %v1898
      %v1980 = vadd.f32 %v1820, %v1900
      %v1981 = vadd.f32 %v1821, %v1902
      %v1982 = vadd.f32 %v1822, %v1904
      %v1983 = vadd.f32 %v1823, %v1906
      %v1984 = vadd.f32 %v1824, %v1908
      %v1985 = vadd.f32 %v1825, %v1910
      %v1986 = vadd.f32 %v1826, %v1912
      %v1987 = vadd.f32 %v1827, %v1914
      %v1988 = vadd.f32 %v1828, %v1916
      %v1989 = vadd.f32 %v1829, %v1918
      %v1990 = vadd.f32 %v1830, %v1920
      %v1991 = vadd.f32 %v1831, %v1922
      %v1992 = vadd.f32 %v1832, %v1924
      %v1993 = vadd.f32 %v1833, %v1926
      %v1994 = vadd.f32 %v1834, %v1928
      %v1995 = vadd.f32 %v1835, %v1930
      %v1996 = vadd.f32 %v1836, %v1932
      %1997 = vst.msk [vmem:[#allocation2] sm:$0xff] %vm460, %v1965
      %1998 = vst.msk [vmem:[#allocation2 + $0x8] sm:$0xff] %vm460, %v1966
      %1999 = vst.msk [vmem:[#allocation2 + $0x10] sm:$0xff] %vm460, %v1967
      %2000 = vst.msk [vmem:[#allocation2 + $0x18] sm:$0xff] %vm460, %v1968
      %2001 = vst.msk [vmem:[#allocation2 + $0x20] sm:$0xff] %vm460, %v1969
      %2002 = vst.msk [vmem:[#allocation2 + $0x28] sm:$0xff] %vm460, %v1970
      %2003 = vst.msk [vmem:[#allocation2 + $0x30] sm:$0xff] %vm460, %v1971
      %2004 = vst.msk [vmem:[#allocation2 + $0x38] sm:$0xff] %vm460, %v1972
      %2005 = vst.msk [vmem:[#allocation2 + $0x40] sm:$0xff] %vm460, %v1973
      %2006 = vst.msk [vmem:[#allocation2 + $0x48] sm:$0xff] %vm460, %v1974
      %2007 = vst.msk [vmem:[#allocation2 + $0x50] sm:$0xff] %vm460, %v1975
      %2008 = vst.msk [vmem:[#allocation2 + $0x58] sm:$0xff] %vm460, %v1976
      %2009 = vst.msk [vmem:[#allocation2 + $0x60] sm:$0xff] %vm460, %v1977
      %2010 = vst.msk [vmem:[#allocation2 + $0x68] sm:$0xff] %vm460, %v1978
      %2011 = vst.msk [vmem:[#allocation2 + $0x70] sm:$0xff] %vm460, %v1979
      %2012 = vst.msk [vmem:[#allocation2 + $0x78] sm:$0xff] %vm460, %v1980
      %2013 = vst.msk [vmem:[#allocation2 + $0x80] sm:$0xff] %vm460, %v1981
      %2014 = vst.msk [vmem:[#allocation2 + $0x88] sm:$0xff] %vm460, %v1982
      %2015 = vst.msk [vmem:[#allocation2 + $0x90] sm:$0xff] %vm460, %v1983
      %2016 = vst.msk [vmem:[#allocation2 + $0x98] sm:$0xff] %vm460, %v1984
      %2017 = vst.msk [vmem:[#allocation2 + $0xa0] sm:$0xff] %vm460, %v1985
      %2018 = vst.msk [vmem:[#allocation2 + $0xa8] sm:$0xff] %vm460, %v1986
      %2019 = vst.msk [vmem:[#allocation2 + $0xb0] sm:$0xff] %vm460, %v1987
      %2020 = vst.msk [vmem:[#allocation2 + $0xb8] sm:$0xff] %vm460, %v1988
      %2021 = vst.msk [vmem:[#allocation2 + $0xc0] sm:$0xff] %vm460, %v1989
      %2022 = vst.msk [vmem:[#allocation2 + $0xc8] sm:$0xff] %vm460, %v1990
      %2023 = vst.msk [vmem:[#allocation2 + $0xd0] sm:$0xff] %vm460, %v1991
      %2024 = vst.msk [vmem:[#allocation2 + $0xd8] sm:$0xff] %vm460, %v1992
      %2025 = vst.msk [vmem:[#allocation2 + $0xe0] sm:$0xff] %vm460, %v1993
      %2026 = vst.msk [vmem:[#allocation2 + $0xe8] sm:$0xff] %vm460, %v1994
      %2027 = vst.msk [vmem:[#allocation2 + $0xf0] sm:$0xff] %vm460, %v1995
      %2028 = vst.msk [vmem:[#allocation2 + $0xf8] sm:$0xff] %vm460, %v1996
      %p2029 = scmp.eq.s32.totalorder %s22, 1
      // Predicated region
      $region49: #{ddno_forward.4} parent=43 // pred_check
        %p2030 = pneg %p2029
      $region50: #{ddno_forward.4} parent=43 // pred_check_branch
        %2032 = sbr.rel (%p2030) target = $region52
      $region51: #{ddno_forward.4} parent=43 // pred_region
        %v2033 = vld [vmem:[#allocation2] sm:$0xff]
        %v2034 = vld [vmem:[#allocation2 + $0x8] sm:$0xff]
        %v2035 = vld [vmem:[#allocation2 + $0x10] sm:$0xff]
        %v2036 = vld [vmem:[#allocation2 + $0x18] sm:$0xff]
        %v2037 = vld [vmem:[#allocation2 + $0x20] sm:$0xff]
        %v2038 = vld [vmem:[#allocation2 + $0x28] sm:$0xff]
        %v2039 = vld [vmem:[#allocation2 + $0x30] sm:$0xff]
        %v2040 = vld [vmem:[#allocation2 + $0x38] sm:$0xff]
        %v2041 = vld [vmem:[#allocation2 + $0x40] sm:$0xff]
        %v2042 = vld [vmem:[#allocation2 + $0x48] sm:$0xff]
        %v2043 = vld [vmem:[#allocation2 + $0x50] sm:$0xff]
        %v2044 = vld [vmem:[#allocation2 + $0x58] sm:$0xff]
        %v2045 = vld [vmem:[#allocation2 + $0x60] sm:$0xff]
        %v2046 = vld [vmem:[#allocation2 + $0x68] sm:$0xff]
        %v2047 = vld [vmem:[#allocation2 + $0x70] sm:$0xff]
        %v2048 = vld [vmem:[#allocation2 + $0x78] sm:$0xff]
        %v2049 = vld [vmem:[#allocation2 + $0x80] sm:$0xff]
        %v2050 = vld [vmem:[#allocation2 + $0x88] sm:$0xff]
        %v2051 = vld [vmem:[#allocation2 + $0x90] sm:$0xff]
        %v2052 = vld [vmem:[#allocation2 + $0x98] sm:$0xff]
        %v2053 = vld [vmem:[#allocation2 + $0xa0] sm:$0xff]
        %v2054 = vld [vmem:[#allocation2 + $0xa8] sm:$0xff]
        %v2055 = vld [vmem:[#allocation2 + $0xb0] sm:$0xff]
        %v2056 = vld [vmem:[#allocation2 + $0xb8] sm:$0xff]
        %v2057 = vld [vmem:[#allocation2 + $0xc0] sm:$0xff]
        %v2058 = vld [vmem:[#allocation2 + $0xc8] sm:$0xff]
        %v2059 = vld [vmem:[#allocation2 + $0xd0] sm:$0xff]
        %v2060 = vld [vmem:[#allocation2 + $0xd8] sm:$0xff]
        %v2061 = vld [vmem:[#allocation2 + $0xe0] sm:$0xff]
        %v2062 = vld [vmem:[#allocation2 + $0xe8] sm:$0xff]
        %v2063 = vld [vmem:[#allocation2 + $0xf0] sm:$0xff]
        %v2064 = vld [vmem:[#allocation2 + $0xf8] sm:$0xff]
        %2065 = vst.msk [vmem:[%s325] sm:$0xff] %vm460, %v2033
        %2066 = vst.msk [vmem:[%s325 + $0x8] sm:$0xff] %vm460, %v2034
        %2067 = vst.msk [vmem:[%s325 + $0x10] sm:$0xff] %vm460, %v2035
        %2068 = vst.msk [vmem:[%s325 + $0x18] sm:$0xff] %vm460, %v2036
        %2069 = vst.msk [vmem:[%s325 + $0x20] sm:$0xff] %vm460, %v2037
        %2070 = vst.msk [vmem:[%s325 + $0x28] sm:$0xff] %vm460, %v2038
        %2071 = vst.msk [vmem:[%s325 + $0x30] sm:$0xff] %vm460, %v2039
        %2072 = vst.msk [vmem:[%s325 + $0x38] sm:$0xff] %vm460, %v2040
        %2073 = vst.msk [vmem:[%s325 + $0x40] sm:$0xff] %vm460, %v2041
        %2074 = vst.msk [vmem:[%s325 + $0x48] sm:$0xff] %vm460, %v2042
        %2075 = vst.msk [vmem:[%s325 + $0x50] sm:$0xff] %vm460, %v2043
        %2076 = vst.msk [vmem:[%s325 + $0x58] sm:$0xff] %vm460, %v2044
        %2077 = vst.msk [vmem:[%s325 + $0x60] sm:$0xff] %vm460, %v2045
        %2078 = vst.msk [vmem:[%s325 + $0x68] sm:$0xff] %vm460, %v2046
        %2079 = vst.msk [vmem:[%s325 + $0x70] sm:$0xff] %vm460, %v2047
        %2080 = vst.msk [vmem:[%s325 + $0x78] sm:$0xff] %vm460, %v2048
        %2081 = vst.msk [vmem:[%s325 + $0x80] sm:$0xff] %vm460, %v2049
        %2082 = vst.msk [vmem:[%s325 + $0x88] sm:$0xff] %vm460, %v2050
        %2083 = vst.msk [vmem:[%s325 + $0x90] sm:$0xff] %vm460, %v2051
        %2084 = vst.msk [vmem:[%s325 + $0x98] sm:$0xff] %vm460, %v2052
        %2085 = vst.msk [vmem:[%s325 + $0xa0] sm:$0xff] %vm460, %v2053
        %2086 = vst.msk [vmem:[%s325 + $0xa8] sm:$0xff] %vm460, %v2054
        %2087 = vst.msk [vmem:[%s325 + $0xb0] sm:$0xff] %vm460, %v2055
        %2088 = vst.msk [vmem:[%s325 + $0xb8] sm:$0xff] %vm460, %v2056
        %2089 = vst.msk [vmem:[%s325 + $0xc0] sm:$0xff] %vm460, %v2057
        %2090 = vst.msk [vmem:[%s325 + $0xc8] sm:$0xff] %vm460, %v2058
        %2091 = vst.msk [vmem:[%s325 + $0xd0] sm:$0xff] %vm460, %v2059
        %2092 = vst.msk [vmem:[%s325 + $0xd8] sm:$0xff] %vm460, %v2060
        %2093 = vst.msk [vmem:[%s325 + $0xe0] sm:$0xff] %vm460, %v2061
        %2094 = vst.msk [vmem:[%s325 + $0xe8] sm:$0xff] %vm460, %v2062
        %2095 = vst.msk [vmem:[%s325 + $0xf0] sm:$0xff] %vm460, %v2063
        %2096 = vst.msk [vmem:[%s325 + $0xf8] sm:$0xff] %vm460, %v2064
      $region52: #{ddno_forward.4} parent=43 // pred_fallthru
        _
      %p2097 = scmp.lt.s32.totalorder %s21, 1
      %s2098 = scalar_select %p2097, %s21, 1
      %s2099 = smul.addr %s2098, 32
      %s2100 = smul.addr %s2099, 8
      %s2101 = scalar_lea.vmem %s6, %s2100
      // Predicated region
      $region53: #{ddno_forward.4} parent=43 // pred_check
        %p2102 = pneg %p198
      $region54: #{ddno_forward.4} parent=43 // pred_check_branch
        %2104 = sbr.rel (%p2102) target = $region56
      $region55: #{ddno_forward.4} parent=43 // pred_region
        _
      $region56: #{ddno_forward.4} parent=43 // pred_fallthru
        _
    $region44: #{ddno_forward.4} parent=5 // pred_fallthru
      _
    %p2105 = scmp.le.s32.totalorder 2, %s12
    // Predicated region
    $region57: #{ddno_forward.4} parent=5 // pred_check
      %p2106 = pneg %p2105
    $region58: #{ddno_forward.4} parent=5 // pred_check_branch
      %2108 = sbr.rel (%p2106) target = $region60
    $region59: #{ddno_forward.4} parent=5 // pred_region
      %s2109 = ssub.s32 %s12, 2
      // Predicated region
      $region61: #{ddno_forward.4} parent=59 // pred_check
        %p2110 = pneg %p204
      $region62: #{ddno_forward.4} parent=59 // pred_check_branch
        %2112 = sbr.rel (%p2110) target = $region64
      $region63: #{ddno_forward.4} parent=59 // pred_region
        %p2113 = scmp.lt.s32.totalorder %s23, 1
        %s2114 = scalar_select %p2113, %s23, 1
        %s2115 = smul.addr %s2114, 32
        %s2116 = smul.addr %s2115, 8
        %s2117 = scalar_lea.vmem %s6, %s2116
      $region64: #{ddno_forward.4} parent=59 // pred_fallthru
        _
    $region60: #{ddno_forward.4} parent=5 // pred_fallthru
      _
  $region6: #{ddno_forward.4} parent=0 // loop_footer
    %s16 = sadd.s32 1, %s12
  $region7: #{ddno_forward.4} parent=0 // loop_footer_branch
    %11 = sbr.rel target = $region3
  $region8: #{ddno_forward.4} parent=0 // loop_exit
    _

// kernel: ddno_forward.3
$region0: #{ddno_forward.3}
  #allocation0 [shape = 'u32[]', space=smem, size = 0x4, offset = 0x4, fixed_abs, tag = 'smem constant byte address 0x4 - core index']
  #allocation1 [shape = 'u32[72,128]{1,0:T(1,128)}', space=vmem, size = 0x9000, scoped, tag = 'internal scratch']
  %s0 = inlined_call_operand.vmem [shape: f32[512,128], index: 0, kind: input, shape index: {}]
  %s1 = inlined_call_operand.vmem [shape: bf16[128,256], index: 1, kind: input, shape index: {}]
  %s2 = inlined_call_operand.vmem [shape: f32[1,256], index: 2, kind: input, shape index: {}]
  %s3 = inlined_call_operand.vmem [shape: bf16[256,32], index: 3, kind: input, shape index: {}]
  %s4 = inlined_call_operand.vmem [shape: f32[1,32], index: 4, kind: input, shape index: {}]
  %s5 = inlined_call_operand.vmem [shape: f32[512,32], index: 5, kind: output, shape index: {}]
  %s6 = sld [smem:[#allocation0]]
  $region30: #{ddno_forward.3} parent=0
    _
  %s8 = ssub.s32 1, %s6
  %s9 = scalar_select 0, %s8, %s6
  // Predicated region
  $region2: #{ddno_forward.3} parent=0 // pred_check
    _
  $region3: #{ddno_forward.3} parent=0 // pred_check_branch
    %11 = sbr.rel (0) target = $region5
  $region4: #{ddno_forward.3} parent=0 // pred_region
    _
  $region5: #{ddno_forward.3} parent=0 // pred_fallthru
    _
  // Predicated region
  $region6: #{ddno_forward.3} parent=0 // pred_check
    _
  $region7: #{ddno_forward.3} parent=0 // pred_check_branch
    %13 = sbr.rel (0) target = $region9
  $region8: #{ddno_forward.3} parent=0 // pred_region
    _
  $region9: #{ddno_forward.3} parent=0 // pred_fallthru
    _
  // Predicated region
  $region10: #{ddno_forward.3} parent=0 // pred_check
    _
  $region11: #{ddno_forward.3} parent=0 // pred_check_branch
    %15 = sbr.rel (0) target = $region13
  $region12: #{ddno_forward.3} parent=0 // pred_region
    _
  $region13: #{ddno_forward.3} parent=0 // pred_fallthru
    _
  // Predicated region
  $region14: #{ddno_forward.3} parent=0 // pred_check
    _
  $region15: #{ddno_forward.3} parent=0 // pred_check_branch
    %17 = sbr.rel (0) target = $region17
  $region16: #{ddno_forward.3} parent=0 // pred_region
    _
  $region17: #{ddno_forward.3} parent=0 // pred_fallthru
    _
  // Predicated region
  $region18: #{ddno_forward.3} parent=0 // pred_check
    _
  $region19: #{ddno_forward.3} parent=0 // pred_check_branch
    %19 = sbr.rel (0) target = $region21
  $region20: #{ddno_forward.3} parent=0 // pred_region
    _
  $region21: #{ddno_forward.3} parent=0 // pred_fallthru
    _
  %v20 = vld [vmem:[%s0] sm:$0xff]
  %v21 = vld [vmem:[%s0 + $0x8] sm:$0xff]
  %v22 = vld [vmem:[%s0 + $0x10] sm:$0xff]
  %v23 = vld [vmem:[%s0 + $0x18] sm:$0xff]
  %v24 = vld [vmem:[%s0 + $0x20] sm:$0xff]
  %v25 = vld [vmem:[%s0 + $0x28] sm:$0xff]
  %v26 = vld [vmem:[%s0 + $0x30] sm:$0xff]
  %v27 = vld [vmem:[%s0 + $0x38] sm:$0xff]
  %v28 = vld [vmem:[%s0 + $0x40] sm:$0xff]
  %v29 = vld [vmem:[%s0 + $0x48] sm:$0xff]
  %v30 = vld [vmem:[%s0 + $0x50] sm:$0xff]
  %v31 = vld [vmem:[%s0 + $0x58] sm:$0xff]
  %v32 = vld [vmem:[%s0 + $0x60] sm:$0xff]
  %v33 = vld [vmem:[%s0 + $0x68] sm:$0xff]
  %v34 = vld [vmem:[%s0 + $0x70] sm:$0xff]
  %v35 = vld [vmem:[%s0 + $0x78] sm:$0xff]
  %v36 = vld [vmem:[%s0 + $0x80] sm:$0xff]
  %v37 = vld [vmem:[%s0 + $0x88] sm:$0xff]
  %v38 = vld [vmem:[%s0 + $0x90] sm:$0xff]
  %v39 = vld [vmem:[%s0 + $0x98] sm:$0xff]
  %v40 = vld [vmem:[%s0 + $0xa0] sm:$0xff]
  %v41 = vld [vmem:[%s0 + $0xa8] sm:$0xff]
  %v42 = vld [vmem:[%s0 + $0xb0] sm:$0xff]
  %v43 = vld [vmem:[%s0 + $0xb8] sm:$0xff]
  %v44 = vld [vmem:[%s0 + $0xc0] sm:$0xff]
  %v45 = vld [vmem:[%s0 + $0xc8] sm:$0xff]
  %v46 = vld [vmem:[%s0 + $0xd0] sm:$0xff]
  %v47 = vld [vmem:[%s0 + $0xd8] sm:$0xff]
  %v48 = vld [vmem:[%s0 + $0xe0] sm:$0xff]
  %v49 = vld [vmem:[%s0 + $0xe8] sm:$0xff]
  %v50 = vld [vmem:[%s0 + $0xf0] sm:$0xff]
  %v51 = vld [vmem:[%s0 + $0xf8] sm:$0xff]
  %v52 = vld [vmem:[%s0 + $0x100] sm:$0xff]
  %v53 = vld [vmem:[%s0 + $0x108] sm:$0xff]
  %v54 = vld [vmem:[%s0 + $0x110] sm:$0xff]
  %v55 = vld [vmem:[%s0 + $0x118] sm:$0xff]
  %v56 = vld [vmem:[%s0 + $0x120] sm:$0xff]
  %v57 = vld [vmem:[%s0 + $0x128] sm:$0xff]
  %v58 = vld [vmem:[%s0 + $0x130] sm:$0xff]
  %v59 = vld [vmem:[%s0 + $0x138] sm:$0xff]
  %v60 = vld [vmem:[%s0 + $0x140] sm:$0xff]
  %v61 = vld [vmem:[%s0 + $0x148] sm:$0xff]
  %v62 = vld [vmem:[%s0 + $0x150] sm:$0xff]
  %v63 = vld [vmem:[%s0 + $0x158] sm:$0xff]
  %v64 = vld [vmem:[%s0 + $0x160] sm:$0xff]
  %v65 = vld [vmem:[%s0 + $0x168] sm:$0xff]
  %v66 = vld [vmem:[%s0 + $0x170] sm:$0xff]
  %v67 = vld [vmem:[%s0 + $0x178] sm:$0xff]
  %v68 = vld [vmem:[%s0 + $0x180] sm:$0xff]
  %v69 = vld [vmem:[%s0 + $0x188] sm:$0xff]
  %v70 = vld [vmem:[%s0 + $0x190] sm:$0xff]
  %v71 = vld [vmem:[%s0 + $0x198] sm:$0xff]
  %v72 = vld [vmem:[%s0 + $0x1a0] sm:$0xff]
  %v73 = vld [vmem:[%s0 + $0x1a8] sm:$0xff]
  %v74 = vld [vmem:[%s0 + $0x1b0] sm:$0xff]
  %v75 = vld [vmem:[%s0 + $0x1b8] sm:$0xff]
  %v76 = vld [vmem:[%s0 + $0x1c0] sm:$0xff]
  %v77 = vld [vmem:[%s0 + $0x1c8] sm:$0xff]
  %v78 = vld [vmem:[%s0 + $0x1d0] sm:$0xff]
  %v79 = vld [vmem:[%s0 + $0x1d8] sm:$0xff]
  %v80 = vld [vmem:[%s0 + $0x1e0] sm:$0xff]
  %v81 = vld [vmem:[%s0 + $0x1e8] sm:$0xff]
  %v82 = vld [vmem:[%s0 + $0x1f0] sm:$0xff]
  %v83 = vld [vmem:[%s0 + $0x1f8] sm:$0xff]
  %v84 = vpack.c.bf16 %v21, %v20
  %v85 = vpack.c.bf16 %v23, %v22
  %v86 = vpack.c.bf16 %v25, %v24
  %v87 = vpack.c.bf16 %v27, %v26
  %v88 = vpack.c.bf16 %v29, %v28
  %v89 = vpack.c.bf16 %v31, %v30
  %v90 = vpack.c.bf16 %v33, %v32
  %v91 = vpack.c.bf16 %v35, %v34
  %v92 = vpack.c.bf16 %v37, %v36
  %v93 = vpack.c.bf16 %v39, %v38
  %v94 = vpack.c.bf16 %v41, %v40
  %v95 = vpack.c.bf16 %v43, %v42
  %v96 = vpack.c.bf16 %v45, %v44
  %v97 = vpack.c.bf16 %v47, %v46
  %v98 = vpack.c.bf16 %v49, %v48
  %v99 = vpack.c.bf16 %v51, %v50
  %v100 = vpack.c.bf16 %v53, %v52
  %v101 = vpack.c.bf16 %v55, %v54
  %v102 = vpack.c.bf16 %v57, %v56
  %v103 = vpack.c.bf16 %v59, %v58
  %v104 = vpack.c.bf16 %v61, %v60
  %v105 = vpack.c.bf16 %v63, %v62
  %v106 = vpack.c.bf16 %v65, %v64
  %v107 = vpack.c.bf16 %v67, %v66
  %v108 = vpack.c.bf16 %v69, %v68
  %v109 = vpack.c.bf16 %v71, %v70
  %v110 = vpack.c.bf16 %v73, %v72
  %v111 = vpack.c.bf16 %v75, %v74
  %v112 = vpack.c.bf16 %v77, %v76
  %v113 = vpack.c.bf16 %v79, %v78
  %v114 = vpack.c.bf16 %v81, %v80
  %v115 = vpack.c.bf16 %v83, %v82
  %v116 = vld [vmem:[%s1] sm:$0xff]
  %v117 = vld [vmem:[%s1 + $0x8] sm:$0xff]
  %v118 = vld [vmem:[%s1 + $0x10] sm:$0xff]
  %v119 = vld [vmem:[%s1 + $0x18] sm:$0xff]
  %v120 = vld [vmem:[%s1 + $0x20] sm:$0xff]
  %v121 = vld [vmem:[%s1 + $0x28] sm:$0xff]
  %v122 = vld [vmem:[%s1 + $0x30] sm:$0xff]
  %v123 = vld [vmem:[%s1 + $0x38] sm:$0xff]
  %v124 = vld [vmem:[%s1 + $0x40] sm:$0xff]
  %v125 = vld [vmem:[%s1 + $0x48] sm:$0xff]
  %v126 = vld [vmem:[%s1 + $0x50] sm:$0xff]
  %v127 = vld [vmem:[%s1 + $0x58] sm:$0xff]
  %v128 = vld [vmem:[%s1 + $0x60] sm:$0xff]
  %v129 = vld [vmem:[%s1 + $0x68] sm:$0xff]
  %v130 = vld [vmem:[%s1 + $0x70] sm:$0xff]
  %v131 = vld [vmem:[%s1 + $0x78] sm:$0xff]
  %v132 = vld [vmem:[%s2] sm:$0x3]
  %v134 = vperm.slane %v132, 0
  %v135 = vperm.slane %v132, 1
  %v154 = vunpack.c.l.b16 %v116
  %v155 = vunpack.c.h.b16 %v116
  %v156 = vunpack.c.l.b16 %v117
  %v157 = vunpack.c.h.b16 %v117
  %v158 = vunpack.c.l.b16 %v118
  %v159 = vunpack.c.h.b16 %v118
  %v160 = vunpack.c.l.b16 %v119
  %v161 = vunpack.c.h.b16 %v119
  %v162 = vunpack.c.l.b16 %v120
  %v163 = vunpack.c.h.b16 %v120
  %v164 = vunpack.c.l.b16 %v121
  %v165 = vunpack.c.h.b16 %v121
  %v166 = vunpack.c.l.b16 %v122
  %v167 = vunpack.c.h.b16 %v122
  %v168 = vunpack.c.l.b16 %v123
  %v169 = vunpack.c.h.b16 %v123
  %v170 = vunpack.c.l.b16 %v124
  %v171 = vunpack.c.h.b16 %v124
  %v172 = vunpack.c.l.b16 %v125
  %v173 = vunpack.c.h.b16 %v125
  %v174 = vunpack.c.l.b16 %v126
  %v175 = vunpack.c.h.b16 %v126
  %v176 = vunpack.c.l.b16 %v127
  %v177 = vunpack.c.h.b16 %v127
  %v178 = vunpack.c.l.b16 %v128
  %v179 = vunpack.c.h.b16 %v128
  %v180 = vunpack.c.l.b16 %v129
  %v181 = vunpack.c.h.b16 %v129
  %v182 = vunpack.c.l.b16 %v130
  %v183 = vunpack.c.h.b16 %v130
  %v184 = vunpack.c.l.b16 %v131
  %v185 = vunpack.c.h.b16 %v131
  %v186 = vpack.c.b16 %v156, %v154
  %v187 = vpack.c.b16 %v157, %v155
  %v188 = vpack.c.b16 %v160, %v158
  %v189 = vpack.c.b16 %v161, %v159
  %v190 = vpack.c.b16 %v164, %v162
  %v191 = vpack.c.b16 %v165, %v163
  %v192 = vpack.c.b16 %v168, %v166
  %v193 = vpack.c.b16 %v169, %v167
  %v194 = vpack.c.b16 %v172, %v170
  %v195 = vpack.c.b16 %v173, %v171
  %v196 = vpack.c.b16 %v176, %v174
  %v197 = vpack.c.b16 %v177, %v175
  %v198 = vpack.c.b16 %v180, %v178
  %v199 = vpack.c.b16 %v181, %v179
  %v200 = vpack.c.b16 %v184, %v182
  %v201 = vpack.c.b16 %v185, %v183
  %218 = vmatpush.bf16.msra.mxu0 %v200
  %219 = vmatpush.bf16.msra.mxu0 %v198
  %220 = vmatpush.bf16.msra.mxu0 %v196
  %221 = vmatpush.bf16.msra.mxu0 %v194
  %222 = vmatpush.bf16.msra.mxu0 %v192
  %223 = vmatpush.bf16.msra.mxu0 %v190
  %224 = vmatpush.bf16.msra.mxu0 %v188
  %225 = vmatpush.bf16.msra.mxu0 %v186
  %226 = vmatmul.bf16.gmra.mxu0 %v84
  %v227 = vpop.f32.mrf.mxu0
  %v228 = vadd.f32 %v134, %v227
  %v229 = vpop.f32.mrf.mxu0
  %v230 = vadd.f32 %v134, %v229
  %231 = vmatmul.bf16.gmra.mxu0 %v85
  %v232 = vpop.f32.mrf.mxu0
  %v233 = vadd.f32 %v134, %v232
  %v234 = vpop.f32.mrf.mxu0
  %v235 = vadd.f32 %v134, %v234
  %236 = vmatmul.bf16.gmra.mxu0 %v86
  %v237 = vpop.f32.mrf.mxu0
  %v238 = vadd.f32 %v134, %v237
  %v239 = vpop.f32.mrf.mxu0
  %v240 = vadd.f32 %v134, %v239
  %241 = vmatmul.bf16.gmra.mxu0 %v87
  %v242 = vpop.f32.mrf.mxu0
  %v243 = vadd.f32 %v134, %v242
  %v244 = vpop.f32.mrf.mxu0
  %v245 = vadd.f32 %v134, %v244
  %246 = vmatmul.bf16.gmra.mxu0 %v88
  %v247 = vpop.f32.mrf.mxu0
  %v248 = vadd.f32 %v134, %v247
  %v249 = vpop.f32.mrf.mxu0
  %v250 = vadd.f32 %v134, %v249
  %251 = vmatmul.bf16.gmra.mxu0 %v89
  %v252 = vpop.f32.mrf.mxu0
  %v253 = vadd.f32 %v134, %v252
  %v254 = vpop.f32.mrf.mxu0
  %v255 = vadd.f32 %v134, %v254
  %256 = vmatmul.bf16.gmra.mxu0 %v90
  %v257 = vpop.f32.mrf.mxu0
  %v258 = vadd.f32 %v134, %v257
  %v259 = vpop.f32.mrf.mxu0
  %v260 = vadd.f32 %v134, %v259
  %261 = vmatmul.bf16.gmra.mxu0 %v91
  %v262 = vpop.f32.mrf.mxu0
  %v263 = vadd.f32 %v134, %v262
  %v264 = vpop.f32.mrf.mxu0
  %v265 = vadd.f32 %v134, %v264
  %266 = vmatmul.bf16.gmra.mxu0 %v92
  %v267 = vpop.f32.mrf.mxu0
  %v268 = vadd.f32 %v134, %v267
  %v269 = vpop.f32.mrf.mxu0
  %v270 = vadd.f32 %v134, %v269
  %271 = vmatmul.bf16.gmra.mxu0 %v93
  %v272 = vpop.f32.mrf.mxu0
  %v273 = vadd.f32 %v134, %v272
  %v274 = vpop.f32.mrf.mxu0
  %v275 = vadd.f32 %v134, %v274
  %276 = vmatmul.bf16.gmra.mxu0 %v94
  %v277 = vpop.f32.mrf.mxu0
  %v278 = vadd.f32 %v134, %v277
  %v279 = vpop.f32.mrf.mxu0
  %v280 = vadd.f32 %v134, %v279
  %281 = vmatmul.bf16.gmra.mxu0 %v95
  %v282 = vpop.f32.mrf.mxu0
  %v283 = vadd.f32 %v134, %v282
  %v284 = vpop.f32.mrf.mxu0
  %v285 = vadd.f32 %v134, %v284
  %286 = vmatmul.bf16.gmra.mxu0 %v96
  %v287 = vpop.f32.mrf.mxu0
  %v288 = vadd.f32 %v134, %v287
  %v289 = vpop.f32.mrf.mxu0
  %v290 = vadd.f32 %v134, %v289
  %291 = vmatmul.bf16.gmra.mxu0 %v97
  %v292 = vpop.f32.mrf.mxu0
  %v293 = vadd.f32 %v134, %v292
  %v294 = vpop.f32.mrf.mxu0
  %v295 = vadd.f32 %v134, %v294
  %296 = vmatmul.bf16.gmra.mxu0 %v98
  %v297 = vpop.f32.mrf.mxu0
  %v298 = vadd.f32 %v134, %v297
  %v299 = vpop.f32.mrf.mxu0
  %v300 = vadd.f32 %v134, %v299
  %301 = vmatmul.bf16.gmra.mxu0 %v99
  %v302 = vpop.f32.mrf.mxu0
  %v303 = vadd.f32 %v134, %v302
  %v304 = vpop.f32.mrf.mxu0
  %v305 = vadd.f32 %v134, %v304
  %306 = vmatmul.bf16.gmra.mxu0 %v100
  %v307 = vpop.f32.mrf.mxu0
  %v308 = vadd.f32 %v134, %v307
  %v309 = vpop.f32.mrf.mxu0
  %v310 = vadd.f32 %v134, %v309
  %311 = vmatmul.bf16.gmra.mxu0 %v101
  %v312 = vpop.f32.mrf.mxu0
  %v313 = vadd.f32 %v134, %v312
  %v314 = vpop.f32.mrf.mxu0
  %v315 = vadd.f32 %v134, %v314
  %316 = vmatmul.bf16.gmra.mxu0 %v102
  %v317 = vpop.f32.mrf.mxu0
  %v318 = vadd.f32 %v134, %v317
  %v319 = vpop.f32.mrf.mxu0
  %v320 = vadd.f32 %v134, %v319
  %321 = vmatmul.bf16.gmra.mxu0 %v103
  %v322 = vpop.f32.mrf.mxu0
  %v323 = vadd.f32 %v134, %v322
  %v324 = vpop.f32.mrf.mxu0
  %v325 = vadd.f32 %v134, %v324
  %326 = vmatmul.bf16.gmra.mxu0 %v104
  %v327 = vpop.f32.mrf.mxu0
  %v328 = vadd.f32 %v134, %v327
  %v329 = vpop.f32.mrf.mxu0
  %v330 = vadd.f32 %v134, %v329
  %331 = vmatmul.bf16.gmra.mxu0 %v105
  %v332 = vpop.f32.mrf.mxu0
  %v333 = vadd.f32 %v134, %v332
  %v334 = vpop.f32.mrf.mxu0
  %v335 = vadd.f32 %v134, %v334
  %336 = vmatmul.bf16.gmra.mxu0 %v106
  %v337 = vpop.f32.mrf.mxu0
  %v338 = vadd.f32 %v134, %v337
  %v339 = vpop.f32.mrf.mxu0
  %v340 = vadd.f32 %v134, %v339
  %341 = vmatmul.bf16.gmra.mxu0 %v107
  %v342 = vpop.f32.mrf.mxu0
  %v343 = vadd.f32 %v134, %v342
  %v344 = vpop.f32.mrf.mxu0
  %v345 = vadd.f32 %v134, %v344
  %346 = vmatmul.bf16.gmra.mxu0 %v108
  %v347 = vpop.f32.mrf.mxu0
  %v348 = vadd.f32 %v134, %v347
  %v349 = vpop.f32.mrf.mxu0
  %v350 = vadd.f32 %v134, %v349
  %351 = vmatmul.bf16.gmra.mxu0 %v109
  %v352 = vpop.f32.mrf.mxu0
  %v353 = vadd.f32 %v134, %v352
  %v354 = vpop.f32.mrf.mxu0
  %v355 = vadd.f32 %v134, %v354
  %356 = vmatmul.bf16.gmra.mxu0 %v110
  %v357 = vpop.f32.mrf.mxu0
  %v358 = vadd.f32 %v134, %v357
  %v359 = vpop.f32.mrf.mxu0
  %v360 = vadd.f32 %v134, %v359
  %361 = vmatmul.bf16.gmra.mxu0 %v111
  %v362 = vpop.f32.mrf.mxu0
  %v363 = vadd.f32 %v134, %v362
  %v364 = vpop.f32.mrf.mxu0
  %v365 = vadd.f32 %v134, %v364
  %366 = vmatmul.bf16.gmra.mxu0 %v112
  %v367 = vpop.f32.mrf.mxu0
  %v368 = vadd.f32 %v134, %v367
  %v369 = vpop.f32.mrf.mxu0
  %v370 = vadd.f32 %v134, %v369
  %371 = vmatmul.bf16.gmra.mxu0 %v113
  %v372 = vpop.f32.mrf.mxu0
  %v373 = vadd.f32 %v134, %v372
  %v374 = vpop.f32.mrf.mxu0
  %v375 = vadd.f32 %v134, %v374
  %376 = vmatmul.bf16.gmra.mxu0 %v114
  %v377 = vpop.f32.mrf.mxu0
  %v378 = vadd.f32 %v134, %v377
  %v379 = vpop.f32.mrf.mxu0
  %v380 = vadd.f32 %v134, %v379
  %381 = vmatmul.bf16.gmra.mxu0 %v115
  %v382 = vpop.f32.mrf.mxu0
  %v383 = vadd.f32 %v134, %v382
  %v384 = vpop.f32.mrf.mxu0
  %v385 = vadd.f32 %v134, %v384
  %386 = vdwg.mxu0
  %387 = vmatpush.bf16.msra.mxu0 %v201
  %388 = vmatpush.bf16.msra.mxu0 %v199
  %389 = vmatpush.bf16.msra.mxu0 %v197
  %390 = vmatpush.bf16.msra.mxu0 %v195
  %391 = vmatpush.bf16.msra.mxu0 %v193
  %392 = vmatpush.bf16.msra.mxu0 %v191
  %393 = vmatpush.bf16.msra.mxu0 %v189
  %394 = vmatpush.bf16.msra.mxu0 %v187
  %395 = vmatmul.bf16.gmra.mxu0 %v84
  %v396 = vpop.f32.mrf.mxu0
  %v397 = vadd.f32 %v135, %v396
  %v398 = vpop.f32.mrf.mxu0
  %v399 = vadd.f32 %v135, %v398
  %400 = vmatmul.bf16.gmra.mxu0 %v85
  %v401 = vpop.f32.mrf.mxu0
  %v402 = vadd.f32 %v135, %v401
  %v403 = vpop.f32.mrf.mxu0
  %v404 = vadd.f32 %v135, %v403
  %405 = vmatmul.bf16.gmra.mxu0 %v86
  %v406 = vpop.f32.mrf.mxu0
  %v407 = vadd.f32 %v135, %v406
  %v408 = vpop.f32.mrf.mxu0
  %v409 = vadd.f32 %v135, %v408
  %410 = vmatmul.bf16.gmra.mxu0 %v87
  %v411 = vpop.f32.mrf.mxu0
  %v412 = vadd.f32 %v135, %v411
  %v413 = vpop.f32.mrf.mxu0
  %v414 = vadd.f32 %v135, %v413
  %415 = vmatmul.bf16.gmra.mxu0 %v88
  %v416 = vpop.f32.mrf.mxu0
  %v417 = vadd.f32 %v135, %v416
  %v418 = vpop.f32.mrf.mxu0
  %v419 = vadd.f32 %v135, %v418
  %420 = vmatmul.bf16.gmra.mxu0 %v89
  %v421 = vpop.f32.mrf.mxu0
  %v422 = vadd.f32 %v135, %v421
  %v423 = vpop.f32.mrf.mxu0
  %v424 = vadd.f32 %v135, %v423
  %425 = vmatmul.bf16.gmra.mxu0 %v90
  %v426 = vpop.f32.mrf.mxu0
  %v427 = vadd.f32 %v135, %v426
  %v428 = vpop.f32.mrf.mxu0
  %v429 = vadd.f32 %v135, %v428
  %430 = vmatmul.bf16.gmra.mxu0 %v91
  %v431 = vpop.f32.mrf.mxu0
  %v432 = vadd.f32 %v135, %v431
  %v433 = vpop.f32.mrf.mxu0
  %v434 = vadd.f32 %v135, %v433
  %435 = vmatmul.bf16.gmra.mxu0 %v92
  %v436 = vpop.f32.mrf.mxu0
  %v437 = vadd.f32 %v135, %v436
  %v438 = vpop.f32.mrf.mxu0
  %v439 = vadd.f32 %v135, %v438
  %440 = vmatmul.bf16.gmra.mxu0 %v93
  %v441 = vpop.f32.mrf.mxu0
  %v442 = vadd.f32 %v135, %v441
  %v443 = vpop.f32.mrf.mxu0
  %v444 = vadd.f32 %v135, %v443
  %445 = vmatmul.bf16.gmra.mxu0 %v94
  %v446 = vpop.f32.mrf.mxu0
  %v447 = vadd.f32 %v135, %v446
  %v448 = vpop.f32.mrf.mxu0
  %v449 = vadd.f32 %v135, %v448
  %450 = vmatmul.bf16.gmra.mxu0 %v95
  %v451 = vpop.f32.mrf.mxu0
  %v452 = vadd.f32 %v135, %v451
  %v453 = vpop.f32.mrf.mxu0
  %v454 = vadd.f32 %v135, %v453
  %455 = vmatmul.bf16.gmra.mxu0 %v96
  %v456 = vpop.f32.mrf.mxu0
  %v457 = vadd.f32 %v135, %v456
  %v458 = vpop.f32.mrf.mxu0
  %v459 = vadd.f32 %v135, %v458
  %460 = vmatmul.bf16.gmra.mxu0 %v97
  %v461 = vpop.f32.mrf.mxu0
  %v462 = vadd.f32 %v135, %v461
  %v463 = vpop.f32.mrf.mxu0
  %v464 = vadd.f32 %v135, %v463
  %465 = vmatmul.bf16.gmra.mxu0 %v98
  %v466 = vpop.f32.mrf.mxu0
  %v467 = vadd.f32 %v135, %v466
  %v468 = vpop.f32.mrf.mxu0
  %v469 = vadd.f32 %v135, %v468
  %470 = vmatmul.bf16.gmra.mxu0 %v99
  %v471 = vpop.f32.mrf.mxu0
  %v472 = vadd.f32 %v135, %v471
  %v473 = vpop.f32.mrf.mxu0
  %v474 = vadd.f32 %v135, %v473
  %475 = vmatmul.bf16.gmra.mxu0 %v100
  %v476 = vpop.f32.mrf.mxu0
  %v477 = vadd.f32 %v135, %v476
  %v478 = vpop.f32.mrf.mxu0
  %v479 = vadd.f32 %v135, %v478
  %480 = vmatmul.bf16.gmra.mxu0 %v101
  %v481 = vpop.f32.mrf.mxu0
  %v482 = vadd.f32 %v135, %v481
  %v483 = vpop.f32.mrf.mxu0
  %v484 = vadd.f32 %v135, %v483
  %485 = vmatmul.bf16.gmra.mxu0 %v102
  %v486 = vpop.f32.mrf.mxu0
  %v487 = vadd.f32 %v135, %v486
  %v488 = vpop.f32.mrf.mxu0
  %v489 = vadd.f32 %v135, %v488
  %490 = vmatmul.bf16.gmra.mxu0 %v103
  %v491 = vpop.f32.mrf.mxu0
  %v492 = vadd.f32 %v135, %v491
  %v493 = vpop.f32.mrf.mxu0
  %v494 = vadd.f32 %v135, %v493
  %495 = vmatmul.bf16.gmra.mxu0 %v104
  %v496 = vpop.f32.mrf.mxu0
  %v497 = vadd.f32 %v135, %v496
  %v498 = vpop.f32.mrf.mxu0
  %v499 = vadd.f32 %v135, %v498
  %500 = vmatmul.bf16.gmra.mxu0 %v105
  %v501 = vpop.f32.mrf.mxu0
  %v502 = vadd.f32 %v135, %v501
  %v503 = vpop.f32.mrf.mxu0
  %v504 = vadd.f32 %v135, %v503
  %505 = vmatmul.bf16.gmra.mxu0 %v106
  %v506 = vpop.f32.mrf.mxu0
  %v507 = vadd.f32 %v135, %v506
  %v508 = vpop.f32.mrf.mxu0
  %v509 = vadd.f32 %v135, %v508
  %510 = vmatmul.bf16.gmra.mxu0 %v107
  %v511 = vpop.f32.mrf.mxu0
  %v512 = vadd.f32 %v135, %v511
  %v513 = vpop.f32.mrf.mxu0
  %v514 = vadd.f32 %v135, %v513
  %515 = vmatmul.bf16.gmra.mxu0 %v108
  %v516 = vpop.f32.mrf.mxu0
  %v517 = vadd.f32 %v135, %v516
  %v518 = vpop.f32.mrf.mxu0
  %v519 = vadd.f32 %v135, %v518
  %520 = vmatmul.bf16.gmra.mxu0 %v109
  %v521 = vpop.f32.mrf.mxu0
  %v522 = vadd.f32 %v135, %v521
  %v523 = vpop.f32.mrf.mxu0
  %v524 = vadd.f32 %v135, %v523
  %525 = vmatmul.bf16.gmra.mxu0 %v110
  %v526 = vpop.f32.mrf.mxu0
  %v527 = vadd.f32 %v135, %v526
  %v528 = vpop.f32.mrf.mxu0
  %v529 = vadd.f32 %v135, %v528
  %530 = vmatmul.bf16.gmra.mxu0 %v111
  %v531 = vpop.f32.mrf.mxu0
  %v532 = vadd.f32 %v135, %v531
  %v533 = vpop.f32.mrf.mxu0
  %v534 = vadd.f32 %v135, %v533
  %535 = vmatmul.bf16.gmra.mxu0 %v112
  %v536 = vpop.f32.mrf.mxu0
  %v537 = vadd.f32 %v135, %v536
  %v538 = vpop.f32.mrf.mxu0
  %v539 = vadd.f32 %v135, %v538
  %540 = vmatmul.bf16.gmra.mxu0 %v113
  %v541 = vpop.f32.mrf.mxu0
  %v542 = vadd.f32 %v135, %v541
  %v543 = vpop.f32.mrf.mxu0
  %v544 = vadd.f32 %v135, %v543
  %545 = vmatmul.bf16.gmra.mxu0 %v114
  %v546 = vpop.f32.mrf.mxu0
  %v547 = vadd.f32 %v135, %v546
  %v548 = vpop.f32.mrf.mxu0
  %v549 = vadd.f32 %v135, %v548
  %550 = vmatmul.bf16.gmra.mxu0 %v115
  %v551 = vpop.f32.mrf.mxu0
  %v552 = vadd.f32 %v135, %v551
  %v553 = vpop.f32.mrf.mxu0
  %v554 = vadd.f32 %v135, %v553
  %555 = vdwg.mxu0
  %v556 = vmul.f32 %v228, 0.5
  %v557 = vmul.f32 %v397, 0.5
  %v558 = vmul.f32 %v230, 0.5
  %v559 = vmul.f32 %v399, 0.5
  %v560 = vmul.f32 %v233, 0.5
  %v561 = vmul.f32 %v402, 0.5
  %v562 = vmul.f32 %v235, 0.5
  %v563 = vmul.f32 %v404, 0.5
  %v564 = vmul.f32 %v238, 0.5
  %v565 = vmul.f32 %v407, 0.5
  %v566 = vmul.f32 %v240, 0.5
  %v567 = vmul.f32 %v409, 0.5
  %v568 = vmul.f32 %v243, 0.5
  %v569 = vmul.f32 %v412, 0.5
  %v570 = vmul.f32 %v245, 0.5
  %v571 = vmul.f32 %v414, 0.5
  %v572 = vmul.f32 %v248, 0.5
  %v573 = vmul.f32 %v417, 0.5
  %v574 = vmul.f32 %v250, 0.5
  %v575 = vmul.f32 %v419, 0.5
  %v576 = vmul.f32 %v253, 0.5
  %v577 = vmul.f32 %v422, 0.5
  %v578 = vmul.f32 %v255, 0.5
  %v579 = vmul.f32 %v424, 0.5
  %v580 = vmul.f32 %v258, 0.5
  %v581 = vmul.f32 %v427, 0.5
  %v582 = vmul.f32 %v260, 0.5
  %v583 = vmul.f32 %v429, 0.5
  %v584 = vmul.f32 %v263, 0.5
  %v585 = vmul.f32 %v432, 0.5
  %v586 = vmul.f32 %v265, 0.5
  %v587 = vmul.f32 %v434, 0.5
  %v588 = vmul.f32 %v268, 0.5
  %v589 = vmul.f32 %v437, 0.5
  %v590 = vmul.f32 %v270, 0.5
  %v591 = vmul.f32 %v439, 0.5
  %v592 = vmul.f32 %v273, 0.5
  %v593 = vmul.f32 %v442, 0.5
  %v594 = vmul.f32 %v275, 0.5
  %v595 = vmul.f32 %v444, 0.5
  %v596 = vmul.f32 %v278, 0.5
  %v597 = vmul.f32 %v447, 0.5
  %v598 = vmul.f32 %v280, 0.5
  %v599 = vmul.f32 %v449, 0.5
  %v600 = vmul.f32 %v283, 0.5
  %v601 = vmul.f32 %v452, 0.5
  %v602 = vmul.f32 %v285, 0.5
  %v603 = vmul.f32 %v454, 0.5
  %v604 = vmul.f32 %v288, 0.5
  %v605 = vmul.f32 %v457, 0.5
  %v606 = vmul.f32 %v290, 0.5
  %v607 = vmul.f32 %v459, 0.5
  %v608 = vmul.f32 %v293, 0.5
  %v609 = vmul.f32 %v462, 0.5
  %v610 = vmul.f32 %v295, 0.5
  %v611 = vmul.f32 %v464, 0.5
  %v612 = vmul.f32 %v298, 0.5
  %v613 = vmul.f32 %v467, 0.5
  %v614 = vmul.f32 %v300, 0.5
  %v615 = vmul.f32 %v469, 0.5
  %v616 = vmul.f32 %v303, 0.5
  %v617 = vmul.f32 %v472, 0.5
  %v618 = vmul.f32 %v305, 0.5
  %v619 = vmul.f32 %v474, 0.5
  %v620 = vmul.f32 %v308, 0.5
  %v621 = vmul.f32 %v477, 0.5
  %v622 = vmul.f32 %v310, 0.5
  %v623 = vmul.f32 %v479, 0.5
  %v624 = vmul.f32 %v313, 0.5
  %v625 = vmul.f32 %v482, 0.5
  %v626 = vmul.f32 %v315, 0.5
  %v627 = vmul.f32 %v484, 0.5
  %v628 = vmul.f32 %v318, 0.5
  %v629 = vmul.f32 %v487, 0.5
  %v630 = vmul.f32 %v320, 0.5
  %v631 = vmul.f32 %v489, 0.5
  %v632 = vmul.f32 %v323, 0.5
  %v633 = vmul.f32 %v492, 0.5
  %v634 = vmul.f32 %v325, 0.5
  %v635 = vmul.f32 %v494, 0.5
  %v636 = vmul.f32 %v328, 0.5
  %v637 = vmul.f32 %v497, 0.5
  %v638 = vmul.f32 %v330, 0.5
  %v639 = vmul.f32 %v499, 0.5
  %v640 = vmul.f32 %v333, 0.5
  %v641 = vmul.f32 %v502, 0.5
  %v642 = vmul.f32 %v335, 0.5
  %v643 = vmul.f32 %v504, 0.5
  %v644 = vmul.f32 %v338, 0.5
  %v645 = vmul.f32 %v507, 0.5
  %v646 = vmul.f32 %v340, 0.5
  %v647 = vmul.f32 %v509, 0.5
  %v648 = vmul.f32 %v343, 0.5
  %v649 = vmul.f32 %v512, 0.5
  %v650 = vmul.f32 %v345, 0.5
  %v651 = vmul.f32 %v514, 0.5
  %v652 = vmul.f32 %v348, 0.5
  %v653 = vmul.f32 %v517, 0.5
  %v654 = vmul.f32 %v350, 0.5
  %v655 = vmul.f32 %v519, 0.5
  %v656 = vmul.f32 %v353, 0.5
  %v657 = vmul.f32 %v522, 0.5
  %v658 = vmul.f32 %v355, 0.5
  %v659 = vmul.f32 %v524, 0.5
  %v660 = vmul.f32 %v358, 0.5
  %v661 = vmul.f32 %v527, 0.5
  %v662 = vmul.f32 %v360, 0.5
  %v663 = vmul.f32 %v529, 0.5
  %v664 = vmul.f32 %v363, 0.5
  %v665 = vmul.f32 %v532, 0.5
  %v666 = vmul.f32 %v365, 0.5
  %v667 = vmul.f32 %v534, 0.5
  %v668 = vmul.f32 %v368, 0.5
  %v669 = vmul.f32 %v537, 0.5
  %v670 = vmul.f32 %v370, 0.5
  %v671 = vmul.f32 %v539, 0.5
  %v672 = vmul.f32 %v373, 0.5
  %v673 = vmul.f32 %v542, 0.5
  %v674 = vmul.f32 %v375, 0.5
  %v675 = vmul.f32 %v544, 0.5
  %v676 = vmul.f32 %v378, 0.5
  %v677 = vmul.f32 %v547, 0.5
  %v678 = vmul.f32 %v380, 0.5
  %v679 = vmul.f32 %v549, 0.5
  %v680 = vmul.f32 %v383, 0.5
  %v681 = vmul.f32 %v552, 0.5
  %v682 = vmul.f32 %v385, 0.5
  %v683 = vmul.f32 %v554, 0.5
  %v684 = vmul.f32 %v228, 0.70710677
  %v685 = vmul.f32 %v397, 0.70710677
  %v686 = vmul.f32 %v230, 0.70710677
  %v687 = vmul.f32 %v399, 0.70710677
  %v688 = vmul.f32 %v233, 0.70710677
  %v689 = vmul.f32 %v402, 0.70710677
  %v690 = vmul.f32 %v235, 0.70710677
  %v691 = vmul.f32 %v404, 0.70710677
  %v692 = vmul.f32 %v238, 0.70710677
  %v693 = vmul.f32 %v407, 0.70710677
  %v694 = vmul.f32 %v240, 0.70710677
  %v695 = vmul.f32 %v409, 0.70710677
  %v696 = vmul.f32 %v243, 0.70710677
  %v697 = vmul.f32 %v412, 0.70710677
  %v698 = vmul.f32 %v245, 0.70710677
  %v699 = vmul.f32 %v414, 0.70710677
  %v700 = vmul.f32 %v248, 0.70710677
  %v701 = vmul.f32 %v417, 0.70710677
  %v702 = vmul.f32 %v250, 0.70710677
  %v703 = vmul.f32 %v419, 0.70710677
  %v704 = vmul.f32 %v253, 0.70710677
  %v705 = vmul.f32 %v422, 0.70710677
  %v706 = vmul.f32 %v255, 0.70710677
  %v707 = vmul.f32 %v424, 0.70710677
  %v708 = vmul.f32 %v258, 0.70710677
  %v709 = vmul.f32 %v427, 0.70710677
  %v710 = vmul.f32 %v260, 0.70710677
  %v711 = vmul.f32 %v429, 0.70710677
  %v712 = vmul.f32 %v263, 0.70710677
  %v713 = vmul.f32 %v432, 0.70710677
  %v714 = vmul.f32 %v265, 0.70710677
  %v715 = vmul.f32 %v434, 0.70710677
  %v716 = vmul.f32 %v268, 0.70710677
  %v717 = vmul.f32 %v437, 0.70710677
  %v718 = vmul.f32 %v270, 0.70710677
  %v719 = vmul.f32 %v439, 0.70710677
  %v720 = vmul.f32 %v273, 0.70710677
  %v721 = vmul.f32 %v442, 0.70710677
  %v722 = vmul.f32 %v275, 0.70710677
  %v723 = vmul.f32 %v444, 0.70710677
  %v724 = vmul.f32 %v278, 0.70710677
  %v725 = vmul.f32 %v447, 0.70710677
  %v726 = vmul.f32 %v280, 0.70710677
  %v727 = vmul.f32 %v449, 0.70710677
  %v728 = vmul.f32 %v283, 0.70710677
  %v729 = vmul.f32 %v452, 0.70710677
  %v730 = vmul.f32 %v285, 0.70710677
  %v731 = vmul.f32 %v454, 0.70710677
  %v732 = vmul.f32 %v288, 0.70710677
  %v733 = vmul.f32 %v457, 0.70710677
  %v734 = vmul.f32 %v290, 0.70710677
  %v735 = vmul.f32 %v459, 0.70710677
  %v736 = vmul.f32 %v293, 0.70710677
  %v737 = vmul.f32 %v462, 0.70710677
  %v738 = vmul.f32 %v295, 0.70710677
  %v739 = vmul.f32 %v464, 0.70710677
  %v740 = vmul.f32 %v298, 0.70710677
  %v741 = vmul.f32 %v467, 0.70710677
  %v742 = vmul.f32 %v300, 0.70710677
  %v743 = vmul.f32 %v469, 0.70710677
  %v744 = vmul.f32 %v303, 0.70710677
  %v745 = vmul.f32 %v472, 0.70710677
  %v746 = vmul.f32 %v305, 0.70710677
  %v747 = vmul.f32 %v474, 0.70710677
  %v748 = vmul.f32 %v308, 0.70710677
  %v749 = vmul.f32 %v477, 0.70710677
  %v750 = vmul.f32 %v310, 0.70710677
  %v751 = vmul.f32 %v479, 0.70710677
  %v752 = vmul.f32 %v313, 0.70710677
  %v753 = vmul.f32 %v482, 0.70710677
  %v754 = vmul.f32 %v315, 0.70710677
  %v755 = vmul.f32 %v484, 0.70710677
  %v756 = vmul.f32 %v318, 0.70710677
  %v757 = vmul.f32 %v487, 0.70710677
  %v758 = vmul.f32 %v320, 0.70710677
  %v759 = vmul.f32 %v489, 0.70710677
  %v760 = vmul.f32 %v323, 0.70710677
  %v761 = vmul.f32 %v492, 0.70710677
  %v762 = vmul.f32 %v325, 0.70710677
  %v763 = vmul.f32 %v494, 0.70710677
  %v764 = vmul.f32 %v328, 0.70710677
  %v765 = vmul.f32 %v497, 0.70710677
  %v766 = vmul.f32 %v330, 0.70710677
  %v767 = vmul.f32 %v499, 0.70710677
  %v768 = vmul.f32 %v333, 0.70710677
  %v769 = vmul.f32 %v502, 0.70710677
  %v770 = vmul.f32 %v335, 0.70710677
  %v771 = vmul.f32 %v504, 0.70710677
  %v772 = vmul.f32 %v338, 0.70710677
  %v773 = vmul.f32 %v507, 0.70710677
  %v774 = vmul.f32 %v340, 0.70710677
  %v775 = vmul.f32 %v509, 0.70710677
  %v776 = vmul.f32 %v343, 0.70710677
  %v777 = vmul.f32 %v512, 0.70710677
  %v778 = vmul.f32 %v345, 0.70710677
  %v779 = vmul.f32 %v514, 0.70710677
  %v780 = vmul.f32 %v348, 0.70710677
  %v781 = vmul.f32 %v517, 0.70710677
  %v782 = vmul.f32 %v350, 0.70710677
  %v783 = vmul.f32 %v519, 0.70710677
  %v784 = vmul.f32 %v353, 0.70710677
  %v785 = vmul.f32 %v522, 0.70710677
  %v786 = vmul.f32 %v355, 0.70710677
  %v787 = vmul.f32 %v524, 0.70710677
  %v788 = vmul.f32 %v358, 0.70710677
  %v789 = vmul.f32 %v527, 0.70710677
  %v790 = vmul.f32 %v360, 0.70710677
  %v791 = vmul.f32 %v529, 0.70710677
  %v792 = vmul.f32 %v363, 0.70710677
  %v793 = vmul.f32 %v532, 0.70710677
  %v794 = vmul.f32 %v365, 0.70710677
  %v795 = vmul.f32 %v534, 0.70710677
  %v796 = vmul.f32 %v368, 0.70710677
  %v797 = vmul.f32 %v537, 0.70710677
  %v798 = vmul.f32 %v370, 0.70710677
  %v799 = vmul.f32 %v539, 0.70710677
  %v800 = vmul.f32 %v373, 0.70710677
  %v801 = vmul.f32 %v542, 0.70710677
  %v802 = vmul.f32 %v375, 0.70710677
  %v803 = vmul.f32 %v544, 0.70710677
  %v804 = vmul.f32 %v378, 0.70710677
  %v805 = vmul.f32 %v547, 0.70710677
  %v806 = vmul.f32 %v380, 0.70710677
  %v807 = vmul.f32 %v549, 0.70710677
  %v808 = vmul.f32 %v383, 0.70710677
  %v809 = vmul.f32 %v552, 0.70710677
  %v810 = vmul.f32 %v385, 0.70710677
  %v811 = vmul.f32 %v554, 0.70710677
  %vm812 = vcmp.ge.f32.partialorder %v684, 0.0
  %vm813 = vcmp.ge.f32.partialorder %v685, 0.0
  %vm814 = vcmp.ge.f32.partialorder %v686, 0.0
  %vm815 = vcmp.ge.f32.partialorder %v687, 0.0
  %vm816 = vcmp.ge.f32.partialorder %v688, 0.0
  %vm817 = vcmp.ge.f32.partialorder %v689, 0.0
  %vm818 = vcmp.ge.f32.partialorder %v690, 0.0
  %vm819 = vcmp.ge.f32.partialorder %v691, 0.0
  %vm820 = vcmp.ge.f32.partialorder %v692, 0.0
  %vm821 = vcmp.ge.f32.partialorder %v693, 0.0
  %vm822 = vcmp.ge.f32.partialorder %v694, 0.0
  %vm823 = vcmp.ge.f32.partialorder %v695, 0.0
  %vm824 = vcmp.ge.f32.partialorder %v696, 0.0
  %vm825 = vcmp.ge.f32.partialorder %v697, 0.0
  %vm826 = vcmp.ge.f32.partialorder %v698, 0.0
  %vm827 = vcmp.ge.f32.partialorder %v699, 0.0
  %vm828 = vcmp.ge.f32.partialorder %v700, 0.0
  %vm829 = vcmp.ge.f32.partialorder %v701, 0.0
  %vm830 = vcmp.ge.f32.partialorder %v702, 0.0
  %vm831 = vcmp.ge.f32.partialorder %v703, 0.0
  %vm832 = vcmp.ge.f32.partialorder %v704, 0.0
  %vm833 = vcmp.ge.f32.partialorder %v705, 0.0
  %vm834 = vcmp.ge.f32.partialorder %v706, 0.0
  %vm835 = vcmp.ge.f32.partialorder %v707, 0.0
  %vm836 = vcmp.ge.f32.partialorder %v708, 0.0
  %vm837 = vcmp.ge.f32.partialorder %v709, 0.0
  %vm838 = vcmp.ge.f32.partialorder %v710, 0.0
  %vm839 = vcmp.ge.f32.partialorder %v711, 0.0
  %vm840 = vcmp.ge.f32.partialorder %v712, 0.0
  %vm841 = vcmp.ge.f32.partialorder %v713, 0.0
  %vm842 = vcmp.ge.f32.partialorder %v714, 0.0
  %vm843 = vcmp.ge.f32.partialorder %v715, 0.0
  %vm844 = vcmp.ge.f32.partialorder %v716, 0.0
  %vm845 = vcmp.ge.f32.partialorder %v717, 0.0
  %vm846 = vcmp.ge.f32.partialorder %v718, 0.0
  %vm847 = vcmp.ge.f32.partialorder %v719, 0.0
  %vm848 = vcmp.ge.f32.partialorder %v720, 0.0
  %vm849 = vcmp.ge.f32.partialorder %v721, 0.0
  %vm850 = vcmp.ge.f32.partialorder %v722, 0.0
  %vm851 = vcmp.ge.f32.partialorder %v723, 0.0
  %vm852 = vcmp.ge.f32.partialorder %v724, 0.0
  %vm853 = vcmp.ge.f32.partialorder %v725, 0.0
  %vm854 = vcmp.ge.f32.partialorder %v726, 0.0
  %vm855 = vcmp.ge.f32.partialorder %v727, 0.0
  %vm856 = vcmp.ge.f32.partialorder %v728, 0.0
  %vm857 = vcmp.ge.f32.partialorder %v729, 0.0
  %vm858 = vcmp.ge.f32.partialorder %v730, 0.0
  %vm859 = vcmp.ge.f32.partialorder %v731, 0.0
  %vm860 = vcmp.ge.f32.partialorder %v732, 0.0
  %vm861 = vcmp.ge.f32.partialorder %v733, 0.0
  %vm862 = vcmp.ge.f32.partialorder %v734, 0.0
  %vm863 = vcmp.ge.f32.partialorder %v735, 0.0
  %vm864 = vcmp.ge.f32.partialorder %v736, 0.0
  %vm865 = vcmp.ge.f32.partialorder %v737, 0.0
  %vm866 = vcmp.ge.f32.partialorder %v738, 0.0
  %vm867 = vcmp.ge.f32.partialorder %v739, 0.0
  %vm868 = vcmp.ge.f32.partialorder %v740, 0.0
  %vm869 = vcmp.ge.f32.partialorder %v741, 0.0
  %vm870 = vcmp.ge.f32.partialorder %v742, 0.0
  %vm871 = vcmp.ge.f32.partialorder %v743, 0.0
  %vm872 = vcmp.ge.f32.partialorder %v744, 0.0
  %vm873 = vcmp.ge.f32.partialorder %v745, 0.0
  %vm874 = vcmp.ge.f32.partialorder %v746, 0.0
  %vm875 = vcmp.ge.f32.partialorder %v747, 0.0
  %vm876 = vcmp.ge.f32.partialorder %v748, 0.0
  %vm877 = vcmp.ge.f32.partialorder %v749, 0.0
  %vm878 = vcmp.ge.f32.partialorder %v750, 0.0
  %vm879 = vcmp.ge.f32.partialorder %v751, 0.0
  %vm880 = vcmp.ge.f32.partialorder %v752, 0.0
  %vm881 = vcmp.ge.f32.partialorder %v753, 0.0
  %vm882 = vcmp.ge.f32.partialorder %v754, 0.0
  %vm883 = vcmp.ge.f32.partialorder %v755, 0.0
  %vm884 = vcmp.ge.f32.partialorder %v756, 0.0
  %vm885 = vcmp.ge.f32.partialorder %v757, 0.0
  %vm886 = vcmp.ge.f32.partialorder %v758, 0.0
  %vm887 = vcmp.ge.f32.partialorder %v759, 0.0
  %vm888 = vcmp.ge.f32.partialorder %v760, 0.0
  %vm889 = vcmp.ge.f32.partialorder %v761, 0.0
  %vm890 = vcmp.ge.f32.partialorder %v762, 0.0
  %vm891 = vcmp.ge.f32.partialorder %v763, 0.0
  %vm892 = vcmp.ge.f32.partialorder %v764, 0.0
  %vm893 = vcmp.ge.f32.partialorder %v765, 0.0
  %vm894 = vcmp.ge.f32.partialorder %v766, 0.0
  %vm895 = vcmp.ge.f32.partialorder %v767, 0.0
  %vm896 = vcmp.ge.f32.partialorder %v768, 0.0
  %vm897 = vcmp.ge.f32.partialorder %v769, 0.0
  %vm898 = vcmp.ge.f32.partialorder %v770, 0.0
  %vm899 = vcmp.ge.f32.partialorder %v771, 0.0
  %vm900 = vcmp.ge.f32.partialorder %v772, 0.0
  %vm901 = vcmp.ge.f32.partialorder %v773, 0.0
  %vm902 = vcmp.ge.f32.partialorder %v774, 0.0
  %vm903 = vcmp.ge.f32.partialorder %v775, 0.0
  %vm904 = vcmp.ge.f32.partialorder %v776, 0.0
  %vm905 = vcmp.ge.f32.partialorder %v777, 0.0
  %vm906 = vcmp.ge.f32.partialorder %v778, 0.0
  %vm907 = vcmp.ge.f32.partialorder %v779, 0.0
  %vm908 = vcmp.ge.f32.partialorder %v780, 0.0
  %vm909 = vcmp.ge.f32.partialorder %v781, 0.0
  %vm910 = vcmp.ge.f32.partialorder %v782, 0.0
  %vm911 = vcmp.ge.f32.partialorder %v783, 0.0
  %vm912 = vcmp.ge.f32.partialorder %v784, 0.0
  %vm913 = vcmp.ge.f32.partialorder %v785, 0.0
  %vm914 = vcmp.ge.f32.partialorder %v786, 0.0
  %vm915 = vcmp.ge.f32.partialorder %v787, 0.0
  %vm916 = vcmp.ge.f32.partialorder %v788, 0.0
  %vm917 = vcmp.ge.f32.partialorder %v789, 0.0
  %vm918 = vcmp.ge.f32.partialorder %v790, 0.0
  %vm919 = vcmp.ge.f32.partialorder %v791, 0.0
  %vm920 = vcmp.ge.f32.partialorder %v792, 0.0
  %vm921 = vcmp.ge.f32.partialorder %v793, 0.0
  %vm922 = vcmp.ge.f32.partialorder %v794, 0.0
  %vm923 = vcmp.ge.f32.partialorder %v795, 0.0
  %vm924 = vcmp.ge.f32.partialorder %v796, 0.0
  %vm925 = vcmp.ge.f32.partialorder %v797, 0.0
  %vm926 = vcmp.ge.f32.partialorder %v798, 0.0
  %vm927 = vcmp.ge.f32.partialorder %v799, 0.0
  %vm928 = vcmp.ge.f32.partialorder %v800, 0.0
  %vm929 = vcmp.ge.f32.partialorder %v801, 0.0
  %vm930 = vcmp.ge.f32.partialorder %v802, 0.0
  %vm931 = vcmp.ge.f32.partialorder %v803, 0.0
  %vm932 = vcmp.ge.f32.partialorder %v804, 0.0
  %vm933 = vcmp.ge.f32.partialorder %v805, 0.0
  %vm934 = vcmp.ge.f32.partialorder %v806, 0.0
  %vm935 = vcmp.ge.f32.partialorder %v807, 0.0
  %vm936 = vcmp.ge.f32.partialorder %v808, 0.0
  %vm937 = vcmp.ge.f32.partialorder %v809, 0.0
  %vm938 = vcmp.ge.f32.partialorder %v810, 0.0
  %vm939 = vcmp.ge.f32.partialorder %v811, 0.0
  %v940 = vsel %vm812, 1.0, -1.0
  %v941 = vsel %vm813, 1.0, -1.0
  %v942 = vsel %vm814, 1.0, -1.0
  %v943 = vsel %vm815, 1.0, -1.0
  %v944 = vsel %vm816, 1.0, -1.0
  %v945 = vsel %vm817, 1.0, -1.0
  %v946 = vsel %vm818, 1.0, -1.0
  %v947 = vsel %vm819, 1.0, -1.0
  %v948 = vsel %vm820, 1.0, -1.0
  %v949 = vsel %vm821, 1.0, -1.0
  %v950 = vsel %vm822, 1.0, -1.0
  %v951 = vsel %vm823, 1.0, -1.0
  %v952 = vsel %vm824, 1.0, -1.0
  %v953 = vsel %vm825, 1.0, -1.0
  %v954 = vsel %vm826, 1.0, -1.0
  %v955 = vsel %vm827, 1.0, -1.0
  %v956 = vsel %vm828, 1.0, -1.0
  %v957 = vsel %vm829, 1.0, -1.0
  %v958 = vsel %vm830, 1.0, -1.0
  %v959 = vsel %vm831, 1.0, -1.0
  %v960 = vsel %vm832, 1.0, -1.0
  %v961 = vsel %vm833, 1.0, -1.0
  %v962 = vsel %vm834, 1.0, -1.0
  %v963 = vsel %vm835, 1.0, -1.0
  %v964 = vsel %vm836, 1.0, -1.0
  %v965 = vsel %vm837, 1.0, -1.0
  %v966 = vsel %vm838, 1.0, -1.0
  %v967 = vsel %vm839, 1.0, -1.0
  %v968 = vsel %vm840, 1.0, -1.0
  %v969 = vsel %vm841, 1.0, -1.0
  %v970 = vsel %vm842, 1.0, -1.0
  %v971 = vsel %vm843, 1.0, -1.0
  %v972 = vsel %vm844, 1.0, -1.0
  %v973 = vsel %vm845, 1.0, -1.0
  %v974 = vsel %vm846, 1.0, -1.0
  %v975 = vsel %vm847, 1.0, -1.0
  %v976 = vsel %vm848, 1.0, -1.0
  %v977 = vsel %vm849, 1.0, -1.0
  %v978 = vsel %vm850, 1.0, -1.0
  %v979 = vsel %vm851, 1.0, -1.0
  %v980 = vsel %vm852, 1.0, -1.0
  %v981 = vsel %vm853, 1.0, -1.0
  %v982 = vsel %vm854, 1.0, -1.0
  %v983 = vsel %vm855, 1.0, -1.0
  %v984 = vsel %vm856, 1.0, -1.0
  %v985 = vsel %vm857, 1.0, -1.0
  %v986 = vsel %vm858, 1.0, -1.0
  %v987 = vsel %vm859, 1.0, -1.0
  %v988 = vsel %vm860, 1.0, -1.0
  %v989 = vsel %vm861, 1.0, -1.0
  %v990 = vsel %vm862, 1.0, -1.0
  %v991 = vsel %vm863, 1.0, -1.0
  %v992 = vsel %vm864, 1.0, -1.0
  %v993 = vsel %vm865, 1.0, -1.0
  %v994 = vsel %vm866, 1.0, -1.0
  %v995 = vsel %vm867, 1.0, -1.0
  %v996 = vsel %vm868, 1.0, -1.0
  %v997 = vsel %vm869, 1.0, -1.0
  %v998 = vsel %vm870, 1.0, -1.0
  %v999 = vsel %vm871, 1.0, -1.0
  %v1000 = vsel %vm872, 1.0, -1.0
  %v1001 = vsel %vm873, 1.0, -1.0
  %v1002 = vsel %vm874, 1.0, -1.0
  %v1003 = vsel %vm875, 1.0, -1.0
  %v1004 = vsel %vm876, 1.0, -1.0
  %v1005 = vsel %vm877, 1.0, -1.0
  %v1006 = vsel %vm878, 1.0, -1.0
  %v1007 = vsel %vm879, 1.0, -1.0
  %v1008 = vsel %vm880, 1.0, -1.0
  %v1009 = vsel %vm881, 1.0, -1.0
  %v1010 = vsel %vm882, 1.0, -1.0
  %v1011 = vsel %vm883, 1.0, -1.0
  %v1012 = vsel %vm884, 1.0, -1.0
  %v1013 = vsel %vm885, 1.0, -1.0
  %v1014 = vsel %vm886, 1.0, -1.0
  %v1015 = vsel %vm887, 1.0, -1.0
  %v1016 = vsel %vm888, 1.0, -1.0
  %v1017 = vsel %vm889, 1.0, -1.0
  %v1018 = vsel %vm890, 1.0, -1.0
  %v1019 = vsel %vm891, 1.0, -1.0
  %v1020 = vsel %vm892, 1.0, -1.0
  %v1021 = vsel %vm893, 1.0, -1.0
  %v1022 = vsel %vm894, 1.0, -1.0
  %v1023 = vsel %vm895, 1.0, -1.0
  %v1024 = vsel %vm896, 1.0, -1.0
  %v1025 = vsel %vm897, 1.0, -1.0
  %v1026 = vsel %vm898, 1.0, -1.0
  %v1027 = vsel %vm899, 1.0, -1.0
  %v1028 = vsel %vm900, 1.0, -1.0
  %v1029 = vsel %vm901, 1.0, -1.0
  %v1030 = vsel %vm902, 1.0, -1.0
  %v1031 = vsel %vm903, 1.0, -1.0
  %v1032 = vsel %vm904, 1.0, -1.0
  %v1033 = vsel %vm905, 1.0, -1.0
  %v1034 = vsel %vm906, 1.0, -1.0
  %v1035 = vsel %vm907, 1.0, -1.0
  %v1036 = vsel %vm908, 1.0, -1.0
  %v1037 = vsel %vm909, 1.0, -1.0
  %v1038 = vsel %vm910, 1.0, -1.0
  %v1039 = vsel %vm911, 1.0, -1.0
  %v1040 = vsel %vm912, 1.0, -1.0
  %v1041 = vsel %vm913, 1.0, -1.0
  %v1042 = vsel %vm914, 1.0, -1.0
  %v1043 = vsel %vm915, 1.0, -1.0
  %v1044 = vsel %vm916, 1.0, -1.0
  %v1045 = vsel %vm917, 1.0, -1.0
  %v1046 = vsel %vm918, 1.0, -1.0
  %v1047 = vsel %vm919, 1.0, -1.0
  %v1048 = vsel %vm920, 1.0, -1.0
  %v1049 = vsel %vm921, 1.0, -1.0
  %v1050 = vsel %vm922, 1.0, -1.0
  %v1051 = vsel %vm923, 1.0, -1.0
  %v1052 = vsel %vm924, 1.0, -1.0
  %v1053 = vsel %vm925, 1.0, -1.0
  %v1054 = vsel %vm926, 1.0, -1.0
  %v1055 = vsel %vm927, 1.0, -1.0
  %v1056 = vsel %vm928, 1.0, -1.0
  %v1057 = vsel %vm929, 1.0, -1.0
  %v1058 = vsel %vm930, 1.0, -1.0
  %v1059 = vsel %vm931, 1.0, -1.0
  %v1060 = vsel %vm932, 1.0, -1.0
  %v1061 = vsel %vm933, 1.0, -1.0
  %v1062 = vsel %vm934, 1.0, -1.0
  %v1063 = vsel %vm935, 1.0, -1.0
  %v1064 = vsel %vm936, 1.0, -1.0
  %v1065 = vsel %vm937, 1.0, -1.0
  %v1066 = vsel %vm938, 1.0, -1.0
  %v1067 = vsel %vm939, 1.0, -1.0
  %v1068 = vand.u32 2147483647, %v684
  %v1069 = vand.u32 2147483647, %v685
  %v1070 = vand.u32 2147483647, %v686
  %v1071 = vand.u32 2147483647, %v687
  %v1072 = vand.u32 2147483647, %v688
  %v1073 = vand.u32 2147483647, %v689
  %v1074 = vand.u32 2147483647, %v690
  %v1075 = vand.u32 2147483647, %v691
  %v1076 = vand.u32 2147483647, %v692
  %v1077 = vand.u32 2147483647, %v693
  %v1078 = vand.u32 2147483647, %v694
  %v1079 = vand.u32 2147483647, %v695
  %v1080 = vand.u32 2147483647, %v696
  %v1081 = vand.u32 2147483647, %v697
  %v1082 = vand.u32 2147483647, %v698
  %v1083 = vand.u32 2147483647, %v699
  %v1084 = vand.u32 2147483647, %v700
  %v1085 = vand.u32 2147483647, %v701
  %v1086 = vand.u32 2147483647, %v702
  %v1087 = vand.u32 2147483647, %v703
  %v1088 = vand.u32 2147483647, %v704
  %v1089 = vand.u32 2147483647, %v705
  %v1090 = vand.u32 2147483647, %v706
  %v1091 = vand.u32 2147483647, %v707
  %v1092 = vand.u32 2147483647, %v708
  %v1093 = vand.u32 2147483647, %v709
  %v1094 = vand.u32 2147483647, %v710
  %v1095 = vand.u32 2147483647, %v711
  %v1096 = vand.u32 2147483647, %v712
  %v1097 = vand.u32 2147483647, %v713
  %v1098 = vand.u32 2147483647, %v714
  %v1099 = vand.u32 2147483647, %v715
  %v1100 = vand.u32 2147483647, %v716
  %v1101 = vand.u32 2147483647, %v717
  %v1102 = vand.u32 2147483647, %v718
  %v1103 = vand.u32 2147483647, %v719
  %v1104 = vand.u32 2147483647, %v720
  %v1105 = vand.u32 2147483647, %v721
  %v1106 = vand.u32 2147483647, %v722
  %v1107 = vand.u32 2147483647, %v723
  %v1108 = vand.u32 2147483647, %v724
  %v1109 = vand.u32 2147483647, %v725
  %v1110 = vand.u32 2147483647, %v726
  %v1111 = vand.u32 2147483647, %v727
  %v1112 = vand.u32 2147483647, %v728
  %v1113 = vand.u32 2147483647, %v729
  %v1114 = vand.u32 2147483647, %v730
  %v1115 = vand.u32 2147483647, %v731
  %v1116 = vand.u32 2147483647, %v732
  %v1117 = vand.u32 2147483647, %v733
  %v1118 = vand.u32 2147483647, %v734
  %v1119 = vand.u32 2147483647, %v735
  %v1120 = vand.u32 2147483647, %v736
  %v1121 = vand.u32 2147483647, %v737
  %v1122 = vand.u32 2147483647, %v738
  %v1123 = vand.u32 2147483647, %v739
  %v1124 = vand.u32 2147483647, %v740
  %v1125 = vand.u32 2147483647, %v741
  %v1126 = vand.u32 2147483647, %v742
  %v1127 = vand.u32 2147483647, %v743
  %v1128 = vand.u32 2147483647, %v744
  %v1129 = vand.u32 2147483647, %v745
  %v1130 = vand.u32 2147483647, %v746
  %v1131 = vand.u32 2147483647, %v747
  %v1132 = vand.u32 2147483647, %v748
  %v1133 = vand.u32 2147483647, %v749
  %v1134 = vand.u32 2147483647, %v750
  %v1135 = vand.u32 2147483647, %v751
  %v1136 = vand.u32 2147483647, %v752
  %v1137 = vand.u32 2147483647, %v753
  %v1138 = vand.u32 2147483647, %v754
  %v1139 = vand.u32 2147483647, %v755
  %v1140 = vand.u32 2147483647, %v756
  %v1141 = vand.u32 2147483647, %v757
  %v1142 = vand.u32 2147483647, %v758
  %v1143 = vand.u32 2147483647, %v759
  %v1144 = vand.u32 2147483647, %v760
  %v1145 = vand.u32 2147483647, %v761
  %v1146 = vand.u32 2147483647, %v762
  %v1147 = vand.u32 2147483647, %v763
  %v1148 = vand.u32 2147483647, %v764
  %v1149 = vand.u32 2147483647, %v765
  %v1150 = vand.u32 2147483647, %v766
  %v1151 = vand.u32 2147483647, %v767
  %v1152 = vand.u32 2147483647, %v768
  %v1153 = vand.u32 2147483647, %v769
  %v1154 = vand.u32 2147483647, %v770
  %v1155 = vand.u32 2147483647, %v771
  %v1156 = vand.u32 2147483647, %v772
  %v1157 = vand.u32 2147483647, %v773
  %v1158 = vand.u32 2147483647, %v774
  %v1159 = vand.u32 2147483647, %v775
  %v1160 = vand.u32 2147483647, %v776
  %v1161 = vand.u32 2147483647, %v777
  %v1162 = vand.u32 2147483647, %v778
  %v1163 = vand.u32 2147483647, %v779
  %v1164 = vand.u32 2147483647, %v780
  %v1165 = vand.u32 2147483647, %v781
  %v1166 = vand.u32 2147483647, %v782
  %v1167 = vand.u32 2147483647, %v783
  %v1168 = vand.u32 2147483647, %v784
  %v1169 = vand.u32 2147483647, %v785
  %v1170 = vand.u32 2147483647, %v786
  %v1171 = vand.u32 2147483647, %v787
  %v1172 = vand.u32 2147483647, %v788
  %v1173 = vand.u32 2147483647, %v789
  %v1174 = vand.u32 2147483647, %v790
  %v1175 = vand.u32 2147483647, %v791
  %v1176 = vand.u32 2147483647, %v792
  %v1177 = vand.u32 2147483647, %v793
  %v1178 = vand.u32 2147483647, %v794
  %v1179 = vand.u32 2147483647, %v795
  %v1180 = vand.u32 2147483647, %v796
  %v1181 = vand.u32 2147483647, %v797
  %v1182 = vand.u32 2147483647, %v798
  %v1183 = vand.u32 2147483647, %v799
  %v1184 = vand.u32 2147483647, %v800
  %v1185 = vand.u32 2147483647, %v801
  %v1186 = vand.u32 2147483647, %v802
  %v1187 = vand.u32 2147483647, %v803
  %v1188 = vand.u32 2147483647, %v804
  %v1189 = vand.u32 2147483647, %v805
  %v1190 = vand.u32 2147483647, %v806
  %v1191 = vand.u32 2147483647, %v807
  %v1192 = vand.u32 2147483647, %v808
  %v1193 = vand.u32 2147483647, %v809
  %v1194 = vand.u32 2147483647, %v810
  %v1195 = vand.u32 2147483647, %v811
  %v1196 = vmul.f32 %v1068, 0.3275911
  %v1197 = vmul.f32 %v1069, 0.3275911
  %v1198 = vmul.f32 %v1070, 0.3275911
  %v1199 = vmul.f32 %v1071, 0.3275911
  %v1200 = vmul.f32 %v1072, 0.3275911
  %v1201 = vmul.f32 %v1073, 0.3275911
  %v1202 = vmul.f32 %v1074, 0.3275911
  %v1203 = vmul.f32 %v1075, 0.3275911
  %v1204 = vmul.f32 %v1076, 0.3275911
  %v1205 = vmul.f32 %v1077, 0.3275911
  %v1206 = vmul.f32 %v1078, 0.3275911
  %v1207 = vmul.f32 %v1079, 0.3275911
  %v1208 = vmul.f32 %v1080, 0.3275911
  %v1209 = vmul.f32 %v1081, 0.3275911
  %v1210 = vmul.f32 %v1082, 0.3275911
  %v1211 = vmul.f32 %v1083, 0.3275911
  %v1212 = vmul.f32 %v1084, 0.3275911
  %v1213 = vmul.f32 %v1085, 0.3275911
  %v1214 = vmul.f32 %v1086, 0.3275911
  %v1215 = vmul.f32 %v1087, 0.3275911
  %v1216 = vmul.f32 %v1088, 0.3275911
  %v1217 = vmul.f32 %v1089, 0.3275911
  %v1218 = vmul.f32 %v1090, 0.3275911
  %v1219 = vmul.f32 %v1091, 0.3275911
  %v1220 = vmul.f32 %v1092, 0.3275911
  %v1221 = vmul.f32 %v1093, 0.3275911
  %v1222 = vmul.f32 %v1094, 0.3275911
  %v1223 = vmul.f32 %v1095, 0.3275911
  %v1224 = vmul.f32 %v1096, 0.3275911
  %v1225 = vmul.f32 %v1097, 0.3275911
  %v1226 = vmul.f32 %v1098, 0.3275911
  %v1227 = vmul.f32 %v1099, 0.3275911
  %v1228 = vmul.f32 %v1100, 0.3275911
  %v1229 = vmul.f32 %v1101, 0.3275911
  %v1230 = vmul.f32 %v1102, 0.3275911
  %v1231 = vmul.f32 %v1103, 0.3275911
  %v1232 = vmul.f32 %v1104, 0.3275911
  %v1233 = vmul.f32 %v1105, 0.3275911
  %v1234 = vmul.f32 %v1106, 0.3275911
  %v1235 = vmul.f32 %v1107, 0.3275911
  %v1236 = vmul.f32 %v1108, 0.3275911
  %v1237 = vmul.f32 %v1109, 0.3275911
  %v1238 = vmul.f32 %v1110, 0.3275911
  %v1239 = vmul.f32 %v1111, 0.3275911
  %v1240 = vmul.f32 %v1112, 0.3275911
  %v1241 = vmul.f32 %v1113, 0.3275911
  %v1242 = vmul.f32 %v1114, 0.3275911
  %v1243 = vmul.f32 %v1115, 0.3275911
  %v1244 = vmul.f32 %v1116, 0.3275911
  %v1245 = vmul.f32 %v1117, 0.3275911
  %v1246 = vmul.f32 %v1118, 0.3275911
  %v1247 = vmul.f32 %v1119, 0.3275911
  %v1248 = vmul.f32 %v1120, 0.3275911
  %v1249 = vmul.f32 %v1121, 0.3275911
  %v1250 = vmul.f32 %v1122, 0.3275911
  %v1251 = vmul.f32 %v1123, 0.3275911
  %v1252 = vmul.f32 %v1124, 0.3275911
  %v1253 = vmul.f32 %v1125, 0.3275911
  %v1254 = vmul.f32 %v1126, 0.3275911
  %v1255 = vmul.f32 %v1127, 0.3275911
  %v1256 = vmul.f32 %v1128, 0.3275911
  %v1257 = vmul.f32 %v1129, 0.3275911
  %v1258 = vmul.f32 %v1130, 0.3275911
  %v1259 = vmul.f32 %v1131, 0.3275911
  %v1260 = vmul.f32 %v1132, 0.3275911
  %v1261 = vmul.f32 %v1133, 0.3275911
  %v1262 = vmul.f32 %v1134, 0.3275911
  %v1263 = vmul.f32 %v1135, 0.3275911
  %v1264 = vmul.f32 %v1136, 0.3275911
  %v1265 = vmul.f32 %v1137, 0.3275911
  %v1266 = vmul.f32 %v1138, 0.3275911
  %v1267 = vmul.f32 %v1139, 0.3275911
  %v1268 = vmul.f32 %v1140, 0.3275911
  %v1269 = vmul.f32 %v1141, 0.3275911
  %v1270 = vmul.f32 %v1142, 0.3275911
  %v1271 = vmul.f32 %v1143, 0.3275911
  %v1272 = vmul.f32 %v1144, 0.3275911
  %v1273 = vmul.f32 %v1145, 0.3275911
  %v1274 = vmul.f32 %v1146, 0.3275911
  %v1275 = vmul.f32 %v1147, 0.3275911
  %v1276 = vmul.f32 %v1148, 0.3275911
  %v1277 = vmul.f32 %v1149, 0.3275911
  %v1278 = vmul.f32 %v1150, 0.3275911
  %v1279 = vmul.f32 %v1151, 0.3275911
  %v1280 = vmul.f32 %v1152, 0.3275911
  %v1281 = vmul.f32 %v1153, 0.3275911
  %v1282 = vmul.f32 %v1154, 0.3275911
  %v1283 = vmul.f32 %v1155, 0.3275911
  %v1284 = vmul.f32 %v1156, 0.3275911
  %v1285 = vmul.f32 %v1157, 0.3275911
  %v1286 = vmul.f32 %v1158, 0.3275911
  %v1287 = vmul.f32 %v1159, 0.3275911
  %v1288 = vmul.f32 %v1160, 0.3275911
  %v1289 = vmul.f32 %v1161, 0.3275911
  %v1290 = vmul.f32 %v1162, 0.3275911
  %v1291 = vmul.f32 %v1163, 0.3275911
  %v1292 = vmul.f32 %v1164, 0.3275911
  %v1293 = vmul.f32 %v1165, 0.3275911
  %v1294 = vmul.f32 %v1166, 0.3275911
  %v1295 = vmul.f32 %v1167, 0.3275911
  %v1296 = vmul.f32 %v1168, 0.3275911
  %v1297 = vmul.f32 %v1169, 0.3275911
  %v1298 = vmul.f32 %v1170, 0.3275911
  %v1299 = vmul.f32 %v1171, 0.3275911
  %v1300 = vmul.f32 %v1172, 0.3275911
  %v1301 = vmul.f32 %v1173, 0.3275911
  %v1302 = vmul.f32 %v1174, 0.3275911
  %v1303 = vmul.f32 %v1175, 0.3275911
  %v1304 = vmul.f32 %v1176, 0.3275911
  %v1305 = vmul.f32 %v1177, 0.3275911
  %v1306 = vmul.f32 %v1178, 0.3275911
  %v1307 = vmul.f32 %v1179, 0.3275911
  %v1308 = vmul.f32 %v1180, 0.3275911
  %v1309 = vmul.f32 %v1181, 0.3275911
  %v1310 = vmul.f32 %v1182, 0.3275911
  %v1311 = vmul.f32 %v1183, 0.3275911
  %v1312 = vmul.f32 %v1184, 0.3275911
  %v1313 = vmul.f32 %v1185, 0.3275911
  %v1314 = vmul.f32 %v1186, 0.3275911
  %v1315 = vmul.f32 %v1187, 0.3275911
  %v1316 = vmul.f32 %v1188, 0.3275911
  %v1317 = vmul.f32 %v1189, 0.3275911
  %v1318 = vmul.f32 %v1190, 0.3275911
  %v1319 = vmul.f32 %v1191, 0.3275911
  %v1320 = vmul.f32 %v1192, 0.3275911
  %v1321 = vmul.f32 %v1193, 0.3275911
  %v1322 = vmul.f32 %v1194, 0.3275911
  %v1323 = vmul.f32 %v1195, 0.3275911
  %v1324 = vadd.f32 %v1196, 1.0
  %v1325 = vadd.f32 %v1197, 1.0
  %v1326 = vadd.f32 %v1198, 1.0
  %v1327 = vadd.f32 %v1199, 1.0
  %v1328 = vadd.f32 %v1200, 1.0
  %v1329 = vadd.f32 %v1201, 1.0
  %v1330 = vadd.f32 %v1202, 1.0
  %v1331 = vadd.f32 %v1203, 1.0
  %v1332 = vadd.f32 %v1204, 1.0
  %v1333 = vadd.f32 %v1205, 1.0
  %v1334 = vadd.f32 %v1206, 1.0
  %v1335 = vadd.f32 %v1207, 1.0
  %v1336 = vadd.f32 %v1208, 1.0
  %v1337 = vadd.f32 %v1209, 1.0
  %v1338 = vadd.f32 %v1210, 1.0
  %v1339 = vadd.f32 %v1211, 1.0
  %v1340 = vadd.f32 %v1212, 1.0
  %v1341 = vadd.f32 %v1213, 1.0
  %v1342 = vadd.f32 %v1214, 1.0
  %v1343 = vadd.f32 %v1215, 1.0
  %v1344 = vadd.f32 %v1216, 1.0
  %v1345 = vadd.f32 %v1217, 1.0
  %v1346 = vadd.f32 %v1218, 1.0
  %v1347 = vadd.f32 %v1219, 1.0
  %v1348 = vadd.f32 %v1220, 1.0
  %v1349 = vadd.f32 %v1221, 1.0
  %v1350 = vadd.f32 %v1222, 1.0
  %v1351 = vadd.f32 %v1223, 1.0
  %v1352 = vadd.f32 %v1224, 1.0
  %v1353 = vadd.f32 %v1225, 1.0
  %v1354 = vadd.f32 %v1226, 1.0
  %v1355 = vadd.f32 %v1227, 1.0
  %v1356 = vadd.f32 %v1228, 1.0
  %v1357 = vadd.f32 %v1229, 1.0
  %v1358 = vadd.f32 %v1230, 1.0
  %v1359 = vadd.f32 %v1231, 1.0
  %v1360 = vadd.f32 %v1232, 1.0
  %v1361 = vadd.f32 %v1233, 1.0
  %v1362 = vadd.f32 %v1234, 1.0
  %v1363 = vadd.f32 %v1235, 1.0
  %v1364 = vadd.f32 %v1236, 1.0
  %v1365 = vadd.f32 %v1237, 1.0
  %v1366 = vadd.f32 %v1238, 1.0
  %v1367 = vadd.f32 %v1239, 1.0
  %v1368 = vadd.f32 %v1240, 1.0
  %v1369 = vadd.f32 %v1241, 1.0
  %v1370 = vadd.f32 %v1242, 1.0
  %v1371 = vadd.f32 %v1243, 1.0
  %v1372 = vadd.f32 %v1244, 1.0
  %v1373 = vadd.f32 %v1245, 1.0
  %v1374 = vadd.f32 %v1246, 1.0
  %v1375 = vadd.f32 %v1247, 1.0
  %v1376 = vadd.f32 %v1248, 1.0
  %v1377 = vadd.f32 %v1249, 1.0
  %v1378 = vadd.f32 %v1250, 1.0
  %v1379 = vadd.f32 %v1251, 1.0
  %v1380 = vadd.f32 %v1252, 1.0
  %v1381 = vadd.f32 %v1253, 1.0
  %v1382 = vadd.f32 %v1254, 1.0
  %v1383 = vadd.f32 %v1255, 1.0
  %v1384 = vadd.f32 %v1256, 1.0
  %v1385 = vadd.f32 %v1257, 1.0
  %v1386 = vadd.f32 %v1258, 1.0
  %v1387 = vadd.f32 %v1259, 1.0
  %v1388 = vadd.f32 %v1260, 1.0
  %v1389 = vadd.f32 %v1261, 1.0
  %v1390 = vadd.f32 %v1262, 1.0
  %v1391 = vadd.f32 %v1263, 1.0
  %v1392 = vadd.f32 %v1264, 1.0
  %v1393 = vadd.f32 %v1265, 1.0
  %v1394 = vadd.f32 %v1266, 1.0
  %v1395 = vadd.f32 %v1267, 1.0
  %v1396 = vadd.f32 %v1268, 1.0
  %v1397 = vadd.f32 %v1269, 1.0
  %v1398 = vadd.f32 %v1270, 1.0
  %v1399 = vadd.f32 %v1271, 1.0
  %v1400 = vadd.f32 %v1272, 1.0
  %v1401 = vadd.f32 %v1273, 1.0
  %v1402 = vadd.f32 %v1274, 1.0
  %v1403 = vadd.f32 %v1275, 1.0
  %v1404 = vadd.f32 %v1276, 1.0
  %v1405 = vadd.f32 %v1277, 1.0
  %v1406 = vadd.f32 %v1278, 1.0
  %v1407 = vadd.f32 %v1279, 1.0
  %v1408 = vadd.f32 %v1280, 1.0
  %v1409 = vadd.f32 %v1281, 1.0
  %v1410 = vadd.f32 %v1282, 1.0
  %v1411 = vadd.f32 %v1283, 1.0
  %v1412 = vadd.f32 %v1284, 1.0
  %v1413 = vadd.f32 %v1285, 1.0
  %v1414 = vadd.f32 %v1286, 1.0
  %v1415 = vadd.f32 %v1287, 1.0
  %v1416 = vadd.f32 %v1288, 1.0
  %v1417 = vadd.f32 %v1289, 1.0
  %v1418 = vadd.f32 %v1290, 1.0
  %v1419 = vadd.f32 %v1291, 1.0
  %v1420 = vadd.f32 %v1292, 1.0
  %v1421 = vadd.f32 %v1293, 1.0
  %v1422 = vadd.f32 %v1294, 1.0
  %v1423 = vadd.f32 %v1295, 1.0
  %v1424 = vadd.f32 %v1296, 1.0
  %v1425 = vadd.f32 %v1297, 1.0
  %v1426 = vadd.f32 %v1298, 1.0
  %v1427 = vadd.f32 %v1299, 1.0
  %v1428 = vadd.f32 %v1300, 1.0
  %v1429 = vadd.f32 %v1301, 1.0
  %v1430 = vadd.f32 %v1302, 1.0
  %v1431 = vadd.f32 %v1303, 1.0
  %v1432 = vadd.f32 %v1304, 1.0
  %v1433 = vadd.f32 %v1305, 1.0
  %v1434 = vadd.f32 %v1306, 1.0
  %v1435 = vadd.f32 %v1307, 1.0
  %v1436 = vadd.f32 %v1308, 1.0
  %v1437 = vadd.f32 %v1309, 1.0
  %v1438 = vadd.f32 %v1310, 1.0
  %v1439 = vadd.f32 %v1311, 1.0
  %v1440 = vadd.f32 %v1312, 1.0
  %v1441 = vadd.f32 %v1313, 1.0
  %v1442 = vadd.f32 %v1314, 1.0
  %v1443 = vadd.f32 %v1315, 1.0
  %v1444 = vadd.f32 %v1316, 1.0
  %v1445 = vadd.f32 %v1317, 1.0
  %v1446 = vadd.f32 %v1318, 1.0
  %v1447 = vadd.f32 %v1319, 1.0
  %v1448 = vadd.f32 %v1320, 1.0
  %v1449 = vadd.f32 %v1321, 1.0
  %v1450 = vadd.f32 %v1322, 1.0
  %v1451 = vadd.f32 %v1323, 1.0
  %v1452 = vrcp.pop %v1324
  %v1453 = vrcp.pop %v1325
  %v1454 = vrcp.pop %v1326
  %v1455 = vrcp.pop %v1327
  %v1456 = vrcp.pop %v1328
  %v1457 = vrcp.pop %v1329
  %v1458 = vrcp.pop %v1330
  %v1459 = vrcp.pop %v1331
  %v1460 = vrcp.pop %v1332
  %v1461 = vrcp.pop %v1333
  %v1462 = vrcp.pop %v1334
  %v1463 = vrcp.pop %v1335
  %v1464 = vrcp.pop %v1336
  %v1465 = vrcp.pop %v1337
  %v1466 = vrcp.pop %v1338
  %v1467 = vrcp.pop %v1339
  %v1468 = vrcp.pop %v1340
  %v1469 = vrcp.pop %v1341
  %v1470 = vrcp.pop %v1342
  %v1471 = vrcp.pop %v1343
  %v1472 = vrcp.pop %v1344
  %v1473 = vrcp.pop %v1345
  %v1474 = vrcp.pop %v1346
  %v1475 = vrcp.pop %v1347
  %v1476 = vrcp.pop %v1348
  %v1477 = vrcp.pop %v1349
  %v1478 = vrcp.pop %v1350
  %v1479 = vrcp.pop %v1351
  %v1480 = vrcp.pop %v1352
  %v1481 = vrcp.pop %v1353
  %v1482 = vrcp.pop %v1354
  %v1483 = vrcp.pop %v1355
  %v1484 = vrcp.pop %v1356
  %v1485 = vrcp.pop %v1357
  %v1486 = vrcp.pop %v1358
  %v1487 = vrcp.pop %v1359
  %v1488 = vrcp.pop %v1360
  %v1489 = vrcp.pop %v1361
  %v1490 = vrcp.pop %v1362
  %v1491 = vrcp.pop %v1363
  %v1492 = vrcp.pop %v1364
  %v1493 = vrcp.pop %v1365
  %v1494 = vrcp.pop %v1366
  %v1495 = vrcp.pop %v1367
  %v1496 = vrcp.pop %v1368
  %v1497 = vrcp.pop %v1369
  %v1498 = vrcp.pop %v1370
  %v1499 = vrcp.pop %v1371
  %v1500 = vrcp.pop %v1372
  %v1501 = vrcp.pop %v1373
  %v1502 = vrcp.pop %v1374
  %v1503 = vrcp.pop %v1375
  %v1504 = vrcp.pop %v1376
  %v1505 = vrcp.pop %v1377
  %v1506 = vrcp.pop %v1378
  %v1507 = vrcp.pop %v1379
  %v1508 = vrcp.pop %v1380
  %v1509 = vrcp.pop %v1381
  %v1510 = vrcp.pop %v1382
  %v1511 = vrcp.pop %v1383
  %v1512 = vrcp.pop %v1384
  %v1513 = vrcp.pop %v1385
  %v1514 = vrcp.pop %v1386
  %v1515 = vrcp.pop %v1387
  %v1516 = vrcp.pop %v1388
  %v1517 = vrcp.pop %v1389
  %v1518 = vrcp.pop %v1390
  %v1519 = vrcp.pop %v1391
  %v1520 = vrcp.pop %v1392
  %v1521 = vrcp.pop %v1393
  %v1522 = vrcp.pop %v1394
  %v1523 = vrcp.pop %v1395
  %v1524 = vrcp.pop %v1396
  %v1525 = vrcp.pop %v1397
  %v1526 = vrcp.pop %v1398
  %v1527 = vrcp.pop %v1399
  %v1528 = vrcp.pop %v1400
  %v1529 = vrcp.pop %v1401
  %v1530 = vrcp.pop %v1402
  %v1531 = vrcp.pop %v1403
  %v1532 = vrcp.pop %v1404
  %v1533 = vrcp.pop %v1405
  %v1534 = vrcp.pop %v1406
  %v1535 = vrcp.pop %v1407
  %v1536 = vrcp.pop %v1408
  %v1537 = vrcp.pop %v1409
  %v1538 = vrcp.pop %v1410
  %v1539 = vrcp.pop %v1411
  %v1540 = vrcp.pop %v1412
  %v1541 = vrcp.pop %v1413
  %v1542 = vrcp.pop %v1414
  %v1543 = vrcp.pop %v1415
  %v1544 = vrcp.pop %v1416
  %v1545 = vrcp.pop %v1417
  %v1546 = vrcp.pop %v1418
  %v1547 = vrcp.pop %v1419
  %v1548 = vrcp.pop %v1420
  %v1549 = vrcp.pop %v1421
  %v1550 = vrcp.pop %v1422
  %v1551 = vrcp.pop %v1423
  %v1552 = vrcp.pop %v1424
  %v1553 = vrcp.pop %v1425
  %v1554 = vrcp.pop %v1426
  %v1555 = vrcp.pop %v1427
  %v1556 = vrcp.pop %v1428
  %v1557 = vrcp.pop %v1429
  %v1558 = vrcp.pop %v1430
  %v1559 = vrcp.pop %v1431
  %v1560 = vrcp.pop %v1432
  %v1561 = vrcp.pop %v1433
  %v1562 = vrcp.pop %v1434
  %v1563 = vrcp.pop %v1435
  %v1564 = vrcp.pop %v1436
  %v1565 = vrcp.pop %v1437
  %v1566 = vrcp.pop %v1438
  %v1567 = vrcp.pop %v1439
  %v1568 = vrcp.pop %v1440
  %v1569 = vrcp.pop %v1441
  %v1570 = vrcp.pop %v1442
  %v1571 = vrcp.pop %v1443
  %v1572 = vrcp.pop %v1444
  %v1573 = vrcp.pop %v1445
  %v1574 = vrcp.pop %v1446
  %v1575 = vrcp.pop %v1447
  %v1576 = vrcp.pop %v1448
  %v1577 = vrcp.pop %v1449
  %v1578 = vrcp.pop %v1450
  %v1579 = vrcp.pop %v1451
  %v1580 = vmul.f32 %v1452, 1.0614054
  %v1581 = vmul.f32 %v1453, 1.0614054
  %v1582 = vmul.f32 %v1454, 1.0614054
  %v1583 = vmul.f32 %v1455, 1.0614054
  %v1584 = vmul.f32 %v1456, 1.0614054
  %v1585 = vmul.f32 %v1457, 1.0614054
  %v1586 = vmul.f32 %v1458, 1.0614054
  %v1587 = vmul.f32 %v1459, 1.0614054
  %v1588 = vmul.f32 %v1460, 1.0614054
  %v1589 = vmul.f32 %v1461, 1.0614054
  %v1590 = vmul.f32 %v1462, 1.0614054
  %v1591 = vmul.f32 %v1463, 1.0614054
  %v1592 = vmul.f32 %v1464, 1.0614054
  %v1593 = vmul.f32 %v1465, 1.0614054
  %v1594 = vmul.f32 %v1466, 1.0614054
  %v1595 = vmul.f32 %v1467, 1.0614054
  %v1596 = vmul.f32 %v1468, 1.0614054
  %v1597 = vmul.f32 %v1469, 1.0614054
  %v1598 = vmul.f32 %v1470, 1.0614054
  %v1599 = vmul.f32 %v1471, 1.0614054
  %v1600 = vmul.f32 %v1472, 1.0614054
  %v1601 = vmul.f32 %v1473, 1.0614054
  %v1602 = vmul.f32 %v1474, 1.0614054
  %v1603 = vmul.f32 %v1475, 1.0614054
  %v1604 = vmul.f32 %v1476, 1.0614054
  %v1605 = vmul.f32 %v1477, 1.0614054
  %v1606 = vmul.f32 %v1478, 1.0614054
  %v1607 = vmul.f32 %v1479, 1.0614054
  %v1608 = vmul.f32 %v1480, 1.0614054
  %v1609 = vmul.f32 %v1481, 1.0614054
  %v1610 = vmul.f32 %v1482, 1.0614054
  %v1611 = vmul.f32 %v1483, 1.0614054
  %v1612 = vmul.f32 %v1484, 1.0614054
  %v1613 = vmul.f32 %v1485, 1.0614054
  %v1614 = vmul.f32 %v1486, 1.0614054
  %v1615 = vmul.f32 %v1487, 1.0614054
  %v1616 = vmul.f32 %v1488, 1.0614054
  %v1617 = vmul.f32 %v1489, 1.0614054
  %v1618 = vmul.f32 %v1490, 1.0614054
  %v1619 = vmul.f32 %v1491, 1.0614054
  %v1620 = vmul.f32 %v1492, 1.0614054
  %v1621 = vmul.f32 %v1493, 1.0614054
  %v1622 = vmul.f32 %v1494, 1.0614054
  %v1623 = vmul.f32 %v1495, 1.0614054
  %v1624 = vmul.f32 %v1496, 1.0614054
  %v1625 = vmul.f32 %v1497, 1.0614054
  %v1626 = vmul.f32 %v1498, 1.0614054
  %v1627 = vmul.f32 %v1499, 1.0614054
  %v1628 = vmul.f32 %v1500, 1.0614054
  %v1629 = vmul.f32 %v1501, 1.0614054
  %v1630 = vmul.f32 %v1502, 1.0614054
  %v1631 = vmul.f32 %v1503, 1.0614054
  %v1632 = vmul.f32 %v1504, 1.0614054
  %v1633 = vmul.f32 %v1505, 1.0614054
  %v1634 = vmul.f32 %v1506, 1.0614054
  %v1635 = vmul.f32 %v1507, 1.0614054
  %v1636 = vmul.f32 %v1508, 1.0614054
  %v1637 = vmul.f32 %v1509, 1.0614054
  %v1638 = vmul.f32 %v1510, 1.0614054
  %v1639 = vmul.f32 %v1511, 1.0614054
  %v1640 = vmul.f32 %v1512, 1.0614054
  %v1641 = vmul.f32 %v1513, 1.0614054
  %v1642 = vmul.f32 %v1514, 1.0614054
  %v1643 = vmul.f32 %v1515, 1.0614054
  %v1644 = vmul.f32 %v1516, 1.0614054
  %v1645 = vmul.f32 %v1517, 1.0614054
  %v1646 = vmul.f32 %v1518, 1.0614054
  %v1647 = vmul.f32 %v1519, 1.0614054
  %v1648 = vmul.f32 %v1520, 1.0614054
  %v1649 = vmul.f32 %v1521, 1.0614054
  %v1650 = vmul.f32 %v1522, 1.0614054
  %v1651 = vmul.f32 %v1523, 1.0614054
  %v1652 = vmul.f32 %v1524, 1.0614054
  %v1653 = vmul.f32 %v1525, 1.0614054
  %v1654 = vmul.f32 %v1526, 1.0614054
  %v1655 = vmul.f32 %v1527, 1.0614054
  %v1656 = vmul.f32 %v1528, 1.0614054
  %v1657 = vmul.f32 %v1529, 1.0614054
  %v1658 = vmul.f32 %v1530, 1.0614054
  %v1659 = vmul.f32 %v1531, 1.0614054
  %v1660 = vmul.f32 %v1532, 1.0614054
  %v1661 = vmul.f32 %v1533, 1.0614054
  %v1662 = vmul.f32 %v1534, 1.0614054
  %v1663 = vmul.f32 %v1535, 1.0614054
  %v1664 = vmul.f32 %v1536, 1.0614054
  %v1665 = vmul.f32 %v1537, 1.0614054
  %v1666 = vmul.f32 %v1538, 1.0614054
  %v1667 = vmul.f32 %v1539, 1.0614054
  %v1668 = vmul.f32 %v1540, 1.0614054
  %v1669 = vmul.f32 %v1541, 1.0614054
  %v1670 = vmul.f32 %v1542, 1.0614054
  %v1671 = vmul.f32 %v1543, 1.0614054
  %v1672 = vmul.f32 %v1544, 1.0614054
  %v1673 = vmul.f32 %v1545, 1.0614054
  %v1674 = vmul.f32 %v1546, 1.0614054
  %v1675 = vmul.f32 %v1547, 1.0614054
  %v1676 = vmul.f32 %v1548, 1.0614054
  %v1677 = vmul.f32 %v1549, 1.0614054
  %v1678 = vmul.f32 %v1550, 1.0614054
  %v1679 = vmul.f32 %v1551, 1.0614054
  %v1680 = vmul.f32 %v1552, 1.0614054
  %v1681 = vmul.f32 %v1553, 1.0614054
  %v1682 = vmul.f32 %v1554, 1.0614054
  %v1683 = vmul.f32 %v1555, 1.0614054
  %v1684 = vmul.f32 %v1556, 1.0614054
  %v1685 = vmul.f32 %v1557, 1.0614054
  %v1686 = vmul.f32 %v1558, 1.0614054
  %v1687 = vmul.f32 %v1559, 1.0614054
  %v1688 = vmul.f32 %v1560, 1.0614054
  %v1689 = vmul.f32 %v1561, 1.0614054
  %v1690 = vmul.f32 %v1562, 1.0614054
  %v1691 = vmul.f32 %v1563, 1.0614054
  %v1692 = vmul.f32 %v1564, 1.0614054
  %v1693 = vmul.f32 %v1565, 1.0614054
  %v1694 = vmul.f32 %v1566, 1.0614054
  %v1695 = vmul.f32 %v1567, 1.0614054
  %v1696 = vmul.f32 %v1568, 1.0614054
  %v1697 = vmul.f32 %v1569, 1.0614054
  %v1698 = vmul.f32 %v1570, 1.0614054
  %v1699 = vmul.f32 %v1571, 1.0614054
  %v1700 = vmul.f32 %v1572, 1.0614054
  %v1701 = vmul.f32 %v1573, 1.0614054
  %v1702 = vmul.f32 %v1574, 1.0614054
  %v1703 = vmul.f32 %v1575, 1.0614054
  %v1704 = vmul.f32 %v1576, 1.0614054
  %v1705 = vmul.f32 %v1577, 1.0614054
  %v1706 = vmul.f32 %v1578, 1.0614054
  %v1707 = vmul.f32 %v1579, 1.0614054
  %v1708 = vadd.f32 %v1580, -1.4531521
  %v1709 = vadd.f32 %v1581, -1.4531521
  %v1710 = vadd.f32 %v1582, -1.4531521
  %v1711 = vadd.f32 %v1583, -1.4531521
  %v1712 = vadd.f32 %v1584, -1.4531521
  %v1713 = vadd.f32 %v1585, -1.4531521
  %v1714 = vadd.f32 %v1586, -1.4531521
  %v1715 = vadd.f32 %v1587, -1.4531521
  %v1716 = vadd.f32 %v1588, -1.4531521
  %v1717 = vadd.f32 %v1589, -1.4531521
  %v1718 = vadd.f32 %v1590, -1.4531521
  %v1719 = vadd.f32 %v1591, -1.4531521
  %v1720 = vadd.f32 %v1592, -1.4531521
  %v1721 = vadd.f32 %v1593, -1.4531521
  %v1722 = vadd.f32 %v1594, -1.4531521
  %v1723 = vadd.f32 %v1595, -1.4531521
  %v1724 = vadd.f32 %v1596, -1.4531521
  %v1725 = vadd.f32 %v1597, -1.4531521
  %v1726 = vadd.f32 %v1598, -1.4531521
  %v1727 = vadd.f32 %v1599, -1.4531521
  %v1728 = vadd.f32 %v1600, -1.4531521
  %v1729 = vadd.f32 %v1601, -1.4531521
  %v1730 = vadd.f32 %v1602, -1.4531521
  %v1731 = vadd.f32 %v1603, -1.4531521
  %v1732 = vadd.f32 %v1604, -1.4531521
  %v1733 = vadd.f32 %v1605, -1.4531521
  %v1734 = vadd.f32 %v1606, -1.4531521
  %v1735 = vadd.f32 %v1607, -1.4531521
  %v1736 = vadd.f32 %v1608, -1.4531521
  %v1737 = vadd.f32 %v1609, -1.4531521
  %v1738 = vadd.f32 %v1610, -1.4531521
  %v1739 = vadd.f32 %v1611, -1.4531521
  %v1740 = vadd.f32 %v1612, -1.4531521
  %v1741 = vadd.f32 %v1613, -1.4531521
  %v1742 = vadd.f32 %v1614, -1.4531521
  %v1743 = vadd.f32 %v1615, -1.4531521
  %v1744 = vadd.f32 %v1616, -1.4531521
  %v1745 = vadd.f32 %v1617, -1.4531521
  %v1746 = vadd.f32 %v1618, -1.4531521
  %v1747 = vadd.f32 %v1619, -1.4531521
  %v1748 = vadd.f32 %v1620, -1.4531521
  %v1749 = vadd.f32 %v1621, -1.4531521
  %v1750 = vadd.f32 %v1622, -1.4531521
  %v1751 = vadd.f32 %v1623, -1.4531521
  %v1752 = vadd.f32 %v1624, -1.4531521
  %v1753 = vadd.f32 %v1625, -1.4531521
  %v1754 = vadd.f32 %v1626, -1.4531521
  %v1755 = vadd.f32 %v1627, -1.4531521
  %v1756 = vadd.f32 %v1628, -1.4531521
  %v1757 = vadd.f32 %v1629, -1.4531521
  %v1758 = vadd.f32 %v1630, -1.4531521
  %v1759 = vadd.f32 %v1631, -1.4531521
  %v1760 = vadd.f32 %v1632, -1.4531521
  %v1761 = vadd.f32 %v1633, -1.4531521
  %v1762 = vadd.f32 %v1634, -1.4531521
  %v1763 = vadd.f32 %v1635, -1.4531521
  %v1764 = vadd.f32 %v1636, -1.4531521
  %v1765 = vadd.f32 %v1637, -1.4531521
  %v1766 = vadd.f32 %v1638, -1.4531521
  %v1767 = vadd.f32 %v1639, -1.4531521
  %v1768 = vadd.f32 %v1640, -1.4531521
  %v1769 = vadd.f32 %v1641, -1.4531521
  %v1770 = vadd.f32 %v1642, -1.4531521
  %v1771 = vadd.f32 %v1643, -1.4531521
  %v1772 = vadd.f32 %v1644, -1.4531521
  %v1773 = vadd.f32 %v1645, -1.4531521
  %v1774 = vadd.f32 %v1646, -1.4531521
  %v1775 = vadd.f32 %v1647, -1.4531521
  %v1776 = vadd.f32 %v1648, -1.4531521
  %v1777 = vadd.f32 %v1649, -1.4531521
  %v1778 = vadd.f32 %v1650, -1.4531521
  %v1779 = vadd.f32 %v1651, -1.4531521
  %v1780 = vadd.f32 %v1652, -1.4531521
  %v1781 = vadd.f32 %v1653, -1.4531521
  %v1782 = vadd.f32 %v1654, -1.4531521
  %v1783 = vadd.f32 %v1655, -1.4531521
  %v1784 = vadd.f32 %v1656, -1.4531521
  %v1785 = vadd.f32 %v1657, -1.4531521
  %v1786 = vadd.f32 %v1658, -1.4531521
  %v1787 = vadd.f32 %v1659, -1.4531521
  %v1788 = vadd.f32 %v1660, -1.4531521
  %v1789 = vadd.f32 %v1661, -1.4531521
  %v1790 = vadd.f32 %v1662, -1.4531521
  %v1791 = vadd.f32 %v1663, -1.4531521
  %v1792 = vadd.f32 %v1664, -1.4531521
  %v1793 = vadd.f32 %v1665, -1.4531521
  %v1794 = vadd.f32 %v1666, -1.4531521
  %v1795 = vadd.f32 %v1667, -1.4531521
  %v1796 = vadd.f32 %v1668, -1.4531521
  %v1797 = vadd.f32 %v1669, -1.4531521
  %v1798 = vadd.f32 %v1670, -1.4531521
  %v1799 = vadd.f32 %v1671, -1.4531521
  %v1800 = vadd.f32 %v1672, -1.4531521
  %v1801 = vadd.f32 %v1673, -1.4531521
  %v1802 = vadd.f32 %v1674, -1.4531521
  %v1803 = vadd.f32 %v1675, -1.4531521
  %v1804 = vadd.f32 %v1676, -1.4531521
  %v1805 = vadd.f32 %v1677, -1.4531521
  %v1806 = vadd.f32 %v1678, -1.4531521
  %v1807 = vadd.f32 %v1679, -1.4531521
  %v1808 = vadd.f32 %v1680, -1.4531521
  %v1809 = vadd.f32 %v1681, -1.4531521
  %v1810 = vadd.f32 %v1682, -1.4531521
  %v1811 = vadd.f32 %v1683, -1.4531521
  %v1812 = vadd.f32 %v1684, -1.4531521
  %v1813 = vadd.f32 %v1685, -1.4531521
  %v1814 = vadd.f32 %v1686, -1.4531521
  %v1815 = vadd.f32 %v1687, -1.4531521
  %v1816 = vadd.f32 %v1688, -1.4531521
  %v1817 = vadd.f32 %v1689, -1.4531521
  %v1818 = vadd.f32 %v1690, -1.4531521
  %v1819 = vadd.f32 %v1691, -1.4531521
  %v1820 = vadd.f32 %v1692, -1.4531521
  %v1821 = vadd.f32 %v1693, -1.4531521
  %v1822 = vadd.f32 %v1694, -1.4531521
  %v1823 = vadd.f32 %v1695, -1.4531521
  %v1824 = vadd.f32 %v1696, -1.4531521
  %v1825 = vadd.f32 %v1697, -1.4531521
  %v1826 = vadd.f32 %v1698, -1.4531521
  %v1827 = vadd.f32 %v1699, -1.4531521
  %v1828 = vadd.f32 %v1700, -1.4531521
  %v1829 = vadd.f32 %v1701, -1.4531521
  %v1830 = vadd.f32 %v1702, -1.4531521
  %v1831 = vadd.f32 %v1703, -1.4531521
  %v1832 = vadd.f32 %v1704, -1.4531521
  %v1833 = vadd.f32 %v1705, -1.4531521
  %v1834 = vadd.f32 %v1706, -1.4531521
  %v1835 = vadd.f32 %v1707, -1.4531521
  %v1836 = vmul.f32 %v1708, %v1452
  %v1837 = vmul.f32 %v1709, %v1453
  %v1838 = vmul.f32 %v1710, %v1454
  %v1839 = vmul.f32 %v1711, %v1455
  %v1840 = vmul.f32 %v1712, %v1456
  %v1841 = vmul.f32 %v1713, %v1457
  %v1842 = vmul.f32 %v1714, %v1458
  %v1843 = vmul.f32 %v1715, %v1459
  %v1844 = vmul.f32 %v1716, %v1460
  %v1845 = vmul.f32 %v1717, %v1461
  %v1846 = vmul.f32 %v1718, %v1462
  %v1847 = vmul.f32 %v1719, %v1463
  %v1848 = vmul.f32 %v1720, %v1464
  %v1849 = vmul.f32 %v1721, %v1465
  %v1850 = vmul.f32 %v1722, %v1466
  %v1851 = vmul.f32 %v1723, %v1467
  %v1852 = vmul.f32 %v1724, %v1468
  %v1853 = vmul.f32 %v1725, %v1469
  %v1854 = vmul.f32 %v1726, %v1470
  %v1855 = vmul.f32 %v1727, %v1471
  %v1856 = vmul.f32 %v1728, %v1472
  %v1857 = vmul.f32 %v1729, %v1473
  %v1858 = vmul.f32 %v1730, %v1474
  %v1859 = vmul.f32 %v1731, %v1475
  %v1860 = vmul.f32 %v1732, %v1476
  %v1861 = vmul.f32 %v1733, %v1477
  %v1862 = vmul.f32 %v1734, %v1478
  %v1863 = vmul.f32 %v1735, %v1479
  %v1864 = vmul.f32 %v1736, %v1480
  %v1865 = vmul.f32 %v1737, %v1481
  %v1866 = vmul.f32 %v1738, %v1482
  %v1867 = vmul.f32 %v1739, %v1483
  %v1868 = vmul.f32 %v1740, %v1484
  %v1869 = vmul.f32 %v1741, %v1485
  %v1870 = vmul.f32 %v1742, %v1486
  %v1871 = vmul.f32 %v1743, %v1487
  %v1872 = vmul.f32 %v1744, %v1488
  %v1873 = vmul.f32 %v1745, %v1489
  %v1874 = vmul.f32 %v1746, %v1490
  %v1875 = vmul.f32 %v1747, %v1491
  %v1876 = vmul.f32 %v1748, %v1492
  %v1877 = vmul.f32 %v1749, %v1493
  %v1878 = vmul.f32 %v1750, %v1494
  %v1879 = vmul.f32 %v1751, %v1495
  %v1880 = vmul.f32 %v1752, %v1496
  %v1881 = vmul.f32 %v1753, %v1497
  %v1882 = vmul.f32 %v1754, %v1498
  %v1883 = vmul.f32 %v1755, %v1499
  %v1884 = vmul.f32 %v1756, %v1500
  %v1885 = vmul.f32 %v1757, %v1501
  %v1886 = vmul.f32 %v1758, %v1502
  %v1887 = vmul.f32 %v1759, %v1503
  %v1888 = vmul.f32 %v1760, %v1504
  %v1889 = vmul.f32 %v1761, %v1505
  %v1890 = vmul.f32 %v1762, %v1506
  %v1891 = vmul.f32 %v1763, %v1507
  %v1892 = vmul.f32 %v1764, %v1508
  %v1893 = vmul.f32 %v1765, %v1509
  %v1894 = vmul.f32 %v1766, %v1510
  %v1895 = vmul.f32 %v1767, %v1511
  %v1896 = vmul.f32 %v1768, %v1512
  %v1897 = vmul.f32 %v1769, %v1513
  %v1898 = vmul.f32 %v1770, %v1514
  %v1899 = vmul.f32 %v1771, %v1515
  %v1900 = vmul.f32 %v1772, %v1516
  %v1901 = vmul.f32 %v1773, %v1517
  %v1902 = vmul.f32 %v1774, %v1518
  %v1903 = vmul.f32 %v1775, %v1519
  %v1904 = vmul.f32 %v1776, %v1520
  %v1905 = vmul.f32 %v1777, %v1521
  %v1906 = vmul.f32 %v1778, %v1522
  %v1907 = vmul.f32 %v1779, %v1523
  %v1908 = vmul.f32 %v1780, %v1524
  %v1909 = vmul.f32 %v1781, %v1525
  %v1910 = vmul.f32 %v1782, %v1526
  %v1911 = vmul.f32 %v1783, %v1527
  %v1912 = vmul.f32 %v1784, %v1528
  %v1913 = vmul.f32 %v1785, %v1529
  %v1914 = vmul.f32 %v1786, %v1530
  %v1915 = vmul.f32 %v1787, %v1531
  %v1916 = vmul.f32 %v1788, %v1532
  %v1917 = vmul.f32 %v1789, %v1533
  %v1918 = vmul.f32 %v1790, %v1534
  %v1919 = vmul.f32 %v1791, %v1535
  %v1920 = vmul.f32 %v1792, %v1536
  %v1921 = vmul.f32 %v1793, %v1537
  %v1922 = vmul.f32 %v1794, %v1538
  %v1923 = vmul.f32 %v1795, %v1539
  %v1924 = vmul.f32 %v1796, %v1540
  %v1925 = vmul.f32 %v1797, %v1541
  %v1926 = vmul.f32 %v1798, %v1542
  %v1927 = vmul.f32 %v1799, %v1543
  %v1928 = vmul.f32 %v1800, %v1544
  %v1929 = vmul.f32 %v1801, %v1545
  %v1930 = vmul.f32 %v1802, %v1546
  %v1931 = vmul.f32 %v1803, %v1547
  %v1932 = vmul.f32 %v1804, %v1548
  %v1933 = vmul.f32 %v1805, %v1549
  %v1934 = vmul.f32 %v1806, %v1550
  %v1935 = vmul.f32 %v1807, %v1551
  %v1936 = vmul.f32 %v1808, %v1552
  %v1937 = vmul.f32 %v1809, %v1553
  %v1938 = vmul.f32 %v1810, %v1554
  %v1939 = vmul.f32 %v1811, %v1555
  %v1940 = vmul.f32 %v1812, %v1556
  %v1941 = vmul.f32 %v1813, %v1557
  %v1942 = vmul.f32 %v1814, %v1558
  %v1943 = vmul.f32 %v1815, %v1559
  %v1944 = vmul.f32 %v1816, %v1560
  %v1945 = vmul.f32 %v1817, %v1561
  %v1946 = vmul.f32 %v1818, %v1562
  %v1947 = vmul.f32 %v1819, %v1563
  %v1948 = vmul.f32 %v1820, %v1564
  %v1949 = vmul.f32 %v1821, %v1565
  %v1950 = vmul.f32 %v1822, %v1566
  %v1951 = vmul.f32 %v1823, %v1567
  %v1952 = vmul.f32 %v1824, %v1568
  %v1953 = vmul.f32 %v1825, %v1569
  %v1954 = vmul.f32 %v1826, %v1570
  %v1955 = vmul.f32 %v1827, %v1571
  %v1956 = vmul.f32 %v1828, %v1572
  %v1957 = vmul.f32 %v1829, %v1573
  %v1958 = vmul.f32 %v1830, %v1574
  %v1959 = vmul.f32 %v1831, %v1575
  %v1960 = vmul.f32 %v1832, %v1576
  %v1961 = vmul.f32 %v1833, %v1577
  %v1962 = vmul.f32 %v1834, %v1578
  %v1963 = vmul.f32 %v1835, %v1579
  %v1964 = vadd.f32 %v1836, 1.4214138
  %v1965 = vadd.f32 %v1837, 1.4214138
  %v1966 = vadd.f32 %v1838, 1.4214138
  %v1967 = vadd.f32 %v1839, 1.4214138
  %v1968 = vadd.f32 %v1840, 1.4214138
  %v1969 = vadd.f32 %v1841, 1.4214138
  %v1970 = vadd.f32 %v1842, 1.4214138
  %v1971 = vadd.f32 %v1843, 1.4214138
  %v1972 = vadd.f32 %v1844, 1.4214138
  %v1973 = vadd.f32 %v1845, 1.4214138
  %v1974 = vadd.f32 %v1846, 1.4214138
  %v1975 = vadd.f32 %v1847, 1.4214138
  %v1976 = vadd.f32 %v1848, 1.4214138
  %v1977 = vadd.f32 %v1849, 1.4214138
  %v1978 = vadd.f32 %v1850, 1.4214138
  %v1979 = vadd.f32 %v1851, 1.4214138
  %v1980 = vadd.f32 %v1852, 1.4214138
  %v1981 = vadd.f32 %v1853, 1.4214138
  %v1982 = vadd.f32 %v1854, 1.4214138
  %v1983 = vadd.f32 %v1855, 1.4214138
  %v1984 = vadd.f32 %v1856, 1.4214138
  %v1985 = vadd.f32 %v1857, 1.4214138
  %v1986 = vadd.f32 %v1858, 1.4214138
  %v1987 = vadd.f32 %v1859, 1.4214138
  %v1988 = vadd.f32 %v1860, 1.4214138
  %v1989 = vadd.f32 %v1861, 1.4214138
  %v1990 = vadd.f32 %v1862, 1.4214138
  %v1991 = vadd.f32 %v1863, 1.4214138
  %v1992 = vadd.f32 %v1864, 1.4214138
  %v1993 = vadd.f32 %v1865, 1.4214138
  %v1994 = vadd.f32 %v1866, 1.4214138
  %v1995 = vadd.f32 %v1867, 1.4214138
  %v1996 = vadd.f32 %v1868, 1.4214138
  %v1997 = vadd.f32 %v1869, 1.4214138
  %v1998 = vadd.f32 %v1870, 1.4214138
  %v1999 = vadd.f32 %v1871, 1.4214138
  %v2000 = vadd.f32 %v1872, 1.4214138
  %v2001 = vadd.f32 %v1873, 1.4214138
  %v2002 = vadd.f32 %v1874, 1.4214138
  %v2003 = vadd.f32 %v1875, 1.4214138
  %v2004 = vadd.f32 %v1876, 1.4214138
  %v2005 = vadd.f32 %v1877, 1.4214138
  %v2006 = vadd.f32 %v1878, 1.4214138
  %v2007 = vadd.f32 %v1879, 1.4214138
  %v2008 = vadd.f32 %v1880, 1.4214138
  %v2009 = vadd.f32 %v1881, 1.4214138
  %v2010 = vadd.f32 %v1882, 1.4214138
  %v2011 = vadd.f32 %v1883, 1.4214138
  %v2012 = vadd.f32 %v1884, 1.4214138
  %v2013 = vadd.f32 %v1885, 1.4214138
  %v2014 = vadd.f32 %v1886, 1.4214138
  %v2015 = vadd.f32 %v1887, 1.4214138
  %v2016 = vadd.f32 %v1888, 1.4214138
  %v2017 = vadd.f32 %v1889, 1.4214138
  %v2018 = vadd.f32 %v1890, 1.4214138
  %v2019 = vadd.f32 %v1891, 1.4214138
  %v2020 = vadd.f32 %v1892, 1.4214138
  %v2021 = vadd.f32 %v1893, 1.4214138
  %v2022 = vadd.f32 %v1894, 1.4214138
  %v2023 = vadd.f32 %v1895, 1.4214138
  %v2024 = vadd.f32 %v1896, 1.4214138
  %v2025 = vadd.f32 %v1897, 1.4214138
  %v2026 = vadd.f32 %v1898, 1.4214138
  %v2027 = vadd.f32 %v1899, 1.4214138
  %v2028 = vadd.f32 %v1900, 1.4214138
  %v2029 = vadd.f32 %v1901, 1.4214138
  %v2030 = vadd.f32 %v1902, 1.4214138
  %v2031 = vadd.f32 %v1903, 1.4214138
  %v2032 = vadd.f32 %v1904, 1.4214138
  %v2033 = vadd.f32 %v1905, 1.4214138
  %v2034 = vadd.f32 %v1906, 1.4214138
  %v2035 = vadd.f32 %v1907, 1.4214138
  %v2036 = vadd.f32 %v1908, 1.4214138
  %v2037 = vadd.f32 %v1909, 1.4214138
  %v2038 = vadd.f32 %v1910, 1.4214138
  %v2039 = vadd.f32 %v1911, 1.4214138
  %v2040 = vadd.f32 %v1912, 1.4214138
  %v2041 = vadd.f32 %v1913, 1.4214138
  %v2042 = vadd.f32 %v1914, 1.4214138
  %v2043 = vadd.f32 %v1915, 1.4214138
  %v2044 = vadd.f32 %v1916, 1.4214138
  %v2045 = vadd.f32 %v1917, 1.4214138
  %v2046 = vadd.f32 %v1918, 1.4214138
  %v2047 = vadd.f32 %v1919, 1.4214138
  %v2048 = vadd.f32 %v1920, 1.4214138
  %v2049 = vadd.f32 %v1921, 1.4214138
  %v2050 = vadd.f32 %v1922, 1.4214138
  %v2051 = vadd.f32 %v1923, 1.4214138
  %v2052 = vadd.f32 %v1924, 1.4214138
  %v2053 = vadd.f32 %v1925, 1.4214138
  %v2054 = vadd.f32 %v1926, 1.4214138
  %v2055 = vadd.f32 %v1927, 1.4214138
  %v2056 = vadd.f32 %v1928, 1.4214138
  %v2057 = vadd.f32 %v1929, 1.4214138
  %v2058 = vadd.f32 %v1930, 1.4214138
  %v2059 = vadd.f32 %v1931, 1.4214138
  %v2060 = vadd.f32 %v1932, 1.4214138
  %v2061 = vadd.f32 %v1933, 1.4214138
  %v2062 = vadd.f32 %v1934, 1.4214138
  %v2063 = vadd.f32 %v1935, 1.4214138
  %v2064 = vadd.f32 %v1936, 1.4214138
  %v2065 = vadd.f32 %v1937, 1.4214138
  %v2066 = vadd.f32 %v1938, 1.4214138
  %v2067 = vadd.f32 %v1939, 1.4214138
  %v2068 = vadd.f32 %v1940, 1.4214138
  %v2069 = vadd.f32 %v1941, 1.4214138
  %v2070 = vadd.f32 %v1942, 1.4214138
  %v2071 = vadd.f32 %v1943, 1.4214138
  %v2072 = vadd.f32 %v1944, 1.4214138
  %v2073 = vadd.f32 %v1945, 1.4214138
  %v2074 = vadd.f32 %v1946, 1.4214138
  %v2075 = vadd.f32 %v1947, 1.4214138
  %v2076 = vadd.f32 %v1948, 1.4214138
  %v2077 = vadd.f32 %v1949, 1.4214138
  %v2078 = vadd.f32 %v1950, 1.4214138
  %v2079 = vadd.f32 %v1951, 1.4214138
  %v2080 = vadd.f32 %v1952, 1.4214138
  %v2081 = vadd.f32 %v1953, 1.4214138
  %v2082 = vadd.f32 %v1954, 1.4214138
  %v2083 = vadd.f32 %v1955, 1.4214138
  %v2084 = vadd.f32 %v1956, 1.4214138
  %v2085 = vadd.f32 %v1957, 1.4214138
  %v2086 = vadd.f32 %v1958, 1.4214138
  %v2087 = vadd.f32 %v1959, 1.4214138
  %v2088 = vadd.f32 %v1960, 1.4214138
  %v2089 = vadd.f32 %v1961, 1.4214138
  %v2090 = vadd.f32 %v1962, 1.4214138
  %v2091 = vadd.f32 %v1963, 1.4214138
  %v2092 = vmul.f32 %v1964, %v1452
  %v2093 = vmul.f32 %v1965, %v1453
  %v2094 = vmul.f32 %v1966, %v1454
  %v2095 = vmul.f32 %v1967, %v1455
  %v2096 = vmul.f32 %v1968, %v1456
  %v2097 = vmul.f32 %v1969, %v1457
  %v2098 = vmul.f32 %v1970, %v1458
  %v2099 = vmul.f32 %v1971, %v1459
  %v2100 = vmul.f32 %v1972, %v1460
  %v2101 = vmul.f32 %v1973, %v1461
  %v2102 = vmul.f32 %v1974, %v1462
  %v2103 = vmul.f32 %v1975, %v1463
  %v2104 = vmul.f32 %v1976, %v1464
  %v2105 = vmul.f32 %v1977, %v1465
  %v2106 = vmul.f32 %v1978, %v1466
  %v2107 = vmul.f32 %v1979, %v1467
  %v2108 = vmul.f32 %v1980, %v1468
  %v2109 = vmul.f32 %v1981, %v1469
  %v2110 = vmul.f32 %v1982, %v1470
  %v2111 = vmul.f32 %v1983, %v1471
  %v2112 = vmul.f32 %v1984, %v1472
  %v2113 = vmul.f32 %v1985, %v1473
  %v2114 = vmul.f32 %v1986, %v1474
  %v2115 = vmul.f32 %v1987, %v1475
  %v2116 = vmul.f32 %v1988, %v1476
  %v2117 = vmul.f32 %v1989, %v1477
  %v2118 = vmul.f32 %v1990, %v1478
  %v2119 = vmul.f32 %v1991, %v1479
  %v2120 = vmul.f32 %v1992, %v1480
  %v2121 = vmul.f32 %v1993, %v1481
  %v2122 = vmul.f32 %v1994, %v1482
  %v2123 = vmul.f32 %v1995, %v1483
  %v2124 = vmul.f32 %v1996, %v1484
  %v2125 = vmul.f32 %v1997, %v1485
  %v2126 = vmul.f32 %v1998, %v1486
  %v2127 = vmul.f32 %v1999, %v1487
  %v2128 = vmul.f32 %v2000, %v1488
  %v2129 = vmul.f32 %v2001, %v1489
  %v2130 = vmul.f32 %v2002, %v1490
  %v2131 = vmul.f32 %v2003, %v1491
  %v2132 = vmul.f32 %v2004, %v1492
  %v2133 = vmul.f32 %v2005, %v1493
  %v2134 = vmul.f32 %v2006, %v1494
  %v2135 = vmul.f32 %v2007, %v1495
  %v2136 = vmul.f32 %v2008, %v1496
  %v2137 = vmul.f32 %v2009, %v1497
  %v2138 = vmul.f32 %v2010, %v1498
  %v2139 = vmul.f32 %v2011, %v1499
  %v2140 = vmul.f32 %v2012, %v1500
  %v2141 = vmul.f32 %v2013, %v1501
  %v2142 = vmul.f32 %v2014, %v1502
  %v2143 = vmul.f32 %v2015, %v1503
  %v2144 = vmul.f32 %v2016, %v1504
  %v2145 = vmul.f32 %v2017, %v1505
  %v2146 = vmul.f32 %v2018, %v1506
  %v2147 = vmul.f32 %v2019, %v1507
  %v2148 = vmul.f32 %v2020, %v1508
  %v2149 = vmul.f32 %v2021, %v1509
  %v2150 = vmul.f32 %v2022, %v1510
  %v2151 = vmul.f32 %v2023, %v1511
  %v2152 = vmul.f32 %v2024, %v1512
  %v2153 = vmul.f32 %v2025, %v1513
  %v2154 = vmul.f32 %v2026, %v1514
  %v2155 = vmul.f32 %v2027, %v1515
  %v2156 = vmul.f32 %v2028, %v1516
  %v2157 = vmul.f32 %v2029, %v1517
  %v2158 = vmul.f32 %v2030, %v1518
  %v2159 = vmul.f32 %v2031, %v1519
  %v2160 = vmul.f32 %v2032, %v1520
  %v2161 = vmul.f32 %v2033, %v1521
  %v2162 = vmul.f32 %v2034, %v1522
  %v2163 = vmul.f32 %v2035, %v1523
  %v2164 = vmul.f32 %v2036, %v1524
  %v2165 = vmul.f32 %v2037, %v1525
  %v2166 = vmul.f32 %v2038, %v1526
  %v2167 = vmul.f32 %v2039, %v1527
  %v2168 = vmul.f32 %v2040, %v1528
  %v2169 = vmul.f32 %v2041, %v1529
  %v2170 = vmul.f32 %v2042, %v1530
  %v2171 = vmul.f32 %v2043, %v1531
  %v2172 = vmul.f32 %v2044, %v1532
  %v2173 = vmul.f32 %v2045, %v1533
  %v2174 = vmul.f32 %v2046, %v1534
  %v2175 = vmul.f32 %v2047, %v1535
  %v2176 = vmul.f32 %v2048, %v1536
  %v2177 = vmul.f32 %v2049, %v1537
  %v2178 = vmul.f32 %v2050, %v1538
  %v2179 = vmul.f32 %v2051, %v1539
  %v2180 = vmul.f32 %v2052, %v1540
  %v2181 = vmul.f32 %v2053, %v1541
  %v2182 = vmul.f32 %v2054, %v1542
  %v2183 = vmul.f32 %v2055, %v1543
  %v2184 = vmul.f32 %v2056, %v1544
  %v2185 = vmul.f32 %v2057, %v1545
  %v2186 = vmul.f32 %v2058, %v1546
  %v2187 = vmul.f32 %v2059, %v1547
  %v2188 = vmul.f32 %v2060, %v1548
  %v2189 = vmul.f32 %v2061, %v1549
  %v2190 = vmul.f32 %v2062, %v1550
  %v2191 = vmul.f32 %v2063, %v1551
  %v2192 = vmul.f32 %v2064, %v1552
  %v2193 = vmul.f32 %v2065, %v1553
  %v2194 = vmul.f32 %v2066, %v1554
  %v2195 = vmul.f32 %v2067, %v1555
  %v2196 = vmul.f32 %v2068, %v1556
  %v2197 = vmul.f32 %v2069, %v1557
  %v2198 = vmul.f32 %v2070, %v1558
  %v2199 = vmul.f32 %v2071, %v1559
  %v2200 = vmul.f32 %v2072, %v1560
  %v2201 = vmul.f32 %v2073, %v1561
  %v2202 = vmul.f32 %v2074, %v1562
  %v2203 = vmul.f32 %v2075, %v1563
  %v2204 = vmul.f32 %v2076, %v1564
  %v2205 = vmul.f32 %v2077, %v1565
  %v2206 = vmul.f32 %v2078, %v1566
  %v2207 = vmul.f32 %v2079, %v1567
  %v2208 = vmul.f32 %v2080, %v1568
  %v2209 = vmul.f32 %v2081, %v1569
  %v2210 = vmul.f32 %v2082, %v1570
  %v2211 = vmul.f32 %v2083, %v1571
  %v2212 = vmul.f32 %v2084, %v1572
  %v2213 = vmul.f32 %v2085, %v1573
  %v2214 = vmul.f32 %v2086, %v1574
  %v2215 = vmul.f32 %v2087, %v1575
  %v2216 = vmul.f32 %v2088, %v1576
  %v2217 = vmul.f32 %v2089, %v1577
  %v2218 = vmul.f32 %v2090, %v1578
  %v2219 = vmul.f32 %v2091, %v1579
  %v2220 = vadd.f32 %v2092, -0.28449672
  %v2221 = vadd.f32 %v2093, -0.28449672
  %v2222 = vadd.f32 %v2094, -0.28449672
  %v2223 = vadd.f32 %v2095, -0.28449672
  %v2224 = vadd.f32 %v2096, -0.28449672
  %v2225 = vadd.f32 %v2097, -0.28449672
  %v2226 = vadd.f32 %v2098, -0.28449672
  %v2227 = vadd.f32 %v2099, -0.28449672
  %v2228 = vadd.f32 %v2100, -0.28449672
  %v2229 = vadd.f32 %v2101, -0.28449672
  %v2230 = vadd.f32 %v2102, -0.28449672
  %v2231 = vadd.f32 %v2103, -0.28449672
  %v2232 = vadd.f32 %v2104, -0.28449672
  %v2233 = vadd.f32 %v2105, -0.28449672
  %v2234 = vadd.f32 %v2106, -0.28449672
  %v2235 = vadd.f32 %v2107, -0.28449672
  %v2236 = vadd.f32 %v2108, -0.28449672
  %v2237 = vadd.f32 %v2109, -0.28449672
  %v2238 = vadd.f32 %v2110, -0.28449672
  %v2239 = vadd.f32 %v2111, -0.28449672
  %v2240 = vadd.f32 %v2112, -0.28449672
  %v2241 = vadd.f32 %v2113, -0.28449672
  %v2242 = vadd.f32 %v2114, -0.28449672
  %v2243 = vadd.f32 %v2115, -0.28449672
  %v2244 = vadd.f32 %v2116, -0.28449672
  %v2245 = vadd.f32 %v2117, -0.28449672
  %v2246 = vadd.f32 %v2118, -0.28449672
  %v2247 = vadd.f32 %v2119, -0.28449672
  %v2248 = vadd.f32 %v2120, -0.28449672
  %v2249 = vadd.f32 %v2121, -0.28449672
  %v2250 = vadd.f32 %v2122, -0.28449672
  %v2251 = vadd.f32 %v2123, -0.28449672
  %v2252 = vadd.f32 %v2124, -0.28449672
  %v2253 = vadd.f32 %v2125, -0.28449672
  %v2254 = vadd.f32 %v2126, -0.28449672
  %v2255 = vadd.f32 %v2127, -0.28449672
  %v2256 = vadd.f32 %v2128, -0.28449672
  %v2257 = vadd.f32 %v2129, -0.28449672
  %v2258 = vadd.f32 %v2130, -0.28449672
  %v2259 = vadd.f32 %v2131, -0.28449672
  %v2260 = vadd.f32 %v2132, -0.28449672
  %v2261 = vadd.f32 %v2133, -0.28449672
  %v2262 = vadd.f32 %v2134, -0.28449672
  %v2263 = vadd.f32 %v2135, -0.28449672
  %v2264 = vadd.f32 %v2136, -0.28449672
  %v2265 = vadd.f32 %v2137, -0.28449672
  %v2266 = vadd.f32 %v2138, -0.28449672
  %v2267 = vadd.f32 %v2139, -0.28449672
  %v2268 = vadd.f32 %v2140, -0.28449672
  %v2269 = vadd.f32 %v2141, -0.28449672
  %v2270 = vadd.f32 %v2142, -0.28449672
  %v2271 = vadd.f32 %v2143, -0.28449672
  %v2272 = vadd.f32 %v2144, -0.28449672
  %v2273 = vadd.f32 %v2145, -0.28449672
  %v2274 = vadd.f32 %v2146, -0.28449672
  %v2275 = vadd.f32 %v2147, -0.28449672
  %v2276 = vadd.f32 %v2148, -0.28449672
  %v2277 = vadd.f32 %v2149, -0.28449672
  %v2278 = vadd.f32 %v2150, -0.28449672
  %v2279 = vadd.f32 %v2151, -0.28449672
  %v2280 = vadd.f32 %v2152, -0.28449672
  %v2281 = vadd.f32 %v2153, -0.28449672
  %v2282 = vadd.f32 %v2154, -0.28449672
  %v2283 = vadd.f32 %v2155, -0.28449672
  %v2284 = vadd.f32 %v2156, -0.28449672
  %v2285 = vadd.f32 %v2157, -0.28449672
  %v2286 = vadd.f32 %v2158, -0.28449672
  %v2287 = vadd.f32 %v2159, -0.28449672
  %v2288 = vadd.f32 %v2160, -0.28449672
  %v2289 = vadd.f32 %v2161, -0.28449672
  %v2290 = vadd.f32 %v2162, -0.28449672
  %v2291 = vadd.f32 %v2163, -0.28449672
  %v2292 = vadd.f32 %v2164, -0.28449672
  %v2293 = vadd.f32 %v2165, -0.28449672
  %v2294 = vadd.f32 %v2166, -0.28449672
  %v2295 = vadd.f32 %v2167, -0.28449672
  %v2296 = vadd.f32 %v2168, -0.28449672
  %v2297 = vadd.f32 %v2169, -0.28449672
  %v2298 = vadd.f32 %v2170, -0.28449672
  %v2299 = vadd.f32 %v2171, -0.28449672
  %v2300 = vadd.f32 %v2172, -0.28449672
  %v2301 = vadd.f32 %v2173, -0.28449672
  %v2302 = vadd.f32 %v2174, -0.28449672
  %v2303 = vadd.f32 %v2175, -0.28449672
  %v2304 = vadd.f32 %v2176, -0.28449672
  %v2305 = vadd.f32 %v2177, -0.28449672
  %v2306 = vadd.f32 %v2178, -0.28449672
  %v2307 = vadd.f32 %v2179, -0.28449672
  %v2308 = vadd.f32 %v2180, -0.28449672
  %v2309 = vadd.f32 %v2181, -0.28449672
  %v2310 = vadd.f32 %v2182, -0.28449672
  %v2311 = vadd.f32 %v2183, -0.28449672
  %v2312 = vadd.f32 %v2184, -0.28449672
  %v2313 = vadd.f32 %v2185, -0.28449672
  %v2314 = vadd.f32 %v2186, -0.28449672
  %v2315 = vadd.f32 %v2187, -0.28449672
  %v2316 = vadd.f32 %v2188, -0.28449672
  %v2317 = vadd.f32 %v2189, -0.28449672
  %v2318 = vadd.f32 %v2190, -0.28449672
  %v2319 = vadd.f32 %v2191, -0.28449672
  %v2320 = vadd.f32 %v2192, -0.28449672
  %v2321 = vadd.f32 %v2193, -0.28449672
  %v2322 = vadd.f32 %v2194, -0.28449672
  %v2323 = vadd.f32 %v2195, -0.28449672
  %v2324 = vadd.f32 %v2196, -0.28449672
  %v2325 = vadd.f32 %v2197, -0.28449672
  %v2326 = vadd.f32 %v2198, -0.28449672
  %v2327 = vadd.f32 %v2199, -0.28449672
  %v2328 = vadd.f32 %v2200, -0.28449672
  %v2329 = vadd.f32 %v2201, -0.28449672
  %v2330 = vadd.f32 %v2202, -0.28449672
  %v2331 = vadd.f32 %v2203, -0.28449672
  %v2332 = vadd.f32 %v2204, -0.28449672
  %v2333 = vadd.f32 %v2205, -0.28449672
  %v2334 = vadd.f32 %v2206, -0.28449672
  %v2335 = vadd.f32 %v2207, -0.28449672
  %v2336 = vadd.f32 %v2208, -0.28449672
  %v2337 = vadd.f32 %v2209, -0.28449672
  %v2338 = vadd.f32 %v2210, -0.28449672
  %v2339 = vadd.f32 %v2211, -0.28449672
  %v2340 = vadd.f32 %v2212, -0.28449672
  %v2341 = vadd.f32 %v2213, -0.28449672
  %v2342 = vadd.f32 %v2214, -0.28449672
  %v2343 = vadd.f32 %v2215, -0.28449672
  %v2344 = vadd.f32 %v2216, -0.28449672
  %v2345 = vadd.f32 %v2217, -0.28449672
  %v2346 = vadd.f32 %v2218, -0.28449672
  %v2347 = vadd.f32 %v2219, -0.28449672
  %v2348 = vmul.f32 %v2220, %v1452
  %v2349 = vmul.f32 %v2221, %v1453
  %v2350 = vmul.f32 %v2222, %v1454
  %v2351 = vmul.f32 %v2223, %v1455
  %v2352 = vmul.f32 %v2224, %v1456
  %v2353 = vmul.f32 %v2225, %v1457
  %v2354 = vmul.f32 %v2226, %v1458
  %v2355 = vmul.f32 %v2227, %v1459
  %v2356 = vmul.f32 %v2228, %v1460
  %v2357 = vmul.f32 %v2229, %v1461
  %v2358 = vmul.f32 %v2230, %v1462
  %v2359 = vmul.f32 %v2231, %v1463
  %v2360 = vmul.f32 %v2232, %v1464
  %v2361 = vmul.f32 %v2233, %v1465
  %v2362 = vmul.f32 %v2234, %v1466
  %v2363 = vmul.f32 %v2235, %v1467
  %v2364 = vmul.f32 %v2236, %v1468
  %v2365 = vmul.f32 %v2237, %v1469
  %v2366 = vmul.f32 %v2238, %v1470
  %v2367 = vmul.f32 %v2239, %v1471
  %v2368 = vmul.f32 %v2240, %v1472
  %v2369 = vmul.f32 %v2241, %v1473
  %v2370 = vmul.f32 %v2242, %v1474
  %v2371 = vmul.f32 %v2243, %v1475
  %v2372 = vmul.f32 %v2244, %v1476
  %v2373 = vmul.f32 %v2245, %v1477
  %v2374 = vmul.f32 %v2246, %v1478
  %v2375 = vmul.f32 %v2247, %v1479
  %v2376 = vmul.f32 %v2248, %v1480
  %v2377 = vmul.f32 %v2249, %v1481
  %v2378 = vmul.f32 %v2250, %v1482
  %v2379 = vmul.f32 %v2251, %v1483
  %v2380 = vmul.f32 %v2252, %v1484
  %v2381 = vmul.f32 %v2253, %v1485
  %v2382 = vmul.f32 %v2254, %v1486
  %v2383 = vmul.f32 %v2255, %v1487
  %v2384 = vmul.f32 %v2256, %v1488
  %v2385 = vmul.f32 %v2257, %v1489
  %v2386 = vmul.f32 %v2258, %v1490
  %v2387 = vmul.f32 %v2259, %v1491
  %v2388 = vmul.f32 %v2260, %v1492
  %v2389 = vmul.f32 %v2261, %v1493
  %v2390 = vmul.f32 %v2262, %v1494
  %v2391 = vmul.f32 %v2263, %v1495
  %v2392 = vmul.f32 %v2264, %v1496
  %v2393 = vmul.f32 %v2265, %v1497
  %v2394 = vmul.f32 %v2266, %v1498
  %v2395 = vmul.f32 %v2267, %v1499
  %v2396 = vmul.f32 %v2268, %v1500
  %v2397 = vmul.f32 %v2269, %v1501
  %v2398 = vmul.f32 %v2270, %v1502
  %v2399 = vmul.f32 %v2271, %v1503
  %v2400 = vmul.f32 %v2272, %v1504
  %v2401 = vmul.f32 %v2273, %v1505
  %v2402 = vmul.f32 %v2274, %v1506
  %v2403 = vmul.f32 %v2275, %v1507
  %v2404 = vmul.f32 %v2276, %v1508
  %v2405 = vmul.f32 %v2277, %v1509
  %v2406 = vmul.f32 %v2278, %v1510
  %v2407 = vmul.f32 %v2279, %v1511
  %v2408 = vmul.f32 %v2280, %v1512
  %v2409 = vmul.f32 %v2281, %v1513
  %v2410 = vmul.f32 %v2282, %v1514
  %v2411 = vmul.f32 %v2283, %v1515
  %v2412 = vmul.f32 %v2284, %v1516
  %v2413 = vmul.f32 %v2285, %v1517
  %v2414 = vmul.f32 %v2286, %v1518
  %v2415 = vmul.f32 %v2287, %v1519
  %v2416 = vmul.f32 %v2288, %v1520
  %v2417 = vmul.f32 %v2289, %v1521
  %v2418 = vmul.f32 %v2290, %v1522
  %v2419 = vmul.f32 %v2291, %v1523
  %v2420 = vmul.f32 %v2292, %v1524
  %v2421 = vmul.f32 %v2293, %v1525
  %v2422 = vmul.f32 %v2294, %v1526
  %v2423 = vmul.f32 %v2295, %v1527
  %v2424 = vmul.f32 %v2296, %v1528
  %v2425 = vmul.f32 %v2297, %v1529
  %v2426 = vmul.f32 %v2298, %v1530
  %v2427 = vmul.f32 %v2299, %v1531
  %v2428 = vmul.f32 %v2300, %v1532
  %v2429 = vmul.f32 %v2301, %v1533
  %v2430 = vmul.f32 %v2302, %v1534
  %v2431 = vmul.f32 %v2303, %v1535
  %v2432 = vmul.f32 %v2304, %v1536
  %v2433 = vmul.f32 %v2305, %v1537
  %v2434 = vmul.f32 %v2306, %v1538
  %v2435 = vmul.f32 %v2307, %v1539
  %v2436 = vmul.f32 %v2308, %v1540
  %v2437 = vmul.f32 %v2309, %v1541
  %v2438 = vmul.f32 %v2310, %v1542
  %v2439 = vmul.f32 %v2311, %v1543
  %v2440 = vmul.f32 %v2312, %v1544
  %v2441 = vmul.f32 %v2313, %v1545
  %v2442 = vmul.f32 %v2314, %v1546
  %v2443 = vmul.f32 %v2315, %v1547
  %v2444 = vmul.f32 %v2316, %v1548
  %v2445 = vmul.f32 %v2317, %v1549
  %v2446 = vmul.f32 %v2318, %v1550
  %v2447 = vmul.f32 %v2319, %v1551
  %v2448 = vmul.f32 %v2320, %v1552
  %v2449 = vmul.f32 %v2321, %v1553
  %v2450 = vmul.f32 %v2322, %v1554
  %v2451 = vmul.f32 %v2323, %v1555
  %v2452 = vmul.f32 %v2324, %v1556
  %v2453 = vmul.f32 %v2325, %v1557
  %v2454 = vmul.f32 %v2326, %v1558
  %v2455 = vmul.f32 %v2327, %v1559
  %v2456 = vmul.f32 %v2328, %v1560
  %v2457 = vmul.f32 %v2329, %v1561
  %v2458 = vmul.f32 %v2330, %v1562
  %v2459 = vmul.f32 %v2331, %v1563
  %v2460 = vmul.f32 %v2332, %v1564
  %v2461 = vmul.f32 %v2333, %v1565
  %v2462 = vmul.f32 %v2334, %v1566
  %v2463 = vmul.f32 %v2335, %v1567
  %v2464 = vmul.f32 %v2336, %v1568
  %v2465 = vmul.f32 %v2337, %v1569
  %v2466 = vmul.f32 %v2338, %v1570
  %v2467 = vmul.f32 %v2339, %v1571
  %v2468 = vmul.f32 %v2340, %v1572
  %v2469 = vmul.f32 %v2341, %v1573
  %v2470 = vmul.f32 %v2342, %v1574
  %v2471 = vmul.f32 %v2343, %v1575
  %v2472 = vmul.f32 %v2344, %v1576
  %v2473 = vmul.f32 %v2345, %v1577
  %v2474 = vmul.f32 %v2346, %v1578
  %v2475 = vmul.f32 %v2347, %v1579
  %v2476 = vadd.f32 %v2348, 0.2548296
  %v2477 = vadd.f32 %v2349, 0.2548296
  %v2478 = vadd.f32 %v2350, 0.2548296
  %v2479 = vadd.f32 %v2351, 0.2548296
  %v2480 = vadd.f32 %v2352, 0.2548296
  %v2481 = vadd.f32 %v2353, 0.2548296
  %v2482 = vadd.f32 %v2354, 0.2548296
  %v2483 = vadd.f32 %v2355, 0.2548296
  %v2484 = vadd.f32 %v2356, 0.2548296
  %v2485 = vadd.f32 %v2357, 0.2548296
  %v2486 = vadd.f32 %v2358, 0.2548296
  %v2487 = vadd.f32 %v2359, 0.2548296
  %v2488 = vadd.f32 %v2360, 0.2548296
  %v2489 = vadd.f32 %v2361, 0.2548296
  %v2490 = vadd.f32 %v2362, 0.2548296
  %v2491 = vadd.f32 %v2363, 0.2548296
  %v2492 = vadd.f32 %v2364, 0.2548296
  %v2493 = vadd.f32 %v2365, 0.2548296
  %v2494 = vadd.f32 %v2366, 0.2548296
  %v2495 = vadd.f32 %v2367, 0.2548296
  %v2496 = vadd.f32 %v2368, 0.2548296
  %v2497 = vadd.f32 %v2369, 0.2548296
  %v2498 = vadd.f32 %v2370, 0.2548296
  %v2499 = vadd.f32 %v2371, 0.2548296
  %v2500 = vadd.f32 %v2372, 0.2548296
  %v2501 = vadd.f32 %v2373, 0.2548296
  %v2502 = vadd.f32 %v2374, 0.2548296
  %v2503 = vadd.f32 %v2375, 0.2548296
  %v2504 = vadd.f32 %v2376, 0.2548296
  %v2505 = vadd.f32 %v2377, 0.2548296
  %v2506 = vadd.f32 %v2378, 0.2548296
  %v2507 = vadd.f32 %v2379, 0.2548296
  %v2508 = vadd.f32 %v2380, 0.2548296
  %v2509 = vadd.f32 %v2381, 0.2548296
  %v2510 = vadd.f32 %v2382, 0.2548296
  %v2511 = vadd.f32 %v2383, 0.2548296
  %v2512 = vadd.f32 %v2384, 0.2548296
  %v2513 = vadd.f32 %v2385, 0.2548296
  %v2514 = vadd.f32 %v2386, 0.2548296
  %v2515 = vadd.f32 %v2387, 0.2548296
  %v2516 = vadd.f32 %v2388, 0.2548296
  %v2517 = vadd.f32 %v2389, 0.2548296
  %v2518 = vadd.f32 %v2390, 0.2548296
  %v2519 = vadd.f32 %v2391, 0.2548296
  %v2520 = vadd.f32 %v2392, 0.2548296
  %v2521 = vadd.f32 %v2393, 0.2548296
  %v2522 = vadd.f32 %v2394, 0.2548296
  %v2523 = vadd.f32 %v2395, 0.2548296
  %v2524 = vadd.f32 %v2396, 0.2548296
  %v2525 = vadd.f32 %v2397, 0.2548296
  %v2526 = vadd.f32 %v2398, 0.2548296
  %v2527 = vadd.f32 %v2399, 0.2548296
  %v2528 = vadd.f32 %v2400, 0.2548296
  %v2529 = vadd.f32 %v2401, 0.2548296
  %v2530 = vadd.f32 %v2402, 0.2548296
  %v2531 = vadd.f32 %v2403, 0.2548296
  %v2532 = vadd.f32 %v2404, 0.2548296
  %v2533 = vadd.f32 %v2405, 0.2548296
  %v2534 = vadd.f32 %v2406, 0.2548296
  %v2535 = vadd.f32 %v2407, 0.2548296
  %v2536 = vadd.f32 %v2408, 0.2548296
  %v2537 = vadd.f32 %v2409, 0.2548296
  %v2538 = vadd.f32 %v2410, 0.2548296
  %v2539 = vadd.f32 %v2411, 0.2548296
  %v2540 = vadd.f32 %v2412, 0.2548296
  %v2541 = vadd.f32 %v2413, 0.2548296
  %v2542 = vadd.f32 %v2414, 0.2548296
  %v2543 = vadd.f32 %v2415, 0.2548296
  %v2544 = vadd.f32 %v2416, 0.2548296
  %v2545 = vadd.f32 %v2417, 0.2548296
  %v2546 = vadd.f32 %v2418, 0.2548296
  %v2547 = vadd.f32 %v2419, 0.2548296
  %v2548 = vadd.f32 %v2420, 0.2548296
  %v2549 = vadd.f32 %v2421, 0.2548296
  %v2550 = vadd.f32 %v2422, 0.2548296
  %v2551 = vadd.f32 %v2423, 0.2548296
  %v2552 = vadd.f32 %v2424, 0.2548296
  %v2553 = vadd.f32 %v2425, 0.2548296
  %v2554 = vadd.f32 %v2426, 0.2548296
  %v2555 = vadd.f32 %v2427, 0.2548296
  %v2556 = vadd.f32 %v2428, 0.2548296
  %v2557 = vadd.f32 %v2429, 0.2548296
  %v2558 = vadd.f32 %v2430, 0.2548296
  %v2559 = vadd.f32 %v2431, 0.2548296
  %v2560 = vadd.f32 %v2432, 0.2548296
  %v2561 = vadd.f32 %v2433, 0.2548296
  %v2562 = vadd.f32 %v2434, 0.2548296
  %v2563 = vadd.f32 %v2435, 0.2548296
  %v2564 = vadd.f32 %v2436, 0.2548296
  %v2565 = vadd.f32 %v2437, 0.2548296
  %v2566 = vadd.f32 %v2438, 0.2548296
  %v2567 = vadd.f32 %v2439, 0.2548296
  %v2568 = vadd.f32 %v2440, 0.2548296
  %v2569 = vadd.f32 %v2441, 0.2548296
  %v2570 = vadd.f32 %v2442, 0.2548296
  %v2571 = vadd.f32 %v2443, 0.2548296
  %v2572 = vadd.f32 %v2444, 0.2548296
  %v2573 = vadd.f32 %v2445, 0.2548296
  %v2574 = vadd.f32 %v2446, 0.2548296
  %v2575 = vadd.f32 %v2447, 0.2548296
  %v2576 = vadd.f32 %v2448, 0.2548296
  %v2577 = vadd.f32 %v2449, 0.2548296
  %v2578 = vadd.f32 %v2450, 0.2548296
  %v2579 = vadd.f32 %v2451, 0.2548296
  %v2580 = vadd.f32 %v2452, 0.2548296
  %v2581 = vadd.f32 %v2453, 0.2548296
  %v2582 = vadd.f32 %v2454, 0.2548296
  %v2583 = vadd.f32 %v2455, 0.2548296
  %v2584 = vadd.f32 %v2456, 0.2548296
  %v2585 = vadd.f32 %v2457, 0.2548296
  %v2586 = vadd.f32 %v2458, 0.2548296
  %v2587 = vadd.f32 %v2459, 0.2548296
  %v2588 = vadd.f32 %v2460, 0.2548296
  %v2589 = vadd.f32 %v2461, 0.2548296
  %v2590 = vadd.f32 %v2462, 0.2548296
  %v2591 = vadd.f32 %v2463, 0.2548296
  %v2592 = vadd.f32 %v2464, 0.2548296
  %v2593 = vadd.f32 %v2465, 0.2548296
  %v2594 = vadd.f32 %v2466, 0.2548296
  %v2595 = vadd.f32 %v2467, 0.2548296
  %v2596 = vadd.f32 %v2468, 0.2548296
  %v2597 = vadd.f32 %v2469, 0.2548296
  %v2598 = vadd.f32 %v2470, 0.2548296
  %v2599 = vadd.f32 %v2471, 0.2548296
  %v2600 = vadd.f32 %v2472, 0.2548296
  %v2601 = vadd.f32 %v2473, 0.2548296
  %v2602 = vadd.f32 %v2474, 0.2548296
  %v2603 = vadd.f32 %v2475, 0.2548296
  %v2604 = vmul.f32 %v2476, %v1452
  %v2605 = vmul.f32 %v2477, %v1453
  %v2606 = vmul.f32 %v2478, %v1454
  %v2607 = vmul.f32 %v2479, %v1455
  %v2608 = vmul.f32 %v2480, %v1456
  %v2609 = vmul.f32 %v2481, %v1457
  %v2610 = vmul.f32 %v2482, %v1458
  %v2611 = vmul.f32 %v2483, %v1459
  %v2612 = vmul.f32 %v2484, %v1460
  %v2613 = vmul.f32 %v2485, %v1461
  %v2614 = vmul.f32 %v2486, %v1462
  %v2615 = vmul.f32 %v2487, %v1463
  %v2616 = vmul.f32 %v2488, %v1464
  %v2617 = vmul.f32 %v2489, %v1465
  %v2618 = vmul.f32 %v2490, %v1466
  %v2619 = vmul.f32 %v2491, %v1467
  %v2620 = vmul.f32 %v2492, %v1468
  %v2621 = vmul.f32 %v2493, %v1469
  %v2622 = vmul.f32 %v2494, %v1470
  %v2623 = vmul.f32 %v2495, %v1471
  %v2624 = vmul.f32 %v2496, %v1472
  %v2625 = vmul.f32 %v2497, %v1473
  %v2626 = vmul.f32 %v2498, %v1474
  %v2627 = vmul.f32 %v2499, %v1475
  %v2628 = vmul.f32 %v2500, %v1476
  %v2629 = vmul.f32 %v2501, %v1477
  %v2630 = vmul.f32 %v2502, %v1478
  %v2631 = vmul.f32 %v2503, %v1479
  %v2632 = vmul.f32 %v2504, %v1480
  %v2633 = vmul.f32 %v2505, %v1481
  %v2634 = vmul.f32 %v2506, %v1482
  %v2635 = vmul.f32 %v2507, %v1483
  %v2636 = vmul.f32 %v2508, %v1484
  %v2637 = vmul.f32 %v2509, %v1485
  %v2638 = vmul.f32 %v2510, %v1486
  %v2639 = vmul.f32 %v2511, %v1487
  %v2640 = vmul.f32 %v2512, %v1488
  %v2641 = vmul.f32 %v2513, %v1489
  %v2642 = vmul.f32 %v2514, %v1490
  %v2643 = vmul.f32 %v2515, %v1491
  %v2644 = vmul.f32 %v2516, %v1492
  %v2645 = vmul.f32 %v2517, %v1493
  %v2646 = vmul.f32 %v2518, %v1494
  %v2647 = vmul.f32 %v2519, %v1495
  %v2648 = vmul.f32 %v2520, %v1496
  %v2649 = vmul.f32 %v2521, %v1497
  %v2650 = vmul.f32 %v2522, %v1498
  %v2651 = vmul.f32 %v2523, %v1499
  %v2652 = vmul.f32 %v2524, %v1500
  %v2653 = vmul.f32 %v2525, %v1501
  %v2654 = vmul.f32 %v2526, %v1502
  %v2655 = vmul.f32 %v2527, %v1503
  %v2656 = vmul.f32 %v2528, %v1504
  %v2657 = vmul.f32 %v2529, %v1505
  %v2658 = vmul.f32 %v2530, %v1506
  %v2659 = vmul.f32 %v2531, %v1507
  %v2660 = vmul.f32 %v2532, %v1508
  %v2661 = vmul.f32 %v2533, %v1509
  %v2662 = vmul.f32 %v2534, %v1510
  %v2663 = vmul.f32 %v2535, %v1511
  %v2664 = vmul.f32 %v2536, %v1512
  %v2665 = vmul.f32 %v2537, %v1513
  %v2666 = vmul.f32 %v2538, %v1514
  %v2667 = vmul.f32 %v2539, %v1515
  %v2668 = vmul.f32 %v2540, %v1516
  %v2669 = vmul.f32 %v2541, %v1517
  %v2670 = vmul.f32 %v2542, %v1518
  %v2671 = vmul.f32 %v2543, %v1519
  %v2672 = vmul.f32 %v2544, %v1520
  %v2673 = vmul.f32 %v2545, %v1521
  %v2674 = vmul.f32 %v2546, %v1522
  %v2675 = vmul.f32 %v2547, %v1523
  %v2676 = vmul.f32 %v2548, %v1524
  %v2677 = vmul.f32 %v2549, %v1525
  %v2678 = vmul.f32 %v2550, %v1526
  %v2679 = vmul.f32 %v2551, %v1527
  %v2680 = vmul.f32 %v2552, %v1528
  %v2681 = vmul.f32 %v2553, %v1529
  %v2682 = vmul.f32 %v2554, %v1530
  %v2683 = vmul.f32 %v2555, %v1531
  %v2684 = vmul.f32 %v2556, %v1532
  %v2685 = vmul.f32 %v2557, %v1533
  %v2686 = vmul.f32 %v2558, %v1534
  %v2687 = vmul.f32 %v2559, %v1535
  %v2688 = vmul.f32 %v2560, %v1536
  %v2689 = vmul.f32 %v2561, %v1537
  %v2690 = vmul.f32 %v2562, %v1538
  %v2691 = vmul.f32 %v2563, %v1539
  %v2692 = vmul.f32 %v2564, %v1540
  %v2693 = vmul.f32 %v2565, %v1541
  %v2694 = vmul.f32 %v2566, %v1542
  %v2695 = vmul.f32 %v2567, %v1543
  %v2696 = vmul.f32 %v2568, %v1544
  %v2697 = vmul.f32 %v2569, %v1545
  %v2698 = vmul.f32 %v2570, %v1546
  %v2699 = vmul.f32 %v2571, %v1547
  %v2700 = vmul.f32 %v2572, %v1548
  %v2701 = vmul.f32 %v2573, %v1549
  %v2702 = vmul.f32 %v2574, %v1550
  %v2703 = vmul.f32 %v2575, %v1551
  %v2704 = vmul.f32 %v2576, %v1552
  %v2705 = vmul.f32 %v2577, %v1553
  %v2706 = vmul.f32 %v2578, %v1554
  %v2707 = vmul.f32 %v2579, %v1555
  %v2708 = vmul.f32 %v2580, %v1556
  %v2709 = vmul.f32 %v2581, %v1557
  %v2710 = vmul.f32 %v2582, %v1558
  %v2711 = vmul.f32 %v2583, %v1559
  %v2712 = vmul.f32 %v2584, %v1560
  %v2713 = vmul.f32 %v2585, %v1561
  %v2714 = vmul.f32 %v2586, %v1562
  %v2715 = vmul.f32 %v2587, %v1563
  %v2716 = vmul.f32 %v2588, %v1564
  %v2717 = vmul.f32 %v2589, %v1565
  %v2718 = vmul.f32 %v2590, %v1566
  %v2719 = vmul.f32 %v2591, %v1567
  %v2720 = vmul.f32 %v2592, %v1568
  %v2721 = vmul.f32 %v2593, %v1569
  %v2722 = vmul.f32 %v2594, %v1570
  %v2723 = vmul.f32 %v2595, %v1571
  %v2724 = vmul.f32 %v2596, %v1572
  %v2725 = vmul.f32 %v2597, %v1573
  %v2726 = vmul.f32 %v2598, %v1574
  %v2727 = vmul.f32 %v2599, %v1575
  %v2728 = vmul.f32 %v2600, %v1576
  %v2729 = vmul.f32 %v2601, %v1577
  %v2730 = vmul.f32 %v2602, %v1578
  %v2731 = vmul.f32 %v2603, %v1579
  %v2732 = vsub.f32 0.0, %v1068
  %v2733 = vsub.f32 0.0, %v1069
  %v2734 = vsub.f32 0.0, %v1070
  %v2735 = vsub.f32 0.0, %v1071
  %v2736 = vsub.f32 0.0, %v1072
  %v2737 = vsub.f32 0.0, %v1073
  %v2738 = vsub.f32 0.0, %v1074
  %v2739 = vsub.f32 0.0, %v1075
  %v2740 = vsub.f32 0.0, %v1076
  %v2741 = vsub.f32 0.0, %v1077
  %v2742 = vsub.f32 0.0, %v1078
  %v2743 = vsub.f32 0.0, %v1079
  %v2744 = vsub.f32 0.0, %v1080
  %v2745 = vsub.f32 0.0, %v1081
  %v2746 = vsub.f32 0.0, %v1082
  %v2747 = vsub.f32 0.0, %v1083
  %v2748 = vsub.f32 0.0, %v1084
  %v2749 = vsub.f32 0.0, %v1085
  %v2750 = vsub.f32 0.0, %v1086
  %v2751 = vsub.f32 0.0, %v1087
  %v2752 = vsub.f32 0.0, %v1088
  %v2753 = vsub.f32 0.0, %v1089
  %v2754 = vsub.f32 0.0, %v1090
  %v2755 = vsub.f32 0.0, %v1091
  %v2756 = vsub.f32 0.0, %v1092
  %v2757 = vsub.f32 0.0, %v1093
  %v2758 = vsub.f32 0.0, %v1094
  %v2759 = vsub.f32 0.0, %v1095
  %v2760 = vsub.f32 0.0, %v1096
  %v2761 = vsub.f32 0.0, %v1097
  %v2762 = vsub.f32 0.0, %v1098
  %v2763 = vsub.f32 0.0, %v1099
  %v2764 = vsub.f32 0.0, %v1100
  %v2765 = vsub.f32 0.0, %v1101
  %v2766 = vsub.f32 0.0, %v1102
  %v2767 = vsub.f32 0.0, %v1103
  %v2768 = vsub.f32 0.0, %v1104
  %v2769 = vsub.f32 0.0, %v1105
  %v2770 = vsub.f32 0.0, %v1106
  %v2771 = vsub.f32 0.0, %v1107
  %v2772 = vsub.f32 0.0, %v1108
  %v2773 = vsub.f32 0.0, %v1109
  %v2774 = vsub.f32 0.0, %v1110
  %v2775 = vsub.f32 0.0, %v1111
  %v2776 = vsub.f32 0.0, %v1112
  %v2777 = vsub.f32 0.0, %v1113
  %v2778 = vsub.f32 0.0, %v1114
  %v2779 = vsub.f32 0.0, %v1115
  %v2780 = vsub.f32 0.0, %v1116
  %v2781 = vsub.f32 0.0, %v1117
  %v2782 = vsub.f32 0.0, %v1118
  %v2783 = vsub.f32 0.0, %v1119
  %v2784 = vsub.f32 0.0, %v1120
  %v2785 = vsub.f32 0.0, %v1121
  %v2786 = vsub.f32 0.0, %v1122
  %v2787 = vsub.f32 0.0, %v1123
  %v2788 = vsub.f32 0.0, %v1124
  %v2789 = vsub.f32 0.0, %v1125
  %v2790 = vsub.f32 0.0, %v1126
  %v2791 = vsub.f32 0.0, %v1127
  %v2792 = vsub.f32 0.0, %v1128
  %v2793 = vsub.f32 0.0, %v1129
  %v2794 = vsub.f32 0.0, %v1130
  %v2795 = vsub.f32 0.0, %v1131
  %v2796 = vsub.f32 0.0, %v1132
  %v2797 = vsub.f32 0.0, %v1133
  %v2798 = vsub.f32 0.0, %v1134
  %v2799 = vsub.f32 0.0, %v1135
  %v2800 = vsub.f32 0.0, %v1136
  %v2801 = vsub.f32 0.0, %v1137
  %v2802 = vsub.f32 0.0, %v1138
  %v2803 = vsub.f32 0.0, %v1139
  %v2804 = vsub.f32 0.0, %v1140
  %v2805 = vsub.f32 0.0, %v1141
  %v2806 = vsub.f32 0.0, %v1142
  %v2807 = vsub.f32 0.0, %v1143
  %v2808 = vsub.f32 0.0, %v1144
  %v2809 = vsub.f32 0.0, %v1145
  %v2810 = vsub.f32 0.0, %v1146
  %v2811 = vsub.f32 0.0, %v1147
  %v2812 = vsub.f32 0.0, %v1148
  %v2813 = vsub.f32 0.0, %v1149
  %v2814 = vsub.f32 0.0, %v1150
  %v2815 = vsub.f32 0.0, %v1151
  %v2816 = vsub.f32 0.0, %v1152
  %v2817 = vsub.f32 0.0, %v1153
  %v2818 = vsub.f32 0.0, %v1154
  %v2819 = vsub.f32 0.0, %v1155
  %v2820 = vsub.f32 0.0, %v1156
  %v2821 = vsub.f32 0.0, %v1157
  %v2822 = vsub.f32 0.0, %v1158
  %v2823 = vsub.f32 0.0, %v1159
  %v2824 = vsub.f32 0.0, %v1160
  %v2825 = vsub.f32 0.0, %v1161
  %v2826 = vsub.f32 0.0, %v1162
  %v2827 = vsub.f32 0.0, %v1163
  %v2828 = vsub.f32 0.0, %v1164
  %v2829 = vsub.f32 0.0, %v1165
  %v2830 = vsub.f32 0.0, %v1166
  %v2831 = vsub.f32 0.0, %v1167
  %v2832 = vsub.f32 0.0, %v1168
  %v2833 = vsub.f32 0.0, %v1169
  %v2834 = vsub.f32 0.0, %v1170
  %v2835 = vsub.f32 0.0, %v1171
  %v2836 = vsub.f32 0.0, %v1172
  %v2837 = vsub.f32 0.0, %v1173
  %v2838 = vsub.f32 0.0, %v1174
  %v2839 = vsub.f32 0.0, %v1175
  %v2840 = vsub.f32 0.0, %v1176
  %v2841 = vsub.f32 0.0, %v1177
  %v2842 = vsub.f32 0.0, %v1178
  %v2843 = vsub.f32 0.0, %v1179
  %v2844 = vsub.f32 0.0, %v1180
  %v2845 = vsub.f32 0.0, %v1181
  %v2846 = vsub.f32 0.0, %v1182
  %v2847 = vsub.f32 0.0, %v1183
  %v2848 = vsub.f32 0.0, %v1184
  %v2849 = vsub.f32 0.0, %v1185
  %v2850 = vsub.f32 0.0, %v1186
  %v2851 = vsub.f32 0.0, %v1187
  %v2852 = vsub.f32 0.0, %v1188
  %v2853 = vsub.f32 0.0, %v1189
  %v2854 = vsub.f32 0.0, %v1190
  %v2855 = vsub.f32 0.0, %v1191
  %v2856 = vsub.f32 0.0, %v1192
  %v2857 = vsub.f32 0.0, %v1193
  %v2858 = vsub.f32 0.0, %v1194
  %v2859 = vsub.f32 0.0, %v1195
  %v2860 = vmul.f32 %v2732, %v1068
  %v2861 = vmul.f32 %v2733, %v1069
  %v2862 = vmul.f32 %v2734, %v1070
  %v2863 = vmul.f32 %v2735, %v1071
  %v2864 = vmul.f32 %v2736, %v1072
  %v2865 = vmul.f32 %v2737, %v1073
  %v2866 = vmul.f32 %v2738, %v1074
  %v2867 = vmul.f32 %v2739, %v1075
  %v2868 = vmul.f32 %v2740, %v1076
  %v2869 = vmul.f32 %v2741, %v1077
  %v2870 = vmul.f32 %v2742, %v1078
  %v2871 = vmul.f32 %v2743, %v1079
  %v2872 = vmul.f32 %v2744, %v1080
  %v2873 = vmul.f32 %v2745, %v1081
  %v2874 = vmul.f32 %v2746, %v1082
  %v2875 = vmul.f32 %v2747, %v1083
  %v2876 = vmul.f32 %v2748, %v1084
  %v2877 = vmul.f32 %v2749, %v1085
  %v2878 = vmul.f32 %v2750, %v1086
  %v2879 = vmul.f32 %v2751, %v1087
  %v2880 = vmul.f32 %v2752, %v1088
  %v2881 = vmul.f32 %v2753, %v1089
  %v2882 = vmul.f32 %v2754, %v1090
  %v2883 = vmul.f32 %v2755, %v1091
  %v2884 = vmul.f32 %v2756, %v1092
  %v2885 = vmul.f32 %v2757, %v1093
  %v2886 = vmul.f32 %v2758, %v1094
  %v2887 = vmul.f32 %v2759, %v1095
  %v2888 = vmul.f32 %v2760, %v1096
  %v2889 = vmul.f32 %v2761, %v1097
  %v2890 = vmul.f32 %v2762, %v1098
  %v2891 = vmul.f32 %v2763, %v1099
  %v2892 = vmul.f32 %v2764, %v1100
  %v2893 = vmul.f32 %v2765, %v1101
  %v2894 = vmul.f32 %v2766, %v1102
  %v2895 = vmul.f32 %v2767, %v1103
  %v2896 = vmul.f32 %v2768, %v1104
  %v2897 = vmul.f32 %v2769, %v1105
  %v2898 = vmul.f32 %v2770, %v1106
  %v2899 = vmul.f32 %v2771, %v1107
  %v2900 = vmul.f32 %v2772, %v1108
  %v2901 = vmul.f32 %v2773, %v1109
  %v2902 = vmul.f32 %v2774, %v1110
  %v2903 = vmul.f32 %v2775, %v1111
  %v2904 = vmul.f32 %v2776, %v1112
  %v2905 = vmul.f32 %v2777, %v1113
  %v2906 = vmul.f32 %v2778, %v1114
  %v2907 = vmul.f32 %v2779, %v1115
  %v2908 = vmul.f32 %v2780, %v1116
  %v2909 = vmul.f32 %v2781, %v1117
  %v2910 = vmul.f32 %v2782, %v1118
  %v2911 = vmul.f32 %v2783, %v1119
  %v2912 = vmul.f32 %v2784, %v1120
  %v2913 = vmul.f32 %v2785, %v1121
  %v2914 = vmul.f32 %v2786, %v1122
  %v2915 = vmul.f32 %v2787, %v1123
  %v2916 = vmul.f32 %v2788, %v1124
  %v2917 = vmul.f32 %v2789, %v1125
  %v2918 = vmul.f32 %v2790, %v1126
  %v2919 = vmul.f32 %v2791, %v1127
  %v2920 = vmul.f32 %v2792, %v1128
  %v2921 = vmul.f32 %v2793, %v1129
  %v2922 = vmul.f32 %v2794, %v1130
  %v2923 = vmul.f32 %v2795, %v1131
  %v2924 = vmul.f32 %v2796, %v1132
  %v2925 = vmul.f32 %v2797, %v1133
  %v2926 = vmul.f32 %v2798, %v1134
  %v2927 = vmul.f32 %v2799, %v1135
  %v2928 = vmul.f32 %v2800, %v1136
  %v2929 = vmul.f32 %v2801, %v1137
  %v2930 = vmul.f32 %v2802, %v1138
  %v2931 = vmul.f32 %v2803, %v1139
  %v2932 = vmul.f32 %v2804, %v1140
  %v2933 = vmul.f32 %v2805, %v1141
  %v2934 = vmul.f32 %v2806, %v1142
  %v2935 = vmul.f32 %v2807, %v1143
  %v2936 = vmul.f32 %v2808, %v1144
  %v2937 = vmul.f32 %v2809, %v1145
  %v2938 = vmul.f32 %v2810, %v1146
  %v2939 = vmul.f32 %v2811, %v1147
  %v2940 = vmul.f32 %v2812, %v1148
  %v2941 = vmul.f32 %v2813, %v1149
  %v2942 = vmul.f32 %v2814, %v1150
  %v2943 = vmul.f32 %v2815, %v1151
  %v2944 = vmul.f32 %v2816, %v1152
  %v2945 = vmul.f32 %v2817, %v1153
  %v2946 = vmul.f32 %v2818, %v1154
  %v2947 = vmul.f32 %v2819, %v1155
  %v2948 = vmul.f32 %v2820, %v1156
  %v2949 = vmul.f32 %v2821, %v1157
  %v2950 = vmul.f32 %v2822, %v1158
  %v2951 = vmul.f32 %v2823, %v1159
  %v2952 = vmul.f32 %v2824, %v1160
  %v2953 = vmul.f32 %v2825, %v1161
  %v2954 = vmul.f32 %v2826, %v1162
  %v2955 = vmul.f32 %v2827, %v1163
  %v2956 = vmul.f32 %v2828, %v1164
  %v2957 = vmul.f32 %v2829, %v1165
  %v2958 = vmul.f32 %v2830, %v1166
  %v2959 = vmul.f32 %v2831, %v1167
  %v2960 = vmul.f32 %v2832, %v1168
  %v2961 = vmul.f32 %v2833, %v1169
  %v2962 = vmul.f32 %v2834, %v1170
  %v2963 = vmul.f32 %v2835, %v1171
  %v2964 = vmul.f32 %v2836, %v1172
  %v2965 = vmul.f32 %v2837, %v1173
  %v2966 = vmul.f32 %v2838, %v1174
  %v2967 = vmul.f32 %v2839, %v1175
  %v2968 = vmul.f32 %v2840, %v1176
  %v2969 = vmul.f32 %v2841, %v1177
  %v2970 = vmul.f32 %v2842, %v1178
  %v2971 = vmul.f32 %v2843, %v1179
  %v2972 = vmul.f32 %v2844, %v1180
  %v2973 = vmul.f32 %v2845, %v1181
  %v2974 = vmul.f32 %v2846, %v1182
  %v2975 = vmul.f32 %v2847, %v1183
  %v2976 = vmul.f32 %v2848, %v1184
  %v2977 = vmul.f32 %v2849, %v1185
  %v2978 = vmul.f32 %v2850, %v1186
  %v2979 = vmul.f32 %v2851, %v1187
  %v2980 = vmul.f32 %v2852, %v1188
  %v2981 = vmul.f32 %v2853, %v1189
  %v2982 = vmul.f32 %v2854, %v1190
  %v2983 = vmul.f32 %v2855, %v1191
  %v2984 = vmul.f32 %v2856, %v1192
  %v2985 = vmul.f32 %v2857, %v1193
  %v2986 = vmul.f32 %v2858, %v1194
  %v2987 = vmul.f32 %v2859, %v1195
  %v2988 = vmul.f32 %v2860, 1.442695
  %v2989 = vpow.pop %v2988
  %v2990 = vmul.f32 %v2861, 1.442695
  %v2991 = vpow.pop %v2990
  %v2992 = vmul.f32 %v2862, 1.442695
  %v2993 = vpow.pop %v2992
  %v2994 = vmul.f32 %v2863, 1.442695
  %v2995 = vpow.pop %v2994
  %v2996 = vmul.f32 %v2864, 1.442695
  %v2997 = vpow.pop %v2996
  %v2998 = vmul.f32 %v2865, 1.442695
  %v2999 = vpow.pop %v2998
  %v3000 = vmul.f32 %v2866, 1.442695
  %v3001 = vpow.pop %v3000
  %v3002 = vmul.f32 %v2867, 1.442695
  %v3003 = vpow.pop %v3002
  %v3004 = vmul.f32 %v2868, 1.442695
  %v3005 = vpow.pop %v3004
  %v3006 = vmul.f32 %v2869, 1.442695
  %v3007 = vpow.pop %v3006
  %v3008 = vmul.f32 %v2870, 1.442695
  %v3009 = vpow.pop %v3008
  %v3010 = vmul.f32 %v2871, 1.442695
  %v3011 = vpow.pop %v3010
  %v3012 = vmul.f32 %v2872, 1.442695
  %v3013 = vpow.pop %v3012
  %v3014 = vmul.f32 %v2873, 1.442695
  %v3015 = vpow.pop %v3014
  %v3016 = vmul.f32 %v2874, 1.442695
  %v3017 = vpow.pop %v3016
  %v3018 = vmul.f32 %v2875, 1.442695
  %v3019 = vpow.pop %v3018
  %v3020 = vmul.f32 %v2876, 1.442695
  %v3021 = vpow.pop %v3020
  %v3022 = vmul.f32 %v2877, 1.442695
  %v3023 = vpow.pop %v3022
  %v3024 = vmul.f32 %v2878, 1.442695
  %v3025 = vpow.pop %v3024
  %v3026 = vmul.f32 %v2879, 1.442695
  %v3027 = vpow.pop %v3026
  %v3028 = vmul.f32 %v2880, 1.442695
  %v3029 = vpow.pop %v3028
  %v3030 = vmul.f32 %v2881, 1.442695
  %v3031 = vpow.pop %v3030
  %v3032 = vmul.f32 %v2882, 1.442695
  %v3033 = vpow.pop %v3032
  %v3034 = vmul.f32 %v2883, 1.442695
  %v3035 = vpow.pop %v3034
  %v3036 = vmul.f32 %v2884, 1.442695
  %v3037 = vpow.pop %v3036
  %v3038 = vmul.f32 %v2885, 1.442695
  %v3039 = vpow.pop %v3038
  %v3040 = vmul.f32 %v2886, 1.442695
  %v3041 = vpow.pop %v3040
  %v3042 = vmul.f32 %v2887, 1.442695
  %v3043 = vpow.pop %v3042
  %v3044 = vmul.f32 %v2888, 1.442695
  %v3045 = vpow.pop %v3044
  %v3046 = vmul.f32 %v2889, 1.442695
  %v3047 = vpow.pop %v3046
  %v3048 = vmul.f32 %v2890, 1.442695
  %v3049 = vpow.pop %v3048
  %v3050 = vmul.f32 %v2891, 1.442695
  %v3051 = vpow.pop %v3050
  %v3052 = vmul.f32 %v2892, 1.442695
  %v3053 = vpow.pop %v3052
  %v3054 = vmul.f32 %v2893, 1.442695
  %v3055 = vpow.pop %v3054
  %v3056 = vmul.f32 %v2894, 1.442695
  %v3057 = vpow.pop %v3056
  %v3058 = vmul.f32 %v2895, 1.442695
  %v3059 = vpow.pop %v3058
  %v3060 = vmul.f32 %v2896, 1.442695
  %v3061 = vpow.pop %v3060
  %v3062 = vmul.f32 %v2897, 1.442695
  %v3063 = vpow.pop %v3062
  %v3064 = vmul.f32 %v2898, 1.442695
  %v3065 = vpow.pop %v3064
  %v3066 = vmul.f32 %v2899, 1.442695
  %v3067 = vpow.pop %v3066
  %v3068 = vmul.f32 %v2900, 1.442695
  %v3069 = vpow.pop %v3068
  %v3070 = vmul.f32 %v2901, 1.442695
  %v3071 = vpow.pop %v3070
  %v3072 = vmul.f32 %v2902, 1.442695
  %v3073 = vpow.pop %v3072
  %v3074 = vmul.f32 %v2903, 1.442695
  %v3075 = vpow.pop %v3074
  %v3076 = vmul.f32 %v2904, 1.442695
  %v3077 = vpow.pop %v3076
  %v3078 = vmul.f32 %v2905, 1.442695
  %v3079 = vpow.pop %v3078
  %v3080 = vmul.f32 %v2906, 1.442695
  %v3081 = vpow.pop %v3080
  %v3082 = vmul.f32 %v2907, 1.442695
  %v3083 = vpow.pop %v3082
  %v3084 = vmul.f32 %v2908, 1.442695
  %v3085 = vpow.pop %v3084
  %v3086 = vmul.f32 %v2909, 1.442695
  %v3087 = vpow.pop %v3086
  %v3088 = vmul.f32 %v2910, 1.442695
  %v3089 = vpow.pop %v3088
  %v3090 = vmul.f32 %v2911, 1.442695
  %v3091 = vpow.pop %v3090
  %v3092 = vmul.f32 %v2912, 1.442695
  %v3093 = vpow.pop %v3092
  %v3094 = vmul.f32 %v2913, 1.442695
  %v3095 = vpow.pop %v3094
  %v3096 = vmul.f32 %v2914, 1.442695
  %v3097 = vpow.pop %v3096
  %v3098 = vmul.f32 %v2915, 1.442695
  %v3099 = vpow.pop %v3098
  %v3100 = vmul.f32 %v2916, 1.442695
  %v3101 = vpow.pop %v3100
  %v3102 = vmul.f32 %v2917, 1.442695
  %v3103 = vpow.pop %v3102
  %v3104 = vmul.f32 %v2918, 1.442695
  %v3105 = vpow.pop %v3104
  %v3106 = vmul.f32 %v2919, 1.442695
  %v3107 = vpow.pop %v3106
  %v3108 = vmul.f32 %v2920, 1.442695
  %v3109 = vpow.pop %v3108
  %v3110 = vmul.f32 %v2921, 1.442695
  %v3111 = vpow.pop %v3110
  %v3112 = vmul.f32 %v2922, 1.442695
  %v3113 = vpow.pop %v3112
  %v3114 = vmul.f32 %v2923, 1.442695
  %v3115 = vpow.pop %v3114
  %v3116 = vmul.f32 %v2924, 1.442695
  %v3117 = vpow.pop %v3116
  %v3118 = vmul.f32 %v2925, 1.442695
  %v3119 = vpow.pop %v3118
  %v3120 = vmul.f32 %v2926, 1.442695
  %v3121 = vpow.pop %v3120
  %v3122 = vmul.f32 %v2927, 1.442695
  %v3123 = vpow.pop %v3122
  %v3124 = vmul.f32 %v2928, 1.442695
  %v3125 = vpow.pop %v3124
  %v3126 = vmul.f32 %v2929, 1.442695
  %v3127 = vpow.pop %v3126
  %v3128 = vmul.f32 %v2930, 1.442695
  %v3129 = vpow.pop %v3128
  %v3130 = vmul.f32 %v2931, 1.442695
  %v3131 = vpow.pop %v3130
  %v3132 = vmul.f32 %v2932, 1.442695
  %v3133 = vpow.pop %v3132
  %v3134 = vmul.f32 %v2933, 1.442695
  %v3135 = vpow.pop %v3134
  %v3136 = vmul.f32 %v2934, 1.442695
  %v3137 = vpow.pop %v3136
  %v3138 = vmul.f32 %v2935, 1.442695
  %v3139 = vpow.pop %v3138
  %v3140 = vmul.f32 %v2936, 1.442695
  %v3141 = vpow.pop %v3140
  %v3142 = vmul.f32 %v2937, 1.442695
  %v3143 = vpow.pop %v3142
  %v3144 = vmul.f32 %v2938, 1.442695
  %v3145 = vpow.pop %v3144
  %v3146 = vmul.f32 %v2939, 1.442695
  %v3147 = vpow.pop %v3146
  %v3148 = vmul.f32 %v2940, 1.442695
  %v3149 = vpow.pop %v3148
  %v3150 = vmul.f32 %v2941, 1.442695
  %v3151 = vpow.pop %v3150
  %v3152 = vmul.f32 %v2942, 1.442695
  %v3153 = vpow.pop %v3152
  %v3154 = vmul.f32 %v2943, 1.442695
  %v3155 = vpow.pop %v3154
  %v3156 = vmul.f32 %v2944, 1.442695
  %v3157 = vpow.pop %v3156
  %v3158 = vmul.f32 %v2945, 1.442695
  %v3159 = vpow.pop %v3158
  %v3160 = vmul.f32 %v2946, 1.442695
  %v3161 = vpow.pop %v3160
  %v3162 = vmul.f32 %v2947, 1.442695
  %v3163 = vpow.pop %v3162
  %v3164 = vmul.f32 %v2948, 1.442695
  %v3165 = vpow.pop %v3164
  %v3166 = vmul.f32 %v2949, 1.442695
  %v3167 = vpow.pop %v3166
  %v3168 = vmul.f32 %v2950, 1.442695
  %v3169 = vpow.pop %v3168
  %v3170 = vmul.f32 %v2951, 1.442695
  %v3171 = vpow.pop %v3170
  %v3172 = vmul.f32 %v2952, 1.442695
  %v3173 = vpow.pop %v3172
  %v3174 = vmul.f32 %v2953, 1.442695
  %v3175 = vpow.pop %v3174
  %v3176 = vmul.f32 %v2954, 1.442695
  %v3177 = vpow.pop %v3176
  %v3178 = vmul.f32 %v2955, 1.442695
  %v3179 = vpow.pop %v3178
  %v3180 = vmul.f32 %v2956, 1.442695
  %v3181 = vpow.pop %v3180
  %v3182 = vmul.f32 %v2957, 1.442695
  %v3183 = vpow.pop %v3182
  %v3184 = vmul.f32 %v2958, 1.442695
  %v3185 = vpow.pop %v3184
  %v3186 = vmul.f32 %v2959, 1.442695
  %v3187 = vpow.pop %v3186
  %v3188 = vmul.f32 %v2960, 1.442695
  %v3189 = vpow.pop %v3188
  %v3190 = vmul.f32 %v2961, 1.442695
  %v3191 = vpow.pop %v3190
  %v3192 = vmul.f32 %v2962, 1.442695
  %v3193 = vpow.pop %v3192
  %v3194 = vmul.f32 %v2963, 1.442695
  %v3195 = vpow.pop %v3194
  %v3196 = vmul.f32 %v2964, 1.442695
  %v3197 = vpow.pop %v3196
  %v3198 = vmul.f32 %v2965, 1.442695
  %v3199 = vpow.pop %v3198
  %v3200 = vmul.f32 %v2966, 1.442695
  %v3201 = vpow.pop %v3200
  %v3202 = vmul.f32 %v2967, 1.442695
  %v3203 = vpow.pop %v3202
  %v3204 = vmul.f32 %v2968, 1.442695
  %v3205 = vpow.pop %v3204
  %v3206 = vmul.f32 %v2969, 1.442695
  %v3207 = vpow.pop %v3206
  %v3208 = vmul.f32 %v2970, 1.442695
  %v3209 = vpow.pop %v3208
  %v3210 = vmul.f32 %v2971, 1.442695
  %v3211 = vpow.pop %v3210
  %v3212 = vmul.f32 %v2972, 1.442695
  %v3213 = vpow.pop %v3212
  %v3214 = vmul.f32 %v2973, 1.442695
  %v3215 = vpow.pop %v3214
  %v3216 = vmul.f32 %v2974, 1.442695
  %v3217 = vpow.pop %v3216
  %v3218 = vmul.f32 %v2975, 1.442695
  %v3219 = vpow.pop %v3218
  %v3220 = vmul.f32 %v2976, 1.442695
  %v3221 = vpow.pop %v3220
  %v3222 = vmul.f32 %v2977, 1.442695
  %v3223 = vpow.pop %v3222
  %v3224 = vmul.f32 %v2978, 1.442695
  %v3225 = vpow.pop %v3224
  %v3226 = vmul.f32 %v2979, 1.442695
  %v3227 = vpow.pop %v3226
  %v3228 = vmul.f32 %v2980, 1.442695
  %v3229 = vpow.pop %v3228
  %v3230 = vmul.f32 %v2981, 1.442695
  %v3231 = vpow.pop %v3230
  %v3232 = vmul.f32 %v2982, 1.442695
  %v3233 = vpow.pop %v3232
  %v3234 = vmul.f32 %v2983, 1.442695
  %v3235 = vpow.pop %v3234
  %v3236 = vmul.f32 %v2984, 1.442695
  %v3237 = vpow.pop %v3236
  %v3238 = vmul.f32 %v2985, 1.442695
  %v3239 = vpow.pop %v3238
  %v3240 = vmul.f32 %v2986, 1.442695
  %v3241 = vpow.pop %v3240
  %v3242 = vmul.f32 %v2987, 1.442695
  %v3243 = vpow.pop %v3242
  %v3244 = vmul.f32 %v2604, %v2989
  %v3245 = vmul.f32 %v2605, %v2991
  %v3246 = vmul.f32 %v2606, %v2993
  %v3247 = vmul.f32 %v2607, %v2995
  %v3248 = vmul.f32 %v2608, %v2997
  %v3249 = vmul.f32 %v2609, %v2999
  %v3250 = vmul.f32 %v2610, %v3001
  %v3251 = vmul.f32 %v2611, %v3003
  %v3252 = vmul.f32 %v2612, %v3005
  %v3253 = vmul.f32 %v2613, %v3007
  %v3254 = vmul.f32 %v2614, %v3009
  %v3255 = vmul.f32 %v2615, %v3011
  %v3256 = vmul.f32 %v2616, %v3013
  %v3257 = vmul.f32 %v2617, %v3015
  %v3258 = vmul.f32 %v2618, %v3017
  %v3259 = vmul.f32 %v2619, %v3019
  %v3260 = vmul.f32 %v2620, %v3021
  %v3261 = vmul.f32 %v2621, %v3023
  %v3262 = vmul.f32 %v2622, %v3025
  %v3263 = vmul.f32 %v2623, %v3027
  %v3264 = vmul.f32 %v2624, %v3029
  %v3265 = vmul.f32 %v2625, %v3031
  %v3266 = vmul.f32 %v2626, %v3033
  %v3267 = vmul.f32 %v2627, %v3035
  %v3268 = vmul.f32 %v2628, %v3037
  %v3269 = vmul.f32 %v2629, %v3039
  %v3270 = vmul.f32 %v2630, %v3041
  %v3271 = vmul.f32 %v2631, %v3043
  %v3272 = vmul.f32 %v2632, %v3045
  %v3273 = vmul.f32 %v2633, %v3047
  %v3274 = vmul.f32 %v2634, %v3049
  %v3275 = vmul.f32 %v2635, %v3051
  %v3276 = vmul.f32 %v2636, %v3053
  %v3277 = vmul.f32 %v2637, %v3055
  %v3278 = vmul.f32 %v2638, %v3057
  %v3279 = vmul.f32 %v2639, %v3059
  %v3280 = vmul.f32 %v2640, %v3061
  %v3281 = vmul.f32 %v2641, %v3063
  %v3282 = vmul.f32 %v2642, %v3065
  %v3283 = vmul.f32 %v2643, %v3067
  %v3284 = vmul.f32 %v2644, %v3069
  %v3285 = vmul.f32 %v2645, %v3071
  %v3286 = vmul.f32 %v2646, %v3073
  %v3287 = vmul.f32 %v2647, %v3075
  %v3288 = vmul.f32 %v2648, %v3077
  %v3289 = vmul.f32 %v2649, %v3079
  %v3290 = vmul.f32 %v2650, %v3081
  %v3291 = vmul.f32 %v2651, %v3083
  %v3292 = vmul.f32 %v2652, %v3085
  %v3293 = vmul.f32 %v2653, %v3087
  %v3294 = vmul.f32 %v2654, %v3089
  %v3295 = vmul.f32 %v2655, %v3091
  %v3296 = vmul.f32 %v2656, %v3093
  %v3297 = vmul.f32 %v2657, %v3095
  %v3298 = vmul.f32 %v2658, %v3097
  %v3299 = vmul.f32 %v2659, %v3099
  %v3300 = vmul.f32 %v2660, %v3101
  %v3301 = vmul.f32 %v2661, %v3103
  %v3302 = vmul.f32 %v2662, %v3105
  %v3303 = vmul.f32 %v2663, %v3107
  %v3304 = vmul.f32 %v2664, %v3109
  %v3305 = vmul.f32 %v2665, %v3111
  %v3306 = vmul.f32 %v2666, %v3113
  %v3307 = vmul.f32 %v2667, %v3115
  %v3308 = vmul.f32 %v2668, %v3117
  %v3309 = vmul.f32 %v2669, %v3119
  %v3310 = vmul.f32 %v2670, %v3121
  %v3311 = vmul.f32 %v2671, %v3123
  %v3312 = vmul.f32 %v2672, %v3125
  %v3313 = vmul.f32 %v2673, %v3127
  %v3314 = vmul.f32 %v2674, %v3129
  %v3315 = vmul.f32 %v2675, %v3131
  %v3316 = vmul.f32 %v2676, %v3133
  %v3317 = vmul.f32 %v2677, %v3135
  %v3318 = vmul.f32 %v2678, %v3137
  %v3319 = vmul.f32 %v2679, %v3139
  %v3320 = vmul.f32 %v2680, %v3141
  %v3321 = vmul.f32 %v2681, %v3143
  %v3322 = vmul.f32 %v2682, %v3145
  %v3323 = vmul.f32 %v2683, %v3147
  %v3324 = vmul.f32 %v2684, %v3149
  %v3325 = vmul.f32 %v2685, %v3151
  %v3326 = vmul.f32 %v2686, %v3153
  %v3327 = vmul.f32 %v2687, %v3155
  %v3328 = vmul.f32 %v2688, %v3157
  %v3329 = vmul.f32 %v2689, %v3159
  %v3330 = vmul.f32 %v2690, %v3161
  %v3331 = vmul.f32 %v2691, %v3163
  %v3332 = vmul.f32 %v2692, %v3165
  %v3333 = vmul.f32 %v2693, %v3167
  %v3334 = vmul.f32 %v2694, %v3169
  %v3335 = vmul.f32 %v2695, %v3171
  %v3336 = vmul.f32 %v2696, %v3173
  %v3337 = vmul.f32 %v2697, %v3175
  %v3338 = vmul.f32 %v2698, %v3177
  %v3339 = vmul.f32 %v2699, %v3179
  %v3340 = vmul.f32 %v2700, %v3181
  %v3341 = vmul.f32 %v2701, %v3183
  %v3342 = vmul.f32 %v2702, %v3185
  %v3343 = vmul.f32 %v2703, %v3187
  %v3344 = vmul.f32 %v2704, %v3189
  %v3345 = vmul.f32 %v2705, %v3191
  %v3346 = vmul.f32 %v2706, %v3193
  %v3347 = vmul.f32 %v2707, %v3195
  %v3348 = vmul.f32 %v2708, %v3197
  %v3349 = vmul.f32 %v2709, %v3199
  %v3350 = vmul.f32 %v2710, %v3201
  %v3351 = vmul.f32 %v2711, %v3203
  %v3352 = vmul.f32 %v2712, %v3205
  %v3353 = vmul.f32 %v2713, %v3207
  %v3354 = vmul.f32 %v2714, %v3209
  %v3355 = vmul.f32 %v2715, %v3211
  %v3356 = vmul.f32 %v2716, %v3213
  %v3357 = vmul.f32 %v2717, %v3215
  %v3358 = vmul.f32 %v2718, %v3217
  %v3359 = vmul.f32 %v2719, %v3219
  %v3360 = vmul.f32 %v2720, %v3221
  %v3361 = vmul.f32 %v2721, %v3223
  %v3362 = vmul.f32 %v2722, %v3225
  %v3363 = vmul.f32 %v2723, %v3227
  %v3364 = vmul.f32 %v2724, %v3229
  %v3365 = vmul.f32 %v2725, %v3231
  %v3366 = vmul.f32 %v2726, %v3233
  %v3367 = vmul.f32 %v2727, %v3235
  %v3368 = vmul.f32 %v2728, %v3237
  %v3369 = vmul.f32 %v2729, %v3239
  %v3370 = vmul.f32 %v2730, %v3241
  %v3371 = vmul.f32 %v2731, %v3243
  %v3372 = vsub.f32 1.0, %v3244
  %v3373 = vsub.f32 1.0, %v3245
  %v3374 = vsub.f32 1.0, %v3246
  %v3375 = vsub.f32 1.0, %v3247
  %v3376 = vsub.f32 1.0, %v3248
  %v3377 = vsub.f32 1.0, %v3249
  %v3378 = vsub.f32 1.0, %v3250
  %v3379 = vsub.f32 1.0, %v3251
  %v3380 = vsub.f32 1.0, %v3252
  %v3381 = vsub.f32 1.0, %v3253
  %v3382 = vsub.f32 1.0, %v3254
  %v3383 = vsub.f32 1.0, %v3255
  %v3384 = vsub.f32 1.0, %v3256
  %v3385 = vsub.f32 1.0, %v3257
  %v3386 = vsub.f32 1.0, %v3258
  %v3387 = vsub.f32 1.0, %v3259
  %v3388 = vsub.f32 1.0, %v3260
  %v3389 = vsub.f32 1.0, %v3261
  %v3390 = vsub.f32 1.0, %v3262
  %v3391 = vsub.f32 1.0, %v3263
  %v3392 = vsub.f32 1.0, %v3264
  %v3393 = vsub.f32 1.0, %v3265
  %v3394 = vsub.f32 1.0, %v3266
  %v3395 = vsub.f32 1.0, %v3267
  %v3396 = vsub.f32 1.0, %v3268
  %v3397 = vsub.f32 1.0, %v3269
  %v3398 = vsub.f32 1.0, %v3270
  %v3399 = vsub.f32 1.0, %v3271
  %v3400 = vsub.f32 1.0, %v3272
  %v3401 = vsub.f32 1.0, %v3273
  %v3402 = vsub.f32 1.0, %v3274
  %v3403 = vsub.f32 1.0, %v3275
  %v3404 = vsub.f32 1.0, %v3276
  %v3405 = vsub.f32 1.0, %v3277
  %v3406 = vsub.f32 1.0, %v3278
  %v3407 = vsub.f32 1.0, %v3279
  %v3408 = vsub.f32 1.0, %v3280
  %v3409 = vsub.f32 1.0, %v3281
  %v3410 = vsub.f32 1.0, %v3282
  %v3411 = vsub.f32 1.0, %v3283
  %v3412 = vsub.f32 1.0, %v3284
  %v3413 = vsub.f32 1.0, %v3285
  %v3414 = vsub.f32 1.0, %v3286
  %v3415 = vsub.f32 1.0, %v3287
  %v3416 = vsub.f32 1.0, %v3288
  %v3417 = vsub.f32 1.0, %v3289
  %v3418 = vsub.f32 1.0, %v3290
  %v3419 = vsub.f32 1.0, %v3291
  %v3420 = vsub.f32 1.0, %v3292
  %v3421 = vsub.f32 1.0, %v3293
  %v3422 = vsub.f32 1.0, %v3294
  %v3423 = vsub.f32 1.0, %v3295
  %v3424 = vsub.f32 1.0, %v3296
  %v3425 = vsub.f32 1.0, %v3297
  %v3426 = vsub.f32 1.0, %v3298
  %v3427 = vsub.f32 1.0, %v3299
  %v3428 = vsub.f32 1.0, %v3300
  %v3429 = vsub.f32 1.0, %v3301
  %v3430 = vsub.f32 1.0, %v3302
  %v3431 = vsub.f32 1.0, %v3303
  %v3432 = vsub.f32 1.0, %v3304
  %v3433 = vsub.f32 1.0, %v3305
  %v3434 = vsub.f32 1.0, %v3306
  %v3435 = vsub.f32 1.0, %v3307
  %v3436 = vsub.f32 1.0, %v3308
  %v3437 = vsub.f32 1.0, %v3309
  %v3438 = vsub.f32 1.0, %v3310
  %v3439 = vsub.f32 1.0, %v3311
  %v3440 = vsub.f32 1.0, %v3312
  %v3441 = vsub.f32 1.0, %v3313
  %v3442 = vsub.f32 1.0, %v3314
  %v3443 = vsub.f32 1.0, %v3315
  %v3444 = vsub.f32 1.0, %v3316
  %v3445 = vsub.f32 1.0, %v3317
  %v3446 = vsub.f32 1.0, %v3318
  %v3447 = vsub.f32 1.0, %v3319
  %v3448 = vsub.f32 1.0, %v3320
  %v3449 = vsub.f32 1.0, %v3321
  %v3450 = vsub.f32 1.0, %v3322
  %v3451 = vsub.f32 1.0, %v3323
  %v3452 = vsub.f32 1.0, %v3324
  %v3453 = vsub.f32 1.0, %v3325
  %v3454 = vsub.f32 1.0, %v3326
  %v3455 = vsub.f32 1.0, %v3327
  %v3456 = vsub.f32 1.0, %v3328
  %v3457 = vsub.f32 1.0, %v3329
  %v3458 = vsub.f32 1.0, %v3330
  %v3459 = vsub.f32 1.0, %v3331
  %v3460 = vsub.f32 1.0, %v3332
  %v3461 = vsub.f32 1.0, %v3333
  %v3462 = vsub.f32 1.0, %v3334
  %v3463 = vsub.f32 1.0, %v3335
  %v3464 = vsub.f32 1.0, %v3336
  %v3465 = vsub.f32 1.0, %v3337
  %v3466 = vsub.f32 1.0, %v3338
  %v3467 = vsub.f32 1.0, %v3339
  %v3468 = vsub.f32 1.0, %v3340
  %v3469 = vsub.f32 1.0, %v3341
  %v3470 = vsub.f32 1.0, %v3342
  %v3471 = vsub.f32 1.0, %v3343
  %v3472 = vsub.f32 1.0, %v3344
  %v3473 = vsub.f32 1.0, %v3345
  %v3474 = vsub.f32 1.0, %v3346
  %v3475 = vsub.f32 1.0, %v3347
  %v3476 = vsub.f32 1.0, %v3348
  %v3477 = vsub.f32 1.0, %v3349
  %v3478 = vsub.f32 1.0, %v3350
  %v3479 = vsub.f32 1.0, %v3351
  %v3480 = vsub.f32 1.0, %v3352
  %v3481 = vsub.f32 1.0, %v3353
  %v3482 = vsub.f32 1.0, %v3354
  %v3483 = vsub.f32 1.0, %v3355
  %v3484 = vsub.f32 1.0, %v3356
  %v3485 = vsub.f32 1.0, %v3357
  %v3486 = vsub.f32 1.0, %v3358
  %v3487 = vsub.f32 1.0, %v3359
  %v3488 = vsub.f32 1.0, %v3360
  %v3489 = vsub.f32 1.0, %v3361
  %v3490 = vsub.f32 1.0, %v3362
  %v3491 = vsub.f32 1.0, %v3363
  %v3492 = vsub.f32 1.0, %v3364
  %v3493 = vsub.f32 1.0, %v3365
  %v3494 = vsub.f32 1.0, %v3366
  %v3495 = vsub.f32 1.0, %v3367
  %v3496 = vsub.f32 1.0, %v3368
  %v3497 = vsub.f32 1.0, %v3369
  %v3498 = vsub.f32 1.0, %v3370
  %v3499 = vsub.f32 1.0, %v3371
  %v3500 = vmul.f32 %v940, %v3372
  %v3501 = vmul.f32 %v941, %v3373
  %v3502 = vmul.f32 %v942, %v3374
  %v3503 = vmul.f32 %v943, %v3375
  %v3504 = vmul.f32 %v944, %v3376
  %v3505 = vmul.f32 %v945, %v3377
  %v3506 = vmul.f32 %v946, %v3378
  %v3507 = vmul.f32 %v947, %v3379
  %v3508 = vmul.f32 %v948, %v3380
  %v3509 = vmul.f32 %v949, %v3381
  %v3510 = vmul.f32 %v950, %v3382
  %v3511 = vmul.f32 %v951, %v3383
  %v3512 = vmul.f32 %v952, %v3384
  %v3513 = vmul.f32 %v953, %v3385
  %v3514 = vmul.f32 %v954, %v3386
  %v3515 = vmul.f32 %v955, %v3387
  %v3516 = vmul.f32 %v956, %v3388
  %v3517 = vmul.f32 %v957, %v3389
  %v3518 = vmul.f32 %v958, %v3390
  %v3519 = vmul.f32 %v959, %v3391
  %v3520 = vmul.f32 %v960, %v3392
  %v3521 = vmul.f32 %v961, %v3393
  %v3522 = vmul.f32 %v962, %v3394
  %v3523 = vmul.f32 %v963, %v3395
  %v3524 = vmul.f32 %v964, %v3396
  %v3525 = vmul.f32 %v965, %v3397
  %v3526 = vmul.f32 %v966, %v3398
  %v3527 = vmul.f32 %v967, %v3399
  %v3528 = vmul.f32 %v968, %v3400
  %v3529 = vmul.f32 %v969, %v3401
  %v3530 = vmul.f32 %v970, %v3402
  %v3531 = vmul.f32 %v971, %v3403
  %v3532 = vmul.f32 %v972, %v3404
  %v3533 = vmul.f32 %v973, %v3405
  %v3534 = vmul.f32 %v974, %v3406
  %v3535 = vmul.f32 %v975, %v3407
  %v3536 = vmul.f32 %v976, %v3408
  %v3537 = vmul.f32 %v977, %v3409
  %v3538 = vmul.f32 %v978, %v3410
  %v3539 = vmul.f32 %v979, %v3411
  %v3540 = vmul.f32 %v980, %v3412
  %v3541 = vmul.f32 %v981, %v3413
  %v3542 = vmul.f32 %v982, %v3414
  %v3543 = vmul.f32 %v983, %v3415
  %v3544 = vmul.f32 %v984, %v3416
  %v3545 = vmul.f32 %v985, %v3417
  %v3546 = vmul.f32 %v986, %v3418
  %v3547 = vmul.f32 %v987, %v3419
  %v3548 = vmul.f32 %v988, %v3420
  %v3549 = vmul.f32 %v989, %v3421
  %v3550 = vmul.f32 %v990, %v3422
  %v3551 = vmul.f32 %v991, %v3423
  %v3552 = vmul.f32 %v992, %v3424
  %v3553 = vmul.f32 %v993, %v3425
  %v3554 = vmul.f32 %v994, %v3426
  %v3555 = vmul.f32 %v995, %v3427
  %v3556 = vmul.f32 %v996, %v3428
  %v3557 = vmul.f32 %v997, %v3429
  %v3558 = vmul.f32 %v998, %v3430
  %v3559 = vmul.f32 %v999, %v3431
  %v3560 = vmul.f32 %v1000, %v3432
  %v3561 = vmul.f32 %v1001, %v3433
  %v3562 = vmul.f32 %v1002, %v3434
  %v3563 = vmul.f32 %v1003, %v3435
  %v3564 = vmul.f32 %v1004, %v3436
  %v3565 = vmul.f32 %v1005, %v3437
  %v3566 = vmul.f32 %v1006, %v3438
  %v3567 = vmul.f32 %v1007, %v3439
  %v3568 = vmul.f32 %v1008, %v3440
  %v3569 = vmul.f32 %v1009, %v3441
  %v3570 = vmul.f32 %v1010, %v3442
  %v3571 = vmul.f32 %v1011, %v3443
  %v3572 = vmul.f32 %v1012, %v3444
  %v3573 = vmul.f32 %v1013, %v3445
  %v3574 = vmul.f32 %v1014, %v3446
  %v3575 = vmul.f32 %v1015, %v3447
  %v3576 = vmul.f32 %v1016, %v3448
  %v3577 = vmul.f32 %v1017, %v3449
  %v3578 = vmul.f32 %v1018, %v3450
  %v3579 = vmul.f32 %v1019, %v3451
  %v3580 = vmul.f32 %v1020, %v3452
  %v3581 = vmul.f32 %v1021, %v3453
  %v3582 = vmul.f32 %v1022, %v3454
  %v3583 = vmul.f32 %v1023, %v3455
  %v3584 = vmul.f32 %v1024, %v3456
  %v3585 = vmul.f32 %v1025, %v3457
  %v3586 = vmul.f32 %v1026, %v3458
  %v3587 = vmul.f32 %v1027, %v3459
  %v3588 = vmul.f32 %v1028, %v3460
  %v3589 = vmul.f32 %v1029, %v3461
  %v3590 = vmul.f32 %v1030, %v3462
  %v3591 = vmul.f32 %v1031, %v3463
  %v3592 = vmul.f32 %v1032, %v3464
  %v3593 = vmul.f32 %v1033, %v3465
  %v3594 = vmul.f32 %v1034, %v3466
  %v3595 = vmul.f32 %v1035, %v3467
  %v3596 = vmul.f32 %v1036, %v3468
  %v3597 = vmul.f32 %v1037, %v3469
  %v3598 = vmul.f32 %v1038, %v3470
  %v3599 = vmul.f32 %v1039, %v3471
  %v3600 = vmul.f32 %v1040, %v3472
  %v3601 = vmul.f32 %v1041, %v3473
  %v3602 = vmul.f32 %v1042, %v3474
  %v3603 = vmul.f32 %v1043, %v3475
  %v3604 = vmul.f32 %v1044, %v3476
  %v3605 = vmul.f32 %v1045, %v3477
  %v3606 = vmul.f32 %v1046, %v3478
  %v3607 = vmul.f32 %v1047, %v3479
  %v3608 = vmul.f32 %v1048, %v3480
  %v3609 = vmul.f32 %v1049, %v3481
  %v3610 = vmul.f32 %v1050, %v3482
  %v3611 = vmul.f32 %v1051, %v3483
  %v3612 = vmul.f32 %v1052, %v3484
  %v3613 = vmul.f32 %v1053, %v3485
  %v3614 = vmul.f32 %v1054, %v3486
  %v3615 = vmul.f32 %v1055, %v3487
  %v3616 = vmul.f32 %v1056, %v3488
  %v3617 = vmul.f32 %v1057, %v3489
  %v3618 = vmul.f32 %v1058, %v3490
  %v3619 = vmul.f32 %v1059, %v3491
  %v3620 = vmul.f32 %v1060, %v3492
  %v3621 = vmul.f32 %v1061, %v3493
  %v3622 = vmul.f32 %v1062, %v3494
  %v3623 = vmul.f32 %v1063, %v3495
  %v3624 = vmul.f32 %v1064, %v3496
  %v3625 = vmul.f32 %v1065, %v3497
  %v3626 = vmul.f32 %v1066, %v3498
  %v3627 = vmul.f32 %v1067, %v3499
  %v3628 = vadd.f32 %v3500, 1.0
  %v3629 = vadd.f32 %v3501, 1.0
  %v3630 = vadd.f32 %v3502, 1.0
  %v3631 = vadd.f32 %v3503, 1.0
  %v3632 = vadd.f32 %v3504, 1.0
  %v3633 = vadd.f32 %v3505, 1.0
  %v3634 = vadd.f32 %v3506, 1.0
  %v3635 = vadd.f32 %v3507, 1.0
  %v3636 = vadd.f32 %v3508, 1.0
  %v3637 = vadd.f32 %v3509, 1.0
  %v3638 = vadd.f32 %v3510, 1.0
  %v3639 = vadd.f32 %v3511, 1.0
  %v3640 = vadd.f32 %v3512, 1.0
  %v3641 = vadd.f32 %v3513, 1.0
  %v3642 = vadd.f32 %v3514, 1.0
  %v3643 = vadd.f32 %v3515, 1.0
  %v3644 = vadd.f32 %v3516, 1.0
  %v3645 = vadd.f32 %v3517, 1.0
  %v3646 = vadd.f32 %v3518, 1.0
  %v3647 = vadd.f32 %v3519, 1.0
  %v3648 = vadd.f32 %v3520, 1.0
  %v3649 = vadd.f32 %v3521, 1.0
  %v3650 = vadd.f32 %v3522, 1.0
  %v3651 = vadd.f32 %v3523, 1.0
  %v3652 = vadd.f32 %v3524, 1.0
  %v3653 = vadd.f32 %v3525, 1.0
  %v3654 = vadd.f32 %v3526, 1.0
  %v3655 = vadd.f32 %v3527, 1.0
  %v3656 = vadd.f32 %v3528, 1.0
  %v3657 = vadd.f32 %v3529, 1.0
  %v3658 = vadd.f32 %v3530, 1.0
  %v3659 = vadd.f32 %v3531, 1.0
  %v3660 = vadd.f32 %v3532, 1.0
  %v3661 = vadd.f32 %v3533, 1.0
  %v3662 = vadd.f32 %v3534, 1.0
  %v3663 = vadd.f32 %v3535, 1.0
  %v3664 = vadd.f32 %v3536, 1.0
  %v3665 = vadd.f32 %v3537, 1.0
  %v3666 = vadd.f32 %v3538, 1.0
  %v3667 = vadd.f32 %v3539, 1.0
  %v3668 = vadd.f32 %v3540, 1.0
  %v3669 = vadd.f32 %v3541, 1.0
  %v3670 = vadd.f32 %v3542, 1.0
  %v3671 = vadd.f32 %v3543, 1.0
  %v3672 = vadd.f32 %v3544, 1.0
  %v3673 = vadd.f32 %v3545, 1.0
  %v3674 = vadd.f32 %v3546, 1.0
  %v3675 = vadd.f32 %v3547, 1.0
  %v3676 = vadd.f32 %v3548, 1.0
  %v3677 = vadd.f32 %v3549, 1.0
  %v3678 = vadd.f32 %v3550, 1.0
  %v3679 = vadd.f32 %v3551, 1.0
  %v3680 = vadd.f32 %v3552, 1.0
  %v3681 = vadd.f32 %v3553, 1.0
  %v3682 = vadd.f32 %v3554, 1.0
  %v3683 = vadd.f32 %v3555, 1.0
  %v3684 = vadd.f32 %v3556, 1.0
  %v3685 = vadd.f32 %v3557, 1.0
  %v3686 = vadd.f32 %v3558, 1.0
  %v3687 = vadd.f32 %v3559, 1.0
  %v3688 = vadd.f32 %v3560, 1.0
  %v3689 = vadd.f32 %v3561, 1.0
  %v3690 = vadd.f32 %v3562, 1.0
  %v3691 = vadd.f32 %v3563, 1.0
  %v3692 = vadd.f32 %v3564, 1.0
  %v3693 = vadd.f32 %v3565, 1.0
  %v3694 = vadd.f32 %v3566, 1.0
  %v3695 = vadd.f32 %v3567, 1.0
  %v3696 = vadd.f32 %v3568, 1.0
  %v3697 = vadd.f32 %v3569, 1.0
  %v3698 = vadd.f32 %v3570, 1.0
  %v3699 = vadd.f32 %v3571, 1.0
  %v3700 = vadd.f32 %v3572, 1.0
  %v3701 = vadd.f32 %v3573, 1.0
  %v3702 = vadd.f32 %v3574, 1.0
  %v3703 = vadd.f32 %v3575, 1.0
  %v3704 = vadd.f32 %v3576, 1.0
  %v3705 = vadd.f32 %v3577, 1.0
  %v3706 = vadd.f32 %v3578, 1.0
  %v3707 = vadd.f32 %v3579, 1.0
  %v3708 = vadd.f32 %v3580, 1.0
  %v3709 = vadd.f32 %v3581, 1.0
  %v3710 = vadd.f32 %v3582, 1.0
  %v3711 = vadd.f32 %v3583, 1.0
  %v3712 = vadd.f32 %v3584, 1.0
  %v3713 = vadd.f32 %v3585, 1.0
  %v3714 = vadd.f32 %v3586, 1.0
  %v3715 = vadd.f32 %v3587, 1.0
  %v3716 = vadd.f32 %v3588, 1.0
  %v3717 = vadd.f32 %v3589, 1.0
  %v3718 = vadd.f32 %v3590, 1.0
  %v3719 = vadd.f32 %v3591, 1.0
  %v3720 = vadd.f32 %v3592, 1.0
  %v3721 = vadd.f32 %v3593, 1.0
  %v3722 = vadd.f32 %v3594, 1.0
  %v3723 = vadd.f32 %v3595, 1.0
  %v3724 = vadd.f32 %v3596, 1.0
  %v3725 = vadd.f32 %v3597, 1.0
  %v3726 = vadd.f32 %v3598, 1.0
  %v3727 = vadd.f32 %v3599, 1.0
  %v3728 = vadd.f32 %v3600, 1.0
  %v3729 = vadd.f32 %v3601, 1.0
  %v3730 = vadd.f32 %v3602, 1.0
  %v3731 = vadd.f32 %v3603, 1.0
  %v3732 = vadd.f32 %v3604, 1.0
  %v3733 = vadd.f32 %v3605, 1.0
  %v3734 = vadd.f32 %v3606, 1.0
  %v3735 = vadd.f32 %v3607, 1.0
  %v3736 = vadd.f32 %v3608, 1.0
  %v3737 = vadd.f32 %v3609, 1.0
  %v3738 = vadd.f32 %v3610, 1.0
  %v3739 = vadd.f32 %v3611, 1.0
  %v3740 = vadd.f32 %v3612, 1.0
  %v3741 = vadd.f32 %v3613, 1.0
  %v3742 = vadd.f32 %v3614, 1.0
  %v3743 = vadd.f32 %v3615, 1.0
  %v3744 = vadd.f32 %v3616, 1.0
  %v3745 = vadd.f32 %v3617, 1.0
  %v3746 = vadd.f32 %v3618, 1.0
  %v3747 = vadd.f32 %v3619, 1.0
  %v3748 = vadd.f32 %v3620, 1.0
  %v3749 = vadd.f32 %v3621, 1.0
  %v3750 = vadd.f32 %v3622, 1.0
  %v3751 = vadd.f32 %v3623, 1.0
  %v3752 = vadd.f32 %v3624, 1.0
  %v3753 = vadd.f32 %v3625, 1.0
  %v3754 = vadd.f32 %v3626, 1.0
  %v3755 = vadd.f32 %v3627, 1.0
  %v3756 = vmul.f32 %v556, %v3628
  %v3757 = vmul.f32 %v557, %v3629
  %v3758 = vmul.f32 %v558, %v3630
  %v3759 = vmul.f32 %v559, %v3631
  %v3760 = vmul.f32 %v560, %v3632
  %v3761 = vmul.f32 %v561, %v3633
  %v3762 = vmul.f32 %v562, %v3634
  %v3763 = vmul.f32 %v563, %v3635
  %v3764 = vmul.f32 %v564, %v3636
  %v3765 = vmul.f32 %v565, %v3637
  %v3766 = vmul.f32 %v566, %v3638
  %v3767 = vmul.f32 %v567, %v3639
  %v3768 = vmul.f32 %v568, %v3640
  %v3769 = vmul.f32 %v569, %v3641
  %v3770 = vmul.f32 %v570, %v3642
  %v3771 = vmul.f32 %v571, %v3643
  %v3772 = vmul.f32 %v572, %v3644
  %v3773 = vmul.f32 %v573, %v3645
  %v3774 = vmul.f32 %v574, %v3646
  %v3775 = vmul.f32 %v575, %v3647
  %v3776 = vmul.f32 %v576, %v3648
  %v3777 = vmul.f32 %v577, %v3649
  %v3778 = vmul.f32 %v578, %v3650
  %v3779 = vmul.f32 %v579, %v3651
  %v3780 = vmul.f32 %v580, %v3652
  %v3781 = vmul.f32 %v581, %v3653
  %v3782 = vmul.f32 %v582, %v3654
  %v3783 = vmul.f32 %v583, %v3655
  %v3784 = vmul.f32 %v584, %v3656
  %v3785 = vmul.f32 %v585, %v3657
  %v3786 = vmul.f32 %v586, %v3658
  %v3787 = vmul.f32 %v587, %v3659
  %v3788 = vmul.f32 %v588, %v3660
  %v3789 = vmul.f32 %v589, %v3661
  %v3790 = vmul.f32 %v590, %v3662
  %v3791 = vmul.f32 %v591, %v3663
  %v3792 = vmul.f32 %v592, %v3664
  %v3793 = vmul.f32 %v593, %v3665
  %v3794 = vmul.f32 %v594, %v3666
  %v3795 = vmul.f32 %v595, %v3667
  %v3796 = vmul.f32 %v596, %v3668
  %v3797 = vmul.f32 %v597, %v3669
  %v3798 = vmul.f32 %v598, %v3670
  %v3799 = vmul.f32 %v599, %v3671
  %v3800 = vmul.f32 %v600, %v3672
  %v3801 = vmul.f32 %v601, %v3673
  %v3802 = vmul.f32 %v602, %v3674
  %v3803 = vmul.f32 %v603, %v3675
  %v3804 = vmul.f32 %v604, %v3676
  %v3805 = vmul.f32 %v605, %v3677
  %v3806 = vmul.f32 %v606, %v3678
  %v3807 = vmul.f32 %v607, %v3679
  %v3808 = vmul.f32 %v608, %v3680
  %v3809 = vmul.f32 %v609, %v3681
  %v3810 = vmul.f32 %v610, %v3682
  %v3811 = vmul.f32 %v611, %v3683
  %v3812 = vmul.f32 %v612, %v3684
  %v3813 = vmul.f32 %v613, %v3685
  %v3814 = vmul.f32 %v614, %v3686
  %v3815 = vmul.f32 %v615, %v3687
  %v3816 = vmul.f32 %v616, %v3688
  %v3817 = vmul.f32 %v617, %v3689
  %v3818 = vmul.f32 %v618, %v3690
  %v3819 = vmul.f32 %v619, %v3691
  %v3820 = vmul.f32 %v620, %v3692
  %v3821 = vmul.f32 %v621, %v3693
  %v3822 = vmul.f32 %v622, %v3694
  %v3823 = vmul.f32 %v623, %v3695
  %v3824 = vmul.f32 %v624, %v3696
  %v3825 = vmul.f32 %v625, %v3697
  %v3826 = vmul.f32 %v626, %v3698
  %v3827 = vmul.f32 %v627, %v3699
  %v3828 = vmul.f32 %v628, %v3700
  %v3829 = vmul.f32 %v629, %v3701
  %v3830 = vmul.f32 %v630, %v3702
  %v3831 = vmul.f32 %v631, %v3703
  %v3832 = vmul.f32 %v632, %v3704
  %v3833 = vmul.f32 %v633, %v3705
  %v3834 = vmul.f32 %v634, %v3706
  %v3835 = vmul.f32 %v635, %v3707
  %v3836 = vmul.f32 %v636, %v3708
  %v3837 = vmul.f32 %v637, %v3709
  %v3838 = vmul.f32 %v638, %v3710
  %v3839 = vmul.f32 %v639, %v3711
  %v3840 = vmul.f32 %v640, %v3712
  %v3841 = vmul.f32 %v641, %v3713
  %v3842 = vmul.f32 %v642, %v3714
  %v3843 = vmul.f32 %v643, %v3715
  %v3844 = vmul.f32 %v644, %v3716
  %v3845 = vmul.f32 %v645, %v3717
  %v3846 = vmul.f32 %v646, %v3718
  %v3847 = vmul.f32 %v647, %v3719
  %v3848 = vmul.f32 %v648, %v3720
  %v3849 = vmul.f32 %v649, %v3721
  %v3850 = vmul.f32 %v650, %v3722
  %v3851 = vmul.f32 %v651, %v3723
  %v3852 = vmul.f32 %v652, %v3724
  %v3853 = vmul.f32 %v653, %v3725
  %v3854 = vmul.f32 %v654, %v3726
  %v3855 = vmul.f32 %v655, %v3727
  %v3856 = vmul.f32 %v656, %v3728
  %v3857 = vmul.f32 %v657, %v3729
  %v3858 = vmul.f32 %v658, %v3730
  %v3859 = vmul.f32 %v659, %v3731
  %v3860 = vmul.f32 %v660, %v3732
  %v3861 = vmul.f32 %v661, %v3733
  %v3862 = vmul.f32 %v662, %v3734
  %v3863 = vmul.f32 %v663, %v3735
  %v3864 = vmul.f32 %v664, %v3736
  %v3865 = vmul.f32 %v665, %v3737
  %v3866 = vmul.f32 %v666, %v3738
  %v3867 = vmul.f32 %v667, %v3739
  %v3868 = vmul.f32 %v668, %v3740
  %v3869 = vmul.f32 %v669, %v3741
  %v3870 = vmul.f32 %v670, %v3742
  %v3871 = vmul.f32 %v671, %v3743
  %v3872 = vmul.f32 %v672, %v3744
  %v3873 = vmul.f32 %v673, %v3745
  %v3874 = vmul.f32 %v674, %v3746
  %v3875 = vmul.f32 %v675, %v3747
  %v3876 = vmul.f32 %v676, %v3748
  %v3877 = vmul.f32 %v677, %v3749
  %v3878 = vmul.f32 %v678, %v3750
  %v3879 = vmul.f32 %v679, %v3751
  %v3880 = vmul.f32 %v680, %v3752
  %v3881 = vmul.f32 %v681, %v3753
  %v3882 = vmul.f32 %v682, %v3754
  %v3883 = vmul.f32 %v683, %v3755
  %v3884 = vpack.c.bf16 %v3758, %v3756
  %v3885 = vpack.c.bf16 %v3759, %v3757
  %v3886 = vpack.c.bf16 %v3762, %v3760
  %v3887 = vpack.c.bf16 %v3763, %v3761
  %v3888 = vpack.c.bf16 %v3766, %v3764
  %v3889 = vpack.c.bf16 %v3767, %v3765
  %v3890 = vpack.c.bf16 %v3770, %v3768
  %v3891 = vpack.c.bf16 %v3771, %v3769
  %v3892 = vpack.c.bf16 %v3774, %v3772
  %v3893 = vpack.c.bf16 %v3775, %v3773
  %v3894 = vpack.c.bf16 %v3778, %v3776
  %v3895 = vpack.c.bf16 %v3779, %v3777
  %v3896 = vpack.c.bf16 %v3782, %v3780
  %v3897 = vpack.c.bf16 %v3783, %v3781
  %v3898 = vpack.c.bf16 %v3786, %v3784
  %v3899 = vpack.c.bf16 %v3787, %v3785
  %v3900 = vpack.c.bf16 %v3790, %v3788
  %v3901 = vpack.c.bf16 %v3791, %v3789
  %v3902 = vpack.c.bf16 %v3794, %v3792
  %v3903 = vpack.c.bf16 %v3795, %v3793
  %v3904 = vpack.c.bf16 %v3798, %v3796
  %v3905 = vpack.c.bf16 %v3799, %v3797
  %v3906 = vpack.c.bf16 %v3802, %v3800
  %v3907 = vpack.c.bf16 %v3803, %v3801
  %v3908 = vpack.c.bf16 %v3806, %v3804
  %v3909 = vpack.c.bf16 %v3807, %v3805
  %v3910 = vpack.c.bf16 %v3810, %v3808
  %v3911 = vpack.c.bf16 %v3811, %v3809
  %v3912 = vpack.c.bf16 %v3814, %v3812
  %v3913 = vpack.c.bf16 %v3815, %v3813
  %v3914 = vpack.c.bf16 %v3818, %v3816
  %v3915 = vpack.c.bf16 %v3819, %v3817
  %v3916 = vpack.c.bf16 %v3822, %v3820
  %v3917 = vpack.c.bf16 %v3823, %v3821
  %v3918 = vpack.c.bf16 %v3826, %v3824
  %v3919 = vpack.c.bf16 %v3827, %v3825
  %v3920 = vpack.c.bf16 %v3830, %v3828
  %v3921 = vpack.c.bf16 %v3831, %v3829
  %v3922 = vpack.c.bf16 %v3834, %v3832
  %v3923 = vpack.c.bf16 %v3835, %v3833
  %v3924 = vpack.c.bf16 %v3838, %v3836
  %v3925 = vpack.c.bf16 %v3839, %v3837
  %v3926 = vpack.c.bf16 %v3842, %v3840
  %v3927 = vpack.c.bf16 %v3843, %v3841
  %v3928 = vpack.c.bf16 %v3846, %v3844
  %v3929 = vpack.c.bf16 %v3847, %v3845
  %v3930 = vpack.c.bf16 %v3850, %v3848
  %v3931 = vpack.c.bf16 %v3851, %v3849
  %v3932 = vpack.c.bf16 %v3854, %v3852
  %v3933 = vpack.c.bf16 %v3855, %v3853
  %v3934 = vpack.c.bf16 %v3858, %v3856
  %v3935 = vpack.c.bf16 %v3859, %v3857
  %v3936 = vpack.c.bf16 %v3862, %v3860
  %v3937 = vpack.c.bf16 %v3863, %v3861
  %v3938 = vpack.c.bf16 %v3866, %v3864
  %v3939 = vpack.c.bf16 %v3867, %v3865
  %v3940 = vpack.c.bf16 %v3870, %v3868
  %v3941 = vpack.c.bf16 %v3871, %v3869
  %v3942 = vpack.c.bf16 %v3874, %v3872
  %v3943 = vpack.c.bf16 %v3875, %v3873
  %v3944 = vpack.c.bf16 %v3878, %v3876
  %v3945 = vpack.c.bf16 %v3879, %v3877
  %v3946 = vpack.c.bf16 %v3882, %v3880
  %v3947 = vpack.c.bf16 %v3883, %v3881
  %v3948 = vld [vmem:[%s3] sm:$0xf]
  %v3949 = vld [vmem:[%s3 + $0x4] sm:$0xf]
  %v3950 = vld [vmem:[%s3 + $0x8] sm:$0xf]
  %v3951 = vld [vmem:[%s3 + $0xc] sm:$0xf]
  %v3952 = vld [vmem:[%s3 + $0x10] sm:$0xf]
  %v3953 = vld [vmem:[%s3 + $0x14] sm:$0xf]
  %v3954 = vld [vmem:[%s3 + $0x18] sm:$0xf]
  %v3955 = vld [vmem:[%s3 + $0x1c] sm:$0xf]
  %v3956 = vld [vmem:[%s3 + $0x20] sm:$0xf]
  %v3957 = vld [vmem:[%s3 + $0x24] sm:$0xf]
  %v3958 = vld [vmem:[%s3 + $0x28] sm:$0xf]
  %v3959 = vld [vmem:[%s3 + $0x2c] sm:$0xf]
  %v3960 = vld [vmem:[%s3 + $0x30] sm:$0xf]
  %v3961 = vld [vmem:[%s3 + $0x34] sm:$0xf]
  %v3962 = vld [vmem:[%s3 + $0x38] sm:$0xf]
  %v3963 = vld [vmem:[%s3 + $0x3c] sm:$0xf]
  %v3964 = vld [vmem:[%s3 + $0x40] sm:$0xf]
  %v3965 = vld [vmem:[%s3 + $0x44] sm:$0xf]
  %v3966 = vld [vmem:[%s3 + $0x48] sm:$0xf]
  %v3967 = vld [vmem:[%s3 + $0x4c] sm:$0xf]
  %v3968 = vld [vmem:[%s3 + $0x50] sm:$0xf]
  %v3969 = vld [vmem:[%s3 + $0x54] sm:$0xf]
  %v3970 = vld [vmem:[%s3 + $0x58] sm:$0xf]
  %v3971 = vld [vmem:[%s3 + $0x5c] sm:$0xf]
  %v3972 = vld [vmem:[%s3 + $0x60] sm:$0xf]
  %v3973 = vld [vmem:[%s3 + $0x64] sm:$0xf]
  %v3974 = vld [vmem:[%s3 + $0x68] sm:$0xf]
  %v3975 = vld [vmem:[%s3 + $0x6c] sm:$0xf]
  %v3976 = vld [vmem:[%s3 + $0x70] sm:$0xf]
  %v3977 = vld [vmem:[%s3 + $0x74] sm:$0xf]
  %v3978 = vld [vmem:[%s3 + $0x78] sm:$0xf]
  %v3979 = vld [vmem:[%s3 + $0x7c] sm:$0xf]
  %v3980 = vld [vmem:[%s4] sm:$0x1]
  %v3982 = vperm.slane %v3980, 0
  %v4016 = vunpack.c.l.b16 %v3948
  %v4017 = vunpack.c.l.b16 %v3949
  %v4018 = vunpack.c.l.b16 %v3950
  %v4019 = vunpack.c.l.b16 %v3951
  %v4020 = vunpack.c.l.b16 %v3952
  %v4021 = vunpack.c.l.b16 %v3953
  %v4022 = vunpack.c.l.b16 %v3954
  %v4023 = vunpack.c.l.b16 %v3955
  %v4024 = vunpack.c.l.b16 %v3956
  %v4025 = vunpack.c.l.b16 %v3957
  %v4026 = vunpack.c.l.b16 %v3958
  %v4027 = vunpack.c.l.b16 %v3959
  %v4028 = vunpack.c.l.b16 %v3960
  %v4029 = vunpack.c.l.b16 %v3961
  %v4030 = vunpack.c.l.b16 %v3962
  %v4031 = vunpack.c.l.b16 %v3963
  %v4032 = vunpack.c.l.b16 %v3964
  %v4033 = vunpack.c.l.b16 %v3965
  %v4034 = vunpack.c.l.b16 %v3966
  %v4035 = vunpack.c.l.b16 %v3967
  %v4036 = vunpack.c.l.b16 %v3968
  %v4037 = vunpack.c.l.b16 %v3969
  %v4038 = vunpack.c.l.b16 %v3970
  %v4039 = vunpack.c.l.b16 %v3971
  %v4040 = vunpack.c.l.b16 %v3972
  %v4041 = vunpack.c.l.b16 %v3973
  %v4042 = vunpack.c.l.b16 %v3974
  %v4043 = vunpack.c.l.b16 %v3975
  %v4044 = vunpack.c.l.b16 %v3976
  %v4045 = vunpack.c.l.b16 %v3977
  %v4046 = vunpack.c.l.b16 %v3978
  %v4047 = vunpack.c.l.b16 %v3979
  %v4048 = vpack.c.b16 %v4017, %v4016
  %v4049 = vpack.c.b16 %v4019, %v4018
  %v4050 = vpack.c.b16 %v4021, %v4020
  %v4051 = vpack.c.b16 %v4023, %v4022
  %v4052 = vpack.c.b16 %v4025, %v4024
  %v4053 = vpack.c.b16 %v4027, %v4026
  %v4054 = vpack.c.b16 %v4029, %v4028
  %v4055 = vpack.c.b16 %v4031, %v4030
  %v4056 = vpack.c.b16 %v4033, %v4032
  %v4057 = vpack.c.b16 %v4035, %v4034
  %v4058 = vpack.c.b16 %v4037, %v4036
  %v4059 = vpack.c.b16 %v4039, %v4038
  %v4060 = vpack.c.b16 %v4041, %v4040
  %v4061 = vpack.c.b16 %v4043, %v4042
  %v4062 = vpack.c.b16 %v4045, %v4044
  %v4063 = vpack.c.b16 %v4047, %v4046
  %4080 = vmatpush.bf16.msra.mxu0 %v4055
  %4081 = vmatpush.bf16.msra.mxu0 %v4054
  %4082 = vmatpush.bf16.msra.mxu0 %v4053
  %4083 = vmatpush.bf16.msra.mxu0 %v4052
  %4084 = vmatpush.bf16.msra.mxu0 %v4051
  %4085 = vmatpush.bf16.msra.mxu0 %v4050
  %4086 = vmatpush.bf16.msra.mxu0 %v4049
  %4087 = vmatpush.bf16.msra.mxu0 %v4048
  %4088 = vmatmul.bf16.gmra.mxu0 %v3884
  %v4089 = vpop.f32.mrf.mxu0
  %v4090 = vadd.f32 %v3982, %v4089
  %v4091 = vpop.f32.mrf.mxu0
  %v4092 = vadd.f32 %v3982, %v4091
  %4093 = vmatmul.bf16.gmra.mxu0 %v3886
  %v4094 = vpop.f32.mrf.mxu0
  %v4095 = vadd.f32 %v3982, %v4094
  %v4096 = vpop.f32.mrf.mxu0
  %v4097 = vadd.f32 %v3982, %v4096
  %4098 = vmatmul.bf16.gmra.mxu0 %v3888
  %v4099 = vpop.f32.mrf.mxu0
  %v4100 = vadd.f32 %v3982, %v4099
  %v4101 = vpop.f32.mrf.mxu0
  %v4102 = vadd.f32 %v3982, %v4101
  %4103 = vmatmul.bf16.gmra.mxu0 %v3890
  %v4104 = vpop.f32.mrf.mxu0
  %v4105 = vadd.f32 %v3982, %v4104
  %v4106 = vpop.f32.mrf.mxu0
  %v4107 = vadd.f32 %v3982, %v4106
  %4108 = vmatmul.bf16.gmra.mxu0 %v3892
  %v4109 = vpop.f32.mrf.mxu0
  %v4110 = vadd.f32 %v3982, %v4109
  %v4111 = vpop.f32.mrf.mxu0
  %v4112 = vadd.f32 %v3982, %v4111
  %4113 = vmatmul.bf16.gmra.mxu0 %v3894
  %v4114 = vpop.f32.mrf.mxu0
  %v4115 = vadd.f32 %v3982, %v4114
  %v4116 = vpop.f32.mrf.mxu0
  %v4117 = vadd.f32 %v3982, %v4116
  %4118 = vmatmul.bf16.gmra.mxu0 %v3896
  %v4119 = vpop.f32.mrf.mxu0
  %v4120 = vadd.f32 %v3982, %v4119
  %v4121 = vpop.f32.mrf.mxu0
  %v4122 = vadd.f32 %v3982, %v4121
  %4123 = vmatmul.bf16.gmra.mxu0 %v3898
  %v4124 = vpop.f32.mrf.mxu0
  %v4125 = vadd.f32 %v3982, %v4124
  %v4126 = vpop.f32.mrf.mxu0
  %v4127 = vadd.f32 %v3982, %v4126
  %4128 = vmatmul.bf16.gmra.mxu0 %v3900
  %v4129 = vpop.f32.mrf.mxu0
  %v4130 = vadd.f32 %v3982, %v4129
  %v4131 = vpop.f32.mrf.mxu0
  %v4132 = vadd.f32 %v3982, %v4131
  %4133 = vmatmul.bf16.gmra.mxu0 %v3902
  %v4134 = vpop.f32.mrf.mxu0
  %v4135 = vadd.f32 %v3982, %v4134
  %v4136 = vpop.f32.mrf.mxu0
  %v4137 = vadd.f32 %v3982, %v4136
  %4138 = vmatmul.bf16.gmra.mxu0 %v3904
  %v4139 = vpop.f32.mrf.mxu0
  %v4140 = vadd.f32 %v3982, %v4139
  %v4141 = vpop.f32.mrf.mxu0
  %v4142 = vadd.f32 %v3982, %v4141
  %4143 = vmatmul.bf16.gmra.mxu0 %v3906
  %v4144 = vpop.f32.mrf.mxu0
  %v4145 = vadd.f32 %v3982, %v4144
  %v4146 = vpop.f32.mrf.mxu0
  %v4147 = vadd.f32 %v3982, %v4146
  %4148 = vmatmul.bf16.gmra.mxu0 %v3908
  %v4149 = vpop.f32.mrf.mxu0
  %v4150 = vadd.f32 %v3982, %v4149
  %v4151 = vpop.f32.mrf.mxu0
  %v4152 = vadd.f32 %v3982, %v4151
  %4153 = vmatmul.bf16.gmra.mxu0 %v3910
  %v4154 = vpop.f32.mrf.mxu0
  %v4155 = vadd.f32 %v3982, %v4154
  %v4156 = vpop.f32.mrf.mxu0
  %v4157 = vadd.f32 %v3982, %v4156
  %4158 = vmatmul.bf16.gmra.mxu0 %v3912
  %v4159 = vpop.f32.mrf.mxu0
  %v4160 = vadd.f32 %v3982, %v4159
  %v4161 = vpop.f32.mrf.mxu0
  %v4162 = vadd.f32 %v3982, %v4161
  %4163 = vmatmul.bf16.gmra.mxu0 %v3914
  %v4164 = vpop.f32.mrf.mxu0
  %v4165 = vadd.f32 %v3982, %v4164
  %v4166 = vpop.f32.mrf.mxu0
  %v4167 = vadd.f32 %v3982, %v4166
  %4168 = vmatmul.bf16.gmra.mxu0 %v3916
  %v4169 = vpop.f32.mrf.mxu0
  %v4170 = vadd.f32 %v3982, %v4169
  %v4171 = vpop.f32.mrf.mxu0
  %v4172 = vadd.f32 %v3982, %v4171
  %4173 = vmatmul.bf16.gmra.mxu0 %v3918
  %v4174 = vpop.f32.mrf.mxu0
  %v4175 = vadd.f32 %v3982, %v4174
  %v4176 = vpop.f32.mrf.mxu0
  %v4177 = vadd.f32 %v3982, %v4176
  %4178 = vmatmul.bf16.gmra.mxu0 %v3920
  %v4179 = vpop.f32.mrf.mxu0
  %v4180 = vadd.f32 %v3982, %v4179
  %v4181 = vpop.f32.mrf.mxu0
  %v4182 = vadd.f32 %v3982, %v4181
  %4183 = vmatmul.bf16.gmra.mxu0 %v3922
  %v4184 = vpop.f32.mrf.mxu0
  %v4185 = vadd.f32 %v3982, %v4184
  %v4186 = vpop.f32.mrf.mxu0
  %v4187 = vadd.f32 %v3982, %v4186
  %4188 = vmatmul.bf16.gmra.mxu0 %v3924
  %v4189 = vpop.f32.mrf.mxu0
  %v4190 = vadd.f32 %v3982, %v4189
  %v4191 = vpop.f32.mrf.mxu0
  %v4192 = vadd.f32 %v3982, %v4191
  %4193 = vmatmul.bf16.gmra.mxu0 %v3926
  %v4194 = vpop.f32.mrf.mxu0
  %v4195 = vadd.f32 %v3982, %v4194
  %v4196 = vpop.f32.mrf.mxu0
  %v4197 = vadd.f32 %v3982, %v4196
  %4198 = vmatmul.bf16.gmra.mxu0 %v3928
  %v4199 = vpop.f32.mrf.mxu0
  %v4200 = vadd.f32 %v3982, %v4199
  %v4201 = vpop.f32.mrf.mxu0
  %v4202 = vadd.f32 %v3982, %v4201
  %4203 = vmatmul.bf16.gmra.mxu0 %v3930
  %v4204 = vpop.f32.mrf.mxu0
  %v4205 = vadd.f32 %v3982, %v4204
  %v4206 = vpop.f32.mrf.mxu0
  %v4207 = vadd.f32 %v3982, %v4206
  %4208 = vmatmul.bf16.gmra.mxu0 %v3932
  %v4209 = vpop.f32.mrf.mxu0
  %v4210 = vadd.f32 %v3982, %v4209
  %v4211 = vpop.f32.mrf.mxu0
  %v4212 = vadd.f32 %v3982, %v4211
  %4213 = vmatmul.bf16.gmra.mxu0 %v3934
  %v4214 = vpop.f32.mrf.mxu0
  %v4215 = vadd.f32 %v3982, %v4214
  %v4216 = vpop.f32.mrf.mxu0
  %v4217 = vadd.f32 %v3982, %v4216
  %4218 = vmatmul.bf16.gmra.mxu0 %v3936
  %v4219 = vpop.f32.mrf.mxu0
  %v4220 = vadd.f32 %v3982, %v4219
  %v4221 = vpop.f32.mrf.mxu0
  %v4222 = vadd.f32 %v3982, %v4221
  %4223 = vmatmul.bf16.gmra.mxu0 %v3938
  %v4224 = vpop.f32.mrf.mxu0
  %v4225 = vadd.f32 %v3982, %v4224
  %v4226 = vpop.f32.mrf.mxu0
  %v4227 = vadd.f32 %v3982, %v4226
  %4228 = vmatmul.bf16.gmra.mxu0 %v3940
  %v4229 = vpop.f32.mrf.mxu0
  %v4230 = vadd.f32 %v3982, %v4229
  %v4231 = vpop.f32.mrf.mxu0
  %v4232 = vadd.f32 %v3982, %v4231
  %4233 = vmatmul.bf16.gmra.mxu0 %v3942
  %v4234 = vpop.f32.mrf.mxu0
  %v4235 = vadd.f32 %v3982, %v4234
  %v4236 = vpop.f32.mrf.mxu0
  %v4237 = vadd.f32 %v3982, %v4236
  %4238 = vmatmul.bf16.gmra.mxu0 %v3944
  %v4239 = vpop.f32.mrf.mxu0
  %v4240 = vadd.f32 %v3982, %v4239
  %v4241 = vpop.f32.mrf.mxu0
  %v4242 = vadd.f32 %v3982, %v4241
  %4243 = vmatmul.bf16.gmra.mxu0 %v3946
  %v4244 = vpop.f32.mrf.mxu0
  %v4245 = vadd.f32 %v3982, %v4244
  %v4246 = vpop.f32.mrf.mxu0
  %v4247 = vadd.f32 %v3982, %v4246
  %4248 = vdwg.mxu0
  %4249 = vmatpush.bf16.msra.mxu0 %v4063
  %4250 = vmatpush.bf16.msra.mxu0 %v4062
  %4251 = vmatpush.bf16.msra.mxu0 %v4061
  %4252 = vmatpush.bf16.msra.mxu0 %v4060
  %4253 = vmatpush.bf16.msra.mxu0 %v4059
  %4254 = vmatpush.bf16.msra.mxu0 %v4058
  %4255 = vmatpush.bf16.msra.mxu0 %v4057
  %4256 = vmatpush.bf16.msra.mxu0 %v4056
  %4257 = vmatmul.bf16.gmra.mxu0 %v3885
  %v4258 = vpop.f32.mrf.mxu0
  %v4259 = vadd.f32 %v4090, %v4258
  %v4260 = vpop.f32.mrf.mxu0
  %v4261 = vadd.f32 %v4092, %v4260
  %4262 = vmatmul.bf16.gmra.mxu0 %v3887
  %v4263 = vpop.f32.mrf.mxu0
  %v4264 = vadd.f32 %v4095, %v4263
  %v4265 = vpop.f32.mrf.mxu0
  %v4266 = vadd.f32 %v4097, %v4265
  %4267 = vmatmul.bf16.gmra.mxu0 %v3889
  %v4268 = vpop.f32.mrf.mxu0
  %v4269 = vadd.f32 %v4100, %v4268
  %v4270 = vpop.f32.mrf.mxu0
  %v4271 = vadd.f32 %v4102, %v4270
  %4272 = vmatmul.bf16.gmra.mxu0 %v3891
  %v4273 = vpop.f32.mrf.mxu0
  %v4274 = vadd.f32 %v4105, %v4273
  %v4275 = vpop.f32.mrf.mxu0
  %v4276 = vadd.f32 %v4107, %v4275
  %4277 = vmatmul.bf16.gmra.mxu0 %v3893
  %v4278 = vpop.f32.mrf.mxu0
  %v4279 = vadd.f32 %v4110, %v4278
  %v4280 = vpop.f32.mrf.mxu0
  %v4281 = vadd.f32 %v4112, %v4280
  %4282 = vmatmul.bf16.gmra.mxu0 %v3895
  %v4283 = vpop.f32.mrf.mxu0
  %v4284 = vadd.f32 %v4115, %v4283
  %v4285 = vpop.f32.mrf.mxu0
  %v4286 = vadd.f32 %v4117, %v4285
  %4287 = vmatmul.bf16.gmra.mxu0 %v3897
  %v4288 = vpop.f32.mrf.mxu0
  %v4289 = vadd.f32 %v4120, %v4288
  %v4290 = vpop.f32.mrf.mxu0
  %v4291 = vadd.f32 %v4122, %v4290
  %4292 = vmatmul.bf16.gmra.mxu0 %v3899
  %v4293 = vpop.f32.mrf.mxu0
  %v4294 = vadd.f32 %v4125, %v4293
  %v4295 = vpop.f32.mrf.mxu0
  %v4296 = vadd.f32 %v4127, %v4295
  %4297 = vmatmul.bf16.gmra.mxu0 %v3901
  %v4298 = vpop.f32.mrf.mxu0
  %v4299 = vadd.f32 %v4130, %v4298
  %v4300 = vpop.f32.mrf.mxu0
  %v4301 = vadd.f32 %v4132, %v4300
  %4302 = vmatmul.bf16.gmra.mxu0 %v3903
  %v4303 = vpop.f32.mrf.mxu0
  %v4304 = vadd.f32 %v4135, %v4303
  %v4305 = vpop.f32.mrf.mxu0
  %v4306 = vadd.f32 %v4137, %v4305
  %4307 = vmatmul.bf16.gmra.mxu0 %v3905
  %v4308 = vpop.f32.mrf.mxu0
  %v4309 = vadd.f32 %v4140, %v4308
  %v4310 = vpop.f32.mrf.mxu0
  %v4311 = vadd.f32 %v4142, %v4310
  %4312 = vmatmul.bf16.gmra.mxu0 %v3907
  %v4313 = vpop.f32.mrf.mxu0
  %v4314 = vadd.f32 %v4145, %v4313
  %v4315 = vpop.f32.mrf.mxu0
  %v4316 = vadd.f32 %v4147, %v4315
  %4317 = vmatmul.bf16.gmra.mxu0 %v3909
  %v4318 = vpop.f32.mrf.mxu0
  %v4319 = vadd.f32 %v4150, %v4318
  %v4320 = vpop.f32.mrf.mxu0
  %v4321 = vadd.f32 %v4152, %v4320
  %4322 = vmatmul.bf16.gmra.mxu0 %v3911
  %v4323 = vpop.f32.mrf.mxu0
  %v4324 = vadd.f32 %v4155, %v4323
  %v4325 = vpop.f32.mrf.mxu0
  %v4326 = vadd.f32 %v4157, %v4325
  %4327 = vmatmul.bf16.gmra.mxu0 %v3913
  %v4328 = vpop.f32.mrf.mxu0
  %v4329 = vadd.f32 %v4160, %v4328
  %v4330 = vpop.f32.mrf.mxu0
  %v4331 = vadd.f32 %v4162, %v4330
  %4332 = vmatmul.bf16.gmra.mxu0 %v3915
  %v4333 = vpop.f32.mrf.mxu0
  %v4334 = vadd.f32 %v4165, %v4333
  %v4335 = vpop.f32.mrf.mxu0
  %v4336 = vadd.f32 %v4167, %v4335
  %4337 = vmatmul.bf16.gmra.mxu0 %v3917
  %v4338 = vpop.f32.mrf.mxu0
  %v4339 = vadd.f32 %v4170, %v4338
  %v4340 = vpop.f32.mrf.mxu0
  %v4341 = vadd.f32 %v4172, %v4340
  %4342 = vmatmul.bf16.gmra.mxu0 %v3919
  %v4343 = vpop.f32.mrf.mxu0
  %v4344 = vadd.f32 %v4175, %v4343
  %v4345 = vpop.f32.mrf.mxu0
  %v4346 = vadd.f32 %v4177, %v4345
  %4347 = vmatmul.bf16.gmra.mxu0 %v3921
  %v4348 = vpop.f32.mrf.mxu0
  %v4349 = vadd.f32 %v4180, %v4348
  %v4350 = vpop.f32.mrf.mxu0
  %v4351 = vadd.f32 %v4182, %v4350
  %4352 = vmatmul.bf16.gmra.mxu0 %v3923
  %v4353 = vpop.f32.mrf.mxu0
  %v4354 = vadd.f32 %v4185, %v4353
  %v4355 = vpop.f32.mrf.mxu0
  %v4356 = vadd.f32 %v4187, %v4355
  %4357 = vmatmul.bf16.gmra.mxu0 %v3925
  %v4358 = vpop.f32.mrf.mxu0
  %v4359 = vadd.f32 %v4190, %v4358
  %v4360 = vpop.f32.mrf.mxu0
  %v4361 = vadd.f32 %v4192, %v4360
  %4362 = vmatmul.bf16.gmra.mxu0 %v3927
  %v4363 = vpop.f32.mrf.mxu0
  %v4364 = vadd.f32 %v4195, %v4363
  %v4365 = vpop.f32.mrf.mxu0
  %v4366 = vadd.f32 %v4197, %v4365
  %4367 = vmatmul.bf16.gmra.mxu0 %v3929
  %v4368 = vpop.f32.mrf.mxu0
  %v4369 = vadd.f32 %v4200, %v4368
  %v4370 = vpop.f32.mrf.mxu0
  %v4371 = vadd.f32 %v4202, %v4370
  %4372 = vmatmul.bf16.gmra.mxu0 %v3931
  %v4373 = vpop.f32.mrf.mxu0
  %v4374 = vadd.f32 %v4205, %v4373
  %v4375 = vpop.f32.mrf.mxu0
  %v4376 = vadd.f32 %v4207, %v4375
  %4377 = vmatmul.bf16.gmra.mxu0 %v3933
  %v4378 = vpop.f32.mrf.mxu0
  %v4379 = vadd.f32 %v4210, %v4378
  %v4380 = vpop.f32.mrf.mxu0
  %v4381 = vadd.f32 %v4212, %v4380
  %4382 = vmatmul.bf16.gmra.mxu0 %v3935
  %v4383 = vpop.f32.mrf.mxu0
  %v4384 = vadd.f32 %v4215, %v4383
  %v4385 = vpop.f32.mrf.mxu0
  %v4386 = vadd.f32 %v4217, %v4385
  %4387 = vmatmul.bf16.gmra.mxu0 %v3937
  %v4388 = vpop.f32.mrf.mxu0
  %v4389 = vadd.f32 %v4220, %v4388
  %v4390 = vpop.f32.mrf.mxu0
  %v4391 = vadd.f32 %v4222, %v4390
  %4392 = vmatmul.bf16.gmra.mxu0 %v3939
  %v4393 = vpop.f32.mrf.mxu0
  %v4394 = vadd.f32 %v4225, %v4393
  %v4395 = vpop.f32.mrf.mxu0
  %v4396 = vadd.f32 %v4227, %v4395
  %4397 = vmatmul.bf16.gmra.mxu0 %v3941
  %v4398 = vpop.f32.mrf.mxu0
  %v4399 = vadd.f32 %v4230, %v4398
  %v4400 = vpop.f32.mrf.mxu0
  %v4401 = vadd.f32 %v4232, %v4400
  %4402 = vmatmul.bf16.gmra.mxu0 %v3943
  %v4403 = vpop.f32.mrf.mxu0
  %v4404 = vadd.f32 %v4235, %v4403
  %v4405 = vpop.f32.mrf.mxu0
  %v4406 = vadd.f32 %v4237, %v4405
  %4407 = vmatmul.bf16.gmra.mxu0 %v3945
  %v4408 = vpop.f32.mrf.mxu0
  %v4409 = vadd.f32 %v4240, %v4408
  %v4410 = vpop.f32.mrf.mxu0
  %v4411 = vadd.f32 %v4242, %v4410
  %4412 = vmatmul.bf16.gmra.mxu0 %v3947
  %v4413 = vpop.f32.mrf.mxu0
  %v4414 = vadd.f32 %v4245, %v4413
  %v4415 = vpop.f32.mrf.mxu0
  %v4416 = vadd.f32 %v4247, %v4415
  %4417 = vdwg.mxu0
  %vm4418 = vcmask 261120
  %4419 = vst.msk [vmem:[%s5] sm:$0xff] %vm4418, %v4259
  %4420 = vst.msk [vmem:[%s5 + $0x8] sm:$0xff] %vm4418, %v4261
  %4421 = vst.msk [vmem:[%s5 + $0x10] sm:$0xff] %vm4418, %v4264
  %4422 = vst.msk [vmem:[%s5 + $0x18] sm:$0xff] %vm4418, %v4266
  %4423 = vst.msk [vmem:[%s5 + $0x20] sm:$0xff] %vm4418, %v4269
  %4424 = vst.msk [vmem:[%s5 + $0x28] sm:$0xff] %vm4418, %v4271
  %4425 = vst.msk [vmem:[%s5 + $0x30] sm:$0xff] %vm4418, %v4274
  %4426 = vst.msk [vmem:[%s5 + $0x38] sm:$0xff] %vm4418, %v4276
  %4427 = vst.msk [vmem:[%s5 + $0x40] sm:$0xff] %vm4418, %v4279
  %4428 = vst.msk [vmem:[%s5 + $0x48] sm:$0xff] %vm4418, %v4281
  %4429 = vst.msk [vmem:[%s5 + $0x50] sm:$0xff] %vm4418, %v4284
  %4430 = vst.msk [vmem:[%s5 + $0x58] sm:$0xff] %vm4418, %v4286
  %4431 = vst.msk [vmem:[%s5 + $0x60] sm:$0xff] %vm4418, %v4289
  %4432 = vst.msk [vmem:[%s5 + $0x68] sm:$0xff] %vm4418, %v4291
  %4433 = vst.msk [vmem:[%s5 + $0x70] sm:$0xff] %vm4418, %v4294
  %4434 = vst.msk [vmem:[%s5 + $0x78] sm:$0xff] %vm4418, %v4296
  %4435 = vst.msk [vmem:[%s5 + $0x80] sm:$0xff] %vm4418, %v4299
  %4436 = vst.msk [vmem:[%s5 + $0x88] sm:$0xff] %vm4418, %v4301
  %4437 = vst.msk [vmem:[%s5 + $0x90] sm:$0xff] %vm4418, %v4304
  %4438 = vst.msk [vmem:[%s5 + $0x98] sm:$0xff] %vm4418, %v4306
  %4439 = vst.msk [vmem:[%s5 + $0xa0] sm:$0xff] %vm4418, %v4309
  %4440 = vst.msk [vmem:[%s5 + $0xa8] sm:$0xff] %vm4418, %v4311
  %4441 = vst.msk [vmem:[%s5 + $0xb0] sm:$0xff] %vm4418, %v4314
  %4442 = vst.msk [vmem:[%s5 + $0xb8] sm:$0xff] %vm4418, %v4316
  %4443 = vst.msk [vmem:[%s5 + $0xc0] sm:$0xff] %vm4418, %v4319
  %4444 = vst.msk [vmem:[%s5 + $0xc8] sm:$0xff] %vm4418, %v4321
  %4445 = vst.msk [vmem:[%s5 + $0xd0] sm:$0xff] %vm4418, %v4324
  %4446 = vst.msk [vmem:[%s5 + $0xd8] sm:$0xff] %vm4418, %v4326
  %4447 = vst.msk [vmem:[%s5 + $0xe0] sm:$0xff] %vm4418, %v4329
  %4448 = vst.msk [vmem:[%s5 + $0xe8] sm:$0xff] %vm4418, %v4331
  %4449 = vst.msk [vmem:[%s5 + $0xf0] sm:$0xff] %vm4418, %v4334
  %4450 = vst.msk [vmem:[%s5 + $0xf8] sm:$0xff] %vm4418, %v4336
  %4451 = vst.msk [vmem:[%s5 + $0x100] sm:$0xff] %vm4418, %v4339
  %4452 = vst.msk [vmem:[%s5 + $0x108] sm:$0xff] %vm4418, %v4341
  %4453 = vst.msk [vmem:[%s5 + $0x110] sm:$0xff] %vm4418, %v4344
  %4454 = vst.msk [vmem:[%s5 + $0x118] sm:$0xff] %vm4418, %v4346
  %4455 = vst.msk [vmem:[%s5 + $0x120] sm:$0xff] %vm4418, %v4349
  %4456 = vst.msk [vmem:[%s5 + $0x128] sm:$0xff] %vm4418, %v4351
  %4457 = vst.msk [vmem:[%s5 + $0x130] sm:$0xff] %vm4418, %v4354
  %4458 = vst.msk [vmem:[%s5 + $0x138] sm:$0xff] %vm4418, %v4356
  %4459 = vst.msk [vmem:[%s5 + $0x140] sm:$0xff] %vm4418, %v4359
  %4460 = vst.msk [vmem:[%s5 + $0x148] sm:$0xff] %vm4418, %v4361
  %4461 = vst.msk [vmem:[%s5 + $0x150] sm:$0xff] %vm4418, %v4364
  %4462 = vst.msk [vmem:[%s5 + $0x158] sm:$0xff] %vm4418, %v4366
  %4463 = vst.msk [vmem:[%s5 + $0x160] sm:$0xff] %vm4418, %v4369
  %4464 = vst.msk [vmem:[%s5 + $0x168] sm:$0xff] %vm4418, %v4371
  %4465 = vst.msk [vmem:[%s5 + $0x170] sm:$0xff] %vm4418, %v4374
  %4466 = vst.msk [vmem:[%s5 + $0x178] sm:$0xff] %vm4418, %v4376
  %4467 = vst.msk [vmem:[%s5 + $0x180] sm:$0xff] %vm4418, %v4379
  %4468 = vst.msk [vmem:[%s5 + $0x188] sm:$0xff] %vm4418, %v4381
  %4469 = vst.msk [vmem:[%s5 + $0x190] sm:$0xff] %vm4418, %v4384
  %4470 = vst.msk [vmem:[%s5 + $0x198] sm:$0xff] %vm4418, %v4386
  %4471 = vst.msk [vmem:[%s5 + $0x1a0] sm:$0xff] %vm4418, %v4389
  %4472 = vst.msk [vmem:[%s5 + $0x1a8] sm:$0xff] %vm4418, %v4391
  %4473 = vst.msk [vmem:[%s5 + $0x1b0] sm:$0xff] %vm4418, %v4394
  %4474 = vst.msk [vmem:[%s5 + $0x1b8] sm:$0xff] %vm4418, %v4396
  %4475 = vst.msk [vmem:[%s5 + $0x1c0] sm:$0xff] %vm4418, %v4399
  %4476 = vst.msk [vmem:[%s5 + $0x1c8] sm:$0xff] %vm4418, %v4401
  %4477 = vst.msk [vmem:[%s5 + $0x1d0] sm:$0xff] %vm4418, %v4404
  %4478 = vst.msk [vmem:[%s5 + $0x1d8] sm:$0xff] %vm4418, %v4406
  %4479 = vst.msk [vmem:[%s5 + $0x1e0] sm:$0xff] %vm4418, %v4409
  %4480 = vst.msk [vmem:[%s5 + $0x1e8] sm:$0xff] %vm4418, %v4411
  %4481 = vst.msk [vmem:[%s5 + $0x1f0] sm:$0xff] %vm4418, %v4414
  %4482 = vst.msk [vmem:[%s5 + $0x1f8] sm:$0xff] %vm4418, %v4416
  // Predicated region
  $region22: #{ddno_forward.3} parent=0 // pred_check
    _
  $region23: #{ddno_forward.3} parent=0 // pred_check_branch
    %4484 = sbr.rel (0) target = $region25
  $region24: #{ddno_forward.3} parent=0 // pred_region
    _
  $region25: #{ddno_forward.3} parent=0 // pred_fallthru
    _
  // Predicated region
  $region26: #{ddno_forward.3} parent=0 // pred_check
    _
  $region27: #{ddno_forward.3} parent=0 // pred_check_branch
    %4486 = sbr.rel (0) target = $region29
  $region28: #{ddno_forward.3} parent=0 // pred_region
    _
  $region29: #{ddno_forward.3} parent=0 // pred_fallthru
    _

// kernel: ddno_forward.5
$region0: #{ddno_forward.5}
  #allocation0 [shape = 'u32[]', space=smem, size = 0x4, offset = 0x4, fixed_abs, tag = 'smem constant byte address 0x4 - core index']
  #allocation1 [shape = 'u32[72,128]{1,0:T(1,128)}', space=vmem, size = 0x9000, scoped, tag = 'internal scratch']
  %s0 = inlined_call_operand.vmem [shape: f32[512,32], index: 0, kind: input, shape index: {}]
  %s1 = inlined_call_operand.vmem [shape: bf16[32,256], index: 1, kind: input, shape index: {}]
  %s2 = inlined_call_operand.vmem [shape: f32[1,256], index: 2, kind: input, shape index: {}]
  %s3 = inlined_call_operand.vmem [shape: bf16[256,128], index: 3, kind: input, shape index: {}]
  %s4 = inlined_call_operand.vmem [shape: f32[1,128], index: 4, kind: input, shape index: {}]
  %s5 = inlined_call_operand.vmem [shape: f32[512,128], index: 5, kind: output, shape index: {}]
  %s6 = sld [smem:[#allocation0]]
  $region30: #{ddno_forward.5} parent=0
    _
  %s8 = ssub.s32 1, %s6
  %s9 = scalar_select 0, %s8, %s6
  // Predicated region
  $region2: #{ddno_forward.5} parent=0 // pred_check
    _
  $region3: #{ddno_forward.5} parent=0 // pred_check_branch
    %11 = sbr.rel (0) target = $region5
  $region4: #{ddno_forward.5} parent=0 // pred_region
    _
  $region5: #{ddno_forward.5} parent=0 // pred_fallthru
    _
  // Predicated region
  $region6: #{ddno_forward.5} parent=0 // pred_check
    _
  $region7: #{ddno_forward.5} parent=0 // pred_check_branch
    %13 = sbr.rel (0) target = $region9
  $region8: #{ddno_forward.5} parent=0 // pred_region
    _
  $region9: #{ddno_forward.5} parent=0 // pred_fallthru
    _
  // Predicated region
  $region10: #{ddno_forward.5} parent=0 // pred_check
    _
  $region11: #{ddno_forward.5} parent=0 // pred_check_branch
    %15 = sbr.rel (0) target = $region13
  $region12: #{ddno_forward.5} parent=0 // pred_region
    _
  $region13: #{ddno_forward.5} parent=0 // pred_fallthru
    _
  // Predicated region
  $region14: #{ddno_forward.5} parent=0 // pred_check
    _
  $region15: #{ddno_forward.5} parent=0 // pred_check_branch
    %17 = sbr.rel (0) target = $region17
  $region16: #{ddno_forward.5} parent=0 // pred_region
    _
  $region17: #{ddno_forward.5} parent=0 // pred_fallthru
    _
  // Predicated region
  $region18: #{ddno_forward.5} parent=0 // pred_check
    _
  $region19: #{ddno_forward.5} parent=0 // pred_check_branch
    %19 = sbr.rel (0) target = $region21
  $region20: #{ddno_forward.5} parent=0 // pred_region
    _
  $region21: #{ddno_forward.5} parent=0 // pred_fallthru
    _
  %v21 = vld [vmem:[%s0] sm:$0xff]
  %v22 = vld [vmem:[%s0 + $0x8] sm:$0xff]
  %v23 = vld [vmem:[%s0 + $0x10] sm:$0xff]
  %v24 = vld [vmem:[%s0 + $0x18] sm:$0xff]
  %v25 = vld [vmem:[%s0 + $0x20] sm:$0xff]
  %v26 = vld [vmem:[%s0 + $0x28] sm:$0xff]
  %v27 = vld [vmem:[%s0 + $0x30] sm:$0xff]
  %v28 = vld [vmem:[%s0 + $0x38] sm:$0xff]
  %v29 = vld [vmem:[%s0 + $0x40] sm:$0xff]
  %v30 = vld [vmem:[%s0 + $0x48] sm:$0xff]
  %v31 = vld [vmem:[%s0 + $0x50] sm:$0xff]
  %v32 = vld [vmem:[%s0 + $0x58] sm:$0xff]
  %v33 = vld [vmem:[%s0 + $0x60] sm:$0xff]
  %v34 = vld [vmem:[%s0 + $0x68] sm:$0xff]
  %v35 = vld [vmem:[%s0 + $0x70] sm:$0xff]
  %v36 = vld [vmem:[%s0 + $0x78] sm:$0xff]
  %v37 = vld [vmem:[%s0 + $0x80] sm:$0xff]
  %v38 = vld [vmem:[%s0 + $0x88] sm:$0xff]
  %v39 = vld [vmem:[%s0 + $0x90] sm:$0xff]
  %v40 = vld [vmem:[%s0 + $0x98] sm:$0xff]
  %v41 = vld [vmem:[%s0 + $0xa0] sm:$0xff]
  %v42 = vld [vmem:[%s0 + $0xa8] sm:$0xff]
  %v43 = vld [vmem:[%s0 + $0xb0] sm:$0xff]
  %v44 = vld [vmem:[%s0 + $0xb8] sm:$0xff]
  %v45 = vld [vmem:[%s0 + $0xc0] sm:$0xff]
  %v46 = vld [vmem:[%s0 + $0xc8] sm:$0xff]
  %v47 = vld [vmem:[%s0 + $0xd0] sm:$0xff]
  %v48 = vld [vmem:[%s0 + $0xd8] sm:$0xff]
  %v49 = vld [vmem:[%s0 + $0xe0] sm:$0xff]
  %v50 = vld [vmem:[%s0 + $0xe8] sm:$0xff]
  %v51 = vld [vmem:[%s0 + $0xf0] sm:$0xff]
  %v52 = vld [vmem:[%s0 + $0xf8] sm:$0xff]
  %v53 = vld [vmem:[%s0 + $0x100] sm:$0xff]
  %v54 = vld [vmem:[%s0 + $0x108] sm:$0xff]
  %v55 = vld [vmem:[%s0 + $0x110] sm:$0xff]
  %v56 = vld [vmem:[%s0 + $0x118] sm:$0xff]
  %v57 = vld [vmem:[%s0 + $0x120] sm:$0xff]
  %v58 = vld [vmem:[%s0 + $0x128] sm:$0xff]
  %v59 = vld [vmem:[%s0 + $0x130] sm:$0xff]
  %v60 = vld [vmem:[%s0 + $0x138] sm:$0xff]
  %v61 = vld [vmem:[%s0 + $0x140] sm:$0xff]
  %v62 = vld [vmem:[%s0 + $0x148] sm:$0xff]
  %v63 = vld [vmem:[%s0 + $0x150] sm:$0xff]
  %v64 = vld [vmem:[%s0 + $0x158] sm:$0xff]
  %v65 = vld [vmem:[%s0 + $0x160] sm:$0xff]
  %v66 = vld [vmem:[%s0 + $0x168] sm:$0xff]
  %v67 = vld [vmem:[%s0 + $0x170] sm:$0xff]
  %v68 = vld [vmem:[%s0 + $0x178] sm:$0xff]
  %v69 = vld [vmem:[%s0 + $0x180] sm:$0xff]
  %v70 = vld [vmem:[%s0 + $0x188] sm:$0xff]
  %v71 = vld [vmem:[%s0 + $0x190] sm:$0xff]
  %v72 = vld [vmem:[%s0 + $0x198] sm:$0xff]
  %v73 = vld [vmem:[%s0 + $0x1a0] sm:$0xff]
  %v74 = vld [vmem:[%s0 + $0x1a8] sm:$0xff]
  %v75 = vld [vmem:[%s0 + $0x1b0] sm:$0xff]
  %v76 = vld [vmem:[%s0 + $0x1b8] sm:$0xff]
  %v77 = vld [vmem:[%s0 + $0x1c0] sm:$0xff]
  %v78 = vld [vmem:[%s0 + $0x1c8] sm:$0xff]
  %v79 = vld [vmem:[%s0 + $0x1d0] sm:$0xff]
  %v80 = vld [vmem:[%s0 + $0x1d8] sm:$0xff]
  %v81 = vld [vmem:[%s0 + $0x1e0] sm:$0xff]
  %v82 = vld [vmem:[%s0 + $0x1e8] sm:$0xff]
  %v83 = vld [vmem:[%s0 + $0x1f0] sm:$0xff]
  %v84 = vld [vmem:[%s0 + $0x1f8] sm:$0xff]
  %v85 = vpack.c.bf16 %v22, %v21
  %v86 = vpack.c.bf16 %v24, %v23
  %v87 = vpack.c.bf16 %v26, %v25
  %v88 = vpack.c.bf16 %v28, %v27
  %v89 = vpack.c.bf16 %v30, %v29
  %v90 = vpack.c.bf16 %v32, %v31
  %v91 = vpack.c.bf16 %v34, %v33
  %v92 = vpack.c.bf16 %v36, %v35
  %v93 = vpack.c.bf16 %v38, %v37
  %v94 = vpack.c.bf16 %v40, %v39
  %v95 = vpack.c.bf16 %v42, %v41
  %v96 = vpack.c.bf16 %v44, %v43
  %v97 = vpack.c.bf16 %v46, %v45
  %v98 = vpack.c.bf16 %v48, %v47
  %v99 = vpack.c.bf16 %v50, %v49
  %v100 = vpack.c.bf16 %v52, %v51
  %v101 = vpack.c.bf16 %v54, %v53
  %v102 = vpack.c.bf16 %v56, %v55
  %v103 = vpack.c.bf16 %v58, %v57
  %v104 = vpack.c.bf16 %v60, %v59
  %v105 = vpack.c.bf16 %v62, %v61
  %v106 = vpack.c.bf16 %v64, %v63
  %v107 = vpack.c.bf16 %v66, %v65
  %v108 = vpack.c.bf16 %v68, %v67
  %v109 = vpack.c.bf16 %v70, %v69
  %v110 = vpack.c.bf16 %v72, %v71
  %v111 = vpack.c.bf16 %v74, %v73
  %v112 = vpack.c.bf16 %v76, %v75
  %v113 = vpack.c.bf16 %v78, %v77
  %v114 = vpack.c.bf16 %v80, %v79
  %v115 = vpack.c.bf16 %v82, %v81
  %v116 = vpack.c.bf16 %v84, %v83
  %v117 = vld [vmem:[%s1] sm:$0xff]
  %v118 = vld [vmem:[%s1 + $0x8] sm:$0xff]
  %v119 = vld [vmem:[%s1 + $0x10] sm:$0xff]
  %v120 = vld [vmem:[%s1 + $0x18] sm:$0xff]
  %v121 = vld [vmem:[%s2] sm:$0x3]
  %v123 = vperm.slane %v121, 0
  %v124 = vperm.slane %v121, 1
  %v131 = vunpack.c.l.b16 %v117
  %v132 = vunpack.c.h.b16 %v117
  %v133 = vunpack.c.l.b16 %v118
  %v134 = vunpack.c.h.b16 %v118
  %v135 = vunpack.c.l.b16 %v119
  %v136 = vunpack.c.h.b16 %v119
  %v137 = vunpack.c.l.b16 %v120
  %v138 = vunpack.c.h.b16 %v120
  %v139 = vpack.c.b16 %v133, %v131
  %v140 = vpack.c.b16 %v134, %v132
  %v141 = vpack.c.b16 %v137, %v135
  %v142 = vpack.c.b16 %v138, %v136
  %vm147 = vcmask 261120
  %v149 = vsel %vm147, %v85, 0
  %v152 = vsel %vm147, %v86, 0
  %v155 = vsel %vm147, %v87, 0
  %v158 = vsel %vm147, %v88, 0
  %v161 = vsel %vm147, %v89, 0
  %v164 = vsel %vm147, %v90, 0
  %v167 = vsel %vm147, %v91, 0
  %v170 = vsel %vm147, %v92, 0
  %v173 = vsel %vm147, %v93, 0
  %v176 = vsel %vm147, %v94, 0
  %v179 = vsel %vm147, %v95, 0
  %v182 = vsel %vm147, %v96, 0
  %v185 = vsel %vm147, %v97, 0
  %v188 = vsel %vm147, %v98, 0
  %v191 = vsel %vm147, %v99, 0
  %v194 = vsel %vm147, %v100, 0
  %v197 = vsel %vm147, %v101, 0
  %v200 = vsel %vm147, %v102, 0
  %v203 = vsel %vm147, %v103, 0
  %v206 = vsel %vm147, %v104, 0
  %v209 = vsel %vm147, %v105, 0
  %v212 = vsel %vm147, %v106, 0
  %v215 = vsel %vm147, %v107, 0
  %v218 = vsel %vm147, %v108, 0
  %v221 = vsel %vm147, %v109, 0
  %v224 = vsel %vm147, %v110, 0
  %v227 = vsel %vm147, %v111, 0
  %v230 = vsel %vm147, %v112, 0
  %v233 = vsel %vm147, %v113, 0
  %v236 = vsel %vm147, %v114, 0
  %v239 = vsel %vm147, %v115, 0
  %v242 = vsel %vm147, %v116, 0
  %244 = vmatpush.bf16.msra.mxu0 0
  %245 = vmatpush.bf16.msra.mxu0 0
  %246 = vmatpush.bf16.msra.mxu0 0
  %247 = vmatpush.bf16.msra.mxu0 0
  %248 = vmatpush.bf16.msra.mxu0 0
  %249 = vmatpush.bf16.msra.mxu0 0
  %250 = vmatpush.bf16.msra.mxu0 %v141
  %251 = vmatpush.bf16.msra.mxu0 %v139
  %252 = vmatmul.bf16.gmra.mxu0 %v149
  %v253 = vpop.f32.mrf.mxu0
  %v254 = vadd.f32 %v123, %v253
  %v255 = vpop.f32.mrf.mxu0
  %v256 = vadd.f32 %v123, %v255
  %257 = vmatmul.bf16.gmra.mxu0 %v152
  %v258 = vpop.f32.mrf.mxu0
  %v259 = vadd.f32 %v123, %v258
  %v260 = vpop.f32.mrf.mxu0
  %v261 = vadd.f32 %v123, %v260
  %262 = vmatmul.bf16.gmra.mxu0 %v155
  %v263 = vpop.f32.mrf.mxu0
  %v264 = vadd.f32 %v123, %v263
  %v265 = vpop.f32.mrf.mxu0
  %v266 = vadd.f32 %v123, %v265
  %267 = vmatmul.bf16.gmra.mxu0 %v158
  %v268 = vpop.f32.mrf.mxu0
  %v269 = vadd.f32 %v123, %v268
  %v270 = vpop.f32.mrf.mxu0
  %v271 = vadd.f32 %v123, %v270
  %272 = vmatmul.bf16.gmra.mxu0 %v161
  %v273 = vpop.f32.mrf.mxu0
  %v274 = vadd.f32 %v123, %v273
  %v275 = vpop.f32.mrf.mxu0
  %v276 = vadd.f32 %v123, %v275
  %277 = vmatmul.bf16.gmra.mxu0 %v164
  %v278 = vpop.f32.mrf.mxu0
  %v279 = vadd.f32 %v123, %v278
  %v280 = vpop.f32.mrf.mxu0
  %v281 = vadd.f32 %v123, %v280
  %282 = vmatmul.bf16.gmra.mxu0 %v167
  %v283 = vpop.f32.mrf.mxu0
  %v284 = vadd.f32 %v123, %v283
  %v285 = vpop.f32.mrf.mxu0
  %v286 = vadd.f32 %v123, %v285
  %287 = vmatmul.bf16.gmra.mxu0 %v170
  %v288 = vpop.f32.mrf.mxu0
  %v289 = vadd.f32 %v123, %v288
  %v290 = vpop.f32.mrf.mxu0
  %v291 = vadd.f32 %v123, %v290
  %292 = vmatmul.bf16.gmra.mxu0 %v173
  %v293 = vpop.f32.mrf.mxu0
  %v294 = vadd.f32 %v123, %v293
  %v295 = vpop.f32.mrf.mxu0
  %v296 = vadd.f32 %v123, %v295
  %297 = vmatmul.bf16.gmra.mxu0 %v176
  %v298 = vpop.f32.mrf.mxu0
  %v299 = vadd.f32 %v123, %v298
  %v300 = vpop.f32.mrf.mxu0
  %v301 = vadd.f32 %v123, %v300
  %302 = vmatmul.bf16.gmra.mxu0 %v179
  %v303 = vpop.f32.mrf.mxu0
  %v304 = vadd.f32 %v123, %v303
  %v305 = vpop.f32.mrf.mxu0
  %v306 = vadd.f32 %v123, %v305
  %307 = vmatmul.bf16.gmra.mxu0 %v182
  %v308 = vpop.f32.mrf.mxu0
  %v309 = vadd.f32 %v123, %v308
  %v310 = vpop.f32.mrf.mxu0
  %v311 = vadd.f32 %v123, %v310
  %312 = vmatmul.bf16.gmra.mxu0 %v185
  %v313 = vpop.f32.mrf.mxu0
  %v314 = vadd.f32 %v123, %v313
  %v315 = vpop.f32.mrf.mxu0
  %v316 = vadd.f32 %v123, %v315
  %317 = vmatmul.bf16.gmra.mxu0 %v188
  %v318 = vpop.f32.mrf.mxu0
  %v319 = vadd.f32 %v123, %v318
  %v320 = vpop.f32.mrf.mxu0
  %v321 = vadd.f32 %v123, %v320
  %322 = vmatmul.bf16.gmra.mxu0 %v191
  %v323 = vpop.f32.mrf.mxu0
  %v324 = vadd.f32 %v123, %v323
  %v325 = vpop.f32.mrf.mxu0
  %v326 = vadd.f32 %v123, %v325
  %327 = vmatmul.bf16.gmra.mxu0 %v194
  %v328 = vpop.f32.mrf.mxu0
  %v329 = vadd.f32 %v123, %v328
  %v330 = vpop.f32.mrf.mxu0
  %v331 = vadd.f32 %v123, %v330
  %332 = vmatmul.bf16.gmra.mxu0 %v197
  %v333 = vpop.f32.mrf.mxu0
  %v334 = vadd.f32 %v123, %v333
  %v335 = vpop.f32.mrf.mxu0
  %v336 = vadd.f32 %v123, %v335
  %337 = vmatmul.bf16.gmra.mxu0 %v200
  %v338 = vpop.f32.mrf.mxu0
  %v339 = vadd.f32 %v123, %v338
  %v340 = vpop.f32.mrf.mxu0
  %v341 = vadd.f32 %v123, %v340
  %342 = vmatmul.bf16.gmra.mxu0 %v203
  %v343 = vpop.f32.mrf.mxu0
  %v344 = vadd.f32 %v123, %v343
  %v345 = vpop.f32.mrf.mxu0
  %v346 = vadd.f32 %v123, %v345
  %347 = vmatmul.bf16.gmra.mxu0 %v206
  %v348 = vpop.f32.mrf.mxu0
  %v349 = vadd.f32 %v123, %v348
  %v350 = vpop.f32.mrf.mxu0
  %v351 = vadd.f32 %v123, %v350
  %352 = vmatmul.bf16.gmra.mxu0 %v209
  %v353 = vpop.f32.mrf.mxu0
  %v354 = vadd.f32 %v123, %v353
  %v355 = vpop.f32.mrf.mxu0
  %v356 = vadd.f32 %v123, %v355
  %357 = vmatmul.bf16.gmra.mxu0 %v212
  %v358 = vpop.f32.mrf.mxu0
  %v359 = vadd.f32 %v123, %v358
  %v360 = vpop.f32.mrf.mxu0
  %v361 = vadd.f32 %v123, %v360
  %362 = vmatmul.bf16.gmra.mxu0 %v215
  %v363 = vpop.f32.mrf.mxu0
  %v364 = vadd.f32 %v123, %v363
  %v365 = vpop.f32.mrf.mxu0
  %v366 = vadd.f32 %v123, %v365
  %367 = vmatmul.bf16.gmra.mxu0 %v218
  %v368 = vpop.f32.mrf.mxu0
  %v369 = vadd.f32 %v123, %v368
  %v370 = vpop.f32.mrf.mxu0
  %v371 = vadd.f32 %v123, %v370
  %372 = vmatmul.bf16.gmra.mxu0 %v221
  %v373 = vpop.f32.mrf.mxu0
  %v374 = vadd.f32 %v123, %v373
  %v375 = vpop.f32.mrf.mxu0
  %v376 = vadd.f32 %v123, %v375
  %377 = vmatmul.bf16.gmra.mxu0 %v224
  %v378 = vpop.f32.mrf.mxu0
  %v379 = vadd.f32 %v123, %v378
  %v380 = vpop.f32.mrf.mxu0
  %v381 = vadd.f32 %v123, %v380
  %382 = vmatmul.bf16.gmra.mxu0 %v227
  %v383 = vpop.f32.mrf.mxu0
  %v384 = vadd.f32 %v123, %v383
  %v385 = vpop.f32.mrf.mxu0
  %v386 = vadd.f32 %v123, %v385
  %387 = vmatmul.bf16.gmra.mxu0 %v230
  %v388 = vpop.f32.mrf.mxu0
  %v389 = vadd.f32 %v123, %v388
  %v390 = vpop.f32.mrf.mxu0
  %v391 = vadd.f32 %v123, %v390
  %392 = vmatmul.bf16.gmra.mxu0 %v233
  %v393 = vpop.f32.mrf.mxu0
  %v394 = vadd.f32 %v123, %v393
  %v395 = vpop.f32.mrf.mxu0
  %v396 = vadd.f32 %v123, %v395
  %397 = vmatmul.bf16.gmra.mxu0 %v236
  %v398 = vpop.f32.mrf.mxu0
  %v399 = vadd.f32 %v123, %v398
  %v400 = vpop.f32.mrf.mxu0
  %v401 = vadd.f32 %v123, %v400
  %402 = vmatmul.bf16.gmra.mxu0 %v239
  %v403 = vpop.f32.mrf.mxu0
  %v404 = vadd.f32 %v123, %v403
  %v405 = vpop.f32.mrf.mxu0
  %v406 = vadd.f32 %v123, %v405
  %407 = vmatmul.bf16.gmra.mxu0 %v242
  %v408 = vpop.f32.mrf.mxu0
  %v409 = vadd.f32 %v123, %v408
  %v410 = vpop.f32.mrf.mxu0
  %v411 = vadd.f32 %v123, %v410
  %412 = vdwg.mxu0
  %413 = vmatpush.bf16.msra.mxu0 0
  %414 = vmatpush.bf16.msra.mxu0 0
  %415 = vmatpush.bf16.msra.mxu0 0
  %416 = vmatpush.bf16.msra.mxu0 0
  %417 = vmatpush.bf16.msra.mxu0 0
  %418 = vmatpush.bf16.msra.mxu0 0
  %419 = vmatpush.bf16.msra.mxu0 %v142
  %420 = vmatpush.bf16.msra.mxu0 %v140
  %421 = vmatmul.bf16.gmra.mxu0 %v149
  %v422 = vpop.f32.mrf.mxu0
  %v423 = vadd.f32 %v124, %v422
  %v424 = vpop.f32.mrf.mxu0
  %v425 = vadd.f32 %v124, %v424
  %426 = vmatmul.bf16.gmra.mxu0 %v152
  %v427 = vpop.f32.mrf.mxu0
  %v428 = vadd.f32 %v124, %v427
  %v429 = vpop.f32.mrf.mxu0
  %v430 = vadd.f32 %v124, %v429
  %431 = vmatmul.bf16.gmra.mxu0 %v155
  %v432 = vpop.f32.mrf.mxu0
  %v433 = vadd.f32 %v124, %v432
  %v434 = vpop.f32.mrf.mxu0
  %v435 = vadd.f32 %v124, %v434
  %436 = vmatmul.bf16.gmra.mxu0 %v158
  %v437 = vpop.f32.mrf.mxu0
  %v438 = vadd.f32 %v124, %v437
  %v439 = vpop.f32.mrf.mxu0
  %v440 = vadd.f32 %v124, %v439
  %441 = vmatmul.bf16.gmra.mxu0 %v161
  %v442 = vpop.f32.mrf.mxu0
  %v443 = vadd.f32 %v124, %v442
  %v444 = vpop.f32.mrf.mxu0
  %v445 = vadd.f32 %v124, %v444
  %446 = vmatmul.bf16.gmra.mxu0 %v164
  %v447 = vpop.f32.mrf.mxu0
  %v448 = vadd.f32 %v124, %v447
  %v449 = vpop.f32.mrf.mxu0
  %v450 = vadd.f32 %v124, %v449
  %451 = vmatmul.bf16.gmra.mxu0 %v167
  %v452 = vpop.f32.mrf.mxu0
  %v453 = vadd.f32 %v124, %v452
  %v454 = vpop.f32.mrf.mxu0
  %v455 = vadd.f32 %v124, %v454
  %456 = vmatmul.bf16.gmra.mxu0 %v170
  %v457 = vpop.f32.mrf.mxu0
  %v458 = vadd.f32 %v124, %v457
  %v459 = vpop.f32.mrf.mxu0
  %v460 = vadd.f32 %v124, %v459
  %461 = vmatmul.bf16.gmra.mxu0 %v173
  %v462 = vpop.f32.mrf.mxu0
  %v463 = vadd.f32 %v124, %v462
  %v464 = vpop.f32.mrf.mxu0
  %v465 = vadd.f32 %v124, %v464
  %466 = vmatmul.bf16.gmra.mxu0 %v176
  %v467 = vpop.f32.mrf.mxu0
  %v468 = vadd.f32 %v124, %v467
  %v469 = vpop.f32.mrf.mxu0
  %v470 = vadd.f32 %v124, %v469
  %471 = vmatmul.bf16.gmra.mxu0 %v179
  %v472 = vpop.f32.mrf.mxu0
  %v473 = vadd.f32 %v124, %v472
  %v474 = vpop.f32.mrf.mxu0
  %v475 = vadd.f32 %v124, %v474
  %476 = vmatmul.bf16.gmra.mxu0 %v182
  %v477 = vpop.f32.mrf.mxu0
  %v478 = vadd.f32 %v124, %v477
  %v479 = vpop.f32.mrf.mxu0
  %v480 = vadd.f32 %v124, %v479
  %481 = vmatmul.bf16.gmra.mxu0 %v185
  %v482 = vpop.f32.mrf.mxu0
  %v483 = vadd.f32 %v124, %v482
  %v484 = vpop.f32.mrf.mxu0
  %v485 = vadd.f32 %v124, %v484
  %486 = vmatmul.bf16.gmra.mxu0 %v188
  %v487 = vpop.f32.mrf.mxu0
  %v488 = vadd.f32 %v124, %v487
  %v489 = vpop.f32.mrf.mxu0
  %v490 = vadd.f32 %v124, %v489
  %491 = vmatmul.bf16.gmra.mxu0 %v191
  %v492 = vpop.f32.mrf.mxu0
  %v493 = vadd.f32 %v124, %v492
  %v494 = vpop.f32.mrf.mxu0
  %v495 = vadd.f32 %v124, %v494
  %496 = vmatmul.bf16.gmra.mxu0 %v194
  %v497 = vpop.f32.mrf.mxu0
  %v498 = vadd.f32 %v124, %v497
  %v499 = vpop.f32.mrf.mxu0
  %v500 = vadd.f32 %v124, %v499
  %501 = vmatmul.bf16.gmra.mxu0 %v197
  %v502 = vpop.f32.mrf.mxu0
  %v503 = vadd.f32 %v124, %v502
  %v504 = vpop.f32.mrf.mxu0
  %v505 = vadd.f32 %v124, %v504
  %506 = vmatmul.bf16.gmra.mxu0 %v200
  %v507 = vpop.f32.mrf.mxu0
  %v508 = vadd.f32 %v124, %v507
  %v509 = vpop.f32.mrf.mxu0
  %v510 = vadd.f32 %v124, %v509
  %511 = vmatmul.bf16.gmra.mxu0 %v203
  %v512 = vpop.f32.mrf.mxu0
  %v513 = vadd.f32 %v124, %v512
  %v514 = vpop.f32.mrf.mxu0
  %v515 = vadd.f32 %v124, %v514
  %516 = vmatmul.bf16.gmra.mxu0 %v206
  %v517 = vpop.f32.mrf.mxu0
  %v518 = vadd.f32 %v124, %v517
  %v519 = vpop.f32.mrf.mxu0
  %v520 = vadd.f32 %v124, %v519
  %521 = vmatmul.bf16.gmra.mxu0 %v209
  %v522 = vpop.f32.mrf.mxu0
  %v523 = vadd.f32 %v124, %v522
  %v524 = vpop.f32.mrf.mxu0
  %v525 = vadd.f32 %v124, %v524
  %526 = vmatmul.bf16.gmra.mxu0 %v212
  %v527 = vpop.f32.mrf.mxu0
  %v528 = vadd.f32 %v124, %v527
  %v529 = vpop.f32.mrf.mxu0
  %v530 = vadd.f32 %v124, %v529
  %531 = vmatmul.bf16.gmra.mxu0 %v215
  %v532 = vpop.f32.mrf.mxu0
  %v533 = vadd.f32 %v124, %v532
  %v534 = vpop.f32.mrf.mxu0
  %v535 = vadd.f32 %v124, %v534
  %536 = vmatmul.bf16.gmra.mxu0 %v218
  %v537 = vpop.f32.mrf.mxu0
  %v538 = vadd.f32 %v124, %v537
  %v539 = vpop.f32.mrf.mxu0
  %v540 = vadd.f32 %v124, %v539
  %541 = vmatmul.bf16.gmra.mxu0 %v221
  %v542 = vpop.f32.mrf.mxu0
  %v543 = vadd.f32 %v124, %v542
  %v544 = vpop.f32.mrf.mxu0
  %v545 = vadd.f32 %v124, %v544
  %546 = vmatmul.bf16.gmra.mxu0 %v224
  %v547 = vpop.f32.mrf.mxu0
  %v548 = vadd.f32 %v124, %v547
  %v549 = vpop.f32.mrf.mxu0
  %v550 = vadd.f32 %v124, %v549
  %551 = vmatmul.bf16.gmra.mxu0 %v227
  %v552 = vpop.f32.mrf.mxu0
  %v553 = vadd.f32 %v124, %v552
  %v554 = vpop.f32.mrf.mxu0
  %v555 = vadd.f32 %v124, %v554
  %556 = vmatmul.bf16.gmra.mxu0 %v230
  %v557 = vpop.f32.mrf.mxu0
  %v558 = vadd.f32 %v124, %v557
  %v559 = vpop.f32.mrf.mxu0
  %v560 = vadd.f32 %v124, %v559
  %561 = vmatmul.bf16.gmra.mxu0 %v233
  %v562 = vpop.f32.mrf.mxu0
  %v563 = vadd.f32 %v124, %v562
  %v564 = vpop.f32.mrf.mxu0
  %v565 = vadd.f32 %v124, %v564
  %566 = vmatmul.bf16.gmra.mxu0 %v236
  %v567 = vpop.f32.mrf.mxu0
  %v568 = vadd.f32 %v124, %v567
  %v569 = vpop.f32.mrf.mxu0
  %v570 = vadd.f32 %v124, %v569
  %571 = vmatmul.bf16.gmra.mxu0 %v239
  %v572 = vpop.f32.mrf.mxu0
  %v573 = vadd.f32 %v124, %v572
  %v574 = vpop.f32.mrf.mxu0
  %v575 = vadd.f32 %v124, %v574
  %576 = vmatmul.bf16.gmra.mxu0 %v242
  %v577 = vpop.f32.mrf.mxu0
  %v578 = vadd.f32 %v124, %v577
  %v579 = vpop.f32.mrf.mxu0
  %v580 = vadd.f32 %v124, %v579
  %581 = vdwg.mxu0
  %v582 = vmul.f32 %v254, 0.5
  %v583 = vmul.f32 %v423, 0.5
  %v584 = vmul.f32 %v256, 0.5
  %v585 = vmul.f32 %v425, 0.5
  %v586 = vmul.f32 %v259, 0.5
  %v587 = vmul.f32 %v428, 0.5
  %v588 = vmul.f32 %v261, 0.5
  %v589 = vmul.f32 %v430, 0.5
  %v590 = vmul.f32 %v264, 0.5
  %v591 = vmul.f32 %v433, 0.5
  %v592 = vmul.f32 %v266, 0.5
  %v593 = vmul.f32 %v435, 0.5
  %v594 = vmul.f32 %v269, 0.5
  %v595 = vmul.f32 %v438, 0.5
  %v596 = vmul.f32 %v271, 0.5
  %v597 = vmul.f32 %v440, 0.5
  %v598 = vmul.f32 %v274, 0.5
  %v599 = vmul.f32 %v443, 0.5
  %v600 = vmul.f32 %v276, 0.5
  %v601 = vmul.f32 %v445, 0.5
  %v602 = vmul.f32 %v279, 0.5
  %v603 = vmul.f32 %v448, 0.5
  %v604 = vmul.f32 %v281, 0.5
  %v605 = vmul.f32 %v450, 0.5
  %v606 = vmul.f32 %v284, 0.5
  %v607 = vmul.f32 %v453, 0.5
  %v608 = vmul.f32 %v286, 0.5
  %v609 = vmul.f32 %v455, 0.5
  %v610 = vmul.f32 %v289, 0.5
  %v611 = vmul.f32 %v458, 0.5
  %v612 = vmul.f32 %v291, 0.5
  %v613 = vmul.f32 %v460, 0.5
  %v614 = vmul.f32 %v294, 0.5
  %v615 = vmul.f32 %v463, 0.5
  %v616 = vmul.f32 %v296, 0.5
  %v617 = vmul.f32 %v465, 0.5
  %v618 = vmul.f32 %v299, 0.5
  %v619 = vmul.f32 %v468, 0.5
  %v620 = vmul.f32 %v301, 0.5
  %v621 = vmul.f32 %v470, 0.5
  %v622 = vmul.f32 %v304, 0.5
  %v623 = vmul.f32 %v473, 0.5
  %v624 = vmul.f32 %v306, 0.5
  %v625 = vmul.f32 %v475, 0.5
  %v626 = vmul.f32 %v309, 0.5
  %v627 = vmul.f32 %v478, 0.5
  %v628 = vmul.f32 %v311, 0.5
  %v629 = vmul.f32 %v480, 0.5
  %v630 = vmul.f32 %v314, 0.5
  %v631 = vmul.f32 %v483, 0.5
  %v632 = vmul.f32 %v316, 0.5
  %v633 = vmul.f32 %v485, 0.5
  %v634 = vmul.f32 %v319, 0.5
  %v635 = vmul.f32 %v488, 0.5
  %v636 = vmul.f32 %v321, 0.5
  %v637 = vmul.f32 %v490, 0.5
  %v638 = vmul.f32 %v324, 0.5
  %v639 = vmul.f32 %v493, 0.5
  %v640 = vmul.f32 %v326, 0.5
  %v641 = vmul.f32 %v495, 0.5
  %v642 = vmul.f32 %v329, 0.5
  %v643 = vmul.f32 %v498, 0.5
  %v644 = vmul.f32 %v331, 0.5
  %v645 = vmul.f32 %v500, 0.5
  %v646 = vmul.f32 %v334, 0.5
  %v647 = vmul.f32 %v503, 0.5
  %v648 = vmul.f32 %v336, 0.5
  %v649 = vmul.f32 %v505, 0.5
  %v650 = vmul.f32 %v339, 0.5
  %v651 = vmul.f32 %v508, 0.5
  %v652 = vmul.f32 %v341, 0.5
  %v653 = vmul.f32 %v510, 0.5
  %v654 = vmul.f32 %v344, 0.5
  %v655 = vmul.f32 %v513, 0.5
  %v656 = vmul.f32 %v346, 0.5
  %v657 = vmul.f32 %v515, 0.5
  %v658 = vmul.f32 %v349, 0.5
  %v659 = vmul.f32 %v518, 0.5
  %v660 = vmul.f32 %v351, 0.5
  %v661 = vmul.f32 %v520, 0.5
  %v662 = vmul.f32 %v354, 0.5
  %v663 = vmul.f32 %v523, 0.5
  %v664 = vmul.f32 %v356, 0.5
  %v665 = vmul.f32 %v525, 0.5
  %v666 = vmul.f32 %v359, 0.5
  %v667 = vmul.f32 %v528, 0.5
  %v668 = vmul.f32 %v361, 0.5
  %v669 = vmul.f32 %v530, 0.5
  %v670 = vmul.f32 %v364, 0.5
  %v671 = vmul.f32 %v533, 0.5
  %v672 = vmul.f32 %v366, 0.5
  %v673 = vmul.f32 %v535, 0.5
  %v674 = vmul.f32 %v369, 0.5
  %v675 = vmul.f32 %v538, 0.5
  %v676 = vmul.f32 %v371, 0.5
  %v677 = vmul.f32 %v540, 0.5
  %v678 = vmul.f32 %v374, 0.5
  %v679 = vmul.f32 %v543, 0.5
  %v680 = vmul.f32 %v376, 0.5
  %v681 = vmul.f32 %v545, 0.5
  %v682 = vmul.f32 %v379, 0.5
  %v683 = vmul.f32 %v548, 0.5
  %v684 = vmul.f32 %v381, 0.5
  %v685 = vmul.f32 %v550, 0.5
  %v686 = vmul.f32 %v384, 0.5
  %v687 = vmul.f32 %v553, 0.5
  %v688 = vmul.f32 %v386, 0.5
  %v689 = vmul.f32 %v555, 0.5
  %v690 = vmul.f32 %v389, 0.5
  %v691 = vmul.f32 %v558, 0.5
  %v692 = vmul.f32 %v391, 0.5
  %v693 = vmul.f32 %v560, 0.5
  %v694 = vmul.f32 %v394, 0.5
  %v695 = vmul.f32 %v563, 0.5
  %v696 = vmul.f32 %v396, 0.5
  %v697 = vmul.f32 %v565, 0.5
  %v698 = vmul.f32 %v399, 0.5
  %v699 = vmul.f32 %v568, 0.5
  %v700 = vmul.f32 %v401, 0.5
  %v701 = vmul.f32 %v570, 0.5
  %v702 = vmul.f32 %v404, 0.5
  %v703 = vmul.f32 %v573, 0.5
  %v704 = vmul.f32 %v406, 0.5
  %v705 = vmul.f32 %v575, 0.5
  %v706 = vmul.f32 %v409, 0.5
  %v707 = vmul.f32 %v578, 0.5
  %v708 = vmul.f32 %v411, 0.5
  %v709 = vmul.f32 %v580, 0.5
  %v710 = vmul.f32 %v254, 0.70710677
  %v711 = vmul.f32 %v423, 0.70710677
  %v712 = vmul.f32 %v256, 0.70710677
  %v713 = vmul.f32 %v425, 0.70710677
  %v714 = vmul.f32 %v259, 0.70710677
  %v715 = vmul.f32 %v428, 0.70710677
  %v716 = vmul.f32 %v261, 0.70710677
  %v717 = vmul.f32 %v430, 0.70710677
  %v718 = vmul.f32 %v264, 0.70710677
  %v719 = vmul.f32 %v433, 0.70710677
  %v720 = vmul.f32 %v266, 0.70710677
  %v721 = vmul.f32 %v435, 0.70710677
  %v722 = vmul.f32 %v269, 0.70710677
  %v723 = vmul.f32 %v438, 0.70710677
  %v724 = vmul.f32 %v271, 0.70710677
  %v725 = vmul.f32 %v440, 0.70710677
  %v726 = vmul.f32 %v274, 0.70710677
  %v727 = vmul.f32 %v443, 0.70710677
  %v728 = vmul.f32 %v276, 0.70710677
  %v729 = vmul.f32 %v445, 0.70710677
  %v730 = vmul.f32 %v279, 0.70710677
  %v731 = vmul.f32 %v448, 0.70710677
  %v732 = vmul.f32 %v281, 0.70710677
  %v733 = vmul.f32 %v450, 0.70710677
  %v734 = vmul.f32 %v284, 0.70710677
  %v735 = vmul.f32 %v453, 0.70710677
  %v736 = vmul.f32 %v286, 0.70710677
  %v737 = vmul.f32 %v455, 0.70710677
  %v738 = vmul.f32 %v289, 0.70710677
  %v739 = vmul.f32 %v458, 0.70710677
  %v740 = vmul.f32 %v291, 0.70710677
  %v741 = vmul.f32 %v460, 0.70710677
  %v742 = vmul.f32 %v294, 0.70710677
  %v743 = vmul.f32 %v463, 0.70710677
  %v744 = vmul.f32 %v296, 0.70710677
  %v745 = vmul.f32 %v465, 0.70710677
  %v746 = vmul.f32 %v299, 0.70710677
  %v747 = vmul.f32 %v468, 0.70710677
  %v748 = vmul.f32 %v301, 0.70710677
  %v749 = vmul.f32 %v470, 0.70710677
  %v750 = vmul.f32 %v304, 0.70710677
  %v751 = vmul.f32 %v473, 0.70710677
  %v752 = vmul.f32 %v306, 0.70710677
  %v753 = vmul.f32 %v475, 0.70710677
  %v754 = vmul.f32 %v309, 0.70710677
  %v755 = vmul.f32 %v478, 0.70710677
  %v756 = vmul.f32 %v311, 0.70710677
  %v757 = vmul.f32 %v480, 0.70710677
  %v758 = vmul.f32 %v314, 0.70710677
  %v759 = vmul.f32 %v483, 0.70710677
  %v760 = vmul.f32 %v316, 0.70710677
  %v761 = vmul.f32 %v485, 0.70710677
  %v762 = vmul.f32 %v319, 0.70710677
  %v763 = vmul.f32 %v488, 0.70710677
  %v764 = vmul.f32 %v321, 0.70710677
  %v765 = vmul.f32 %v490, 0.70710677
  %v766 = vmul.f32 %v324, 0.70710677
  %v767 = vmul.f32 %v493, 0.70710677
  %v768 = vmul.f32 %v326, 0.70710677
  %v769 = vmul.f32 %v495, 0.70710677
  %v770 = vmul.f32 %v329, 0.70710677
  %v771 = vmul.f32 %v498, 0.70710677
  %v772 = vmul.f32 %v331, 0.70710677
  %v773 = vmul.f32 %v500, 0.70710677
  %v774 = vmul.f32 %v334, 0.70710677
  %v775 = vmul.f32 %v503, 0.70710677
  %v776 = vmul.f32 %v336, 0.70710677
  %v777 = vmul.f32 %v505, 0.70710677
  %v778 = vmul.f32 %v339, 0.70710677
  %v779 = vmul.f32 %v508, 0.70710677
  %v780 = vmul.f32 %v341, 0.70710677
  %v781 = vmul.f32 %v510, 0.70710677
  %v782 = vmul.f32 %v344, 0.70710677
  %v783 = vmul.f32 %v513, 0.70710677
  %v784 = vmul.f32 %v346, 0.70710677
  %v785 = vmul.f32 %v515, 0.70710677
  %v786 = vmul.f32 %v349, 0.70710677
  %v787 = vmul.f32 %v518, 0.70710677
  %v788 = vmul.f32 %v351, 0.70710677
  %v789 = vmul.f32 %v520, 0.70710677
  %v790 = vmul.f32 %v354, 0.70710677
  %v791 = vmul.f32 %v523, 0.70710677
  %v792 = vmul.f32 %v356, 0.70710677
  %v793 = vmul.f32 %v525, 0.70710677
  %v794 = vmul.f32 %v359, 0.70710677
  %v795 = vmul.f32 %v528, 0.70710677
  %v796 = vmul.f32 %v361, 0.70710677
  %v797 = vmul.f32 %v530, 0.70710677
  %v798 = vmul.f32 %v364, 0.70710677
  %v799 = vmul.f32 %v533, 0.70710677
  %v800 = vmul.f32 %v366, 0.70710677
  %v801 = vmul.f32 %v535, 0.70710677
  %v802 = vmul.f32 %v369, 0.70710677
  %v803 = vmul.f32 %v538, 0.70710677
  %v804 = vmul.f32 %v371, 0.70710677
  %v805 = vmul.f32 %v540, 0.70710677
  %v806 = vmul.f32 %v374, 0.70710677
  %v807 = vmul.f32 %v543, 0.70710677
  %v808 = vmul.f32 %v376, 0.70710677
  %v809 = vmul.f32 %v545, 0.70710677
  %v810 = vmul.f32 %v379, 0.70710677
  %v811 = vmul.f32 %v548, 0.70710677
  %v812 = vmul.f32 %v381, 0.70710677
  %v813 = vmul.f32 %v550, 0.70710677
  %v814 = vmul.f32 %v384, 0.70710677
  %v815 = vmul.f32 %v553, 0.70710677
  %v816 = vmul.f32 %v386, 0.70710677
  %v817 = vmul.f32 %v555, 0.70710677
  %v818 = vmul.f32 %v389, 0.70710677
  %v819 = vmul.f32 %v558, 0.70710677
  %v820 = vmul.f32 %v391, 0.70710677
  %v821 = vmul.f32 %v560, 0.70710677
  %v822 = vmul.f32 %v394, 0.70710677
  %v823 = vmul.f32 %v563, 0.70710677
  %v824 = vmul.f32 %v396, 0.70710677
  %v825 = vmul.f32 %v565, 0.70710677
  %v826 = vmul.f32 %v399, 0.70710677
  %v827 = vmul.f32 %v568, 0.70710677
  %v828 = vmul.f32 %v401, 0.70710677
  %v829 = vmul.f32 %v570, 0.70710677
  %v830 = vmul.f32 %v404, 0.70710677
  %v831 = vmul.f32 %v573, 0.70710677
  %v832 = vmul.f32 %v406, 0.70710677
  %v833 = vmul.f32 %v575, 0.70710677
  %v834 = vmul.f32 %v409, 0.70710677
  %v835 = vmul.f32 %v578, 0.70710677
  %v836 = vmul.f32 %v411, 0.70710677
  %v837 = vmul.f32 %v580, 0.70710677
  %vm838 = vcmp.ge.f32.partialorder %v710, 0.0
  %vm839 = vcmp.ge.f32.partialorder %v711, 0.0
  %vm840 = vcmp.ge.f32.partialorder %v712, 0.0
  %vm841 = vcmp.ge.f32.partialorder %v713, 0.0
  %vm842 = vcmp.ge.f32.partialorder %v714, 0.0
  %vm843 = vcmp.ge.f32.partialorder %v715, 0.0
  %vm844 = vcmp.ge.f32.partialorder %v716, 0.0
  %vm845 = vcmp.ge.f32.partialorder %v717, 0.0
  %vm846 = vcmp.ge.f32.partialorder %v718, 0.0
  %vm847 = vcmp.ge.f32.partialorder %v719, 0.0
  %vm848 = vcmp.ge.f32.partialorder %v720, 0.0
  %vm849 = vcmp.ge.f32.partialorder %v721, 0.0
  %vm850 = vcmp.ge.f32.partialorder %v722, 0.0
  %vm851 = vcmp.ge.f32.partialorder %v723, 0.0
  %vm852 = vcmp.ge.f32.partialorder %v724, 0.0
  %vm853 = vcmp.ge.f32.partialorder %v725, 0.0
  %vm854 = vcmp.ge.f32.partialorder %v726, 0.0
  %vm855 = vcmp.ge.f32.partialorder %v727, 0.0
  %vm856 = vcmp.ge.f32.partialorder %v728, 0.0
  %vm857 = vcmp.ge.f32.partialorder %v729, 0.0
  %vm858 = vcmp.ge.f32.partialorder %v730, 0.0
  %vm859 = vcmp.ge.f32.partialorder %v731, 0.0
  %vm860 = vcmp.ge.f32.partialorder %v732, 0.0
  %vm861 = vcmp.ge.f32.partialorder %v733, 0.0
  %vm862 = vcmp.ge.f32.partialorder %v734, 0.0
  %vm863 = vcmp.ge.f32.partialorder %v735, 0.0
  %vm864 = vcmp.ge.f32.partialorder %v736, 0.0
  %vm865 = vcmp.ge.f32.partialorder %v737, 0.0
  %vm866 = vcmp.ge.f32.partialorder %v738, 0.0
  %vm867 = vcmp.ge.f32.partialorder %v739, 0.0
  %vm868 = vcmp.ge.f32.partialorder %v740, 0.0
  %vm869 = vcmp.ge.f32.partialorder %v741, 0.0
  %vm870 = vcmp.ge.f32.partialorder %v742, 0.0
  %vm871 = vcmp.ge.f32.partialorder %v743, 0.0
  %vm872 = vcmp.ge.f32.partialorder %v744, 0.0
  %vm873 = vcmp.ge.f32.partialorder %v745, 0.0
  %vm874 = vcmp.ge.f32.partialorder %v746, 0.0
  %vm875 = vcmp.ge.f32.partialorder %v747, 0.0
  %vm876 = vcmp.ge.f32.partialorder %v748, 0.0
  %vm877 = vcmp.ge.f32.partialorder %v749, 0.0
  %vm878 = vcmp.ge.f32.partialorder %v750, 0.0
  %vm879 = vcmp.ge.f32.partialorder %v751, 0.0
  %vm880 = vcmp.ge.f32.partialorder %v752, 0.0
  %vm881 = vcmp.ge.f32.partialorder %v753, 0.0
  %vm882 = vcmp.ge.f32.partialorder %v754, 0.0
  %vm883 = vcmp.ge.f32.partialorder %v755, 0.0
  %vm884 = vcmp.ge.f32.partialorder %v756, 0.0
  %vm885 = vcmp.ge.f32.partialorder %v757, 0.0
  %vm886 = vcmp.ge.f32.partialorder %v758, 0.0
  %vm887 = vcmp.ge.f32.partialorder %v759, 0.0
  %vm888 = vcmp.ge.f32.partialorder %v760, 0.0
  %vm889 = vcmp.ge.f32.partialorder %v761, 0.0
  %vm890 = vcmp.ge.f32.partialorder %v762, 0.0
  %vm891 = vcmp.ge.f32.partialorder %v763, 0.0
  %vm892 = vcmp.ge.f32.partialorder %v764, 0.0
  %vm893 = vcmp.ge.f32.partialorder %v765, 0.0
  %vm894 = vcmp.ge.f32.partialorder %v766, 0.0
  %vm895 = vcmp.ge.f32.partialorder %v767, 0.0
  %vm896 = vcmp.ge.f32.partialorder %v768, 0.0
  %vm897 = vcmp.ge.f32.partialorder %v769, 0.0
  %vm898 = vcmp.ge.f32.partialorder %v770, 0.0
  %vm899 = vcmp.ge.f32.partialorder %v771, 0.0
  %vm900 = vcmp.ge.f32.partialorder %v772, 0.0
  %vm901 = vcmp.ge.f32.partialorder %v773, 0.0
  %vm902 = vcmp.ge.f32.partialorder %v774, 0.0
  %vm903 = vcmp.ge.f32.partialorder %v775, 0.0
  %vm904 = vcmp.ge.f32.partialorder %v776, 0.0
  %vm905 = vcmp.ge.f32.partialorder %v777, 0.0
  %vm906 = vcmp.ge.f32.partialorder %v778, 0.0
  %vm907 = vcmp.ge.f32.partialorder %v779, 0.0
  %vm908 = vcmp.ge.f32.partialorder %v780, 0.0
  %vm909 = vcmp.ge.f32.partialorder %v781, 0.0
  %vm910 = vcmp.ge.f32.partialorder %v782, 0.0
  %vm911 = vcmp.ge.f32.partialorder %v783, 0.0
  %vm912 = vcmp.ge.f32.partialorder %v784, 0.0
  %vm913 = vcmp.ge.f32.partialorder %v785, 0.0
  %vm914 = vcmp.ge.f32.partialorder %v786, 0.0
  %vm915 = vcmp.ge.f32.partialorder %v787, 0.0
  %vm916 = vcmp.ge.f32.partialorder %v788, 0.0
  %vm917 = vcmp.ge.f32.partialorder %v789, 0.0
  %vm918 = vcmp.ge.f32.partialorder %v790, 0.0
  %vm919 = vcmp.ge.f32.partialorder %v791, 0.0
  %vm920 = vcmp.ge.f32.partialorder %v792, 0.0
  %vm921 = vcmp.ge.f32.partialorder %v793, 0.0
  %vm922 = vcmp.ge.f32.partialorder %v794, 0.0
  %vm923 = vcmp.ge.f32.partialorder %v795, 0.0
  %vm924 = vcmp.ge.f32.partialorder %v796, 0.0
  %vm925 = vcmp.ge.f32.partialorder %v797, 0.0
  %vm926 = vcmp.ge.f32.partialorder %v798, 0.0
  %vm927 = vcmp.ge.f32.partialorder %v799, 0.0
  %vm928 = vcmp.ge.f32.partialorder %v800, 0.0
  %vm929 = vcmp.ge.f32.partialorder %v801, 0.0
  %vm930 = vcmp.ge.f32.partialorder %v802, 0.0
  %vm931 = vcmp.ge.f32.partialorder %v803, 0.0
  %vm932 = vcmp.ge.f32.partialorder %v804, 0.0
  %vm933 = vcmp.ge.f32.partialorder %v805, 0.0
  %vm934 = vcmp.ge.f32.partialorder %v806, 0.0
  %vm935 = vcmp.ge.f32.partialorder %v807, 0.0
  %vm936 = vcmp.ge.f32.partialorder %v808, 0.0
  %vm937 = vcmp.ge.f32.partialorder %v809, 0.0
  %vm938 = vcmp.ge.f32.partialorder %v810, 0.0
  %vm939 = vcmp.ge.f32.partialorder %v811, 0.0
  %vm940 = vcmp.ge.f32.partialorder %v812, 0.0
  %vm941 = vcmp.ge.f32.partialorder %v813, 0.0
  %vm942 = vcmp.ge.f32.partialorder %v814, 0.0
  %vm943 = vcmp.ge.f32.partialorder %v815, 0.0
  %vm944 = vcmp.ge.f32.partialorder %v816, 0.0
  %vm945 = vcmp.ge.f32.partialorder %v817, 0.0
  %vm946 = vcmp.ge.f32.partialorder %v818, 0.0
  %vm947 = vcmp.ge.f32.partialorder %v819, 0.0
  %vm948 = vcmp.ge.f32.partialorder %v820, 0.0
  %vm949 = vcmp.ge.f32.partialorder %v821, 0.0
  %vm950 = vcmp.ge.f32.partialorder %v822, 0.0
  %vm951 = vcmp.ge.f32.partialorder %v823, 0.0
  %vm952 = vcmp.ge.f32.partialorder %v824, 0.0
  %vm953 = vcmp.ge.f32.partialorder %v825, 0.0
  %vm954 = vcmp.ge.f32.partialorder %v826, 0.0
  %vm955 = vcmp.ge.f32.partialorder %v827, 0.0
  %vm956 = vcmp.ge.f32.partialorder %v828, 0.0
  %vm957 = vcmp.ge.f32.partialorder %v829, 0.0
  %vm958 = vcmp.ge.f32.partialorder %v830, 0.0
  %vm959 = vcmp.ge.f32.partialorder %v831, 0.0
  %vm960 = vcmp.ge.f32.partialorder %v832, 0.0
  %vm961 = vcmp.ge.f32.partialorder %v833, 0.0
  %vm962 = vcmp.ge.f32.partialorder %v834, 0.0
  %vm963 = vcmp.ge.f32.partialorder %v835, 0.0
  %vm964 = vcmp.ge.f32.partialorder %v836, 0.0
  %vm965 = vcmp.ge.f32.partialorder %v837, 0.0
  %v966 = vsel %vm838, 1.0, -1.0
  %v967 = vsel %vm839, 1.0, -1.0
  %v968 = vsel %vm840, 1.0, -1.0
  %v969 = vsel %vm841, 1.0, -1.0
  %v970 = vsel %vm842, 1.0, -1.0
  %v971 = vsel %vm843, 1.0, -1.0
  %v972 = vsel %vm844, 1.0, -1.0
  %v973 = vsel %vm845, 1.0, -1.0
  %v974 = vsel %vm846, 1.0, -1.0
  %v975 = vsel %vm847, 1.0, -1.0
  %v976 = vsel %vm848, 1.0, -1.0
  %v977 = vsel %vm849, 1.0, -1.0
  %v978 = vsel %vm850, 1.0, -1.0
  %v979 = vsel %vm851, 1.0, -1.0
  %v980 = vsel %vm852, 1.0, -1.0
  %v981 = vsel %vm853, 1.0, -1.0
  %v982 = vsel %vm854, 1.0, -1.0
  %v983 = vsel %vm855, 1.0, -1.0
  %v984 = vsel %vm856, 1.0, -1.0
  %v985 = vsel %vm857, 1.0, -1.0
  %v986 = vsel %vm858, 1.0, -1.0
  %v987 = vsel %vm859, 1.0, -1.0
  %v988 = vsel %vm860, 1.0, -1.0
  %v989 = vsel %vm861, 1.0, -1.0
  %v990 = vsel %vm862, 1.0, -1.0
  %v991 = vsel %vm863, 1.0, -1.0
  %v992 = vsel %vm864, 1.0, -1.0
  %v993 = vsel %vm865, 1.0, -1.0
  %v994 = vsel %vm866, 1.0, -1.0
  %v995 = vsel %vm867, 1.0, -1.0
  %v996 = vsel %vm868, 1.0, -1.0
  %v997 = vsel %vm869, 1.0, -1.0
  %v998 = vsel %vm870, 1.0, -1.0
  %v999 = vsel %vm871, 1.0, -1.0
  %v1000 = vsel %vm872, 1.0, -1.0
  %v1001 = vsel %vm873, 1.0, -1.0
  %v1002 = vsel %vm874, 1.0, -1.0
  %v1003 = vsel %vm875, 1.0, -1.0
  %v1004 = vsel %vm876, 1.0, -1.0
  %v1005 = vsel %vm877, 1.0, -1.0
  %v1006 = vsel %vm878, 1.0, -1.0
  %v1007 = vsel %vm879, 1.0, -1.0
  %v1008 = vsel %vm880, 1.0, -1.0
  %v1009 = vsel %vm881, 1.0, -1.0
  %v1010 = vsel %vm882, 1.0, -1.0
  %v1011 = vsel %vm883, 1.0, -1.0
  %v1012 = vsel %vm884, 1.0, -1.0
  %v1013 = vsel %vm885, 1.0, -1.0
  %v1014 = vsel %vm886, 1.0, -1.0
  %v1015 = vsel %vm887, 1.0, -1.0
  %v1016 = vsel %vm888, 1.0, -1.0
  %v1017 = vsel %vm889, 1.0, -1.0
  %v1018 = vsel %vm890, 1.0, -1.0
  %v1019 = vsel %vm891, 1.0, -1.0
  %v1020 = vsel %vm892, 1.0, -1.0
  %v1021 = vsel %vm893, 1.0, -1.0
  %v1022 = vsel %vm894, 1.0, -1.0
  %v1023 = vsel %vm895, 1.0, -1.0
  %v1024 = vsel %vm896, 1.0, -1.0
  %v1025 = vsel %vm897, 1.0, -1.0
  %v1026 = vsel %vm898, 1.0, -1.0
  %v1027 = vsel %vm899, 1.0, -1.0
  %v1028 = vsel %vm900, 1.0, -1.0
  %v1029 = vsel %vm901, 1.0, -1.0
  %v1030 = vsel %vm902, 1.0, -1.0
  %v1031 = vsel %vm903, 1.0, -1.0
  %v1032 = vsel %vm904, 1.0, -1.0
  %v1033 = vsel %vm905, 1.0, -1.0
  %v1034 = vsel %vm906, 1.0, -1.0
  %v1035 = vsel %vm907, 1.0, -1.0
  %v1036 = vsel %vm908, 1.0, -1.0
  %v1037 = vsel %vm909, 1.0, -1.0
  %v1038 = vsel %vm910, 1.0, -1.0
  %v1039 = vsel %vm911, 1.0, -1.0
  %v1040 = vsel %vm912, 1.0, -1.0
  %v1041 = vsel %vm913, 1.0, -1.0
  %v1042 = vsel %vm914, 1.0, -1.0
  %v1043 = vsel %vm915, 1.0, -1.0
  %v1044 = vsel %vm916, 1.0, -1.0
  %v1045 = vsel %vm917, 1.0, -1.0
  %v1046 = vsel %vm918, 1.0, -1.0
  %v1047 = vsel %vm919, 1.0, -1.0
  %v1048 = vsel %vm920, 1.0, -1.0
  %v1049 = vsel %vm921, 1.0, -1.0
  %v1050 = vsel %vm922, 1.0, -1.0
  %v1051 = vsel %vm923, 1.0, -1.0
  %v1052 = vsel %vm924, 1.0, -1.0
  %v1053 = vsel %vm925, 1.0, -1.0
  %v1054 = vsel %vm926, 1.0, -1.0
  %v1055 = vsel %vm927, 1.0, -1.0
  %v1056 = vsel %vm928, 1.0, -1.0
  %v1057 = vsel %vm929, 1.0, -1.0
  %v1058 = vsel %vm930, 1.0, -1.0
  %v1059 = vsel %vm931, 1.0, -1.0
  %v1060 = vsel %vm932, 1.0, -1.0
  %v1061 = vsel %vm933, 1.0, -1.0
  %v1062 = vsel %vm934, 1.0, -1.0
  %v1063 = vsel %vm935, 1.0, -1.0
  %v1064 = vsel %vm936, 1.0, -1.0
  %v1065 = vsel %vm937, 1.0, -1.0
  %v1066 = vsel %vm938, 1.0, -1.0
  %v1067 = vsel %vm939, 1.0, -1.0
  %v1068 = vsel %vm940, 1.0, -1.0
  %v1069 = vsel %vm941, 1.0, -1.0
  %v1070 = vsel %vm942, 1.0, -1.0
  %v1071 = vsel %vm943, 1.0, -1.0
  %v1072 = vsel %vm944, 1.0, -1.0
  %v1073 = vsel %vm945, 1.0, -1.0
  %v1074 = vsel %vm946, 1.0, -1.0
  %v1075 = vsel %vm947, 1.0, -1.0
  %v1076 = vsel %vm948, 1.0, -1.0
  %v1077 = vsel %vm949, 1.0, -1.0
  %v1078 = vsel %vm950, 1.0, -1.0
  %v1079 = vsel %vm951, 1.0, -1.0
  %v1080 = vsel %vm952, 1.0, -1.0
  %v1081 = vsel %vm953, 1.0, -1.0
  %v1082 = vsel %vm954, 1.0, -1.0
  %v1083 = vsel %vm955, 1.0, -1.0
  %v1084 = vsel %vm956, 1.0, -1.0
  %v1085 = vsel %vm957, 1.0, -1.0
  %v1086 = vsel %vm958, 1.0, -1.0
  %v1087 = vsel %vm959, 1.0, -1.0
  %v1088 = vsel %vm960, 1.0, -1.0
  %v1089 = vsel %vm961, 1.0, -1.0
  %v1090 = vsel %vm962, 1.0, -1.0
  %v1091 = vsel %vm963, 1.0, -1.0
  %v1092 = vsel %vm964, 1.0, -1.0
  %v1093 = vsel %vm965, 1.0, -1.0
  %v1094 = vand.u32 2147483647, %v710
  %v1095 = vand.u32 2147483647, %v711
  %v1096 = vand.u32 2147483647, %v712
  %v1097 = vand.u32 2147483647, %v713
  %v1098 = vand.u32 2147483647, %v714
  %v1099 = vand.u32 2147483647, %v715
  %v1100 = vand.u32 2147483647, %v716
  %v1101 = vand.u32 2147483647, %v717
  %v1102 = vand.u32 2147483647, %v718
  %v1103 = vand.u32 2147483647, %v719
  %v1104 = vand.u32 2147483647, %v720
  %v1105 = vand.u32 2147483647, %v721
  %v1106 = vand.u32 2147483647, %v722
  %v1107 = vand.u32 2147483647, %v723
  %v1108 = vand.u32 2147483647, %v724
  %v1109 = vand.u32 2147483647, %v725
  %v1110 = vand.u32 2147483647, %v726
  %v1111 = vand.u32 2147483647, %v727
  %v1112 = vand.u32 2147483647, %v728
  %v1113 = vand.u32 2147483647, %v729
  %v1114 = vand.u32 2147483647, %v730
  %v1115 = vand.u32 2147483647, %v731
  %v1116 = vand.u32 2147483647, %v732
  %v1117 = vand.u32 2147483647, %v733
  %v1118 = vand.u32 2147483647, %v734
  %v1119 = vand.u32 2147483647, %v735
  %v1120 = vand.u32 2147483647, %v736
  %v1121 = vand.u32 2147483647, %v737
  %v1122 = vand.u32 2147483647, %v738
  %v1123 = vand.u32 2147483647, %v739
  %v1124 = vand.u32 2147483647, %v740
  %v1125 = vand.u32 2147483647, %v741
  %v1126 = vand.u32 2147483647, %v742
  %v1127 = vand.u32 2147483647, %v743
  %v1128 = vand.u32 2147483647, %v744
  %v1129 = vand.u32 2147483647, %v745
  %v1130 = vand.u32 2147483647, %v746
  %v1131 = vand.u32 2147483647, %v747
  %v1132 = vand.u32 2147483647, %v748
  %v1133 = vand.u32 2147483647, %v749
  %v1134 = vand.u32 2147483647, %v750
  %v1135 = vand.u32 2147483647, %v751
  %v1136 = vand.u32 2147483647, %v752
  %v1137 = vand.u32 2147483647, %v753
  %v1138 = vand.u32 2147483647, %v754
  %v1139 = vand.u32 2147483647, %v755
  %v1140 = vand.u32 2147483647, %v756
  %v1141 = vand.u32 2147483647, %v757
  %v1142 = vand.u32 2147483647, %v758
  %v1143 = vand.u32 2147483647, %v759
  %v1144 = vand.u32 2147483647, %v760
  %v1145 = vand.u32 2147483647, %v761
  %v1146 = vand.u32 2147483647, %v762
  %v1147 = vand.u32 2147483647, %v763
  %v1148 = vand.u32 2147483647, %v764
  %v1149 = vand.u32 2147483647, %v765
  %v1150 = vand.u32 2147483647, %v766
  %v1151 = vand.u32 2147483647, %v767
  %v1152 = vand.u32 2147483647, %v768
  %v1153 = vand.u32 2147483647, %v769
  %v1154 = vand.u32 2147483647, %v770
  %v1155 = vand.u32 2147483647, %v771
  %v1156 = vand.u32 2147483647, %v772
  %v1157 = vand.u32 2147483647, %v773
  %v1158 = vand.u32 2147483647, %v774
  %v1159 = vand.u32 2147483647, %v775
  %v1160 = vand.u32 2147483647, %v776
  %v1161 = vand.u32 2147483647, %v777
  %v1162 = vand.u32 2147483647, %v778
  %v1163 = vand.u32 2147483647, %v779
  %v1164 = vand.u32 2147483647, %v780
  %v1165 = vand.u32 2147483647, %v781
  %v1166 = vand.u32 2147483647, %v782
  %v1167 = vand.u32 2147483647, %v783
  %v1168 = vand.u32 2147483647, %v784
  %v1169 = vand.u32 2147483647, %v785
  %v1170 = vand.u32 2147483647, %v786
  %v1171 = vand.u32 2147483647, %v787
  %v1172 = vand.u32 2147483647, %v788
  %v1173 = vand.u32 2147483647, %v789
  %v1174 = vand.u32 2147483647, %v790
  %v1175 = vand.u32 2147483647, %v791
  %v1176 = vand.u32 2147483647, %v792
  %v1177 = vand.u32 2147483647, %v793
  %v1178 = vand.u32 2147483647, %v794
  %v1179 = vand.u32 2147483647, %v795
  %v1180 = vand.u32 2147483647, %v796
  %v1181 = vand.u32 2147483647, %v797
  %v1182 = vand.u32 2147483647, %v798
  %v1183 = vand.u32 2147483647, %v799
  %v1184 = vand.u32 2147483647, %v800
  %v1185 = vand.u32 2147483647, %v801
  %v1186 = vand.u32 2147483647, %v802
  %v1187 = vand.u32 2147483647, %v803
  %v1188 = vand.u32 2147483647, %v804
  %v1189 = vand.u32 2147483647, %v805
  %v1190 = vand.u32 2147483647, %v806
  %v1191 = vand.u32 2147483647, %v807
  %v1192 = vand.u32 2147483647, %v808
  %v1193 = vand.u32 2147483647, %v809
  %v1194 = vand.u32 2147483647, %v810
  %v1195 = vand.u32 2147483647, %v811
  %v1196 = vand.u32 2147483647, %v812
  %v1197 = vand.u32 2147483647, %v813
  %v1198 = vand.u32 2147483647, %v814
  %v1199 = vand.u32 2147483647, %v815
  %v1200 = vand.u32 2147483647, %v816
  %v1201 = vand.u32 2147483647, %v817
  %v1202 = vand.u32 2147483647, %v818
  %v1203 = vand.u32 2147483647, %v819
  %v1204 = vand.u32 2147483647, %v820
  %v1205 = vand.u32 2147483647, %v821
  %v1206 = vand.u32 2147483647, %v822
  %v1207 = vand.u32 2147483647, %v823
  %v1208 = vand.u32 2147483647, %v824
  %v1209 = vand.u32 2147483647, %v825
  %v1210 = vand.u32 2147483647, %v826
  %v1211 = vand.u32 2147483647, %v827
  %v1212 = vand.u32 2147483647, %v828
  %v1213 = vand.u32 2147483647, %v829
  %v1214 = vand.u32 2147483647, %v830
  %v1215 = vand.u32 2147483647, %v831
  %v1216 = vand.u32 2147483647, %v832
  %v1217 = vand.u32 2147483647, %v833
  %v1218 = vand.u32 2147483647, %v834
  %v1219 = vand.u32 2147483647, %v835
  %v1220 = vand.u32 2147483647, %v836
  %v1221 = vand.u32 2147483647, %v837
  %v1222 = vmul.f32 %v1094, 0.3275911
  %v1223 = vmul.f32 %v1095, 0.3275911
  %v1224 = vmul.f32 %v1096, 0.3275911
  %v1225 = vmul.f32 %v1097, 0.3275911
  %v1226 = vmul.f32 %v1098, 0.3275911
  %v1227 = vmul.f32 %v1099, 0.3275911
  %v1228 = vmul.f32 %v1100, 0.3275911
  %v1229 = vmul.f32 %v1101, 0.3275911
  %v1230 = vmul.f32 %v1102, 0.3275911
  %v1231 = vmul.f32 %v1103, 0.3275911
  %v1232 = vmul.f32 %v1104, 0.3275911
  %v1233 = vmul.f32 %v1105, 0.3275911
  %v1234 = vmul.f32 %v1106, 0.3275911
  %v1235 = vmul.f32 %v1107, 0.3275911
  %v1236 = vmul.f32 %v1108, 0.3275911
  %v1237 = vmul.f32 %v1109, 0.3275911
  %v1238 = vmul.f32 %v1110, 0.3275911
  %v1239 = vmul.f32 %v1111, 0.3275911
  %v1240 = vmul.f32 %v1112, 0.3275911
  %v1241 = vmul.f32 %v1113, 0.3275911
  %v1242 = vmul.f32 %v1114, 0.3275911
  %v1243 = vmul.f32 %v1115, 0.3275911
  %v1244 = vmul.f32 %v1116, 0.3275911
  %v1245 = vmul.f32 %v1117, 0.3275911
  %v1246 = vmul.f32 %v1118, 0.3275911
  %v1247 = vmul.f32 %v1119, 0.3275911
  %v1248 = vmul.f32 %v1120, 0.3275911
  %v1249 = vmul.f32 %v1121, 0.3275911
  %v1250 = vmul.f32 %v1122, 0.3275911
  %v1251 = vmul.f32 %v1123, 0.3275911
  %v1252 = vmul.f32 %v1124, 0.3275911
  %v1253 = vmul.f32 %v1125, 0.3275911
  %v1254 = vmul.f32 %v1126, 0.3275911
  %v1255 = vmul.f32 %v1127, 0.3275911
  %v1256 = vmul.f32 %v1128, 0.3275911
  %v1257 = vmul.f32 %v1129, 0.3275911
  %v1258 = vmul.f32 %v1130, 0.3275911
  %v1259 = vmul.f32 %v1131, 0.3275911
  %v1260 = vmul.f32 %v1132, 0.3275911
  %v1261 = vmul.f32 %v1133, 0.3275911
  %v1262 = vmul.f32 %v1134, 0.3275911
  %v1263 = vmul.f32 %v1135, 0.3275911
  %v1264 = vmul.f32 %v1136, 0.3275911
  %v1265 = vmul.f32 %v1137, 0.3275911
  %v1266 = vmul.f32 %v1138, 0.3275911
  %v1267 = vmul.f32 %v1139, 0.3275911
  %v1268 = vmul.f32 %v1140, 0.3275911
  %v1269 = vmul.f32 %v1141, 0.3275911
  %v1270 = vmul.f32 %v1142, 0.3275911
  %v1271 = vmul.f32 %v1143, 0.3275911
  %v1272 = vmul.f32 %v1144, 0.3275911
  %v1273 = vmul.f32 %v1145, 0.3275911
  %v1274 = vmul.f32 %v1146, 0.3275911
  %v1275 = vmul.f32 %v1147, 0.3275911
  %v1276 = vmul.f32 %v1148, 0.3275911
  %v1277 = vmul.f32 %v1149, 0.3275911
  %v1278 = vmul.f32 %v1150, 0.3275911
  %v1279 = vmul.f32 %v1151, 0.3275911
  %v1280 = vmul.f32 %v1152, 0.3275911
  %v1281 = vmul.f32 %v1153, 0.3275911
  %v1282 = vmul.f32 %v1154, 0.3275911
  %v1283 = vmul.f32 %v1155, 0.3275911
  %v1284 = vmul.f32 %v1156, 0.3275911
  %v1285 = vmul.f32 %v1157, 0.3275911
  %v1286 = vmul.f32 %v1158, 0.3275911
  %v1287 = vmul.f32 %v1159, 0.3275911
  %v1288 = vmul.f32 %v1160, 0.3275911
  %v1289 = vmul.f32 %v1161, 0.3275911
  %v1290 = vmul.f32 %v1162, 0.3275911
  %v1291 = vmul.f32 %v1163, 0.3275911
  %v1292 = vmul.f32 %v1164, 0.3275911
  %v1293 = vmul.f32 %v1165, 0.3275911
  %v1294 = vmul.f32 %v1166, 0.3275911
  %v1295 = vmul.f32 %v1167, 0.3275911
  %v1296 = vmul.f32 %v1168, 0.3275911
  %v1297 = vmul.f32 %v1169, 0.3275911
  %v1298 = vmul.f32 %v1170, 0.3275911
  %v1299 = vmul.f32 %v1171, 0.3275911
  %v1300 = vmul.f32 %v1172, 0.3275911
  %v1301 = vmul.f32 %v1173, 0.3275911
  %v1302 = vmul.f32 %v1174, 0.3275911
  %v1303 = vmul.f32 %v1175, 0.3275911
  %v1304 = vmul.f32 %v1176, 0.3275911
  %v1305 = vmul.f32 %v1177, 0.3275911
  %v1306 = vmul.f32 %v1178, 0.3275911
  %v1307 = vmul.f32 %v1179, 0.3275911
  %v1308 = vmul.f32 %v1180, 0.3275911
  %v1309 = vmul.f32 %v1181, 0.3275911
  %v1310 = vmul.f32 %v1182, 0.3275911
  %v1311 = vmul.f32 %v1183, 0.3275911
  %v1312 = vmul.f32 %v1184, 0.3275911
  %v1313 = vmul.f32 %v1185, 0.3275911
  %v1314 = vmul.f32 %v1186, 0.3275911
  %v1315 = vmul.f32 %v1187, 0.3275911
  %v1316 = vmul.f32 %v1188, 0.3275911
  %v1317 = vmul.f32 %v1189, 0.3275911
  %v1318 = vmul.f32 %v1190, 0.3275911
  %v1319 = vmul.f32 %v1191, 0.3275911
  %v1320 = vmul.f32 %v1192, 0.3275911
  %v1321 = vmul.f32 %v1193, 0.3275911
  %v1322 = vmul.f32 %v1194, 0.3275911
  %v1323 = vmul.f32 %v1195, 0.3275911
  %v1324 = vmul.f32 %v1196, 0.3275911
  %v1325 = vmul.f32 %v1197, 0.3275911
  %v1326 = vmul.f32 %v1198, 0.3275911
  %v1327 = vmul.f32 %v1199, 0.3275911
  %v1328 = vmul.f32 %v1200, 0.3275911
  %v1329 = vmul.f32 %v1201, 0.3275911
  %v1330 = vmul.f32 %v1202, 0.3275911
  %v1331 = vmul.f32 %v1203, 0.3275911
  %v1332 = vmul.f32 %v1204, 0.3275911
  %v1333 = vmul.f32 %v1205, 0.3275911
  %v1334 = vmul.f32 %v1206, 0.3275911
  %v1335 = vmul.f32 %v1207, 0.3275911
  %v1336 = vmul.f32 %v1208, 0.3275911
  %v1337 = vmul.f32 %v1209, 0.3275911
  %v1338 = vmul.f32 %v1210, 0.3275911
  %v1339 = vmul.f32 %v1211, 0.3275911
  %v1340 = vmul.f32 %v1212, 0.3275911
  %v1341 = vmul.f32 %v1213, 0.3275911
  %v1342 = vmul.f32 %v1214, 0.3275911
  %v1343 = vmul.f32 %v1215, 0.3275911
  %v1344 = vmul.f32 %v1216, 0.3275911
  %v1345 = vmul.f32 %v1217, 0.3275911
  %v1346 = vmul.f32 %v1218, 0.3275911
  %v1347 = vmul.f32 %v1219, 0.3275911
  %v1348 = vmul.f32 %v1220, 0.3275911
  %v1349 = vmul.f32 %v1221, 0.3275911
  %v1350 = vadd.f32 %v1222, 1.0
  %v1351 = vadd.f32 %v1223, 1.0
  %v1352 = vadd.f32 %v1224, 1.0
  %v1353 = vadd.f32 %v1225, 1.0
  %v1354 = vadd.f32 %v1226, 1.0
  %v1355 = vadd.f32 %v1227, 1.0
  %v1356 = vadd.f32 %v1228, 1.0
  %v1357 = vadd.f32 %v1229, 1.0
  %v1358 = vadd.f32 %v1230, 1.0
  %v1359 = vadd.f32 %v1231, 1.0
  %v1360 = vadd.f32 %v1232, 1.0
  %v1361 = vadd.f32 %v1233, 1.0
  %v1362 = vadd.f32 %v1234, 1.0
  %v1363 = vadd.f32 %v1235, 1.0
  %v1364 = vadd.f32 %v1236, 1.0
  %v1365 = vadd.f32 %v1237, 1.0
  %v1366 = vadd.f32 %v1238, 1.0
  %v1367 = vadd.f32 %v1239, 1.0
  %v1368 = vadd.f32 %v1240, 1.0
  %v1369 = vadd.f32 %v1241, 1.0
  %v1370 = vadd.f32 %v1242, 1.0
  %v1371 = vadd.f32 %v1243, 1.0
  %v1372 = vadd.f32 %v1244, 1.0
  %v1373 = vadd.f32 %v1245, 1.0
  %v1374 = vadd.f32 %v1246, 1.0
  %v1375 = vadd.f32 %v1247, 1.0
  %v1376 = vadd.f32 %v1248, 1.0
  %v1377 = vadd.f32 %v1249, 1.0
  %v1378 = vadd.f32 %v1250, 1.0
  %v1379 = vadd.f32 %v1251, 1.0
  %v1380 = vadd.f32 %v1252, 1.0
  %v1381 = vadd.f32 %v1253, 1.0
  %v1382 = vadd.f32 %v1254, 1.0
  %v1383 = vadd.f32 %v1255, 1.0
  %v1384 = vadd.f32 %v1256, 1.0
  %v1385 = vadd.f32 %v1257, 1.0
  %v1386 = vadd.f32 %v1258, 1.0
  %v1387 = vadd.f32 %v1259, 1.0
  %v1388 = vadd.f32 %v1260, 1.0
  %v1389 = vadd.f32 %v1261, 1.0
  %v1390 = vadd.f32 %v1262, 1.0
  %v1391 = vadd.f32 %v1263, 1.0
  %v1392 = vadd.f32 %v1264, 1.0
  %v1393 = vadd.f32 %v1265, 1.0
  %v1394 = vadd.f32 %v1266, 1.0
  %v1395 = vadd.f32 %v1267, 1.0
  %v1396 = vadd.f32 %v1268, 1.0
  %v1397 = vadd.f32 %v1269, 1.0
  %v1398 = vadd.f32 %v1270, 1.0
  %v1399 = vadd.f32 %v1271, 1.0
  %v1400 = vadd.f32 %v1272, 1.0
  %v1401 = vadd.f32 %v1273, 1.0
  %v1402 = vadd.f32 %v1274, 1.0
  %v1403 = vadd.f32 %v1275, 1.0
  %v1404 = vadd.f32 %v1276, 1.0
  %v1405 = vadd.f32 %v1277, 1.0
  %v1406 = vadd.f32 %v1278, 1.0
  %v1407 = vadd.f32 %v1279, 1.0
  %v1408 = vadd.f32 %v1280, 1.0
  %v1409 = vadd.f32 %v1281, 1.0
  %v1410 = vadd.f32 %v1282, 1.0
  %v1411 = vadd.f32 %v1283, 1.0
  %v1412 = vadd.f32 %v1284, 1.0
  %v1413 = vadd.f32 %v1285, 1.0
  %v1414 = vadd.f32 %v1286, 1.0
  %v1415 = vadd.f32 %v1287, 1.0
  %v1416 = vadd.f32 %v1288, 1.0
  %v1417 = vadd.f32 %v1289, 1.0
  %v1418 = vadd.f32 %v1290, 1.0
  %v1419 = vadd.f32 %v1291, 1.0
  %v1420 = vadd.f32 %v1292, 1.0
  %v1421 = vadd.f32 %v1293, 1.0
  %v1422 = vadd.f32 %v1294, 1.0
  %v1423 = vadd.f32 %v1295, 1.0
  %v1424 = vadd.f32 %v1296, 1.0
  %v1425 = vadd.f32 %v1297, 1.0
  %v1426 = vadd.f32 %v1298, 1.0
  %v1427 = vadd.f32 %v1299, 1.0
  %v1428 = vadd.f32 %v1300, 1.0
  %v1429 = vadd.f32 %v1301, 1.0
  %v1430 = vadd.f32 %v1302, 1.0
  %v1431 = vadd.f32 %v1303, 1.0
  %v1432 = vadd.f32 %v1304, 1.0
  %v1433 = vadd.f32 %v1305, 1.0
  %v1434 = vadd.f32 %v1306, 1.0
  %v1435 = vadd.f32 %v1307, 1.0
  %v1436 = vadd.f32 %v1308, 1.0
  %v1437 = vadd.f32 %v1309, 1.0
  %v1438 = vadd.f32 %v1310, 1.0
  %v1439 = vadd.f32 %v1311, 1.0
  %v1440 = vadd.f32 %v1312, 1.0
  %v1441 = vadd.f32 %v1313, 1.0
  %v1442 = vadd.f32 %v1314, 1.0
  %v1443 = vadd.f32 %v1315, 1.0
  %v1444 = vadd.f32 %v1316, 1.0
  %v1445 = vadd.f32 %v1317, 1.0
  %v1446 = vadd.f32 %v1318, 1.0
  %v1447 = vadd.f32 %v1319, 1.0
  %v1448 = vadd.f32 %v1320, 1.0
  %v1449 = vadd.f32 %v1321, 1.0
  %v1450 = vadd.f32 %v1322, 1.0
  %v1451 = vadd.f32 %v1323, 1.0
  %v1452 = vadd.f32 %v1324, 1.0
  %v1453 = vadd.f32 %v1325, 1.0
  %v1454 = vadd.f32 %v1326, 1.0
  %v1455 = vadd.f32 %v1327, 1.0
  %v1456 = vadd.f32 %v1328, 1.0
  %v1457 = vadd.f32 %v1329, 1.0
  %v1458 = vadd.f32 %v1330, 1.0
  %v1459 = vadd.f32 %v1331, 1.0
  %v1460 = vadd.f32 %v1332, 1.0
  %v1461 = vadd.f32 %v1333, 1.0
  %v1462 = vadd.f32 %v1334, 1.0
  %v1463 = vadd.f32 %v1335, 1.0
  %v1464 = vadd.f32 %v1336, 1.0
  %v1465 = vadd.f32 %v1337, 1.0
  %v1466 = vadd.f32 %v1338, 1.0
  %v1467 = vadd.f32 %v1339, 1.0
  %v1468 = vadd.f32 %v1340, 1.0
  %v1469 = vadd.f32 %v1341, 1.0
  %v1470 = vadd.f32 %v1342, 1.0
  %v1471 = vadd.f32 %v1343, 1.0
  %v1472 = vadd.f32 %v1344, 1.0
  %v1473 = vadd.f32 %v1345, 1.0
  %v1474 = vadd.f32 %v1346, 1.0
  %v1475 = vadd.f32 %v1347, 1.0
  %v1476 = vadd.f32 %v1348, 1.0
  %v1477 = vadd.f32 %v1349, 1.0
  %v1478 = vrcp.pop %v1350
  %v1479 = vrcp.pop %v1351
  %v1480 = vrcp.pop %v1352
  %v1481 = vrcp.pop %v1353
  %v1482 = vrcp.pop %v1354
  %v1483 = vrcp.pop %v1355
  %v1484 = vrcp.pop %v1356
  %v1485 = vrcp.pop %v1357
  %v1486 = vrcp.pop %v1358
  %v1487 = vrcp.pop %v1359
  %v1488 = vrcp.pop %v1360
  %v1489 = vrcp.pop %v1361
  %v1490 = vrcp.pop %v1362
  %v1491 = vrcp.pop %v1363
  %v1492 = vrcp.pop %v1364
  %v1493 = vrcp.pop %v1365
  %v1494 = vrcp.pop %v1366
  %v1495 = vrcp.pop %v1367
  %v1496 = vrcp.pop %v1368
  %v1497 = vrcp.pop %v1369
  %v1498 = vrcp.pop %v1370
  %v1499 = vrcp.pop %v1371
  %v1500 = vrcp.pop %v1372
  %v1501 = vrcp.pop %v1373
  %v1502 = vrcp.pop %v1374
  %v1503 = vrcp.pop %v1375
  %v1504 = vrcp.pop %v1376
  %v1505 = vrcp.pop %v1377
  %v1506 = vrcp.pop %v1378
  %v1507 = vrcp.pop %v1379
  %v1508 = vrcp.pop %v1380
  %v1509 = vrcp.pop %v1381
  %v1510 = vrcp.pop %v1382
  %v1511 = vrcp.pop %v1383
  %v1512 = vrcp.pop %v1384
  %v1513 = vrcp.pop %v1385
  %v1514 = vrcp.pop %v1386
  %v1515 = vrcp.pop %v1387
  %v1516 = vrcp.pop %v1388
  %v1517 = vrcp.pop %v1389
  %v1518 = vrcp.pop %v1390
  %v1519 = vrcp.pop %v1391
  %v1520 = vrcp.pop %v1392
  %v1521 = vrcp.pop %v1393
  %v1522 = vrcp.pop %v1394
  %v1523 = vrcp.pop %v1395
  %v1524 = vrcp.pop %v1396
  %v1525 = vrcp.pop %v1397
  %v1526 = vrcp.pop %v1398
  %v1527 = vrcp.pop %v1399
  %v1528 = vrcp.pop %v1400
  %v1529 = vrcp.pop %v1401
  %v1530 = vrcp.pop %v1402
  %v1531 = vrcp.pop %v1403
  %v1532 = vrcp.pop %v1404
  %v1533 = vrcp.pop %v1405
  %v1534 = vrcp.pop %v1406
  %v1535 = vrcp.pop %v1407
  %v1536 = vrcp.pop %v1408
  %v1537 = vrcp.pop %v1409
  %v1538 = vrcp.pop %v1410
  %v1539 = vrcp.pop %v1411
  %v1540 = vrcp.pop %v1412
  %v1541 = vrcp.pop %v1413
  %v1542 = vrcp.pop %v1414
  %v1543 = vrcp.pop %v1415
  %v1544 = vrcp.pop %v1416
  %v1545 = vrcp.pop %v1417
  %v1546 = vrcp.pop %v1418
  %v1547 = vrcp.pop %v1419
  %v1548 = vrcp.pop %v1420
  %v1549 = vrcp.pop %v1421
  %v1550 = vrcp.pop %v1422
  %v1551 = vrcp.pop %v1423
  %v1552 = vrcp.pop %v1424
  %v1553 = vrcp.pop %v1425
  %v1554 = vrcp.pop %v1426
  %v1555 = vrcp.pop %v1427
  %v1556 = vrcp.pop %v1428
  %v1557 = vrcp.pop %v1429
  %v1558 = vrcp.pop %v1430
  %v1559 = vrcp.pop %v1431
  %v1560 = vrcp.pop %v1432
  %v1561 = vrcp.pop %v1433
  %v1562 = vrcp.pop %v1434
  %v1563 = vrcp.pop %v1435
  %v1564 = vrcp.pop %v1436
  %v1565 = vrcp.pop %v1437
  %v1566 = vrcp.pop %v1438
  %v1567 = vrcp.pop %v1439
  %v1568 = vrcp.pop %v1440
  %v1569 = vrcp.pop %v1441
  %v1570 = vrcp.pop %v1442
  %v1571 = vrcp.pop %v1443
  %v1572 = vrcp.pop %v1444
  %v1573 = vrcp.pop %v1445
  %v1574 = vrcp.pop %v1446
  %v1575 = vrcp.pop %v1447
  %v1576 = vrcp.pop %v1448
  %v1577 = vrcp.pop %v1449
  %v1578 = vrcp.pop %v1450
  %v1579 = vrcp.pop %v1451
  %v1580 = vrcp.pop %v1452
  %v1581 = vrcp.pop %v1453
  %v1582 = vrcp.pop %v1454
  %v1583 = vrcp.pop %v1455
  %v1584 = vrcp.pop %v1456
  %v1585 = vrcp.pop %v1457
  %v1586 = vrcp.pop %v1458
  %v1587 = vrcp.pop %v1459
  %v1588 = vrcp.pop %v1460
  %v1589 = vrcp.pop %v1461
  %v1590 = vrcp.pop %v1462
  %v1591 = vrcp.pop %v1463
  %v1592 = vrcp.pop %v1464
  %v1593 = vrcp.pop %v1465
  %v1594 = vrcp.pop %v1466
  %v1595 = vrcp.pop %v1467
  %v1596 = vrcp.pop %v1468
  %v1597 = vrcp.pop %v1469
  %v1598 = vrcp.pop %v1470
  %v1599 = vrcp.pop %v1471
  %v1600 = vrcp.pop %v1472
  %v1601 = vrcp.pop %v1473
  %v1602 = vrcp.pop %v1474
  %v1603 = vrcp.pop %v1475
  %v1604 = vrcp.pop %v1476
  %v1605 = vrcp.pop %v1477
  %v1606 = vmul.f32 %v1478, 1.0614054
  %v1607 = vmul.f32 %v1479, 1.0614054
  %v1608 = vmul.f32 %v1480, 1.0614054
  %v1609 = vmul.f32 %v1481, 1.0614054
  %v1610 = vmul.f32 %v1482, 1.0614054
  %v1611 = vmul.f32 %v1483, 1.0614054
  %v1612 = vmul.f32 %v1484, 1.0614054
  %v1613 = vmul.f32 %v1485, 1.0614054
  %v1614 = vmul.f32 %v1486, 1.0614054
  %v1615 = vmul.f32 %v1487, 1.0614054
  %v1616 = vmul.f32 %v1488, 1.0614054
  %v1617 = vmul.f32 %v1489, 1.0614054
  %v1618 = vmul.f32 %v1490, 1.0614054
  %v1619 = vmul.f32 %v1491, 1.0614054
  %v1620 = vmul.f32 %v1492, 1.0614054
  %v1621 = vmul.f32 %v1493, 1.0614054
  %v1622 = vmul.f32 %v1494, 1.0614054
  %v1623 = vmul.f32 %v1495, 1.0614054
  %v1624 = vmul.f32 %v1496, 1.0614054
  %v1625 = vmul.f32 %v1497, 1.0614054
  %v1626 = vmul.f32 %v1498, 1.0614054
  %v1627 = vmul.f32 %v1499, 1.0614054
  %v1628 = vmul.f32 %v1500, 1.0614054
  %v1629 = vmul.f32 %v1501, 1.0614054
  %v1630 = vmul.f32 %v1502, 1.0614054
  %v1631 = vmul.f32 %v1503, 1.0614054
  %v1632 = vmul.f32 %v1504, 1.0614054
  %v1633 = vmul.f32 %v1505, 1.0614054
  %v1634 = vmul.f32 %v1506, 1.0614054
  %v1635 = vmul.f32 %v1507, 1.0614054
  %v1636 = vmul.f32 %v1508, 1.0614054
  %v1637 = vmul.f32 %v1509, 1.0614054
  %v1638 = vmul.f32 %v1510, 1.0614054
  %v1639 = vmul.f32 %v1511, 1.0614054
  %v1640 = vmul.f32 %v1512, 1.0614054
  %v1641 = vmul.f32 %v1513, 1.0614054
  %v1642 = vmul.f32 %v1514, 1.0614054
  %v1643 = vmul.f32 %v1515, 1.0614054
  %v1644 = vmul.f32 %v1516, 1.0614054
  %v1645 = vmul.f32 %v1517, 1.0614054
  %v1646 = vmul.f32 %v1518, 1.0614054
  %v1647 = vmul.f32 %v1519, 1.0614054
  %v1648 = vmul.f32 %v1520, 1.0614054
  %v1649 = vmul.f32 %v1521, 1.0614054
  %v1650 = vmul.f32 %v1522, 1.0614054
  %v1651 = vmul.f32 %v1523, 1.0614054
  %v1652 = vmul.f32 %v1524, 1.0614054
  %v1653 = vmul.f32 %v1525, 1.0614054
  %v1654 = vmul.f32 %v1526, 1.0614054
  %v1655 = vmul.f32 %v1527, 1.0614054
  %v1656 = vmul.f32 %v1528, 1.0614054
  %v1657 = vmul.f32 %v1529, 1.0614054
  %v1658 = vmul.f32 %v1530, 1.0614054
  %v1659 = vmul.f32 %v1531, 1.0614054
  %v1660 = vmul.f32 %v1532, 1.0614054
  %v1661 = vmul.f32 %v1533, 1.0614054
  %v1662 = vmul.f32 %v1534, 1.0614054
  %v1663 = vmul.f32 %v1535, 1.0614054
  %v1664 = vmul.f32 %v1536, 1.0614054
  %v1665 = vmul.f32 %v1537, 1.0614054
  %v1666 = vmul.f32 %v1538, 1.0614054
  %v1667 = vmul.f32 %v1539, 1.0614054
  %v1668 = vmul.f32 %v1540, 1.0614054
  %v1669 = vmul.f32 %v1541, 1.0614054
  %v1670 = vmul.f32 %v1542, 1.0614054
  %v1671 = vmul.f32 %v1543, 1.0614054
  %v1672 = vmul.f32 %v1544, 1.0614054
  %v1673 = vmul.f32 %v1545, 1.0614054
  %v1674 = vmul.f32 %v1546, 1.0614054
  %v1675 = vmul.f32 %v1547, 1.0614054
  %v1676 = vmul.f32 %v1548, 1.0614054
  %v1677 = vmul.f32 %v1549, 1.0614054
  %v1678 = vmul.f32 %v1550, 1.0614054
  %v1679 = vmul.f32 %v1551, 1.0614054
  %v1680 = vmul.f32 %v1552, 1.0614054
  %v1681 = vmul.f32 %v1553, 1.0614054
  %v1682 = vmul.f32 %v1554, 1.0614054
  %v1683 = vmul.f32 %v1555, 1.0614054
  %v1684 = vmul.f32 %v1556, 1.0614054
  %v1685 = vmul.f32 %v1557, 1.0614054
  %v1686 = vmul.f32 %v1558, 1.0614054
  %v1687 = vmul.f32 %v1559, 1.0614054
  %v1688 = vmul.f32 %v1560, 1.0614054
  %v1689 = vmul.f32 %v1561, 1.0614054
  %v1690 = vmul.f32 %v1562, 1.0614054
  %v1691 = vmul.f32 %v1563, 1.0614054
  %v1692 = vmul.f32 %v1564, 1.0614054
  %v1693 = vmul.f32 %v1565, 1.0614054
  %v1694 = vmul.f32 %v1566, 1.0614054
  %v1695 = vmul.f32 %v1567, 1.0614054
  %v1696 = vmul.f32 %v1568, 1.0614054
  %v1697 = vmul.f32 %v1569, 1.0614054
  %v1698 = vmul.f32 %v1570, 1.0614054
  %v1699 = vmul.f32 %v1571, 1.0614054
  %v1700 = vmul.f32 %v1572, 1.0614054
  %v1701 = vmul.f32 %v1573, 1.0614054
  %v1702 = vmul.f32 %v1574, 1.0614054
  %v1703 = vmul.f32 %v1575, 1.0614054
  %v1704 = vmul.f32 %v1576, 1.0614054
  %v1705 = vmul.f32 %v1577, 1.0614054
  %v1706 = vmul.f32 %v1578, 1.0614054
  %v1707 = vmul.f32 %v1579, 1.0614054
  %v1708 = vmul.f32 %v1580, 1.0614054
  %v1709 = vmul.f32 %v1581, 1.0614054
  %v1710 = vmul.f32 %v1582, 1.0614054
  %v1711 = vmul.f32 %v1583, 1.0614054
  %v1712 = vmul.f32 %v1584, 1.0614054
  %v1713 = vmul.f32 %v1585, 1.0614054
  %v1714 = vmul.f32 %v1586, 1.0614054
  %v1715 = vmul.f32 %v1587, 1.0614054
  %v1716 = vmul.f32 %v1588, 1.0614054
  %v1717 = vmul.f32 %v1589, 1.0614054
  %v1718 = vmul.f32 %v1590, 1.0614054
  %v1719 = vmul.f32 %v1591, 1.0614054
  %v1720 = vmul.f32 %v1592, 1.0614054
  %v1721 = vmul.f32 %v1593, 1.0614054
  %v1722 = vmul.f32 %v1594, 1.0614054
  %v1723 = vmul.f32 %v1595, 1.0614054
  %v1724 = vmul.f32 %v1596, 1.0614054
  %v1725 = vmul.f32 %v1597, 1.0614054
  %v1726 = vmul.f32 %v1598, 1.0614054
  %v1727 = vmul.f32 %v1599, 1.0614054
  %v1728 = vmul.f32 %v1600, 1.0614054
  %v1729 = vmul.f32 %v1601, 1.0614054
  %v1730 = vmul.f32 %v1602, 1.0614054
  %v1731 = vmul.f32 %v1603, 1.0614054
  %v1732 = vmul.f32 %v1604, 1.0614054
  %v1733 = vmul.f32 %v1605, 1.0614054
  %v1734 = vadd.f32 %v1606, -1.4531521
  %v1735 = vadd.f32 %v1607, -1.4531521
  %v1736 = vadd.f32 %v1608, -1.4531521
  %v1737 = vadd.f32 %v1609, -1.4531521
  %v1738 = vadd.f32 %v1610, -1.4531521
  %v1739 = vadd.f32 %v1611, -1.4531521
  %v1740 = vadd.f32 %v1612, -1.4531521
  %v1741 = vadd.f32 %v1613, -1.4531521
  %v1742 = vadd.f32 %v1614, -1.4531521
  %v1743 = vadd.f32 %v1615, -1.4531521
  %v1744 = vadd.f32 %v1616, -1.4531521
  %v1745 = vadd.f32 %v1617, -1.4531521
  %v1746 = vadd.f32 %v1618, -1.4531521
  %v1747 = vadd.f32 %v1619, -1.4531521
  %v1748 = vadd.f32 %v1620, -1.4531521
  %v1749 = vadd.f32 %v1621, -1.4531521
  %v1750 = vadd.f32 %v1622, -1.4531521
  %v1751 = vadd.f32 %v1623, -1.4531521
  %v1752 = vadd.f32 %v1624, -1.4531521
  %v1753 = vadd.f32 %v1625, -1.4531521
  %v1754 = vadd.f32 %v1626, -1.4531521
  %v1755 = vadd.f32 %v1627, -1.4531521
  %v1756 = vadd.f32 %v1628, -1.4531521
  %v1757 = vadd.f32 %v1629, -1.4531521
  %v1758 = vadd.f32 %v1630, -1.4531521
  %v1759 = vadd.f32 %v1631, -1.4531521
  %v1760 = vadd.f32 %v1632, -1.4531521
  %v1761 = vadd.f32 %v1633, -1.4531521
  %v1762 = vadd.f32 %v1634, -1.4531521
  %v1763 = vadd.f32 %v1635, -1.4531521
  %v1764 = vadd.f32 %v1636, -1.4531521
  %v1765 = vadd.f32 %v1637, -1.4531521
  %v1766 = vadd.f32 %v1638, -1.4531521
  %v1767 = vadd.f32 %v1639, -1.4531521
  %v1768 = vadd.f32 %v1640, -1.4531521
  %v1769 = vadd.f32 %v1641, -1.4531521
  %v1770 = vadd.f32 %v1642, -1.4531521
  %v1771 = vadd.f32 %v1643, -1.4531521
  %v1772 = vadd.f32 %v1644, -1.4531521
  %v1773 = vadd.f32 %v1645, -1.4531521
  %v1774 = vadd.f32 %v1646, -1.4531521
  %v1775 = vadd.f32 %v1647, -1.4531521
  %v1776 = vadd.f32 %v1648, -1.4531521
  %v1777 = vadd.f32 %v1649, -1.4531521
  %v1778 = vadd.f32 %v1650, -1.4531521
  %v1779 = vadd.f32 %v1651, -1.4531521
  %v1780 = vadd.f32 %v1652, -1.4531521
  %v1781 = vadd.f32 %v1653, -1.4531521
  %v1782 = vadd.f32 %v1654, -1.4531521
  %v1783 = vadd.f32 %v1655, -1.4531521
  %v1784 = vadd.f32 %v1656, -1.4531521
  %v1785 = vadd.f32 %v1657, -1.4531521
  %v1786 = vadd.f32 %v1658, -1.4531521
  %v1787 = vadd.f32 %v1659, -1.4531521
  %v1788 = vadd.f32 %v1660, -1.4531521
  %v1789 = vadd.f32 %v1661, -1.4531521
  %v1790 = vadd.f32 %v1662, -1.4531521
  %v1791 = vadd.f32 %v1663, -1.4531521
  %v1792 = vadd.f32 %v1664, -1.4531521
  %v1793 = vadd.f32 %v1665, -1.4531521
  %v1794 = vadd.f32 %v1666, -1.4531521
  %v1795 = vadd.f32 %v1667, -1.4531521
  %v1796 = vadd.f32 %v1668, -1.4531521
  %v1797 = vadd.f32 %v1669, -1.4531521
  %v1798 = vadd.f32 %v1670, -1.4531521
  %v1799 = vadd.f32 %v1671, -1.4531521
  %v1800 = vadd.f32 %v1672, -1.4531521
  %v1801 = vadd.f32 %v1673, -1.4531521
  %v1802 = vadd.f32 %v1674, -1.4531521
  %v1803 = vadd.f32 %v1675, -1.4531521
  %v1804 = vadd.f32 %v1676, -1.4531521
  %v1805 = vadd.f32 %v1677, -1.4531521
  %v1806 = vadd.f32 %v1678, -1.4531521
  %v1807 = vadd.f32 %v1679, -1.4531521
  %v1808 = vadd.f32 %v1680, -1.4531521
  %v1809 = vadd.f32 %v1681, -1.4531521
  %v1810 = vadd.f32 %v1682, -1.4531521
  %v1811 = vadd.f32 %v1683, -1.4531521
  %v1812 = vadd.f32 %v1684, -1.4531521
  %v1813 = vadd.f32 %v1685, -1.4531521
  %v1814 = vadd.f32 %v1686, -1.4531521
  %v1815 = vadd.f32 %v1687, -1.4531521
  %v1816 = vadd.f32 %v1688, -1.4531521
  %v1817 = vadd.f32 %v1689, -1.4531521
  %v1818 = vadd.f32 %v1690, -1.4531521
  %v1819 = vadd.f32 %v1691, -1.4531521
  %v1820 = vadd.f32 %v1692, -1.4531521
  %v1821 = vadd.f32 %v1693, -1.4531521
  %v1822 = vadd.f32 %v1694, -1.4531521
  %v1823 = vadd.f32 %v1695, -1.4531521
  %v1824 = vadd.f32 %v1696, -1.4531521
  %v1825 = vadd.f32 %v1697, -1.4531521
  %v1826 = vadd.f32 %v1698, -1.4531521
  %v1827 = vadd.f32 %v1699, -1.4531521
  %v1828 = vadd.f32 %v1700, -1.4531521
  %v1829 = vadd.f32 %v1701, -1.4531521
  %v1830 = vadd.f32 %v1702, -1.4531521
  %v1831 = vadd.f32 %v1703, -1.4531521
  %v1832 = vadd.f32 %v1704, -1.4531521
  %v1833 = vadd.f32 %v1705, -1.4531521
  %v1834 = vadd.f32 %v1706, -1.4531521
  %v1835 = vadd.f32 %v1707, -1.4531521
  %v1836 = vadd.f32 %v1708, -1.4531521
  %v1837 = vadd.f32 %v1709, -1.4531521
  %v1838 = vadd.f32 %v1710, -1.4531521
  %v1839 = vadd.f32 %v1711, -1.4531521
  %v1840 = vadd.f32 %v1712, -1.4531521
  %v1841 = vadd.f32 %v1713, -1.4531521
  %v1842 = vadd.f32 %v1714, -1.4531521
  %v1843 = vadd.f32 %v1715, -1.4531521
  %v1844 = vadd.f32 %v1716, -1.4531521
  %v1845 = vadd.f32 %v1717, -1.4531521
  %v1846 = vadd.f32 %v1718, -1.4531521
  %v1847 = vadd.f32 %v1719, -1.4531521
  %v1848 = vadd.f32 %v1720, -1.4531521
  %v1849 = vadd.f32 %v1721, -1.4531521
  %v1850 = vadd.f32 %v1722, -1.4531521
  %v1851 = vadd.f32 %v1723, -1.4531521
  %v1852 = vadd.f32 %v1724, -1.4531521
  %v1853 = vadd.f32 %v1725, -1.4531521
  %v1854 = vadd.f32 %v1726, -1.4531521
  %v1855 = vadd.f32 %v1727, -1.4531521
  %v1856 = vadd.f32 %v1728, -1.4531521
  %v1857 = vadd.f32 %v1729, -1.4531521
  %v1858 = vadd.f32 %v1730, -1.4531521
  %v1859 = vadd.f32 %v1731, -1.4531521
  %v1860 = vadd.f32 %v1732, -1.4531521
  %v1861 = vadd.f32 %v1733, -1.4531521
  %v1862 = vmul.f32 %v1734, %v1478
  %v1863 = vmul.f32 %v1735, %v1479
  %v1864 = vmul.f32 %v1736, %v1480
  %v1865 = vmul.f32 %v1737, %v1481
  %v1866 = vmul.f32 %v1738, %v1482
  %v1867 = vmul.f32 %v1739, %v1483
  %v1868 = vmul.f32 %v1740, %v1484
  %v1869 = vmul.f32 %v1741, %v1485
  %v1870 = vmul.f32 %v1742, %v1486
  %v1871 = vmul.f32 %v1743, %v1487
  %v1872 = vmul.f32 %v1744, %v1488
  %v1873 = vmul.f32 %v1745, %v1489
  %v1874 = vmul.f32 %v1746, %v1490
  %v1875 = vmul.f32 %v1747, %v1491
  %v1876 = vmul.f32 %v1748, %v1492
  %v1877 = vmul.f32 %v1749, %v1493
  %v1878 = vmul.f32 %v1750, %v1494
  %v1879 = vmul.f32 %v1751, %v1495
  %v1880 = vmul.f32 %v1752, %v1496
  %v1881 = vmul.f32 %v1753, %v1497
  %v1882 = vmul.f32 %v1754, %v1498
  %v1883 = vmul.f32 %v1755, %v1499
  %v1884 = vmul.f32 %v1756, %v1500
  %v1885 = vmul.f32 %v1757, %v1501
  %v1886 = vmul.f32 %v1758, %v1502
  %v1887 = vmul.f32 %v1759, %v1503
  %v1888 = vmul.f32 %v1760, %v1504
  %v1889 = vmul.f32 %v1761, %v1505
  %v1890 = vmul.f32 %v1762, %v1506
  %v1891 = vmul.f32 %v1763, %v1507
  %v1892 = vmul.f32 %v1764, %v1508
  %v1893 = vmul.f32 %v1765, %v1509
  %v1894 = vmul.f32 %v1766, %v1510
  %v1895 = vmul.f32 %v1767, %v1511
  %v1896 = vmul.f32 %v1768, %v1512
  %v1897 = vmul.f32 %v1769, %v1513
  %v1898 = vmul.f32 %v1770, %v1514
  %v1899 = vmul.f32 %v1771, %v1515
  %v1900 = vmul.f32 %v1772, %v1516
  %v1901 = vmul.f32 %v1773, %v1517
  %v1902 = vmul.f32 %v1774, %v1518
  %v1903 = vmul.f32 %v1775, %v1519
  %v1904 = vmul.f32 %v1776, %v1520
  %v1905 = vmul.f32 %v1777, %v1521
  %v1906 = vmul.f32 %v1778, %v1522
  %v1907 = vmul.f32 %v1779, %v1523
  %v1908 = vmul.f32 %v1780, %v1524
  %v1909 = vmul.f32 %v1781, %v1525
  %v1910 = vmul.f32 %v1782, %v1526
  %v1911 = vmul.f32 %v1783, %v1527
  %v1912 = vmul.f32 %v1784, %v1528
  %v1913 = vmul.f32 %v1785, %v1529
  %v1914 = vmul.f32 %v1786, %v1530
  %v1915 = vmul.f32 %v1787, %v1531
  %v1916 = vmul.f32 %v1788, %v1532
  %v1917 = vmul.f32 %v1789, %v1533
  %v1918 = vmul.f32 %v1790, %v1534
  %v1919 = vmul.f32 %v1791, %v1535
  %v1920 = vmul.f32 %v1792, %v1536
  %v1921 = vmul.f32 %v1793, %v1537
  %v1922 = vmul.f32 %v1794, %v1538
  %v1923 = vmul.f32 %v1795, %v1539
  %v1924 = vmul.f32 %v1796, %v1540
  %v1925 = vmul.f32 %v1797, %v1541
  %v1926 = vmul.f32 %v1798, %v1542
  %v1927 = vmul.f32 %v1799, %v1543
  %v1928 = vmul.f32 %v1800, %v1544
  %v1929 = vmul.f32 %v1801, %v1545
  %v1930 = vmul.f32 %v1802, %v1546
  %v1931 = vmul.f32 %v1803, %v1547
  %v1932 = vmul.f32 %v1804, %v1548
  %v1933 = vmul.f32 %v1805, %v1549
  %v1934 = vmul.f32 %v1806, %v1550
  %v1935 = vmul.f32 %v1807, %v1551
  %v1936 = vmul.f32 %v1808, %v1552
  %v1937 = vmul.f32 %v1809, %v1553
  %v1938 = vmul.f32 %v1810, %v1554
  %v1939 = vmul.f32 %v1811, %v1555
  %v1940 = vmul.f32 %v1812, %v1556
  %v1941 = vmul.f32 %v1813, %v1557
  %v1942 = vmul.f32 %v1814, %v1558
  %v1943 = vmul.f32 %v1815, %v1559
  %v1944 = vmul.f32 %v1816, %v1560
  %v1945 = vmul.f32 %v1817, %v1561
  %v1946 = vmul.f32 %v1818, %v1562
  %v1947 = vmul.f32 %v1819, %v1563
  %v1948 = vmul.f32 %v1820, %v1564
  %v1949 = vmul.f32 %v1821, %v1565
  %v1950 = vmul.f32 %v1822, %v1566
  %v1951 = vmul.f32 %v1823, %v1567
  %v1952 = vmul.f32 %v1824, %v1568
  %v1953 = vmul.f32 %v1825, %v1569
  %v1954 = vmul.f32 %v1826, %v1570
  %v1955 = vmul.f32 %v1827, %v1571
  %v1956 = vmul.f32 %v1828, %v1572
  %v1957 = vmul.f32 %v1829, %v1573
  %v1958 = vmul.f32 %v1830, %v1574
  %v1959 = vmul.f32 %v1831, %v1575
  %v1960 = vmul.f32 %v1832, %v1576
  %v1961 = vmul.f32 %v1833, %v1577
  %v1962 = vmul.f32 %v1834, %v1578
  %v1963 = vmul.f32 %v1835, %v1579
  %v1964 = vmul.f32 %v1836, %v1580
  %v1965 = vmul.f32 %v1837, %v1581
  %v1966 = vmul.f32 %v1838, %v1582
  %v1967 = vmul.f32 %v1839, %v1583
  %v1968 = vmul.f32 %v1840, %v1584
  %v1969 = vmul.f32 %v1841, %v1585
  %v1970 = vmul.f32 %v1842, %v1586
  %v1971 = vmul.f32 %v1843, %v1587
  %v1972 = vmul.f32 %v1844, %v1588
  %v1973 = vmul.f32 %v1845, %v1589
  %v1974 = vmul.f32 %v1846, %v1590
  %v1975 = vmul.f32 %v1847, %v1591
  %v1976 = vmul.f32 %v1848, %v1592
  %v1977 = vmul.f32 %v1849, %v1593
  %v1978 = vmul.f32 %v1850, %v1594
  %v1979 = vmul.f32 %v1851, %v1595
  %v1980 = vmul.f32 %v1852, %v1596
  %v1981 = vmul.f32 %v1853, %v1597
  %v1982 = vmul.f32 %v1854, %v1598
  %v1983 = vmul.f32 %v1855, %v1599
  %v1984 = vmul.f32 %v1856, %v1600
  %v1985 = vmul.f32 %v1857, %v1601
  %v1986 = vmul.f32 %v1858, %v1602
  %v1987 = vmul.f32 %v1859, %v1603
  %v1988 = vmul.f32 %v1860, %v1604
  %v1989 = vmul.f32 %v1861, %v1605
  %v1990 = vadd.f32 %v1862, 1.4214138
  %v1991 = vadd.f32 %v1863, 1.4214138
  %v1992 = vadd.f32 %v1864, 1.4214138
  %v1993 = vadd.f32 %v1865, 1.4214138
  %v1994 = vadd.f32 %v1866, 1.4214138
  %v1995 = vadd.f32 %v1867, 1.4214138
  %v1996 = vadd.f32 %v1868, 1.4214138
  %v1997 = vadd.f32 %v1869, 1.4214138
  %v1998 = vadd.f32 %v1870, 1.4214138
  %v1999 = vadd.f32 %v1871, 1.4214138
  %v2000 = vadd.f32 %v1872, 1.4214138
  %v2001 = vadd.f32 %v1873, 1.4214138
  %v2002 = vadd.f32 %v1874, 1.4214138
  %v2003 = vadd.f32 %v1875, 1.4214138
  %v2004 = vadd.f32 %v1876, 1.4214138
  %v2005 = vadd.f32 %v1877, 1.4214138
  %v2006 = vadd.f32 %v1878, 1.4214138
  %v2007 = vadd.f32 %v1879, 1.4214138
  %v2008 = vadd.f32 %v1880, 1.4214138
  %v2009 = vadd.f32 %v1881, 1.4214138
  %v2010 = vadd.f32 %v1882, 1.4214138
  %v2011 = vadd.f32 %v1883, 1.4214138
  %v2012 = vadd.f32 %v1884, 1.4214138
  %v2013 = vadd.f32 %v1885, 1.4214138
  %v2014 = vadd.f32 %v1886, 1.4214138
  %v2015 = vadd.f32 %v1887, 1.4214138
  %v2016 = vadd.f32 %v1888, 1.4214138
  %v2017 = vadd.f32 %v1889, 1.4214138
  %v2018 = vadd.f32 %v1890, 1.4214138
  %v2019 = vadd.f32 %v1891, 1.4214138
  %v2020 = vadd.f32 %v1892, 1.4214138
  %v2021 = vadd.f32 %v1893, 1.4214138
  %v2022 = vadd.f32 %v1894, 1.4214138
  %v2023 = vadd.f32 %v1895, 1.4214138
  %v2024 = vadd.f32 %v1896, 1.4214138
  %v2025 = vadd.f32 %v1897, 1.4214138
  %v2026 = vadd.f32 %v1898, 1.4214138
  %v2027 = vadd.f32 %v1899, 1.4214138
  %v2028 = vadd.f32 %v1900, 1.4214138
  %v2029 = vadd.f32 %v1901, 1.4214138
  %v2030 = vadd.f32 %v1902, 1.4214138
  %v2031 = vadd.f32 %v1903, 1.4214138
  %v2032 = vadd.f32 %v1904, 1.4214138
  %v2033 = vadd.f32 %v1905, 1.4214138
  %v2034 = vadd.f32 %v1906, 1.4214138
  %v2035 = vadd.f32 %v1907, 1.4214138
  %v2036 = vadd.f32 %v1908, 1.4214138
  %v2037 = vadd.f32 %v1909, 1.4214138
  %v2038 = vadd.f32 %v1910, 1.4214138
  %v2039 = vadd.f32 %v1911, 1.4214138
  %v2040 = vadd.f32 %v1912, 1.4214138
  %v2041 = vadd.f32 %v1913, 1.4214138
  %v2042 = vadd.f32 %v1914, 1.4214138
  %v2043 = vadd.f32 %v1915, 1.4214138
  %v2044 = vadd.f32 %v1916, 1.4214138
  %v2045 = vadd.f32 %v1917, 1.4214138
  %v2046 = vadd.f32 %v1918, 1.4214138
  %v2047 = vadd.f32 %v1919, 1.4214138
  %v2048 = vadd.f32 %v1920, 1.4214138
  %v2049 = vadd.f32 %v1921, 1.4214138
  %v2050 = vadd.f32 %v1922, 1.4214138
  %v2051 = vadd.f32 %v1923, 1.4214138
  %v2052 = vadd.f32 %v1924, 1.4214138
  %v2053 = vadd.f32 %v1925, 1.4214138
  %v2054 = vadd.f32 %v1926, 1.4214138
  %v2055 = vadd.f32 %v1927, 1.4214138
  %v2056 = vadd.f32 %v1928, 1.4214138
  %v2057 = vadd.f32 %v1929, 1.4214138
  %v2058 = vadd.f32 %v1930, 1.4214138
  %v2059 = vadd.f32 %v1931, 1.4214138
  %v2060 = vadd.f32 %v1932, 1.4214138
  %v2061 = vadd.f32 %v1933, 1.4214138
  %v2062 = vadd.f32 %v1934, 1.4214138
  %v2063 = vadd.f32 %v1935, 1.4214138
  %v2064 = vadd.f32 %v1936, 1.4214138
  %v2065 = vadd.f32 %v1937, 1.4214138
  %v2066 = vadd.f32 %v1938, 1.4214138
  %v2067 = vadd.f32 %v1939, 1.4214138
  %v2068 = vadd.f32 %v1940, 1.4214138
  %v2069 = vadd.f32 %v1941, 1.4214138
  %v2070 = vadd.f32 %v1942, 1.4214138
  %v2071 = vadd.f32 %v1943, 1.4214138
  %v2072 = vadd.f32 %v1944, 1.4214138
  %v2073 = vadd.f32 %v1945, 1.4214138
  %v2074 = vadd.f32 %v1946, 1.4214138
  %v2075 = vadd.f32 %v1947, 1.4214138
  %v2076 = vadd.f32 %v1948, 1.4214138
  %v2077 = vadd.f32 %v1949, 1.4214138
  %v2078 = vadd.f32 %v1950, 1.4214138
  %v2079 = vadd.f32 %v1951, 1.4214138
  %v2080 = vadd.f32 %v1952, 1.4214138
  %v2081 = vadd.f32 %v1953, 1.4214138
  %v2082 = vadd.f32 %v1954, 1.4214138
  %v2083 = vadd.f32 %v1955, 1.4214138
  %v2084 = vadd.f32 %v1956, 1.4214138
  %v2085 = vadd.f32 %v1957, 1.4214138
  %v2086 = vadd.f32 %v1958, 1.4214138
  %v2087 = vadd.f32 %v1959, 1.4214138
  %v2088 = vadd.f32 %v1960, 1.4214138
  %v2089 = vadd.f32 %v1961, 1.4214138
  %v2090 = vadd.f32 %v1962, 1.4214138
  %v2091 = vadd.f32 %v1963, 1.4214138
  %v2092 = vadd.f32 %v1964, 1.4214138
  %v2093 = vadd.f32 %v1965, 1.4214138
  %v2094 = vadd.f32 %v1966, 1.4214138
  %v2095 = vadd.f32 %v1967, 1.4214138
  %v2096 = vadd.f32 %v1968, 1.4214138
  %v2097 = vadd.f32 %v1969, 1.4214138
  %v2098 = vadd.f32 %v1970, 1.4214138
  %v2099 = vadd.f32 %v1971, 1.4214138
  %v2100 = vadd.f32 %v1972, 1.4214138
  %v2101 = vadd.f32 %v1973, 1.4214138
  %v2102 = vadd.f32 %v1974, 1.4214138
  %v2103 = vadd.f32 %v1975, 1.4214138
  %v2104 = vadd.f32 %v1976, 1.4214138
  %v2105 = vadd.f32 %v1977, 1.4214138
  %v2106 = vadd.f32 %v1978, 1.4214138
  %v2107 = vadd.f32 %v1979, 1.4214138
  %v2108 = vadd.f32 %v1980, 1.4214138
  %v2109 = vadd.f32 %v1981, 1.4214138
  %v2110 = vadd.f32 %v1982, 1.4214138
  %v2111 = vadd.f32 %v1983, 1.4214138
  %v2112 = vadd.f32 %v1984, 1.4214138
  %v2113 = vadd.f32 %v1985, 1.4214138
  %v2114 = vadd.f32 %v1986, 1.4214138
  %v2115 = vadd.f32 %v1987, 1.4214138
  %v2116 = vadd.f32 %v1988, 1.4214138
  %v2117 = vadd.f32 %v1989, 1.4214138
  %v2118 = vmul.f32 %v1990, %v1478
  %v2119 = vmul.f32 %v1991, %v1479
  %v2120 = vmul.f32 %v1992, %v1480
  %v2121 = vmul.f32 %v1993, %v1481
  %v2122 = vmul.f32 %v1994, %v1482
  %v2123 = vmul.f32 %v1995, %v1483
  %v2124 = vmul.f32 %v1996, %v1484
  %v2125 = vmul.f32 %v1997, %v1485
  %v2126 = vmul.f32 %v1998, %v1486
  %v2127 = vmul.f32 %v1999, %v1487
  %v2128 = vmul.f32 %v2000, %v1488
  %v2129 = vmul.f32 %v2001, %v1489
  %v2130 = vmul.f32 %v2002, %v1490
  %v2131 = vmul.f32 %v2003, %v1491
  %v2132 = vmul.f32 %v2004, %v1492
  %v2133 = vmul.f32 %v2005, %v1493
  %v2134 = vmul.f32 %v2006, %v1494
  %v2135 = vmul.f32 %v2007, %v1495
  %v2136 = vmul.f32 %v2008, %v1496
  %v2137 = vmul.f32 %v2009, %v1497
  %v2138 = vmul.f32 %v2010, %v1498
  %v2139 = vmul.f32 %v2011, %v1499
  %v2140 = vmul.f32 %v2012, %v1500
  %v2141 = vmul.f32 %v2013, %v1501
  %v2142 = vmul.f32 %v2014, %v1502
  %v2143 = vmul.f32 %v2015, %v1503
  %v2144 = vmul.f32 %v2016, %v1504
  %v2145 = vmul.f32 %v2017, %v1505
  %v2146 = vmul.f32 %v2018, %v1506
  %v2147 = vmul.f32 %v2019, %v1507
  %v2148 = vmul.f32 %v2020, %v1508
  %v2149 = vmul.f32 %v2021, %v1509
  %v2150 = vmul.f32 %v2022, %v1510
  %v2151 = vmul.f32 %v2023, %v1511
  %v2152 = vmul.f32 %v2024, %v1512
  %v2153 = vmul.f32 %v2025, %v1513
  %v2154 = vmul.f32 %v2026, %v1514
  %v2155 = vmul.f32 %v2027, %v1515
  %v2156 = vmul.f32 %v2028, %v1516
  %v2157 = vmul.f32 %v2029, %v1517
  %v2158 = vmul.f32 %v2030, %v1518
  %v2159 = vmul.f32 %v2031, %v1519
  %v2160 = vmul.f32 %v2032, %v1520
  %v2161 = vmul.f32 %v2033, %v1521
  %v2162 = vmul.f32 %v2034, %v1522
  %v2163 = vmul.f32 %v2035, %v1523
  %v2164 = vmul.f32 %v2036, %v1524
  %v2165 = vmul.f32 %v2037, %v1525
  %v2166 = vmul.f32 %v2038, %v1526
  %v2167 = vmul.f32 %v2039, %v1527
  %v2168 = vmul.f32 %v2040, %v1528
  %v2169 = vmul.f32 %v2041, %v1529
  %v2170 = vmul.f32 %v2042, %v1530
  %v2171 = vmul.f32 %v2043, %v1531
  %v2172 = vmul.f32 %v2044, %v1532
  %v2173 = vmul.f32 %v2045, %v1533
  %v2174 = vmul.f32 %v2046, %v1534
  %v2175 = vmul.f32 %v2047, %v1535
  %v2176 = vmul.f32 %v2048, %v1536
  %v2177 = vmul.f32 %v2049, %v1537
  %v2178 = vmul.f32 %v2050, %v1538
  %v2179 = vmul.f32 %v2051, %v1539
  %v2180 = vmul.f32 %v2052, %v1540
  %v2181 = vmul.f32 %v2053, %v1541
  %v2182 = vmul.f32 %v2054, %v1542
  %v2183 = vmul.f32 %v2055, %v1543
  %v2184 = vmul.f32 %v2056, %v1544
  %v2185 = vmul.f32 %v2057, %v1545
  %v2186 = vmul.f32 %v2058, %v1546
  %v2187 = vmul.f32 %v2059, %v1547
  %v2188 = vmul.f32 %v2060, %v1548
  %v2189 = vmul.f32 %v2061, %v1549
  %v2190 = vmul.f32 %v2062, %v1550
  %v2191 = vmul.f32 %v2063, %v1551
  %v2192 = vmul.f32 %v2064, %v1552
  %v2193 = vmul.f32 %v2065, %v1553
  %v2194 = vmul.f32 %v2066, %v1554
  %v2195 = vmul.f32 %v2067, %v1555
  %v2196 = vmul.f32 %v2068, %v1556
  %v2197 = vmul.f32 %v2069, %v1557
  %v2198 = vmul.f32 %v2070, %v1558
  %v2199 = vmul.f32 %v2071, %v1559
  %v2200 = vmul.f32 %v2072, %v1560
  %v2201 = vmul.f32 %v2073, %v1561
  %v2202 = vmul.f32 %v2074, %v1562
  %v2203 = vmul.f32 %v2075, %v1563
  %v2204 = vmul.f32 %v2076, %v1564
  %v2205 = vmul.f32 %v2077, %v1565
  %v2206 = vmul.f32 %v2078, %v1566
  %v2207 = vmul.f32 %v2079, %v1567
  %v2208 = vmul.f32 %v2080, %v1568
  %v2209 = vmul.f32 %v2081, %v1569
  %v2210 = vmul.f32 %v2082, %v1570
  %v2211 = vmul.f32 %v2083, %v1571
  %v2212 = vmul.f32 %v2084, %v1572
  %v2213 = vmul.f32 %v2085, %v1573
  %v2214 = vmul.f32 %v2086, %v1574
  %v2215 = vmul.f32 %v2087, %v1575
  %v2216 = vmul.f32 %v2088, %v1576
  %v2217 = vmul.f32 %v2089, %v1577
  %v2218 = vmul.f32 %v2090, %v1578
  %v2219 = vmul.f32 %v2091, %v1579
  %v2220 = vmul.f32 %v2092, %v1580
  %v2221 = vmul.f32 %v2093, %v1581
  %v2222 = vmul.f32 %v2094, %v1582
  %v2223 = vmul.f32 %v2095, %v1583
  %v2224 = vmul.f32 %v2096, %v1584
  %v2225 = vmul.f32 %v2097, %v1585
  %v2226 = vmul.f32 %v2098, %v1586
  %v2227 = vmul.f32 %v2099, %v1587
  %v2228 = vmul.f32 %v2100, %v1588
  %v2229 = vmul.f32 %v2101, %v1589
  %v2230 = vmul.f32 %v2102, %v1590
  %v2231 = vmul.f32 %v2103, %v1591
  %v2232 = vmul.f32 %v2104, %v1592
  %v2233 = vmul.f32 %v2105, %v1593
  %v2234 = vmul.f32 %v2106, %v1594
  %v2235 = vmul.f32 %v2107, %v1595
  %v2236 = vmul.f32 %v2108, %v1596
  %v2237 = vmul.f32 %v2109, %v1597
  %v2238 = vmul.f32 %v2110, %v1598
  %v2239 = vmul.f32 %v2111, %v1599
  %v2240 = vmul.f32 %v2112, %v1600
  %v2241 = vmul.f32 %v2113, %v1601
  %v2242 = vmul.f32 %v2114, %v1602
  %v2243 = vmul.f32 %v2115, %v1603
  %v2244 = vmul.f32 %v2116, %v1604
  %v2245 = vmul.f32 %v2117, %v1605
  %v2246 = vadd.f32 %v2118, -0.28449672
  %v2247 = vadd.f32 %v2119, -0.28449672
  %v2248 = vadd.f32 %v2120, -0.28449672
  %v2249 = vadd.f32 %v2121, -0.28449672
  %v2250 = vadd.f32 %v2122, -0.28449672
  %v2251 = vadd.f32 %v2123, -0.28449672
  %v2252 = vadd.f32 %v2124, -0.28449672
  %v2253 = vadd.f32 %v2125, -0.28449672
  %v2254 = vadd.f32 %v2126, -0.28449672
  %v2255 = vadd.f32 %v2127, -0.28449672
  %v2256 = vadd.f32 %v2128, -0.28449672
  %v2257 = vadd.f32 %v2129, -0.28449672
  %v2258 = vadd.f32 %v2130, -0.28449672
  %v2259 = vadd.f32 %v2131, -0.28449672
  %v2260 = vadd.f32 %v2132, -0.28449672
  %v2261 = vadd.f32 %v2133, -0.28449672
  %v2262 = vadd.f32 %v2134, -0.28449672
  %v2263 = vadd.f32 %v2135, -0.28449672
  %v2264 = vadd.f32 %v2136, -0.28449672
  %v2265 = vadd.f32 %v2137, -0.28449672
  %v2266 = vadd.f32 %v2138, -0.28449672
  %v2267 = vadd.f32 %v2139, -0.28449672
  %v2268 = vadd.f32 %v2140, -0.28449672
  %v2269 = vadd.f32 %v2141, -0.28449672
  %v2270 = vadd.f32 %v2142, -0.28449672
  %v2271 = vadd.f32 %v2143, -0.28449672
  %v2272 = vadd.f32 %v2144, -0.28449672
  %v2273 = vadd.f32 %v2145, -0.28449672
  %v2274 = vadd.f32 %v2146, -0.28449672
  %v2275 = vadd.f32 %v2147, -0.28449672
  %v2276 = vadd.f32 %v2148, -0.28449672
  %v2277 = vadd.f32 %v2149, -0.28449672
  %v2278 = vadd.f32 %v2150, -0.28449672
  %v2279 = vadd.f32 %v2151, -0.28449672
  %v2280 = vadd.f32 %v2152, -0.28449672
  %v2281 = vadd.f32 %v2153, -0.28449672
  %v2282 = vadd.f32 %v2154, -0.28449672
  %v2283 = vadd.f32 %v2155, -0.28449672
  %v2284 = vadd.f32 %v2156, -0.28449672
  %v2285 = vadd.f32 %v2157, -0.28449672
  %v2286 = vadd.f32 %v2158, -0.28449672
  %v2287 = vadd.f32 %v2159, -0.28449672
  %v2288 = vadd.f32 %v2160, -0.28449672
  %v2289 = vadd.f32 %v2161, -0.28449672
  %v2290 = vadd.f32 %v2162, -0.28449672
  %v2291 = vadd.f32 %v2163, -0.28449672
  %v2292 = vadd.f32 %v2164, -0.28449672
  %v2293 = vadd.f32 %v2165, -0.28449672
  %v2294 = vadd.f32 %v2166, -0.28449672
  %v2295 = vadd.f32 %v2167, -0.28449672
  %v2296 = vadd.f32 %v2168, -0.28449672
  %v2297 = vadd.f32 %v2169, -0.28449672
  %v2298 = vadd.f32 %v2170, -0.28449672
  %v2299 = vadd.f32 %v2171, -0.28449672
  %v2300 = vadd.f32 %v2172, -0.28449672
  %v2301 = vadd.f32 %v2173, -0.28449672
  %v2302 = vadd.f32 %v2174, -0.28449672
  %v2303 = vadd.f32 %v2175, -0.28449672
  %v2304 = vadd.f32 %v2176, -0.28449672
  %v2305 = vadd.f32 %v2177, -0.28449672
  %v2306 = vadd.f32 %v2178, -0.28449672
  %v2307 = vadd.f32 %v2179, -0.28449672
  %v2308 = vadd.f32 %v2180, -0.28449672
  %v2309 = vadd.f32 %v2181, -0.28449672
  %v2310 = vadd.f32 %v2182, -0.28449672
  %v2311 = vadd.f32 %v2183, -0.28449672
  %v2312 = vadd.f32 %v2184, -0.28449672
  %v2313 = vadd.f32 %v2185, -0.28449672
  %v2314 = vadd.f32 %v2186, -0.28449672
  %v2315 = vadd.f32 %v2187, -0.28449672
  %v2316 = vadd.f32 %v2188, -0.28449672
  %v2317 = vadd.f32 %v2189, -0.28449672
  %v2318 = vadd.f32 %v2190, -0.28449672
  %v2319 = vadd.f32 %v2191, -0.28449672
  %v2320 = vadd.f32 %v2192, -0.28449672
  %v2321 = vadd.f32 %v2193, -0.28449672
  %v2322 = vadd.f32 %v2194, -0.28449672
  %v2323 = vadd.f32 %v2195, -0.28449672
  %v2324 = vadd.f32 %v2196, -0.28449672
  %v2325 = vadd.f32 %v2197, -0.28449672
  %v2326 = vadd.f32 %v2198, -0.28449672
  %v2327 = vadd.f32 %v2199, -0.28449672
  %v2328 = vadd.f32 %v2200, -0.28449672
  %v2329 = vadd.f32 %v2201, -0.28449672
  %v2330 = vadd.f32 %v2202, -0.28449672
  %v2331 = vadd.f32 %v2203, -0.28449672
  %v2332 = vadd.f32 %v2204, -0.28449672
  %v2333 = vadd.f32 %v2205, -0.28449672
  %v2334 = vadd.f32 %v2206, -0.28449672
  %v2335 = vadd.f32 %v2207, -0.28449672
  %v2336 = vadd.f32 %v2208, -0.28449672
  %v2337 = vadd.f32 %v2209, -0.28449672
  %v2338 = vadd.f32 %v2210, -0.28449672
  %v2339 = vadd.f32 %v2211, -0.28449672
  %v2340 = vadd.f32 %v2212, -0.28449672
  %v2341 = vadd.f32 %v2213, -0.28449672
  %v2342 = vadd.f32 %v2214, -0.28449672
  %v2343 = vadd.f32 %v2215, -0.28449672
  %v2344 = vadd.f32 %v2216, -0.28449672
  %v2345 = vadd.f32 %v2217, -0.28449672
  %v2346 = vadd.f32 %v2218, -0.28449672
  %v2347 = vadd.f32 %v2219, -0.28449672
  %v2348 = vadd.f32 %v2220, -0.28449672
  %v2349 = vadd.f32 %v2221, -0.28449672
  %v2350 = vadd.f32 %v2222, -0.28449672
  %v2351 = vadd.f32 %v2223, -0.28449672
  %v2352 = vadd.f32 %v2224, -0.28449672
  %v2353 = vadd.f32 %v2225, -0.28449672
  %v2354 = vadd.f32 %v2226, -0.28449672
  %v2355 = vadd.f32 %v2227, -0.28449672
  %v2356 = vadd.f32 %v2228, -0.28449672
  %v2357 = vadd.f32 %v2229, -0.28449672
  %v2358 = vadd.f32 %v2230, -0.28449672
  %v2359 = vadd.f32 %v2231, -0.28449672
  %v2360 = vadd.f32 %v2232, -0.28449672
  %v2361 = vadd.f32 %v2233, -0.28449672
  %v2362 = vadd.f32 %v2234, -0.28449672
  %v2363 = vadd.f32 %v2235, -0.28449672
  %v2364 = vadd.f32 %v2236, -0.28449672
  %v2365 = vadd.f32 %v2237, -0.28449672
  %v2366 = vadd.f32 %v2238, -0.28449672
  %v2367 = vadd.f32 %v2239, -0.28449672
  %v2368 = vadd.f32 %v2240, -0.28449672
  %v2369 = vadd.f32 %v2241, -0.28449672
  %v2370 = vadd.f32 %v2242, -0.28449672
  %v2371 = vadd.f32 %v2243, -0.28449672
  %v2372 = vadd.f32 %v2244, -0.28449672
  %v2373 = vadd.f32 %v2245, -0.28449672
  %v2374 = vmul.f32 %v2246, %v1478
  %v2375 = vmul.f32 %v2247, %v1479
  %v2376 = vmul.f32 %v2248, %v1480
  %v2377 = vmul.f32 %v2249, %v1481
  %v2378 = vmul.f32 %v2250, %v1482
  %v2379 = vmul.f32 %v2251, %v1483
  %v2380 = vmul.f32 %v2252, %v1484
  %v2381 = vmul.f32 %v2253, %v1485
  %v2382 = vmul.f32 %v2254, %v1486
  %v2383 = vmul.f32 %v2255, %v1487
  %v2384 = vmul.f32 %v2256, %v1488
  %v2385 = vmul.f32 %v2257, %v1489
  %v2386 = vmul.f32 %v2258, %v1490
  %v2387 = vmul.f32 %v2259, %v1491
  %v2388 = vmul.f32 %v2260, %v1492
  %v2389 = vmul.f32 %v2261, %v1493
  %v2390 = vmul.f32 %v2262, %v1494
  %v2391 = vmul.f32 %v2263, %v1495
  %v2392 = vmul.f32 %v2264, %v1496
  %v2393 = vmul.f32 %v2265, %v1497
  %v2394 = vmul.f32 %v2266, %v1498
  %v2395 = vmul.f32 %v2267, %v1499
  %v2396 = vmul.f32 %v2268, %v1500
  %v2397 = vmul.f32 %v2269, %v1501
  %v2398 = vmul.f32 %v2270, %v1502
  %v2399 = vmul.f32 %v2271, %v1503
  %v2400 = vmul.f32 %v2272, %v1504
  %v2401 = vmul.f32 %v2273, %v1505
  %v2402 = vmul.f32 %v2274, %v1506
  %v2403 = vmul.f32 %v2275, %v1507
  %v2404 = vmul.f32 %v2276, %v1508
  %v2405 = vmul.f32 %v2277, %v1509
  %v2406 = vmul.f32 %v2278, %v1510
  %v2407 = vmul.f32 %v2279, %v1511
  %v2408 = vmul.f32 %v2280, %v1512
  %v2409 = vmul.f32 %v2281, %v1513
  %v2410 = vmul.f32 %v2282, %v1514
  %v2411 = vmul.f32 %v2283, %v1515
  %v2412 = vmul.f32 %v2284, %v1516
  %v2413 = vmul.f32 %v2285, %v1517
  %v2414 = vmul.f32 %v2286, %v1518
  %v2415 = vmul.f32 %v2287, %v1519
  %v2416 = vmul.f32 %v2288, %v1520
  %v2417 = vmul.f32 %v2289, %v1521
  %v2418 = vmul.f32 %v2290, %v1522
  %v2419 = vmul.f32 %v2291, %v1523
  %v2420 = vmul.f32 %v2292, %v1524
  %v2421 = vmul.f32 %v2293, %v1525
  %v2422 = vmul.f32 %v2294, %v1526
  %v2423 = vmul.f32 %v2295, %v1527
  %v2424 = vmul.f32 %v2296, %v1528
  %v2425 = vmul.f32 %v2297, %v1529
  %v2426 = vmul.f32 %v2298, %v1530
  %v2427 = vmul.f32 %v2299, %v1531
  %v2428 = vmul.f32 %v2300, %v1532
  %v2429 = vmul.f32 %v2301, %v1533
  %v2430 = vmul.f32 %v2302, %v1534
  %v2431 = vmul.f32 %v2303, %v1535
  %v2432 = vmul.f32 %v2304, %v1536
  %v2433 = vmul.f32 %v2305, %v1537
  %v2434 = vmul.f32 %v2306, %v1538
  %v2435 = vmul.f32 %v2307, %v1539
  %v2436 = vmul.f32 %v2308, %v1540
  %v2437 = vmul.f32 %v2309, %v1541
  %v2438 = vmul.f32 %v2310, %v1542
  %v2439 = vmul.f32 %v2311, %v1543
  %v2440 = vmul.f32 %v2312, %v1544
  %v2441 = vmul.f32 %v2313, %v1545
  %v2442 = vmul.f32 %v2314, %v1546
  %v2443 = vmul.f32 %v2315, %v1547
  %v2444 = vmul.f32 %v2316, %v1548
  %v2445 = vmul.f32 %v2317, %v1549
  %v2446 = vmul.f32 %v2318, %v1550
  %v2447 = vmul.f32 %v2319, %v1551
  %v2448 = vmul.f32 %v2320, %v1552
  %v2449 = vmul.f32 %v2321, %v1553
  %v2450 = vmul.f32 %v2322, %v1554
  %v2451 = vmul.f32 %v2323, %v1555
  %v2452 = vmul.f32 %v2324, %v1556
  %v2453 = vmul.f32 %v2325, %v1557
  %v2454 = vmul.f32 %v2326, %v1558
  %v2455 = vmul.f32 %v2327, %v1559
  %v2456 = vmul.f32 %v2328, %v1560
  %v2457 = vmul.f32 %v2329, %v1561
  %v2458 = vmul.f32 %v2330, %v1562
  %v2459 = vmul.f32 %v2331, %v1563
  %v2460 = vmul.f32 %v2332, %v1564
  %v2461 = vmul.f32 %v2333, %v1565
  %v2462 = vmul.f32 %v2334, %v1566
  %v2463 = vmul.f32 %v2335, %v1567
  %v2464 = vmul.f32 %v2336, %v1568
  %v2465 = vmul.f32 %v2337, %v1569
  %v2466 = vmul.f32 %v2338, %v1570
  %v2467 = vmul.f32 %v2339, %v1571
  %v2468 = vmul.f32 %v2340, %v1572
  %v2469 = vmul.f32 %v2341, %v1573
  %v2470 = vmul.f32 %v2342, %v1574
  %v2471 = vmul.f32 %v2343, %v1575
  %v2472 = vmul.f32 %v2344, %v1576
  %v2473 = vmul.f32 %v2345, %v1577
  %v2474 = vmul.f32 %v2346, %v1578
  %v2475 = vmul.f32 %v2347, %v1579
  %v2476 = vmul.f32 %v2348, %v1580
  %v2477 = vmul.f32 %v2349, %v1581
  %v2478 = vmul.f32 %v2350, %v1582
  %v2479 = vmul.f32 %v2351, %v1583
  %v2480 = vmul.f32 %v2352, %v1584
  %v2481 = vmul.f32 %v2353, %v1585
  %v2482 = vmul.f32 %v2354, %v1586
  %v2483 = vmul.f32 %v2355, %v1587
  %v2484 = vmul.f32 %v2356, %v1588
  %v2485 = vmul.f32 %v2357, %v1589
  %v2486 = vmul.f32 %v2358, %v1590
  %v2487 = vmul.f32 %v2359, %v1591
  %v2488 = vmul.f32 %v2360, %v1592
  %v2489 = vmul.f32 %v2361, %v1593
  %v2490 = vmul.f32 %v2362, %v1594
  %v2491 = vmul.f32 %v2363, %v1595
  %v2492 = vmul.f32 %v2364, %v1596
  %v2493 = vmul.f32 %v2365, %v1597
  %v2494 = vmul.f32 %v2366, %v1598
  %v2495 = vmul.f32 %v2367, %v1599
  %v2496 = vmul.f32 %v2368, %v1600
  %v2497 = vmul.f32 %v2369, %v1601
  %v2498 = vmul.f32 %v2370, %v1602
  %v2499 = vmul.f32 %v2371, %v1603
  %v2500 = vmul.f32 %v2372, %v1604
  %v2501 = vmul.f32 %v2373, %v1605
  %v2502 = vadd.f32 %v2374, 0.2548296
  %v2503 = vadd.f32 %v2375, 0.2548296
  %v2504 = vadd.f32 %v2376, 0.2548296
  %v2505 = vadd.f32 %v2377, 0.2548296
  %v2506 = vadd.f32 %v2378, 0.2548296
  %v2507 = vadd.f32 %v2379, 0.2548296
  %v2508 = vadd.f32 %v2380, 0.2548296
  %v2509 = vadd.f32 %v2381, 0.2548296
  %v2510 = vadd.f32 %v2382, 0.2548296
  %v2511 = vadd.f32 %v2383, 0.2548296
  %v2512 = vadd.f32 %v2384, 0.2548296
  %v2513 = vadd.f32 %v2385, 0.2548296
  %v2514 = vadd.f32 %v2386, 0.2548296
  %v2515 = vadd.f32 %v2387, 0.2548296
  %v2516 = vadd.f32 %v2388, 0.2548296
  %v2517 = vadd.f32 %v2389, 0.2548296
  %v2518 = vadd.f32 %v2390, 0.2548296
  %v2519 = vadd.f32 %v2391, 0.2548296
  %v2520 = vadd.f32 %v2392, 0.2548296
  %v2521 = vadd.f32 %v2393, 0.2548296
  %v2522 = vadd.f32 %v2394, 0.2548296
  %v2523 = vadd.f32 %v2395, 0.2548296
  %v2524 = vadd.f32 %v2396, 0.2548296
  %v2525 = vadd.f32 %v2397, 0.2548296
  %v2526 = vadd.f32 %v2398, 0.2548296
  %v2527 = vadd.f32 %v2399, 0.2548296
  %v2528 = vadd.f32 %v2400, 0.2548296
  %v2529 = vadd.f32 %v2401, 0.2548296
  %v2530 = vadd.f32 %v2402, 0.2548296
  %v2531 = vadd.f32 %v2403, 0.2548296
  %v2532 = vadd.f32 %v2404, 0.2548296
  %v2533 = vadd.f32 %v2405, 0.2548296
  %v2534 = vadd.f32 %v2406, 0.2548296
  %v2535 = vadd.f32 %v2407, 0.2548296
  %v2536 = vadd.f32 %v2408, 0.2548296
  %v2537 = vadd.f32 %v2409, 0.2548296
  %v2538 = vadd.f32 %v2410, 0.2548296
  %v2539 = vadd.f32 %v2411, 0.2548296
  %v2540 = vadd.f32 %v2412, 0.2548296
  %v2541 = vadd.f32 %v2413, 0.2548296
  %v2542 = vadd.f32 %v2414, 0.2548296
  %v2543 = vadd.f32 %v2415, 0.2548296
  %v2544 = vadd.f32 %v2416, 0.2548296
  %v2545 = vadd.f32 %v2417, 0.2548296
  %v2546 = vadd.f32 %v2418, 0.2548296
  %v2547 = vadd.f32 %v2419, 0.2548296
  %v2548 = vadd.f32 %v2420, 0.2548296
  %v2549 = vadd.f32 %v2421, 0.2548296
  %v2550 = vadd.f32 %v2422, 0.2548296
  %v2551 = vadd.f32 %v2423, 0.2548296
  %v2552 = vadd.f32 %v2424, 0.2548296
  %v2553 = vadd.f32 %v2425, 0.2548296
  %v2554 = vadd.f32 %v2426, 0.2548296
  %v2555 = vadd.f32 %v2427, 0.2548296
  %v2556 = vadd.f32 %v2428, 0.2548296
  %v2557 = vadd.f32 %v2429, 0.2548296
  %v2558 = vadd.f32 %v2430, 0.2548296
  %v2559 = vadd.f32 %v2431, 0.2548296
  %v2560 = vadd.f32 %v2432, 0.2548296
  %v2561 = vadd.f32 %v2433, 0.2548296
  %v2562 = vadd.f32 %v2434, 0.2548296
  %v2563 = vadd.f32 %v2435, 0.2548296
  %v2564 = vadd.f32 %v2436, 0.2548296
  %v2565 = vadd.f32 %v2437, 0.2548296
  %v2566 = vadd.f32 %v2438, 0.2548296
  %v2567 = vadd.f32 %v2439, 0.2548296
  %v2568 = vadd.f32 %v2440, 0.2548296
  %v2569 = vadd.f32 %v2441, 0.2548296
  %v2570 = vadd.f32 %v2442, 0.2548296
  %v2571 = vadd.f32 %v2443, 0.2548296
  %v2572 = vadd.f32 %v2444, 0.2548296
  %v2573 = vadd.f32 %v2445, 0.2548296
  %v2574 = vadd.f32 %v2446, 0.2548296
  %v2575 = vadd.f32 %v2447, 0.2548296
  %v2576 = vadd.f32 %v2448, 0.2548296
  %v2577 = vadd.f32 %v2449, 0.2548296
  %v2578 = vadd.f32 %v2450, 0.2548296
  %v2579 = vadd.f32 %v2451, 0.2548296
  %v2580 = vadd.f32 %v2452, 0.2548296
  %v2581 = vadd.f32 %v2453, 0.2548296
  %v2582 = vadd.f32 %v2454, 0.2548296
  %v2583 = vadd.f32 %v2455, 0.2548296
  %v2584 = vadd.f32 %v2456, 0.2548296
  %v2585 = vadd.f32 %v2457, 0.2548296
  %v2586 = vadd.f32 %v2458, 0.2548296
  %v2587 = vadd.f32 %v2459, 0.2548296
  %v2588 = vadd.f32 %v2460, 0.2548296
  %v2589 = vadd.f32 %v2461, 0.2548296
  %v2590 = vadd.f32 %v2462, 0.2548296
  %v2591 = vadd.f32 %v2463, 0.2548296
  %v2592 = vadd.f32 %v2464, 0.2548296
  %v2593 = vadd.f32 %v2465, 0.2548296
  %v2594 = vadd.f32 %v2466, 0.2548296
  %v2595 = vadd.f32 %v2467, 0.2548296
  %v2596 = vadd.f32 %v2468, 0.2548296
  %v2597 = vadd.f32 %v2469, 0.2548296
  %v2598 = vadd.f32 %v2470, 0.2548296
  %v2599 = vadd.f32 %v2471, 0.2548296
  %v2600 = vadd.f32 %v2472, 0.2548296
  %v2601 = vadd.f32 %v2473, 0.2548296
  %v2602 = vadd.f32 %v2474, 0.2548296
  %v2603 = vadd.f32 %v2475, 0.2548296
  %v2604 = vadd.f32 %v2476, 0.2548296
  %v2605 = vadd.f32 %v2477, 0.2548296
  %v2606 = vadd.f32 %v2478, 0.2548296
  %v2607 = vadd.f32 %v2479, 0.2548296
  %v2608 = vadd.f32 %v2480, 0.2548296
  %v2609 = vadd.f32 %v2481, 0.2548296
  %v2610 = vadd.f32 %v2482, 0.2548296
  %v2611 = vadd.f32 %v2483, 0.2548296
  %v2612 = vadd.f32 %v2484, 0.2548296
  %v2613 = vadd.f32 %v2485, 0.2548296
  %v2614 = vadd.f32 %v2486, 0.2548296
  %v2615 = vadd.f32 %v2487, 0.2548296
  %v2616 = vadd.f32 %v2488, 0.2548296
  %v2617 = vadd.f32 %v2489, 0.2548296
  %v2618 = vadd.f32 %v2490, 0.2548296
  %v2619 = vadd.f32 %v2491, 0.2548296
  %v2620 = vadd.f32 %v2492, 0.2548296
  %v2621 = vadd.f32 %v2493, 0.2548296
  %v2622 = vadd.f32 %v2494, 0.2548296
  %v2623 = vadd.f32 %v2495, 0.2548296
  %v2624 = vadd.f32 %v2496, 0.2548296
  %v2625 = vadd.f32 %v2497, 0.2548296
  %v2626 = vadd.f32 %v2498, 0.2548296
  %v2627 = vadd.f32 %v2499, 0.2548296
  %v2628 = vadd.f32 %v2500, 0.2548296
  %v2629 = vadd.f32 %v2501, 0.2548296
  %v2630 = vmul.f32 %v2502, %v1478
  %v2631 = vmul.f32 %v2503, %v1479
  %v2632 = vmul.f32 %v2504, %v1480
  %v2633 = vmul.f32 %v2505, %v1481
  %v2634 = vmul.f32 %v2506, %v1482
  %v2635 = vmul.f32 %v2507, %v1483
  %v2636 = vmul.f32 %v2508, %v1484
  %v2637 = vmul.f32 %v2509, %v1485
  %v2638 = vmul.f32 %v2510, %v1486
  %v2639 = vmul.f32 %v2511, %v1487
  %v2640 = vmul.f32 %v2512, %v1488
  %v2641 = vmul.f32 %v2513, %v1489
  %v2642 = vmul.f32 %v2514, %v1490
  %v2643 = vmul.f32 %v2515, %v1491
  %v2644 = vmul.f32 %v2516, %v1492
  %v2645 = vmul.f32 %v2517, %v1493
  %v2646 = vmul.f32 %v2518, %v1494
  %v2647 = vmul.f32 %v2519, %v1495
  %v2648 = vmul.f32 %v2520, %v1496
  %v2649 = vmul.f32 %v2521, %v1497
  %v2650 = vmul.f32 %v2522, %v1498
  %v2651 = vmul.f32 %v2523, %v1499
  %v2652 = vmul.f32 %v2524, %v1500
  %v2653 = vmul.f32 %v2525, %v1501
  %v2654 = vmul.f32 %v2526, %v1502
  %v2655 = vmul.f32 %v2527, %v1503
  %v2656 = vmul.f32 %v2528, %v1504
  %v2657 = vmul.f32 %v2529, %v1505
  %v2658 = vmul.f32 %v2530, %v1506
  %v2659 = vmul.f32 %v2531, %v1507
  %v2660 = vmul.f32 %v2532, %v1508
  %v2661 = vmul.f32 %v2533, %v1509
  %v2662 = vmul.f32 %v2534, %v1510
  %v2663 = vmul.f32 %v2535, %v1511
  %v2664 = vmul.f32 %v2536, %v1512
  %v2665 = vmul.f32 %v2537, %v1513
  %v2666 = vmul.f32 %v2538, %v1514
  %v2667 = vmul.f32 %v2539, %v1515
  %v2668 = vmul.f32 %v2540, %v1516
  %v2669 = vmul.f32 %v2541, %v1517
  %v2670 = vmul.f32 %v2542, %v1518
  %v2671 = vmul.f32 %v2543, %v1519
  %v2672 = vmul.f32 %v2544, %v1520
  %v2673 = vmul.f32 %v2545, %v1521
  %v2674 = vmul.f32 %v2546, %v1522
  %v2675 = vmul.f32 %v2547, %v1523
  %v2676 = vmul.f32 %v2548, %v1524
  %v2677 = vmul.f32 %v2549, %v1525
  %v2678 = vmul.f32 %v2550, %v1526
  %v2679 = vmul.f32 %v2551, %v1527
  %v2680 = vmul.f32 %v2552, %v1528
  %v2681 = vmul.f32 %v2553, %v1529
  %v2682 = vmul.f32 %v2554, %v1530
  %v2683 = vmul.f32 %v2555, %v1531
  %v2684 = vmul.f32 %v2556, %v1532
  %v2685 = vmul.f32 %v2557, %v1533
  %v2686 = vmul.f32 %v2558, %v1534
  %v2687 = vmul.f32 %v2559, %v1535
  %v2688 = vmul.f32 %v2560, %v1536
  %v2689 = vmul.f32 %v2561, %v1537
  %v2690 = vmul.f32 %v2562, %v1538
  %v2691 = vmul.f32 %v2563, %v1539
  %v2692 = vmul.f32 %v2564, %v1540
  %v2693 = vmul.f32 %v2565, %v1541
  %v2694 = vmul.f32 %v2566, %v1542
  %v2695 = vmul.f32 %v2567, %v1543
  %v2696 = vmul.f32 %v2568, %v1544
  %v2697 = vmul.f32 %v2569, %v1545
  %v2698 = vmul.f32 %v2570, %v1546
  %v2699 = vmul.f32 %v2571, %v1547
  %v2700 = vmul.f32 %v2572, %v1548
  %v2701 = vmul.f32 %v2573, %v1549
  %v2702 = vmul.f32 %v2574, %v1550
  %v2703 = vmul.f32 %v2575, %v1551
  %v2704 = vmul.f32 %v2576, %v1552
  %v2705 = vmul.f32 %v2577, %v1553
  %v2706 = vmul.f32 %v2578, %v1554
  %v2707 = vmul.f32 %v2579, %v1555
  %v2708 = vmul.f32 %v2580, %v1556
  %v2709 = vmul.f32 %v2581, %v1557
  %v2710 = vmul.f32 %v2582, %v1558
  %v2711 = vmul.f32 %v2583, %v1559
  %v2712 = vmul.f32 %v2584, %v1560
  %v2713 = vmul.f32 %v2585, %v1561
  %v2714 = vmul.f32 %v2586, %v1562
  %v2715 = vmul.f32 %v2587, %v1563
  %v2716 = vmul.f32 %v2588, %v1564
  %v2717 = vmul.f32 %v2589, %v1565
  %v2718 = vmul.f32 %v2590, %v1566
  %v2719 = vmul.f32 %v2591, %v1567
  %v2720 = vmul.f32 %v2592, %v1568
  %v2721 = vmul.f32 %v2593, %v1569
  %v2722 = vmul.f32 %v2594, %v1570
  %v2723 = vmul.f32 %v2595, %v1571
  %v2724 = vmul.f32 %v2596, %v1572
  %v2725 = vmul.f32 %v2597, %v1573
  %v2726 = vmul.f32 %v2598, %v1574
  %v2727 = vmul.f32 %v2599, %v1575
  %v2728 = vmul.f32 %v2600, %v1576
  %v2729 = vmul.f32 %v2601, %v1577
  %v2730 = vmul.f32 %v2602, %v1578
  %v2731 = vmul.f32 %v2603, %v1579
  %v2732 = vmul.f32 %v2604, %v1580
  %v2733 = vmul.f32 %v2605, %v1581
  %v2734 = vmul.f32 %v2606, %v1582
  %v2735 = vmul.f32 %v2607, %v1583
  %v2736 = vmul.f32 %v2608, %v1584
  %v2737 = vmul.f32 %v2609, %v1585
  %v2738 = vmul.f32 %v2610, %v1586
  %v2739 = vmul.f32 %v2611, %v1587
  %v2740 = vmul.f32 %v2612, %v1588
  %v2741 = vmul.f32 %v2613, %v1589
  %v2742 = vmul.f32 %v2614, %v1590
  %v2743 = vmul.f32 %v2615, %v1591
  %v2744 = vmul.f32 %v2616, %v1592
  %v2745 = vmul.f32 %v2617, %v1593
  %v2746 = vmul.f32 %v2618, %v1594
  %v2747 = vmul.f32 %v2619, %v1595
  %v2748 = vmul.f32 %v2620, %v1596
  %v2749 = vmul.f32 %v2621, %v1597
  %v2750 = vmul.f32 %v2622, %v1598
  %v2751 = vmul.f32 %v2623, %v1599
  %v2752 = vmul.f32 %v2624, %v1600
  %v2753 = vmul.f32 %v2625, %v1601
  %v2754 = vmul.f32 %v2626, %v1602
  %v2755 = vmul.f32 %v2627, %v1603
  %v2756 = vmul.f32 %v2628, %v1604
  %v2757 = vmul.f32 %v2629, %v1605
  %v2758 = vsub.f32 0.0, %v1094
  %v2759 = vsub.f32 0.0, %v1095
  %v2760 = vsub.f32 0.0, %v1096
  %v2761 = vsub.f32 0.0, %v1097
  %v2762 = vsub.f32 0.0, %v1098
  %v2763 = vsub.f32 0.0, %v1099
  %v2764 = vsub.f32 0.0, %v1100
  %v2765 = vsub.f32 0.0, %v1101
  %v2766 = vsub.f32 0.0, %v1102
  %v2767 = vsub.f32 0.0, %v1103
  %v2768 = vsub.f32 0.0, %v1104
  %v2769 = vsub.f32 0.0, %v1105
  %v2770 = vsub.f32 0.0, %v1106
  %v2771 = vsub.f32 0.0, %v1107
  %v2772 = vsub.f32 0.0, %v1108
  %v2773 = vsub.f32 0.0, %v1109
  %v2774 = vsub.f32 0.0, %v1110
  %v2775 = vsub.f32 0.0, %v1111
  %v2776 = vsub.f32 0.0, %v1112
  %v2777 = vsub.f32 0.0, %v1113
  %v2778 = vsub.f32 0.0, %v1114
  %v2779 = vsub.f32 0.0, %v1115
  %v2780 = vsub.f32 0.0, %v1116
  %v2781 = vsub.f32 0.0, %v1117
  %v2782 = vsub.f32 0.0, %v1118
  %v2783 = vsub.f32 0.0, %v1119
  %v2784 = vsub.f32 0.0, %v1120
  %v2785 = vsub.f32 0.0, %v1121
  %v2786 = vsub.f32 0.0, %v1122
  %v2787 = vsub.f32 0.0, %v1123
  %v2788 = vsub.f32 0.0, %v1124
  %v2789 = vsub.f32 0.0, %v1125
  %v2790 = vsub.f32 0.0, %v1126
  %v2791 = vsub.f32 0.0, %v1127
  %v2792 = vsub.f32 0.0, %v1128
  %v2793 = vsub.f32 0.0, %v1129
  %v2794 = vsub.f32 0.0, %v1130
  %v2795 = vsub.f32 0.0, %v1131
  %v2796 = vsub.f32 0.0, %v1132
  %v2797 = vsub.f32 0.0, %v1133
  %v2798 = vsub.f32 0.0, %v1134
  %v2799 = vsub.f32 0.0, %v1135
  %v2800 = vsub.f32 0.0, %v1136
  %v2801 = vsub.f32 0.0, %v1137
  %v2802 = vsub.f32 0.0, %v1138
  %v2803 = vsub.f32 0.0, %v1139
  %v2804 = vsub.f32 0.0, %v1140
  %v2805 = vsub.f32 0.0, %v1141
  %v2806 = vsub.f32 0.0, %v1142
  %v2807 = vsub.f32 0.0, %v1143
  %v2808 = vsub.f32 0.0, %v1144
  %v2809 = vsub.f32 0.0, %v1145
  %v2810 = vsub.f32 0.0, %v1146
  %v2811 = vsub.f32 0.0, %v1147
  %v2812 = vsub.f32 0.0, %v1148
  %v2813 = vsub.f32 0.0, %v1149
  %v2814 = vsub.f32 0.0, %v1150
  %v2815 = vsub.f32 0.0, %v1151
  %v2816 = vsub.f32 0.0, %v1152
  %v2817 = vsub.f32 0.0, %v1153
  %v2818 = vsub.f32 0.0, %v1154
  %v2819 = vsub.f32 0.0, %v1155
  %v2820 = vsub.f32 0.0, %v1156
  %v2821 = vsub.f32 0.0, %v1157
  %v2822 = vsub.f32 0.0, %v1158
  %v2823 = vsub.f32 0.0, %v1159
  %v2824 = vsub.f32 0.0, %v1160
  %v2825 = vsub.f32 0.0, %v1161
  %v2826 = vsub.f32 0.0, %v1162
  %v2827 = vsub.f32 0.0, %v1163
  %v2828 = vsub.f32 0.0, %v1164
  %v2829 = vsub.f32 0.0, %v1165
  %v2830 = vsub.f32 0.0, %v1166
  %v2831 = vsub.f32 0.0, %v1167
  %v2832 = vsub.f32 0.0, %v1168
  %v2833 = vsub.f32 0.0, %v1169
  %v2834 = vsub.f32 0.0, %v1170
  %v2835 = vsub.f32 0.0, %v1171
  %v2836 = vsub.f32 0.0, %v1172
  %v2837 = vsub.f32 0.0, %v1173
  %v2838 = vsub.f32 0.0, %v1174
  %v2839 = vsub.f32 0.0, %v1175
  %v2840 = vsub.f32 0.0, %v1176
  %v2841 = vsub.f32 0.0, %v1177
  %v2842 = vsub.f32 0.0, %v1178
  %v2843 = vsub.f32 0.0, %v1179
  %v2844 = vsub.f32 0.0, %v1180
  %v2845 = vsub.f32 0.0, %v1181
  %v2846 = vsub.f32 0.0, %v1182
  %v2847 = vsub.f32 0.0, %v1183
  %v2848 = vsub.f32 0.0, %v1184
  %v2849 = vsub.f32 0.0, %v1185
  %v2850 = vsub.f32 0.0, %v1186
  %v2851 = vsub.f32 0.0, %v1187
  %v2852 = vsub.f32 0.0, %v1188
  %v2853 = vsub.f32 0.0, %v1189
  %v2854 = vsub.f32 0.0, %v1190
  %v2855 = vsub.f32 0.0, %v1191
  %v2856 = vsub.f32 0.0, %v1192
  %v2857 = vsub.f32 0.0, %v1193
  %v2858 = vsub.f32 0.0, %v1194
  %v2859 = vsub.f32 0.0, %v1195
  %v2860 = vsub.f32 0.0, %v1196
  %v2861 = vsub.f32 0.0, %v1197
  %v2862 = vsub.f32 0.0, %v1198
  %v2863 = vsub.f32 0.0, %v1199
  %v2864 = vsub.f32 0.0, %v1200
  %v2865 = vsub.f32 0.0, %v1201
  %v2866 = vsub.f32 0.0, %v1202
  %v2867 = vsub.f32 0.0, %v1203
  %v2868 = vsub.f32 0.0, %v1204
  %v2869 = vsub.f32 0.0, %v1205
  %v2870 = vsub.f32 0.0, %v1206
  %v2871 = vsub.f32 0.0, %v1207
  %v2872 = vsub.f32 0.0, %v1208
  %v2873 = vsub.f32 0.0, %v1209
  %v2874 = vsub.f32 0.0, %v1210
  %v2875 = vsub.f32 0.0, %v1211
  %v2876 = vsub.f32 0.0, %v1212
  %v2877 = vsub.f32 0.0, %v1213
  %v2878 = vsub.f32 0.0, %v1214
  %v2879 = vsub.f32 0.0, %v1215
  %v2880 = vsub.f32 0.0, %v1216
  %v2881 = vsub.f32 0.0, %v1217
  %v2882 = vsub.f32 0.0, %v1218
  %v2883 = vsub.f32 0.0, %v1219
  %v2884 = vsub.f32 0.0, %v1220
  %v2885 = vsub.f32 0.0, %v1221
  %v2886 = vmul.f32 %v2758, %v1094
  %v2887 = vmul.f32 %v2759, %v1095
  %v2888 = vmul.f32 %v2760, %v1096
  %v2889 = vmul.f32 %v2761, %v1097
  %v2890 = vmul.f32 %v2762, %v1098
  %v2891 = vmul.f32 %v2763, %v1099
  %v2892 = vmul.f32 %v2764, %v1100
  %v2893 = vmul.f32 %v2765, %v1101
  %v2894 = vmul.f32 %v2766, %v1102
  %v2895 = vmul.f32 %v2767, %v1103
  %v2896 = vmul.f32 %v2768, %v1104
  %v2897 = vmul.f32 %v2769, %v1105
  %v2898 = vmul.f32 %v2770, %v1106
  %v2899 = vmul.f32 %v2771, %v1107
  %v2900 = vmul.f32 %v2772, %v1108
  %v2901 = vmul.f32 %v2773, %v1109
  %v2902 = vmul.f32 %v2774, %v1110
  %v2903 = vmul.f32 %v2775, %v1111
  %v2904 = vmul.f32 %v2776, %v1112
  %v2905 = vmul.f32 %v2777, %v1113
  %v2906 = vmul.f32 %v2778, %v1114
  %v2907 = vmul.f32 %v2779, %v1115
  %v2908 = vmul.f32 %v2780, %v1116
  %v2909 = vmul.f32 %v2781, %v1117
  %v2910 = vmul.f32 %v2782, %v1118
  %v2911 = vmul.f32 %v2783, %v1119
  %v2912 = vmul.f32 %v2784, %v1120
  %v2913 = vmul.f32 %v2785, %v1121
  %v2914 = vmul.f32 %v2786, %v1122
  %v2915 = vmul.f32 %v2787, %v1123
  %v2916 = vmul.f32 %v2788, %v1124
  %v2917 = vmul.f32 %v2789, %v1125
  %v2918 = vmul.f32 %v2790, %v1126
  %v2919 = vmul.f32 %v2791, %v1127
  %v2920 = vmul.f32 %v2792, %v1128
  %v2921 = vmul.f32 %v2793, %v1129
  %v2922 = vmul.f32 %v2794, %v1130
  %v2923 = vmul.f32 %v2795, %v1131
  %v2924 = vmul.f32 %v2796, %v1132
  %v2925 = vmul.f32 %v2797, %v1133
  %v2926 = vmul.f32 %v2798, %v1134
  %v2927 = vmul.f32 %v2799, %v1135
  %v2928 = vmul.f32 %v2800, %v1136
  %v2929 = vmul.f32 %v2801, %v1137
  %v2930 = vmul.f32 %v2802, %v1138
  %v2931 = vmul.f32 %v2803, %v1139
  %v2932 = vmul.f32 %v2804, %v1140
  %v2933 = vmul.f32 %v2805, %v1141
  %v2934 = vmul.f32 %v2806, %v1142
  %v2935 = vmul.f32 %v2807, %v1143
  %v2936 = vmul.f32 %v2808, %v1144
  %v2937 = vmul.f32 %v2809, %v1145
  %v2938 = vmul.f32 %v2810, %v1146
  %v2939 = vmul.f32 %v2811, %v1147
  %v2940 = vmul.f32 %v2812, %v1148
  %v2941 = vmul.f32 %v2813, %v1149
  %v2942 = vmul.f32 %v2814, %v1150
  %v2943 = vmul.f32 %v2815, %v1151
  %v2944 = vmul.f32 %v2816, %v1152
  %v2945 = vmul.f32 %v2817, %v1153
  %v2946 = vmul.f32 %v2818, %v1154
  %v2947 = vmul.f32 %v2819, %v1155
  %v2948 = vmul.f32 %v2820, %v1156
  %v2949 = vmul.f32 %v2821, %v1157
  %v2950 = vmul.f32 %v2822, %v1158
  %v2951 = vmul.f32 %v2823, %v1159
  %v2952 = vmul.f32 %v2824, %v1160
  %v2953 = vmul.f32 %v2825, %v1161
  %v2954 = vmul.f32 %v2826, %v1162
  %v2955 = vmul.f32 %v2827, %v1163
  %v2956 = vmul.f32 %v2828, %v1164
  %v2957 = vmul.f32 %v2829, %v1165
  %v2958 = vmul.f32 %v2830, %v1166
  %v2959 = vmul.f32 %v2831, %v1167
  %v2960 = vmul.f32 %v2832, %v1168
  %v2961 = vmul.f32 %v2833, %v1169
  %v2962 = vmul.f32 %v2834, %v1170
  %v2963 = vmul.f32 %v2835, %v1171
  %v2964 = vmul.f32 %v2836, %v1172
  %v2965 = vmul.f32 %v2837, %v1173
  %v2966 = vmul.f32 %v2838, %v1174
  %v2967 = vmul.f32 %v2839, %v1175
  %v2968 = vmul.f32 %v2840, %v1176
  %v2969 = vmul.f32 %v2841, %v1177
  %v2970 = vmul.f32 %v2842, %v1178
  %v2971 = vmul.f32 %v2843, %v1179
  %v2972 = vmul.f32 %v2844, %v1180
  %v2973 = vmul.f32 %v2845, %v1181
  %v2974 = vmul.f32 %v2846, %v1182
  %v2975 = vmul.f32 %v2847, %v1183
  %v2976 = vmul.f32 %v2848, %v1184
  %v2977 = vmul.f32 %v2849, %v1185
  %v2978 = vmul.f32 %v2850, %v1186
  %v2979 = vmul.f32 %v2851, %v1187
  %v2980 = vmul.f32 %v2852, %v1188
  %v2981 = vmul.f32 %v2853, %v1189
  %v2982 = vmul.f32 %v2854, %v1190
  %v2983 = vmul.f32 %v2855, %v1191
  %v2984 = vmul.f32 %v2856, %v1192
  %v2985 = vmul.f32 %v2857, %v1193
  %v2986 = vmul.f32 %v2858, %v1194
  %v2987 = vmul.f32 %v2859, %v1195
  %v2988 = vmul.f32 %v2860, %v1196
  %v2989 = vmul.f32 %v2861, %v1197
  %v2990 = vmul.f32 %v2862, %v1198
  %v2991 = vmul.f32 %v2863, %v1199
  %v2992 = vmul.f32 %v2864, %v1200
  %v2993 = vmul.f32 %v2865, %v1201
  %v2994 = vmul.f32 %v2866, %v1202
  %v2995 = vmul.f32 %v2867, %v1203
  %v2996 = vmul.f32 %v2868, %v1204
  %v2997 = vmul.f32 %v2869, %v1205
  %v2998 = vmul.f32 %v2870, %v1206
  %v2999 = vmul.f32 %v2871, %v1207
  %v3000 = vmul.f32 %v2872, %v1208
  %v3001 = vmul.f32 %v2873, %v1209
  %v3002 = vmul.f32 %v2874, %v1210
  %v3003 = vmul.f32 %v2875, %v1211
  %v3004 = vmul.f32 %v2876, %v1212
  %v3005 = vmul.f32 %v2877, %v1213
  %v3006 = vmul.f32 %v2878, %v1214
  %v3007 = vmul.f32 %v2879, %v1215
  %v3008 = vmul.f32 %v2880, %v1216
  %v3009 = vmul.f32 %v2881, %v1217
  %v3010 = vmul.f32 %v2882, %v1218
  %v3011 = vmul.f32 %v2883, %v1219
  %v3012 = vmul.f32 %v2884, %v1220
  %v3013 = vmul.f32 %v2885, %v1221
  %v3014 = vmul.f32 %v2886, 1.442695
  %v3015 = vpow.pop %v3014
  %v3016 = vmul.f32 %v2887, 1.442695
  %v3017 = vpow.pop %v3016
  %v3018 = vmul.f32 %v2888, 1.442695
  %v3019 = vpow.pop %v3018
  %v3020 = vmul.f32 %v2889, 1.442695
  %v3021 = vpow.pop %v3020
  %v3022 = vmul.f32 %v2890, 1.442695
  %v3023 = vpow.pop %v3022
  %v3024 = vmul.f32 %v2891, 1.442695
  %v3025 = vpow.pop %v3024
  %v3026 = vmul.f32 %v2892, 1.442695
  %v3027 = vpow.pop %v3026
  %v3028 = vmul.f32 %v2893, 1.442695
  %v3029 = vpow.pop %v3028
  %v3030 = vmul.f32 %v2894, 1.442695
  %v3031 = vpow.pop %v3030
  %v3032 = vmul.f32 %v2895, 1.442695
  %v3033 = vpow.pop %v3032
  %v3034 = vmul.f32 %v2896, 1.442695
  %v3035 = vpow.pop %v3034
  %v3036 = vmul.f32 %v2897, 1.442695
  %v3037 = vpow.pop %v3036
  %v3038 = vmul.f32 %v2898, 1.442695
  %v3039 = vpow.pop %v3038
  %v3040 = vmul.f32 %v2899, 1.442695
  %v3041 = vpow.pop %v3040
  %v3042 = vmul.f32 %v2900, 1.442695
  %v3043 = vpow.pop %v3042
  %v3044 = vmul.f32 %v2901, 1.442695
  %v3045 = vpow.pop %v3044
  %v3046 = vmul.f32 %v2902, 1.442695
  %v3047 = vpow.pop %v3046
  %v3048 = vmul.f32 %v2903, 1.442695
  %v3049 = vpow.pop %v3048
  %v3050 = vmul.f32 %v2904, 1.442695
  %v3051 = vpow.pop %v3050
  %v3052 = vmul.f32 %v2905, 1.442695
  %v3053 = vpow.pop %v3052
  %v3054 = vmul.f32 %v2906, 1.442695
  %v3055 = vpow.pop %v3054
  %v3056 = vmul.f32 %v2907, 1.442695
  %v3057 = vpow.pop %v3056
  %v3058 = vmul.f32 %v2908, 1.442695
  %v3059 = vpow.pop %v3058
  %v3060 = vmul.f32 %v2909, 1.442695
  %v3061 = vpow.pop %v3060
  %v3062 = vmul.f32 %v2910, 1.442695
  %v3063 = vpow.pop %v3062
  %v3064 = vmul.f32 %v2911, 1.442695
  %v3065 = vpow.pop %v3064
  %v3066 = vmul.f32 %v2912, 1.442695
  %v3067 = vpow.pop %v3066
  %v3068 = vmul.f32 %v2913, 1.442695
  %v3069 = vpow.pop %v3068
  %v3070 = vmul.f32 %v2914, 1.442695
  %v3071 = vpow.pop %v3070
  %v3072 = vmul.f32 %v2915, 1.442695
  %v3073 = vpow.pop %v3072
  %v3074 = vmul.f32 %v2916, 1.442695
  %v3075 = vpow.pop %v3074
  %v3076 = vmul.f32 %v2917, 1.442695
  %v3077 = vpow.pop %v3076
  %v3078 = vmul.f32 %v2918, 1.442695
  %v3079 = vpow.pop %v3078
  %v3080 = vmul.f32 %v2919, 1.442695
  %v3081 = vpow.pop %v3080
  %v3082 = vmul.f32 %v2920, 1.442695
  %v3083 = vpow.pop %v3082
  %v3084 = vmul.f32 %v2921, 1.442695
  %v3085 = vpow.pop %v3084
  %v3086 = vmul.f32 %v2922, 1.442695
  %v3087 = vpow.pop %v3086
  %v3088 = vmul.f32 %v2923, 1.442695
  %v3089 = vpow.pop %v3088
  %v3090 = vmul.f32 %v2924, 1.442695
  %v3091 = vpow.pop %v3090
  %v3092 = vmul.f32 %v2925, 1.442695
  %v3093 = vpow.pop %v3092
  %v3094 = vmul.f32 %v2926, 1.442695
  %v3095 = vpow.pop %v3094
  %v3096 = vmul.f32 %v2927, 1.442695
  %v3097 = vpow.pop %v3096
  %v3098 = vmul.f32 %v2928, 1.442695
  %v3099 = vpow.pop %v3098
  %v3100 = vmul.f32 %v2929, 1.442695
  %v3101 = vpow.pop %v3100
  %v3102 = vmul.f32 %v2930, 1.442695
  %v3103 = vpow.pop %v3102
  %v3104 = vmul.f32 %v2931, 1.442695
  %v3105 = vpow.pop %v3104
  %v3106 = vmul.f32 %v2932, 1.442695
  %v3107 = vpow.pop %v3106
  %v3108 = vmul.f32 %v2933, 1.442695
  %v3109 = vpow.pop %v3108
  %v3110 = vmul.f32 %v2934, 1.442695
  %v3111 = vpow.pop %v3110
  %v3112 = vmul.f32 %v2935, 1.442695
  %v3113 = vpow.pop %v3112
  %v3114 = vmul.f32 %v2936, 1.442695
  %v3115 = vpow.pop %v3114
  %v3116 = vmul.f32 %v2937, 1.442695
  %v3117 = vpow.pop %v3116
  %v3118 = vmul.f32 %v2938, 1.442695
  %v3119 = vpow.pop %v3118
  %v3120 = vmul.f32 %v2939, 1.442695
  %v3121 = vpow.pop %v3120
  %v3122 = vmul.f32 %v2940, 1.442695
  %v3123 = vpow.pop %v3122
  %v3124 = vmul.f32 %v2941, 1.442695
  %v3125 = vpow.pop %v3124
  %v3126 = vmul.f32 %v2942, 1.442695
  %v3127 = vpow.pop %v3126
  %v3128 = vmul.f32 %v2943, 1.442695
  %v3129 = vpow.pop %v3128
  %v3130 = vmul.f32 %v2944, 1.442695
  %v3131 = vpow.pop %v3130
  %v3132 = vmul.f32 %v2945, 1.442695
  %v3133 = vpow.pop %v3132
  %v3134 = vmul.f32 %v2946, 1.442695
  %v3135 = vpow.pop %v3134
  %v3136 = vmul.f32 %v2947, 1.442695
  %v3137 = vpow.pop %v3136
  %v3138 = vmul.f32 %v2948, 1.442695
  %v3139 = vpow.pop %v3138
  %v3140 = vmul.f32 %v2949, 1.442695
  %v3141 = vpow.pop %v3140
  %v3142 = vmul.f32 %v2950, 1.442695
  %v3143 = vpow.pop %v3142
  %v3144 = vmul.f32 %v2951, 1.442695
  %v3145 = vpow.pop %v3144
  %v3146 = vmul.f32 %v2952, 1.442695
  %v3147 = vpow.pop %v3146
  %v3148 = vmul.f32 %v2953, 1.442695
  %v3149 = vpow.pop %v3148
  %v3150 = vmul.f32 %v2954, 1.442695
  %v3151 = vpow.pop %v3150
  %v3152 = vmul.f32 %v2955, 1.442695
  %v3153 = vpow.pop %v3152
  %v3154 = vmul.f32 %v2956, 1.442695
  %v3155 = vpow.pop %v3154
  %v3156 = vmul.f32 %v2957, 1.442695
  %v3157 = vpow.pop %v3156
  %v3158 = vmul.f32 %v2958, 1.442695
  %v3159 = vpow.pop %v3158
  %v3160 = vmul.f32 %v2959, 1.442695
  %v3161 = vpow.pop %v3160
  %v3162 = vmul.f32 %v2960, 1.442695
  %v3163 = vpow.pop %v3162
  %v3164 = vmul.f32 %v2961, 1.442695
  %v3165 = vpow.pop %v3164
  %v3166 = vmul.f32 %v2962, 1.442695
  %v3167 = vpow.pop %v3166
  %v3168 = vmul.f32 %v2963, 1.442695
  %v3169 = vpow.pop %v3168
  %v3170 = vmul.f32 %v2964, 1.442695
  %v3171 = vpow.pop %v3170
  %v3172 = vmul.f32 %v2965, 1.442695
  %v3173 = vpow.pop %v3172
  %v3174 = vmul.f32 %v2966, 1.442695
  %v3175 = vpow.pop %v3174
  %v3176 = vmul.f32 %v2967, 1.442695
  %v3177 = vpow.pop %v3176
  %v3178 = vmul.f32 %v2968, 1.442695
  %v3179 = vpow.pop %v3178
  %v3180 = vmul.f32 %v2969, 1.442695
  %v3181 = vpow.pop %v3180
  %v3182 = vmul.f32 %v2970, 1.442695
  %v3183 = vpow.pop %v3182
  %v3184 = vmul.f32 %v2971, 1.442695
  %v3185 = vpow.pop %v3184
  %v3186 = vmul.f32 %v2972, 1.442695
  %v3187 = vpow.pop %v3186
  %v3188 = vmul.f32 %v2973, 1.442695
  %v3189 = vpow.pop %v3188
  %v3190 = vmul.f32 %v2974, 1.442695
  %v3191 = vpow.pop %v3190
  %v3192 = vmul.f32 %v2975, 1.442695
  %v3193 = vpow.pop %v3192
  %v3194 = vmul.f32 %v2976, 1.442695
  %v3195 = vpow.pop %v3194
  %v3196 = vmul.f32 %v2977, 1.442695
  %v3197 = vpow.pop %v3196
  %v3198 = vmul.f32 %v2978, 1.442695
  %v3199 = vpow.pop %v3198
  %v3200 = vmul.f32 %v2979, 1.442695
  %v3201 = vpow.pop %v3200
  %v3202 = vmul.f32 %v2980, 1.442695
  %v3203 = vpow.pop %v3202
  %v3204 = vmul.f32 %v2981, 1.442695
  %v3205 = vpow.pop %v3204
  %v3206 = vmul.f32 %v2982, 1.442695
  %v3207 = vpow.pop %v3206
  %v3208 = vmul.f32 %v2983, 1.442695
  %v3209 = vpow.pop %v3208
  %v3210 = vmul.f32 %v2984, 1.442695
  %v3211 = vpow.pop %v3210
  %v3212 = vmul.f32 %v2985, 1.442695
  %v3213 = vpow.pop %v3212
  %v3214 = vmul.f32 %v2986, 1.442695
  %v3215 = vpow.pop %v3214
  %v3216 = vmul.f32 %v2987, 1.442695
  %v3217 = vpow.pop %v3216
  %v3218 = vmul.f32 %v2988, 1.442695
  %v3219 = vpow.pop %v3218
  %v3220 = vmul.f32 %v2989, 1.442695
  %v3221 = vpow.pop %v3220
  %v3222 = vmul.f32 %v2990, 1.442695
  %v3223 = vpow.pop %v3222
  %v3224 = vmul.f32 %v2991, 1.442695
  %v3225 = vpow.pop %v3224
  %v3226 = vmul.f32 %v2992, 1.442695
  %v3227 = vpow.pop %v3226
  %v3228 = vmul.f32 %v2993, 1.442695
  %v3229 = vpow.pop %v3228
  %v3230 = vmul.f32 %v2994, 1.442695
  %v3231 = vpow.pop %v3230
  %v3232 = vmul.f32 %v2995, 1.442695
  %v3233 = vpow.pop %v3232
  %v3234 = vmul.f32 %v2996, 1.442695
  %v3235 = vpow.pop %v3234
  %v3236 = vmul.f32 %v2997, 1.442695
  %v3237 = vpow.pop %v3236
  %v3238 = vmul.f32 %v2998, 1.442695
  %v3239 = vpow.pop %v3238
  %v3240 = vmul.f32 %v2999, 1.442695
  %v3241 = vpow.pop %v3240
  %v3242 = vmul.f32 %v3000, 1.442695
  %v3243 = vpow.pop %v3242
  %v3244 = vmul.f32 %v3001, 1.442695
  %v3245 = vpow.pop %v3244
  %v3246 = vmul.f32 %v3002, 1.442695
  %v3247 = vpow.pop %v3246
  %v3248 = vmul.f32 %v3003, 1.442695
  %v3249 = vpow.pop %v3248
  %v3250 = vmul.f32 %v3004, 1.442695
  %v3251 = vpow.pop %v3250
  %v3252 = vmul.f32 %v3005, 1.442695
  %v3253 = vpow.pop %v3252
  %v3254 = vmul.f32 %v3006, 1.442695
  %v3255 = vpow.pop %v3254
  %v3256 = vmul.f32 %v3007, 1.442695
  %v3257 = vpow.pop %v3256
  %v3258 = vmul.f32 %v3008, 1.442695
  %v3259 = vpow.pop %v3258
  %v3260 = vmul.f32 %v3009, 1.442695
  %v3261 = vpow.pop %v3260
  %v3262 = vmul.f32 %v3010, 1.442695
  %v3263 = vpow.pop %v3262
  %v3264 = vmul.f32 %v3011, 1.442695
  %v3265 = vpow.pop %v3264
  %v3266 = vmul.f32 %v3012, 1.442695
  %v3267 = vpow.pop %v3266
  %v3268 = vmul.f32 %v3013, 1.442695
  %v3269 = vpow.pop %v3268
  %v3270 = vmul.f32 %v2630, %v3015
  %v3271 = vmul.f32 %v2631, %v3017
  %v3272 = vmul.f32 %v2632, %v3019
  %v3273 = vmul.f32 %v2633, %v3021
  %v3274 = vmul.f32 %v2634, %v3023
  %v3275 = vmul.f32 %v2635, %v3025
  %v3276 = vmul.f32 %v2636, %v3027
  %v3277 = vmul.f32 %v2637, %v3029
  %v3278 = vmul.f32 %v2638, %v3031
  %v3279 = vmul.f32 %v2639, %v3033
  %v3280 = vmul.f32 %v2640, %v3035
  %v3281 = vmul.f32 %v2641, %v3037
  %v3282 = vmul.f32 %v2642, %v3039
  %v3283 = vmul.f32 %v2643, %v3041
  %v3284 = vmul.f32 %v2644, %v3043
  %v3285 = vmul.f32 %v2645, %v3045
  %v3286 = vmul.f32 %v2646, %v3047
  %v3287 = vmul.f32 %v2647, %v3049
  %v3288 = vmul.f32 %v2648, %v3051
  %v3289 = vmul.f32 %v2649, %v3053
  %v3290 = vmul.f32 %v2650, %v3055
  %v3291 = vmul.f32 %v2651, %v3057
  %v3292 = vmul.f32 %v2652, %v3059
  %v3293 = vmul.f32 %v2653, %v3061
  %v3294 = vmul.f32 %v2654, %v3063
  %v3295 = vmul.f32 %v2655, %v3065
  %v3296 = vmul.f32 %v2656, %v3067
  %v3297 = vmul.f32 %v2657, %v3069
  %v3298 = vmul.f32 %v2658, %v3071
  %v3299 = vmul.f32 %v2659, %v3073
  %v3300 = vmul.f32 %v2660, %v3075
  %v3301 = vmul.f32 %v2661, %v3077
  %v3302 = vmul.f32 %v2662, %v3079
  %v3303 = vmul.f32 %v2663, %v3081
  %v3304 = vmul.f32 %v2664, %v3083
  %v3305 = vmul.f32 %v2665, %v3085
  %v3306 = vmul.f32 %v2666, %v3087
  %v3307 = vmul.f32 %v2667, %v3089
  %v3308 = vmul.f32 %v2668, %v3091
  %v3309 = vmul.f32 %v2669, %v3093
  %v3310 = vmul.f32 %v2670, %v3095
  %v3311 = vmul.f32 %v2671, %v3097
  %v3312 = vmul.f32 %v2672, %v3099
  %v3313 = vmul.f32 %v2673, %v3101
  %v3314 = vmul.f32 %v2674, %v3103
  %v3315 = vmul.f32 %v2675, %v3105
  %v3316 = vmul.f32 %v2676, %v3107
  %v3317 = vmul.f32 %v2677, %v3109
  %v3318 = vmul.f32 %v2678, %v3111
  %v3319 = vmul.f32 %v2679, %v3113
  %v3320 = vmul.f32 %v2680, %v3115
  %v3321 = vmul.f32 %v2681, %v3117
  %v3322 = vmul.f32 %v2682, %v3119
  %v3323 = vmul.f32 %v2683, %v3121
  %v3324 = vmul.f32 %v2684, %v3123
  %v3325 = vmul.f32 %v2685, %v3125
  %v3326 = vmul.f32 %v2686, %v3127
  %v3327 = vmul.f32 %v2687, %v3129
  %v3328 = vmul.f32 %v2688, %v3131
  %v3329 = vmul.f32 %v2689, %v3133
  %v3330 = vmul.f32 %v2690, %v3135
  %v3331 = vmul.f32 %v2691, %v3137
  %v3332 = vmul.f32 %v2692, %v3139
  %v3333 = vmul.f32 %v2693, %v3141
  %v3334 = vmul.f32 %v2694, %v3143
  %v3335 = vmul.f32 %v2695, %v3145
  %v3336 = vmul.f32 %v2696, %v3147
  %v3337 = vmul.f32 %v2697, %v3149
  %v3338 = vmul.f32 %v2698, %v3151
  %v3339 = vmul.f32 %v2699, %v3153
  %v3340 = vmul.f32 %v2700, %v3155
  %v3341 = vmul.f32 %v2701, %v3157
  %v3342 = vmul.f32 %v2702, %v3159
  %v3343 = vmul.f32 %v2703, %v3161
  %v3344 = vmul.f32 %v2704, %v3163
  %v3345 = vmul.f32 %v2705, %v3165
  %v3346 = vmul.f32 %v2706, %v3167
  %v3347 = vmul.f32 %v2707, %v3169
  %v3348 = vmul.f32 %v2708, %v3171
  %v3349 = vmul.f32 %v2709, %v3173
  %v3350 = vmul.f32 %v2710, %v3175
  %v3351 = vmul.f32 %v2711, %v3177
  %v3352 = vmul.f32 %v2712, %v3179
  %v3353 = vmul.f32 %v2713, %v3181
  %v3354 = vmul.f32 %v2714, %v3183
  %v3355 = vmul.f32 %v2715, %v3185
  %v3356 = vmul.f32 %v2716, %v3187
  %v3357 = vmul.f32 %v2717, %v3189
  %v3358 = vmul.f32 %v2718, %v3191
  %v3359 = vmul.f32 %v2719, %v3193
  %v3360 = vmul.f32 %v2720, %v3195
  %v3361 = vmul.f32 %v2721, %v3197
  %v3362 = vmul.f32 %v2722, %v3199
  %v3363 = vmul.f32 %v2723, %v3201
  %v3364 = vmul.f32 %v2724, %v3203
  %v3365 = vmul.f32 %v2725, %v3205
  %v3366 = vmul.f32 %v2726, %v3207
  %v3367 = vmul.f32 %v2727, %v3209
  %v3368 = vmul.f32 %v2728, %v3211
  %v3369 = vmul.f32 %v2729, %v3213
  %v3370 = vmul.f32 %v2730, %v3215
  %v3371 = vmul.f32 %v2731, %v3217
  %v3372 = vmul.f32 %v2732, %v3219
  %v3373 = vmul.f32 %v2733, %v3221
  %v3374 = vmul.f32 %v2734, %v3223
  %v3375 = vmul.f32 %v2735, %v3225
  %v3376 = vmul.f32 %v2736, %v3227
  %v3377 = vmul.f32 %v2737, %v3229
  %v3378 = vmul.f32 %v2738, %v3231
  %v3379 = vmul.f32 %v2739, %v3233
  %v3380 = vmul.f32 %v2740, %v3235
  %v3381 = vmul.f32 %v2741, %v3237
  %v3382 = vmul.f32 %v2742, %v3239
  %v3383 = vmul.f32 %v2743, %v3241
  %v3384 = vmul.f32 %v2744, %v3243
  %v3385 = vmul.f32 %v2745, %v3245
  %v3386 = vmul.f32 %v2746, %v3247
  %v3387 = vmul.f32 %v2747, %v3249
  %v3388 = vmul.f32 %v2748, %v3251
  %v3389 = vmul.f32 %v2749, %v3253
  %v3390 = vmul.f32 %v2750, %v3255
  %v3391 = vmul.f32 %v2751, %v3257
  %v3392 = vmul.f32 %v2752, %v3259
  %v3393 = vmul.f32 %v2753, %v3261
  %v3394 = vmul.f32 %v2754, %v3263
  %v3395 = vmul.f32 %v2755, %v3265
  %v3396 = vmul.f32 %v2756, %v3267
  %v3397 = vmul.f32 %v2757, %v3269
  %v3398 = vsub.f32 1.0, %v3270
  %v3399 = vsub.f32 1.0, %v3271
  %v3400 = vsub.f32 1.0, %v3272
  %v3401 = vsub.f32 1.0, %v3273
  %v3402 = vsub.f32 1.0, %v3274
  %v3403 = vsub.f32 1.0, %v3275
  %v3404 = vsub.f32 1.0, %v3276
  %v3405 = vsub.f32 1.0, %v3277
  %v3406 = vsub.f32 1.0, %v3278
  %v3407 = vsub.f32 1.0, %v3279
  %v3408 = vsub.f32 1.0, %v3280
  %v3409 = vsub.f32 1.0, %v3281
  %v3410 = vsub.f32 1.0, %v3282
  %v3411 = vsub.f32 1.0, %v3283
  %v3412 = vsub.f32 1.0, %v3284
  %v3413 = vsub.f32 1.0, %v3285
  %v3414 = vsub.f32 1.0, %v3286
  %v3415 = vsub.f32 1.0, %v3287
  %v3416 = vsub.f32 1.0, %v3288
  %v3417 = vsub.f32 1.0, %v3289
  %v3418 = vsub.f32 1.0, %v3290
  %v3419 = vsub.f32 1.0, %v3291
  %v3420 = vsub.f32 1.0, %v3292
  %v3421 = vsub.f32 1.0, %v3293
  %v3422 = vsub.f32 1.0, %v3294
  %v3423 = vsub.f32 1.0, %v3295
  %v3424 = vsub.f32 1.0, %v3296
  %v3425 = vsub.f32 1.0, %v3297
  %v3426 = vsub.f32 1.0, %v3298
  %v3427 = vsub.f32 1.0, %v3299
  %v3428 = vsub.f32 1.0, %v3300
  %v3429 = vsub.f32 1.0, %v3301
  %v3430 = vsub.f32 1.0, %v3302
  %v3431 = vsub.f32 1.0, %v3303
  %v3432 = vsub.f32 1.0, %v3304
  %v3433 = vsub.f32 1.0, %v3305
  %v3434 = vsub.f32 1.0, %v3306
  %v3435 = vsub.f32 1.0, %v3307
  %v3436 = vsub.f32 1.0, %v3308
  %v3437 = vsub.f32 1.0, %v3309
  %v3438 = vsub.f32 1.0, %v3310
  %v3439 = vsub.f32 1.0, %v3311
  %v3440 = vsub.f32 1.0, %v3312
  %v3441 = vsub.f32 1.0, %v3313
  %v3442 = vsub.f32 1.0, %v3314
  %v3443 = vsub.f32 1.0, %v3315
  %v3444 = vsub.f32 1.0, %v3316
  %v3445 = vsub.f32 1.0, %v3317
  %v3446 = vsub.f32 1.0, %v3318
  %v3447 = vsub.f32 1.0, %v3319
  %v3448 = vsub.f32 1.0, %v3320
  %v3449 = vsub.f32 1.0, %v3321
  %v3450 = vsub.f32 1.0, %v3322
  %v3451 = vsub.f32 1.0, %v3323
  %v3452 = vsub.f32 1.0, %v3324
  %v3453 = vsub.f32 1.0, %v3325
  %v3454 = vsub.f32 1.0, %v3326
  %v3455 = vsub.f32 1.0, %v3327
  %v3456 = vsub.f32 1.0, %v3328
  %v3457 = vsub.f32 1.0, %v3329
  %v3458 = vsub.f32 1.0, %v3330
  %v3459 = vsub.f32 1.0, %v3331
  %v3460 = vsub.f32 1.0, %v3332
  %v3461 = vsub.f32 1.0, %v3333
  %v3462 = vsub.f32 1.0, %v3334
  %v3463 = vsub.f32 1.0, %v3335
  %v3464 = vsub.f32 1.0, %v3336
  %v3465 = vsub.f32 1.0, %v3337
  %v3466 = vsub.f32 1.0, %v3338
  %v3467 = vsub.f32 1.0, %v3339
  %v3468 = vsub.f32 1.0, %v3340
  %v3469 = vsub.f32 1.0, %v3341
  %v3470 = vsub.f32 1.0, %v3342
  %v3471 = vsub.f32 1.0, %v3343
  %v3472 = vsub.f32 1.0, %v3344
  %v3473 = vsub.f32 1.0, %v3345
  %v3474 = vsub.f32 1.0, %v3346
  %v3475 = vsub.f32 1.0, %v3347
  %v3476 = vsub.f32 1.0, %v3348
  %v3477 = vsub.f32 1.0, %v3349
  %v3478 = vsub.f32 1.0, %v3350
  %v3479 = vsub.f32 1.0, %v3351
  %v3480 = vsub.f32 1.0, %v3352
  %v3481 = vsub.f32 1.0, %v3353
  %v3482 = vsub.f32 1.0, %v3354
  %v3483 = vsub.f32 1.0, %v3355
  %v3484 = vsub.f32 1.0, %v3356
  %v3485 = vsub.f32 1.0, %v3357
  %v3486 = vsub.f32 1.0, %v3358
  %v3487 = vsub.f32 1.0, %v3359
  %v3488 = vsub.f32 1.0, %v3360
  %v3489 = vsub.f32 1.0, %v3361
  %v3490 = vsub.f32 1.0, %v3362
  %v3491 = vsub.f32 1.0, %v3363
  %v3492 = vsub.f32 1.0, %v3364
  %v3493 = vsub.f32 1.0, %v3365
  %v3494 = vsub.f32 1.0, %v3366
  %v3495 = vsub.f32 1.0, %v3367
  %v3496 = vsub.f32 1.0, %v3368
  %v3497 = vsub.f32 1.0, %v3369
  %v3498 = vsub.f32 1.0, %v3370
  %v3499 = vsub.f32 1.0, %v3371
  %v3500 = vsub.f32 1.0, %v3372
  %v3501 = vsub.f32 1.0, %v3373
  %v3502 = vsub.f32 1.0, %v3374
  %v3503 = vsub.f32 1.0, %v3375
  %v3504 = vsub.f32 1.0, %v3376
  %v3505 = vsub.f32 1.0, %v3377
  %v3506 = vsub.f32 1.0, %v3378
  %v3507 = vsub.f32 1.0, %v3379
  %v3508 = vsub.f32 1.0, %v3380
  %v3509 = vsub.f32 1.0, %v3381
  %v3510 = vsub.f32 1.0, %v3382
  %v3511 = vsub.f32 1.0, %v3383
  %v3512 = vsub.f32 1.0, %v3384
  %v3513 = vsub.f32 1.0, %v3385
  %v3514 = vsub.f32 1.0, %v3386
  %v3515 = vsub.f32 1.0, %v3387
  %v3516 = vsub.f32 1.0, %v3388
  %v3517 = vsub.f32 1.0, %v3389
  %v3518 = vsub.f32 1.0, %v3390
  %v3519 = vsub.f32 1.0, %v3391
  %v3520 = vsub.f32 1.0, %v3392
  %v3521 = vsub.f32 1.0, %v3393
  %v3522 = vsub.f32 1.0, %v3394
  %v3523 = vsub.f32 1.0, %v3395
  %v3524 = vsub.f32 1.0, %v3396
  %v3525 = vsub.f32 1.0, %v3397
  %v3526 = vmul.f32 %v966, %v3398
  %v3527 = vmul.f32 %v967, %v3399
  %v3528 = vmul.f32 %v968, %v3400
  %v3529 = vmul.f32 %v969, %v3401
  %v3530 = vmul.f32 %v970, %v3402
  %v3531 = vmul.f32 %v971, %v3403
  %v3532 = vmul.f32 %v972, %v3404
  %v3533 = vmul.f32 %v973, %v3405
  %v3534 = vmul.f32 %v974, %v3406
  %v3535 = vmul.f32 %v975, %v3407
  %v3536 = vmul.f32 %v976, %v3408
  %v3537 = vmul.f32 %v977, %v3409
  %v3538 = vmul.f32 %v978, %v3410
  %v3539 = vmul.f32 %v979, %v3411
  %v3540 = vmul.f32 %v980, %v3412
  %v3541 = vmul.f32 %v981, %v3413
  %v3542 = vmul.f32 %v982, %v3414
  %v3543 = vmul.f32 %v983, %v3415
  %v3544 = vmul.f32 %v984, %v3416
  %v3545 = vmul.f32 %v985, %v3417
  %v3546 = vmul.f32 %v986, %v3418
  %v3547 = vmul.f32 %v987, %v3419
  %v3548 = vmul.f32 %v988, %v3420
  %v3549 = vmul.f32 %v989, %v3421
  %v3550 = vmul.f32 %v990, %v3422
  %v3551 = vmul.f32 %v991, %v3423
  %v3552 = vmul.f32 %v992, %v3424
  %v3553 = vmul.f32 %v993, %v3425
  %v3554 = vmul.f32 %v994, %v3426
  %v3555 = vmul.f32 %v995, %v3427
  %v3556 = vmul.f32 %v996, %v3428
  %v3557 = vmul.f32 %v997, %v3429
  %v3558 = vmul.f32 %v998, %v3430
  %v3559 = vmul.f32 %v999, %v3431
  %v3560 = vmul.f32 %v1000, %v3432
  %v3561 = vmul.f32 %v1001, %v3433
  %v3562 = vmul.f32 %v1002, %v3434
  %v3563 = vmul.f32 %v1003, %v3435
  %v3564 = vmul.f32 %v1004, %v3436
  %v3565 = vmul.f32 %v1005, %v3437
  %v3566 = vmul.f32 %v1006, %v3438
  %v3567 = vmul.f32 %v1007, %v3439
  %v3568 = vmul.f32 %v1008, %v3440
  %v3569 = vmul.f32 %v1009, %v3441
  %v3570 = vmul.f32 %v1010, %v3442
  %v3571 = vmul.f32 %v1011, %v3443
  %v3572 = vmul.f32 %v1012, %v3444
  %v3573 = vmul.f32 %v1013, %v3445
  %v3574 = vmul.f32 %v1014, %v3446
  %v3575 = vmul.f32 %v1015, %v3447
  %v3576 = vmul.f32 %v1016, %v3448
  %v3577 = vmul.f32 %v1017, %v3449
  %v3578 = vmul.f32 %v1018, %v3450
  %v3579 = vmul.f32 %v1019, %v3451
  %v3580 = vmul.f32 %v1020, %v3452
  %v3581 = vmul.f32 %v1021, %v3453
  %v3582 = vmul.f32 %v1022, %v3454
  %v3583 = vmul.f32 %v1023, %v3455
  %v3584 = vmul.f32 %v1024, %v3456
  %v3585 = vmul.f32 %v1025, %v3457
  %v3586 = vmul.f32 %v1026, %v3458
  %v3587 = vmul.f32 %v1027, %v3459
  %v3588 = vmul.f32 %v1028, %v3460
  %v3589 = vmul.f32 %v1029, %v3461
  %v3590 = vmul.f32 %v1030, %v3462
  %v3591 = vmul.f32 %v1031, %v3463
  %v3592 = vmul.f32 %v1032, %v3464
  %v3593 = vmul.f32 %v1033, %v3465
  %v3594 = vmul.f32 %v1034, %v3466
  %v3595 = vmul.f32 %v1035, %v3467
  %v3596 = vmul.f32 %v1036, %v3468
  %v3597 = vmul.f32 %v1037, %v3469
  %v3598 = vmul.f32 %v1038, %v3470
  %v3599 = vmul.f32 %v1039, %v3471
  %v3600 = vmul.f32 %v1040, %v3472
  %v3601 = vmul.f32 %v1041, %v3473
  %v3602 = vmul.f32 %v1042, %v3474
  %v3603 = vmul.f32 %v1043, %v3475
  %v3604 = vmul.f32 %v1044, %v3476
  %v3605 = vmul.f32 %v1045, %v3477
  %v3606 = vmul.f32 %v1046, %v3478
  %v3607 = vmul.f32 %v1047, %v3479
  %v3608 = vmul.f32 %v1048, %v3480
  %v3609 = vmul.f32 %v1049, %v3481
  %v3610 = vmul.f32 %v1050, %v3482
  %v3611 = vmul.f32 %v1051, %v3483
  %v3612 = vmul.f32 %v1052, %v3484
  %v3613 = vmul.f32 %v1053, %v3485
  %v3614 = vmul.f32 %v1054, %v3486
  %v3615 = vmul.f32 %v1055, %v3487
  %v3616 = vmul.f32 %v1056, %v3488
  %v3617 = vmul.f32 %v1057, %v3489
  %v3618 = vmul.f32 %v1058, %v3490
  %v3619 = vmul.f32 %v1059, %v3491
  %v3620 = vmul.f32 %v1060, %v3492
  %v3621 = vmul.f32 %v1061, %v3493
  %v3622 = vmul.f32 %v1062, %v3494
  %v3623 = vmul.f32 %v1063, %v3495
  %v3624 = vmul.f32 %v1064, %v3496
  %v3625 = vmul.f32 %v1065, %v3497
  %v3626 = vmul.f32 %v1066, %v3498
  %v3627 = vmul.f32 %v1067, %v3499
  %v3628 = vmul.f32 %v1068, %v3500
  %v3629 = vmul.f32 %v1069, %v3501
  %v3630 = vmul.f32 %v1070, %v3502
  %v3631 = vmul.f32 %v1071, %v3503
  %v3632 = vmul.f32 %v1072, %v3504
  %v3633 = vmul.f32 %v1073, %v3505
  %v3634 = vmul.f32 %v1074, %v3506
  %v3635 = vmul.f32 %v1075, %v3507
  %v3636 = vmul.f32 %v1076, %v3508
  %v3637 = vmul.f32 %v1077, %v3509
  %v3638 = vmul.f32 %v1078, %v3510
  %v3639 = vmul.f32 %v1079, %v3511
  %v3640 = vmul.f32 %v1080, %v3512
  %v3641 = vmul.f32 %v1081, %v3513
  %v3642 = vmul.f32 %v1082, %v3514
  %v3643 = vmul.f32 %v1083, %v3515
  %v3644 = vmul.f32 %v1084, %v3516
  %v3645 = vmul.f32 %v1085, %v3517
  %v3646 = vmul.f32 %v1086, %v3518
  %v3647 = vmul.f32 %v1087, %v3519
  %v3648 = vmul.f32 %v1088, %v3520
  %v3649 = vmul.f32 %v1089, %v3521
  %v3650 = vmul.f32 %v1090, %v3522
  %v3651 = vmul.f32 %v1091, %v3523
  %v3652 = vmul.f32 %v1092, %v3524
  %v3653 = vmul.f32 %v1093, %v3525
  %v3654 = vadd.f32 %v3526, 1.0
  %v3655 = vadd.f32 %v3527, 1.0
  %v3656 = vadd.f32 %v3528, 1.0
  %v3657 = vadd.f32 %v3529, 1.0
  %v3658 = vadd.f32 %v3530, 1.0
  %v3659 = vadd.f32 %v3531, 1.0
  %v3660 = vadd.f32 %v3532, 1.0
  %v3661 = vadd.f32 %v3533, 1.0
  %v3662 = vadd.f32 %v3534, 1.0
  %v3663 = vadd.f32 %v3535, 1.0
  %v3664 = vadd.f32 %v3536, 1.0
  %v3665 = vadd.f32 %v3537, 1.0
  %v3666 = vadd.f32 %v3538, 1.0
  %v3667 = vadd.f32 %v3539, 1.0
  %v3668 = vadd.f32 %v3540, 1.0
  %v3669 = vadd.f32 %v3541, 1.0
  %v3670 = vadd.f32 %v3542, 1.0
  %v3671 = vadd.f32 %v3543, 1.0
  %v3672 = vadd.f32 %v3544, 1.0
  %v3673 = vadd.f32 %v3545, 1.0
  %v3674 = vadd.f32 %v3546, 1.0
  %v3675 = vadd.f32 %v3547, 1.0
  %v3676 = vadd.f32 %v3548, 1.0
  %v3677 = vadd.f32 %v3549, 1.0
  %v3678 = vadd.f32 %v3550, 1.0
  %v3679 = vadd.f32 %v3551, 1.0
  %v3680 = vadd.f32 %v3552, 1.0
  %v3681 = vadd.f32 %v3553, 1.0
  %v3682 = vadd.f32 %v3554, 1.0
  %v3683 = vadd.f32 %v3555, 1.0
  %v3684 = vadd.f32 %v3556, 1.0
  %v3685 = vadd.f32 %v3557, 1.0
  %v3686 = vadd.f32 %v3558, 1.0
  %v3687 = vadd.f32 %v3559, 1.0
  %v3688 = vadd.f32 %v3560, 1.0
  %v3689 = vadd.f32 %v3561, 1.0
  %v3690 = vadd.f32 %v3562, 1.0
  %v3691 = vadd.f32 %v3563, 1.0
  %v3692 = vadd.f32 %v3564, 1.0
  %v3693 = vadd.f32 %v3565, 1.0
  %v3694 = vadd.f32 %v3566, 1.0
  %v3695 = vadd.f32 %v3567, 1.0
  %v3696 = vadd.f32 %v3568, 1.0
  %v3697 = vadd.f32 %v3569, 1.0
  %v3698 = vadd.f32 %v3570, 1.0
  %v3699 = vadd.f32 %v3571, 1.0
  %v3700 = vadd.f32 %v3572, 1.0
  %v3701 = vadd.f32 %v3573, 1.0
  %v3702 = vadd.f32 %v3574, 1.0
  %v3703 = vadd.f32 %v3575, 1.0
  %v3704 = vadd.f32 %v3576, 1.0
  %v3705 = vadd.f32 %v3577, 1.0
  %v3706 = vadd.f32 %v3578, 1.0
  %v3707 = vadd.f32 %v3579, 1.0
  %v3708 = vadd.f32 %v3580, 1.0
  %v3709 = vadd.f32 %v3581, 1.0
  %v3710 = vadd.f32 %v3582, 1.0
  %v3711 = vadd.f32 %v3583, 1.0
  %v3712 = vadd.f32 %v3584, 1.0
  %v3713 = vadd.f32 %v3585, 1.0
  %v3714 = vadd.f32 %v3586, 1.0
  %v3715 = vadd.f32 %v3587, 1.0
  %v3716 = vadd.f32 %v3588, 1.0
  %v3717 = vadd.f32 %v3589, 1.0
  %v3718 = vadd.f32 %v3590, 1.0
  %v3719 = vadd.f32 %v3591, 1.0
  %v3720 = vadd.f32 %v3592, 1.0
  %v3721 = vadd.f32 %v3593, 1.0
  %v3722 = vadd.f32 %v3594, 1.0
  %v3723 = vadd.f32 %v3595, 1.0
  %v3724 = vadd.f32 %v3596, 1.0
  %v3725 = vadd.f32 %v3597, 1.0
  %v3726 = vadd.f32 %v3598, 1.0
  %v3727 = vadd.f32 %v3599, 1.0
  %v3728 = vadd.f32 %v3600, 1.0
  %v3729 = vadd.f32 %v3601, 1.0
  %v3730 = vadd.f32 %v3602, 1.0
  %v3731 = vadd.f32 %v3603, 1.0
  %v3732 = vadd.f32 %v3604, 1.0
  %v3733 = vadd.f32 %v3605, 1.0
  %v3734 = vadd.f32 %v3606, 1.0
  %v3735 = vadd.f32 %v3607, 1.0
  %v3736 = vadd.f32 %v3608, 1.0
  %v3737 = vadd.f32 %v3609, 1.0
  %v3738 = vadd.f32 %v3610, 1.0
  %v3739 = vadd.f32 %v3611, 1.0
  %v3740 = vadd.f32 %v3612, 1.0
  %v3741 = vadd.f32 %v3613, 1.0
  %v3742 = vadd.f32 %v3614, 1.0
  %v3743 = vadd.f32 %v3615, 1.0
  %v3744 = vadd.f32 %v3616, 1.0
  %v3745 = vadd.f32 %v3617, 1.0
  %v3746 = vadd.f32 %v3618, 1.0
  %v3747 = vadd.f32 %v3619, 1.0
  %v3748 = vadd.f32 %v3620, 1.0
  %v3749 = vadd.f32 %v3621, 1.0
  %v3750 = vadd.f32 %v3622, 1.0
  %v3751 = vadd.f32 %v3623, 1.0
  %v3752 = vadd.f32 %v3624, 1.0
  %v3753 = vadd.f32 %v3625, 1.0
  %v3754 = vadd.f32 %v3626, 1.0
  %v3755 = vadd.f32 %v3627, 1.0
  %v3756 = vadd.f32 %v3628, 1.0
  %v3757 = vadd.f32 %v3629, 1.0
  %v3758 = vadd.f32 %v3630, 1.0
  %v3759 = vadd.f32 %v3631, 1.0
  %v3760 = vadd.f32 %v3632, 1.0
  %v3761 = vadd.f32 %v3633, 1.0
  %v3762 = vadd.f32 %v3634, 1.0
  %v3763 = vadd.f32 %v3635, 1.0
  %v3764 = vadd.f32 %v3636, 1.0
  %v3765 = vadd.f32 %v3637, 1.0
  %v3766 = vadd.f32 %v3638, 1.0
  %v3767 = vadd.f32 %v3639, 1.0
  %v3768 = vadd.f32 %v3640, 1.0
  %v3769 = vadd.f32 %v3641, 1.0
  %v3770 = vadd.f32 %v3642, 1.0
  %v3771 = vadd.f32 %v3643, 1.0
  %v3772 = vadd.f32 %v3644, 1.0
  %v3773 = vadd.f32 %v3645, 1.0
  %v3774 = vadd.f32 %v3646, 1.0
  %v3775 = vadd.f32 %v3647, 1.0
  %v3776 = vadd.f32 %v3648, 1.0
  %v3777 = vadd.f32 %v3649, 1.0
  %v3778 = vadd.f32 %v3650, 1.0
  %v3779 = vadd.f32 %v3651, 1.0
  %v3780 = vadd.f32 %v3652, 1.0
  %v3781 = vadd.f32 %v3653, 1.0
  %v3782 = vmul.f32 %v582, %v3654
  %v3783 = vmul.f32 %v583, %v3655
  %v3784 = vmul.f32 %v584, %v3656
  %v3785 = vmul.f32 %v585, %v3657
  %v3786 = vmul.f32 %v586, %v3658
  %v3787 = vmul.f32 %v587, %v3659
  %v3788 = vmul.f32 %v588, %v3660
  %v3789 = vmul.f32 %v589, %v3661
  %v3790 = vmul.f32 %v590, %v3662
  %v3791 = vmul.f32 %v591, %v3663
  %v3792 = vmul.f32 %v592, %v3664
  %v3793 = vmul.f32 %v593, %v3665
  %v3794 = vmul.f32 %v594, %v3666
  %v3795 = vmul.f32 %v595, %v3667
  %v3796 = vmul.f32 %v596, %v3668
  %v3797 = vmul.f32 %v597, %v3669
  %v3798 = vmul.f32 %v598, %v3670
  %v3799 = vmul.f32 %v599, %v3671
  %v3800 = vmul.f32 %v600, %v3672
  %v3801 = vmul.f32 %v601, %v3673
  %v3802 = vmul.f32 %v602, %v3674
  %v3803 = vmul.f32 %v603, %v3675
  %v3804 = vmul.f32 %v604, %v3676
  %v3805 = vmul.f32 %v605, %v3677
  %v3806 = vmul.f32 %v606, %v3678
  %v3807 = vmul.f32 %v607, %v3679
  %v3808 = vmul.f32 %v608, %v3680
  %v3809 = vmul.f32 %v609, %v3681
  %v3810 = vmul.f32 %v610, %v3682
  %v3811 = vmul.f32 %v611, %v3683
  %v3812 = vmul.f32 %v612, %v3684
  %v3813 = vmul.f32 %v613, %v3685
  %v3814 = vmul.f32 %v614, %v3686
  %v3815 = vmul.f32 %v615, %v3687
  %v3816 = vmul.f32 %v616, %v3688
  %v3817 = vmul.f32 %v617, %v3689
  %v3818 = vmul.f32 %v618, %v3690
  %v3819 = vmul.f32 %v619, %v3691
  %v3820 = vmul.f32 %v620, %v3692
  %v3821 = vmul.f32 %v621, %v3693
  %v3822 = vmul.f32 %v622, %v3694
  %v3823 = vmul.f32 %v623, %v3695
  %v3824 = vmul.f32 %v624, %v3696
  %v3825 = vmul.f32 %v625, %v3697
  %v3826 = vmul.f32 %v626, %v3698
  %v3827 = vmul.f32 %v627, %v3699
  %v3828 = vmul.f32 %v628, %v3700
  %v3829 = vmul.f32 %v629, %v3701
  %v3830 = vmul.f32 %v630, %v3702
  %v3831 = vmul.f32 %v631, %v3703
  %v3832 = vmul.f32 %v632, %v3704
  %v3833 = vmul.f32 %v633, %v3705
  %v3834 = vmul.f32 %v634, %v3706
  %v3835 = vmul.f32 %v635, %v3707
  %v3836 = vmul.f32 %v636, %v3708
  %v3837 = vmul.f32 %v637, %v3709
  %v3838 = vmul.f32 %v638, %v3710
  %v3839 = vmul.f32 %v639, %v3711
  %v3840 = vmul.f32 %v640, %v3712
  %v3841 = vmul.f32 %v641, %v3713
  %v3842 = vmul.f32 %v642, %v3714
  %v3843 = vmul.f32 %v643, %v3715
  %v3844 = vmul.f32 %v644, %v3716
  %v3845 = vmul.f32 %v645, %v3717
  %v3846 = vmul.f32 %v646, %v3718
  %v3847 = vmul.f32 %v647, %v3719
  %v3848 = vmul.f32 %v648, %v3720
  %v3849 = vmul.f32 %v649, %v3721
  %v3850 = vmul.f32 %v650, %v3722
  %v3851 = vmul.f32 %v651, %v3723
  %v3852 = vmul.f32 %v652, %v3724
  %v3853 = vmul.f32 %v653, %v3725
  %v3854 = vmul.f32 %v654, %v3726
  %v3855 = vmul.f32 %v655, %v3727
  %v3856 = vmul.f32 %v656, %v3728
  %v3857 = vmul.f32 %v657, %v3729
  %v3858 = vmul.f32 %v658, %v3730
  %v3859 = vmul.f32 %v659, %v3731
  %v3860 = vmul.f32 %v660, %v3732
  %v3861 = vmul.f32 %v661, %v3733
  %v3862 = vmul.f32 %v662, %v3734
  %v3863 = vmul.f32 %v663, %v3735
  %v3864 = vmul.f32 %v664, %v3736
  %v3865 = vmul.f32 %v665, %v3737
  %v3866 = vmul.f32 %v666, %v3738
  %v3867 = vmul.f32 %v667, %v3739
  %v3868 = vmul.f32 %v668, %v3740
  %v3869 = vmul.f32 %v669, %v3741
  %v3870 = vmul.f32 %v670, %v3742
  %v3871 = vmul.f32 %v671, %v3743
  %v3872 = vmul.f32 %v672, %v3744
  %v3873 = vmul.f32 %v673, %v3745
  %v3874 = vmul.f32 %v674, %v3746
  %v3875 = vmul.f32 %v675, %v3747
  %v3876 = vmul.f32 %v676, %v3748
  %v3877 = vmul.f32 %v677, %v3749
  %v3878 = vmul.f32 %v678, %v3750
  %v3879 = vmul.f32 %v679, %v3751
  %v3880 = vmul.f32 %v680, %v3752
  %v3881 = vmul.f32 %v681, %v3753
  %v3882 = vmul.f32 %v682, %v3754
  %v3883 = vmul.f32 %v683, %v3755
  %v3884 = vmul.f32 %v684, %v3756
  %v3885 = vmul.f32 %v685, %v3757
  %v3886 = vmul.f32 %v686, %v3758
  %v3887 = vmul.f32 %v687, %v3759
  %v3888 = vmul.f32 %v688, %v3760
  %v3889 = vmul.f32 %v689, %v3761
  %v3890 = vmul.f32 %v690, %v3762
  %v3891 = vmul.f32 %v691, %v3763
  %v3892 = vmul.f32 %v692, %v3764
  %v3893 = vmul.f32 %v693, %v3765
  %v3894 = vmul.f32 %v694, %v3766
  %v3895 = vmul.f32 %v695, %v3767
  %v3896 = vmul.f32 %v696, %v3768
  %v3897 = vmul.f32 %v697, %v3769
  %v3898 = vmul.f32 %v698, %v3770
  %v3899 = vmul.f32 %v699, %v3771
  %v3900 = vmul.f32 %v700, %v3772
  %v3901 = vmul.f32 %v701, %v3773
  %v3902 = vmul.f32 %v702, %v3774
  %v3903 = vmul.f32 %v703, %v3775
  %v3904 = vmul.f32 %v704, %v3776
  %v3905 = vmul.f32 %v705, %v3777
  %v3906 = vmul.f32 %v706, %v3778
  %v3907 = vmul.f32 %v707, %v3779
  %v3908 = vmul.f32 %v708, %v3780
  %v3909 = vmul.f32 %v709, %v3781
  %v3910 = vpack.c.bf16 %v3784, %v3782
  %v3911 = vpack.c.bf16 %v3785, %v3783
  %v3912 = vpack.c.bf16 %v3788, %v3786
  %v3913 = vpack.c.bf16 %v3789, %v3787
  %v3914 = vpack.c.bf16 %v3792, %v3790
  %v3915 = vpack.c.bf16 %v3793, %v3791
  %v3916 = vpack.c.bf16 %v3796, %v3794
  %v3917 = vpack.c.bf16 %v3797, %v3795
  %v3918 = vpack.c.bf16 %v3800, %v3798
  %v3919 = vpack.c.bf16 %v3801, %v3799
  %v3920 = vpack.c.bf16 %v3804, %v3802
  %v3921 = vpack.c.bf16 %v3805, %v3803
  %v3922 = vpack.c.bf16 %v3808, %v3806
  %v3923 = vpack.c.bf16 %v3809, %v3807
  %v3924 = vpack.c.bf16 %v3812, %v3810
  %v3925 = vpack.c.bf16 %v3813, %v3811
  %v3926 = vpack.c.bf16 %v3816, %v3814
  %v3927 = vpack.c.bf16 %v3817, %v3815
  %v3928 = vpack.c.bf16 %v3820, %v3818
  %v3929 = vpack.c.bf16 %v3821, %v3819
  %v3930 = vpack.c.bf16 %v3824, %v3822
  %v3931 = vpack.c.bf16 %v3825, %v3823
  %v3932 = vpack.c.bf16 %v3828, %v3826
  %v3933 = vpack.c.bf16 %v3829, %v3827
  %v3934 = vpack.c.bf16 %v3832, %v3830
  %v3935 = vpack.c.bf16 %v3833, %v3831
  %v3936 = vpack.c.bf16 %v3836, %v3834
  %v3937 = vpack.c.bf16 %v3837, %v3835
  %v3938 = vpack.c.bf16 %v3840, %v3838
  %v3939 = vpack.c.bf16 %v3841, %v3839
  %v3940 = vpack.c.bf16 %v3844, %v3842
  %v3941 = vpack.c.bf16 %v3845, %v3843
  %v3942 = vpack.c.bf16 %v3848, %v3846
  %v3943 = vpack.c.bf16 %v3849, %v3847
  %v3944 = vpack.c.bf16 %v3852, %v3850
  %v3945 = vpack.c.bf16 %v3853, %v3851
  %v3946 = vpack.c.bf16 %v3856, %v3854
  %v3947 = vpack.c.bf16 %v3857, %v3855
  %v3948 = vpack.c.bf16 %v3860, %v3858
  %v3949 = vpack.c.bf16 %v3861, %v3859
  %v3950 = vpack.c.bf16 %v3864, %v3862
  %v3951 = vpack.c.bf16 %v3865, %v3863
  %v3952 = vpack.c.bf16 %v3868, %v3866
  %v3953 = vpack.c.bf16 %v3869, %v3867
  %v3954 = vpack.c.bf16 %v3872, %v3870
  %v3955 = vpack.c.bf16 %v3873, %v3871
  %v3956 = vpack.c.bf16 %v3876, %v3874
  %v3957 = vpack.c.bf16 %v3877, %v3875
  %v3958 = vpack.c.bf16 %v3880, %v3878
  %v3959 = vpack.c.bf16 %v3881, %v3879
  %v3960 = vpack.c.bf16 %v3884, %v3882
  %v3961 = vpack.c.bf16 %v3885, %v3883
  %v3962 = vpack.c.bf16 %v3888, %v3886
  %v3963 = vpack.c.bf16 %v3889, %v3887
  %v3964 = vpack.c.bf16 %v3892, %v3890
  %v3965 = vpack.c.bf16 %v3893, %v3891
  %v3966 = vpack.c.bf16 %v3896, %v3894
  %v3967 = vpack.c.bf16 %v3897, %v3895
  %v3968 = vpack.c.bf16 %v3900, %v3898
  %v3969 = vpack.c.bf16 %v3901, %v3899
  %v3970 = vpack.c.bf16 %v3904, %v3902
  %v3971 = vpack.c.bf16 %v3905, %v3903
  %v3972 = vpack.c.bf16 %v3908, %v3906
  %v3973 = vpack.c.bf16 %v3909, %v3907
  %v3974 = vld [vmem:[%s3] sm:$0xf]
  %v3975 = vld [vmem:[%s3 + $0x4] sm:$0xf]
  %v3976 = vld [vmem:[%s3 + $0x8] sm:$0xf]
  %v3977 = vld [vmem:[%s3 + $0xc] sm:$0xf]
  %v3978 = vld [vmem:[%s3 + $0x10] sm:$0xf]
  %v3979 = vld [vmem:[%s3 + $0x14] sm:$0xf]
  %v3980 = vld [vmem:[%s3 + $0x18] sm:$0xf]
  %v3981 = vld [vmem:[%s3 + $0x1c] sm:$0xf]
  %v3982 = vld [vmem:[%s3 + $0x20] sm:$0xf]
  %v3983 = vld [vmem:[%s3 + $0x24] sm:$0xf]
  %v3984 = vld [vmem:[%s3 + $0x28] sm:$0xf]
  %v3985 = vld [vmem:[%s3 + $0x2c] sm:$0xf]
  %v3986 = vld [vmem:[%s3 + $0x30] sm:$0xf]
  %v3987 = vld [vmem:[%s3 + $0x34] sm:$0xf]
  %v3988 = vld [vmem:[%s3 + $0x38] sm:$0xf]
  %v3989 = vld [vmem:[%s3 + $0x3c] sm:$0xf]
  %v3990 = vld [vmem:[%s3 + $0x40] sm:$0xf]
  %v3991 = vld [vmem:[%s3 + $0x44] sm:$0xf]
  %v3992 = vld [vmem:[%s3 + $0x48] sm:$0xf]
  %v3993 = vld [vmem:[%s3 + $0x4c] sm:$0xf]
  %v3994 = vld [vmem:[%s3 + $0x50] sm:$0xf]
  %v3995 = vld [vmem:[%s3 + $0x54] sm:$0xf]
  %v3996 = vld [vmem:[%s3 + $0x58] sm:$0xf]
  %v3997 = vld [vmem:[%s3 + $0x5c] sm:$0xf]
  %v3998 = vld [vmem:[%s3 + $0x60] sm:$0xf]
  %v3999 = vld [vmem:[%s3 + $0x64] sm:$0xf]
  %v4000 = vld [vmem:[%s3 + $0x68] sm:$0xf]
  %v4001 = vld [vmem:[%s3 + $0x6c] sm:$0xf]
  %v4002 = vld [vmem:[%s3 + $0x70] sm:$0xf]
  %v4003 = vld [vmem:[%s3 + $0x74] sm:$0xf]
  %v4004 = vld [vmem:[%s3 + $0x78] sm:$0xf]
  %v4005 = vld [vmem:[%s3 + $0x7c] sm:$0xf]
  %v4006 = vld [vmem:[%s4] sm:$0x1]
  %v4008 = vperm.slane %v4006, 0
  %v4042 = vunpack.c.l.b16 %v3974
  %v4043 = vunpack.c.l.b16 %v3975
  %v4044 = vunpack.c.l.b16 %v3976
  %v4045 = vunpack.c.l.b16 %v3977
  %v4046 = vunpack.c.l.b16 %v3978
  %v4047 = vunpack.c.l.b16 %v3979
  %v4048 = vunpack.c.l.b16 %v3980
  %v4049 = vunpack.c.l.b16 %v3981
  %v4050 = vunpack.c.l.b16 %v3982
  %v4051 = vunpack.c.l.b16 %v3983
  %v4052 = vunpack.c.l.b16 %v3984
  %v4053 = vunpack.c.l.b16 %v3985
  %v4054 = vunpack.c.l.b16 %v3986
  %v4055 = vunpack.c.l.b16 %v3987
  %v4056 = vunpack.c.l.b16 %v3988
  %v4057 = vunpack.c.l.b16 %v3989
  %v4058 = vunpack.c.l.b16 %v3990
  %v4059 = vunpack.c.l.b16 %v3991
  %v4060 = vunpack.c.l.b16 %v3992
  %v4061 = vunpack.c.l.b16 %v3993
  %v4062 = vunpack.c.l.b16 %v3994
  %v4063 = vunpack.c.l.b16 %v3995
  %v4064 = vunpack.c.l.b16 %v3996
  %v4065 = vunpack.c.l.b16 %v3997
  %v4066 = vunpack.c.l.b16 %v3998
  %v4067 = vunpack.c.l.b16 %v3999
  %v4068 = vunpack.c.l.b16 %v4000
  %v4069 = vunpack.c.l.b16 %v4001
  %v4070 = vunpack.c.l.b16 %v4002
  %v4071 = vunpack.c.l.b16 %v4003
  %v4072 = vunpack.c.l.b16 %v4004
  %v4073 = vunpack.c.l.b16 %v4005
  %v4074 = vpack.c.b16 %v4043, %v4042
  %v4075 = vpack.c.b16 %v4045, %v4044
  %v4076 = vpack.c.b16 %v4047, %v4046
  %v4077 = vpack.c.b16 %v4049, %v4048
  %v4078 = vpack.c.b16 %v4051, %v4050
  %v4079 = vpack.c.b16 %v4053, %v4052
  %v4080 = vpack.c.b16 %v4055, %v4054
  %v4081 = vpack.c.b16 %v4057, %v4056
  %v4082 = vpack.c.b16 %v4059, %v4058
  %v4083 = vpack.c.b16 %v4061, %v4060
  %v4084 = vpack.c.b16 %v4063, %v4062
  %v4085 = vpack.c.b16 %v4065, %v4064
  %v4086 = vpack.c.b16 %v4067, %v4066
  %v4087 = vpack.c.b16 %v4069, %v4068
  %v4088 = vpack.c.b16 %v4071, %v4070
  %v4089 = vpack.c.b16 %v4073, %v4072
  %4106 = vmatpush.bf16.msra.mxu0 %v4081
  %4107 = vmatpush.bf16.msra.mxu0 %v4080
  %4108 = vmatpush.bf16.msra.mxu0 %v4079
  %4109 = vmatpush.bf16.msra.mxu0 %v4078
  %4110 = vmatpush.bf16.msra.mxu0 %v4077
  %4111 = vmatpush.bf16.msra.mxu0 %v4076
  %4112 = vmatpush.bf16.msra.mxu0 %v4075
  %4113 = vmatpush.bf16.msra.mxu0 %v4074
  %4114 = vmatmul.bf16.gmra.mxu0 %v3910
  %v4115 = vpop.f32.mrf.mxu0
  %v4116 = vadd.f32 %v4008, %v4115
  %v4117 = vpop.f32.mrf.mxu0
  %v4118 = vadd.f32 %v4008, %v4117
  %4119 = vmatmul.bf16.gmra.mxu0 %v3912
  %v4120 = vpop.f32.mrf.mxu0
  %v4121 = vadd.f32 %v4008, %v4120
  %v4122 = vpop.f32.mrf.mxu0
  %v4123 = vadd.f32 %v4008, %v4122
  %4124 = vmatmul.bf16.gmra.mxu0 %v3914
  %v4125 = vpop.f32.mrf.mxu0
  %v4126 = vadd.f32 %v4008, %v4125
  %v4127 = vpop.f32.mrf.mxu0
  %v4128 = vadd.f32 %v4008, %v4127
  %4129 = vmatmul.bf16.gmra.mxu0 %v3916
  %v4130 = vpop.f32.mrf.mxu0
  %v4131 = vadd.f32 %v4008, %v4130
  %v4132 = vpop.f32.mrf.mxu0
  %v4133 = vadd.f32 %v4008, %v4132
  %4134 = vmatmul.bf16.gmra.mxu0 %v3918
  %v4135 = vpop.f32.mrf.mxu0
  %v4136 = vadd.f32 %v4008, %v4135
  %v4137 = vpop.f32.mrf.mxu0
  %v4138 = vadd.f32 %v4008, %v4137
  %4139 = vmatmul.bf16.gmra.mxu0 %v3920
  %v4140 = vpop.f32.mrf.mxu0
  %v4141 = vadd.f32 %v4008, %v4140
  %v4142 = vpop.f32.mrf.mxu0
  %v4143 = vadd.f32 %v4008, %v4142
  %4144 = vmatmul.bf16.gmra.mxu0 %v3922
  %v4145 = vpop.f32.mrf.mxu0
  %v4146 = vadd.f32 %v4008, %v4145
  %v4147 = vpop.f32.mrf.mxu0
  %v4148 = vadd.f32 %v4008, %v4147
  %4149 = vmatmul.bf16.gmra.mxu0 %v3924
  %v4150 = vpop.f32.mrf.mxu0
  %v4151 = vadd.f32 %v4008, %v4150
  %v4152 = vpop.f32.mrf.mxu0
  %v4153 = vadd.f32 %v4008, %v4152
  %4154 = vmatmul.bf16.gmra.mxu0 %v3926
  %v4155 = vpop.f32.mrf.mxu0
  %v4156 = vadd.f32 %v4008, %v4155
  %v4157 = vpop.f32.mrf.mxu0
  %v4158 = vadd.f32 %v4008, %v4157
  %4159 = vmatmul.bf16.gmra.mxu0 %v3928
  %v4160 = vpop.f32.mrf.mxu0
  %v4161 = vadd.f32 %v4008, %v4160
  %v4162 = vpop.f32.mrf.mxu0
  %v4163 = vadd.f32 %v4008, %v4162
  %4164 = vmatmul.bf16.gmra.mxu0 %v3930
  %v4165 = vpop.f32.mrf.mxu0
  %v4166 = vadd.f32 %v4008, %v4165
  %v4167 = vpop.f32.mrf.mxu0
  %v4168 = vadd.f32 %v4008, %v4167
  %4169 = vmatmul.bf16.gmra.mxu0 %v3932
  %v4170 = vpop.f32.mrf.mxu0
  %v4171 = vadd.f32 %v4008, %v4170
  %v4172 = vpop.f32.mrf.mxu0
  %v4173 = vadd.f32 %v4008, %v4172
  %4174 = vmatmul.bf16.gmra.mxu0 %v3934
  %v4175 = vpop.f32.mrf.mxu0
  %v4176 = vadd.f32 %v4008, %v4175
  %v4177 = vpop.f32.mrf.mxu0
  %v4178 = vadd.f32 %v4008, %v4177
  %4179 = vmatmul.bf16.gmra.mxu0 %v3936
  %v4180 = vpop.f32.mrf.mxu0
  %v4181 = vadd.f32 %v4008, %v4180
  %v4182 = vpop.f32.mrf.mxu0
  %v4183 = vadd.f32 %v4008, %v4182
  %4184 = vmatmul.bf16.gmra.mxu0 %v3938
  %v4185 = vpop.f32.mrf.mxu0
  %v4186 = vadd.f32 %v4008, %v4185
  %v4187 = vpop.f32.mrf.mxu0
  %v4188 = vadd.f32 %v4008, %v4187
  %4189 = vmatmul.bf16.gmra.mxu0 %v3940
  %v4190 = vpop.f32.mrf.mxu0
  %v4191 = vadd.f32 %v4008, %v4190
  %v4192 = vpop.f32.mrf.mxu0
  %v4193 = vadd.f32 %v4008, %v4192
  %4194 = vmatmul.bf16.gmra.mxu0 %v3942
  %v4195 = vpop.f32.mrf.mxu0
  %v4196 = vadd.f32 %v4008, %v4195
  %v4197 = vpop.f32.mrf.mxu0
  %v4198 = vadd.f32 %v4008, %v4197
  %4199 = vmatmul.bf16.gmra.mxu0 %v3944
  %v4200 = vpop.f32.mrf.mxu0
  %v4201 = vadd.f32 %v4008, %v4200
  %v4202 = vpop.f32.mrf.mxu0
  %v4203 = vadd.f32 %v4008, %v4202
  %4204 = vmatmul.bf16.gmra.mxu0 %v3946
  %v4205 = vpop.f32.mrf.mxu0
  %v4206 = vadd.f32 %v4008, %v4205
  %v4207 = vpop.f32.mrf.mxu0
  %v4208 = vadd.f32 %v4008, %v4207
  %4209 = vmatmul.bf16.gmra.mxu0 %v3948
  %v4210 = vpop.f32.mrf.mxu0
  %v4211 = vadd.f32 %v4008, %v4210
  %v4212 = vpop.f32.mrf.mxu0
  %v4213 = vadd.f32 %v4008, %v4212
  %4214 = vmatmul.bf16.gmra.mxu0 %v3950
  %v4215 = vpop.f32.mrf.mxu0
  %v4216 = vadd.f32 %v4008, %v4215
  %v4217 = vpop.f32.mrf.mxu0
  %v4218 = vadd.f32 %v4008, %v4217
  %4219 = vmatmul.bf16.gmra.mxu0 %v3952
  %v4220 = vpop.f32.mrf.mxu0
  %v4221 = vadd.f32 %v4008, %v4220
  %v4222 = vpop.f32.mrf.mxu0
  %v4223 = vadd.f32 %v4008, %v4222
  %4224 = vmatmul.bf16.gmra.mxu0 %v3954
  %v4225 = vpop.f32.mrf.mxu0
  %v4226 = vadd.f32 %v4008, %v4225
  %v4227 = vpop.f32.mrf.mxu0
  %v4228 = vadd.f32 %v4008, %v4227
  %4229 = vmatmul.bf16.gmra.mxu0 %v3956
  %v4230 = vpop.f32.mrf.mxu0
  %v4231 = vadd.f32 %v4008, %v4230
  %v4232 = vpop.f32.mrf.mxu0
  %v4233 = vadd.f32 %v4008, %v4232
  %4234 = vmatmul.bf16.gmra.mxu0 %v3958
  %v4235 = vpop.f32.mrf.mxu0
  %v4236 = vadd.f32 %v4008, %v4235
  %v4237 = vpop.f32.mrf.mxu0
  %v4238 = vadd.f32 %v4008, %v4237
  %4239 = vmatmul.bf16.gmra.mxu0 %v3960
  %v4240 = vpop.f32.mrf.mxu0
  %v4241 = vadd.f32 %v4008, %v4240
  %v4242 = vpop.f32.mrf.mxu0
  %v4243 = vadd.f32 %v4008, %v4242
  %4244 = vmatmul.bf16.gmra.mxu0 %v3962
  %v4245 = vpop.f32.mrf.mxu0
  %v4246 = vadd.f32 %v4008, %v4245
  %v4247 = vpop.f32.mrf.mxu0
  %v4248 = vadd.f32 %v4008, %v4247
  %4249 = vmatmul.bf16.gmra.mxu0 %v3964
  %v4250 = vpop.f32.mrf.mxu0
  %v4251 = vadd.f32 %v4008, %v4250
  %v4252 = vpop.f32.mrf.mxu0
  %v4253 = vadd.f32 %v4008, %v4252
  %4254 = vmatmul.bf16.gmra.mxu0 %v3966
  %v4255 = vpop.f32.mrf.mxu0
  %v4256 = vadd.f32 %v4008, %v4255
  %v4257 = vpop.f32.mrf.mxu0
  %v4258 = vadd.f32 %v4008, %v4257
  %4259 = vmatmul.bf16.gmra.mxu0 %v3968
  %v4260 = vpop.f32.mrf.mxu0
  %v4261 = vadd.f32 %v4008, %v4260
  %v4262 = vpop.f32.mrf.mxu0
  %v4263 = vadd.f32 %v4008, %v4262
  %4264 = vmatmul.bf16.gmra.mxu0 %v3970
  %v4265 = vpop.f32.mrf.mxu0
  %v4266 = vadd.f32 %v4008, %v4265
  %v4267 = vpop.f32.mrf.mxu0
  %v4268 = vadd.f32 %v4008, %v4267
  %4269 = vmatmul.bf16.gmra.mxu0 %v3972
  %v4270 = vpop.f32.mrf.mxu0
  %v4271 = vadd.f32 %v4008, %v4270
  %v4272 = vpop.f32.mrf.mxu0
  %v4273 = vadd.f32 %v4008, %v4272
  %4274 = vdwg.mxu0
  %4275 = vmatpush.bf16.msra.mxu0 %v4089
  %4276 = vmatpush.bf16.msra.mxu0 %v4088
  %4277 = vmatpush.bf16.msra.mxu0 %v4087
  %4278 = vmatpush.bf16.msra.mxu0 %v4086
  %4279 = vmatpush.bf16.msra.mxu0 %v4085
  %4280 = vmatpush.bf16.msra.mxu0 %v4084
  %4281 = vmatpush.bf16.msra.mxu0 %v4083
  %4282 = vmatpush.bf16.msra.mxu0 %v4082
  %4283 = vmatmul.bf16.gmra.mxu0 %v3911
  %v4284 = vpop.f32.mrf.mxu0
  %v4285 = vadd.f32 %v4116, %v4284
  %v4286 = vpop.f32.mrf.mxu0
  %v4287 = vadd.f32 %v4118, %v4286
  %4288 = vmatmul.bf16.gmra.mxu0 %v3913
  %v4289 = vpop.f32.mrf.mxu0
  %v4290 = vadd.f32 %v4121, %v4289
  %v4291 = vpop.f32.mrf.mxu0
  %v4292 = vadd.f32 %v4123, %v4291
  %4293 = vmatmul.bf16.gmra.mxu0 %v3915
  %v4294 = vpop.f32.mrf.mxu0
  %v4295 = vadd.f32 %v4126, %v4294
  %v4296 = vpop.f32.mrf.mxu0
  %v4297 = vadd.f32 %v4128, %v4296
  %4298 = vmatmul.bf16.gmra.mxu0 %v3917
  %v4299 = vpop.f32.mrf.mxu0
  %v4300 = vadd.f32 %v4131, %v4299
  %v4301 = vpop.f32.mrf.mxu0
  %v4302 = vadd.f32 %v4133, %v4301
  %4303 = vmatmul.bf16.gmra.mxu0 %v3919
  %v4304 = vpop.f32.mrf.mxu0
  %v4305 = vadd.f32 %v4136, %v4304
  %v4306 = vpop.f32.mrf.mxu0
  %v4307 = vadd.f32 %v4138, %v4306
  %4308 = vmatmul.bf16.gmra.mxu0 %v3921
  %v4309 = vpop.f32.mrf.mxu0
  %v4310 = vadd.f32 %v4141, %v4309
  %v4311 = vpop.f32.mrf.mxu0
  %v4312 = vadd.f32 %v4143, %v4311
  %4313 = vmatmul.bf16.gmra.mxu0 %v3923
  %v4314 = vpop.f32.mrf.mxu0
  %v4315 = vadd.f32 %v4146, %v4314
  %v4316 = vpop.f32.mrf.mxu0
  %v4317 = vadd.f32 %v4148, %v4316
  %4318 = vmatmul.bf16.gmra.mxu0 %v3925
  %v4319 = vpop.f32.mrf.mxu0
  %v4320 = vadd.f32 %v4151, %v4319
  %v4321 = vpop.f32.mrf.mxu0
  %v4322 = vadd.f32 %v4153, %v4321
  %4323 = vmatmul.bf16.gmra.mxu0 %v3927
  %v4324 = vpop.f32.mrf.mxu0
  %v4325 = vadd.f32 %v4156, %v4324
  %v4326 = vpop.f32.mrf.mxu0
  %v4327 = vadd.f32 %v4158, %v4326
  %4328 = vmatmul.bf16.gmra.mxu0 %v3929
  %v4329 = vpop.f32.mrf.mxu0
  %v4330 = vadd.f32 %v4161, %v4329
  %v4331 = vpop.f32.mrf.mxu0
  %v4332 = vadd.f32 %v4163, %v4331
  %4333 = vmatmul.bf16.gmra.mxu0 %v3931
  %v4334 = vpop.f32.mrf.mxu0
  %v4335 = vadd.f32 %v4166, %v4334
  %v4336 = vpop.f32.mrf.mxu0
  %v4337 = vadd.f32 %v4168, %v4336
  %4338 = vmatmul.bf16.gmra.mxu0 %v3933
  %v4339 = vpop.f32.mrf.mxu0
  %v4340 = vadd.f32 %v4171, %v4339
  %v4341 = vpop.f32.mrf.mxu0
  %v4342 = vadd.f32 %v4173, %v4341
  %4343 = vmatmul.bf16.gmra.mxu0 %v3935
  %v4344 = vpop.f32.mrf.mxu0
  %v4345 = vadd.f32 %v4176, %v4344
  %v4346 = vpop.f32.mrf.mxu0
  %v4347 = vadd.f32 %v4178, %v4346
  %4348 = vmatmul.bf16.gmra.mxu0 %v3937
  %v4349 = vpop.f32.mrf.mxu0
  %v4350 = vadd.f32 %v4181, %v4349
  %v4351 = vpop.f32.mrf.mxu0
  %v4352 = vadd.f32 %v4183, %v4351
  %4353 = vmatmul.bf16.gmra.mxu0 %v3939
  %v4354 = vpop.f32.mrf.mxu0
  %v4355 = vadd.f32 %v4186, %v4354
  %v4356 = vpop.f32.mrf.mxu0
  %v4357 = vadd.f32 %v4188, %v4356
  %4358 = vmatmul.bf16.gmra.mxu0 %v3941
  %v4359 = vpop.f32.mrf.mxu0
  %v4360 = vadd.f32 %v4191, %v4359
  %v4361 = vpop.f32.mrf.mxu0
  %v4362 = vadd.f32 %v4193, %v4361
  %4363 = vmatmul.bf16.gmra.mxu0 %v3943
  %v4364 = vpop.f32.mrf.mxu0
  %v4365 = vadd.f32 %v4196, %v4364
  %v4366 = vpop.f32.mrf.mxu0
  %v4367 = vadd.f32 %v4198, %v4366
  %4368 = vmatmul.bf16.gmra.mxu0 %v3945
  %v4369 = vpop.f32.mrf.mxu0
  %v4370 = vadd.f32 %v4201, %v4369
  %v4371 = vpop.f32.mrf.mxu0
  %v4372 = vadd.f32 %v4203, %v4371
  %4373 = vmatmul.bf16.gmra.mxu0 %v3947
  %v4374 = vpop.f32.mrf.mxu0
  %v4375 = vadd.f32 %v4206, %v4374
  %v4376 = vpop.f32.mrf.mxu0
  %v4377 = vadd.f32 %v4208, %v4376
  %4378 = vmatmul.bf16.gmra.mxu0 %v3949
  %v4379 = vpop.f32.mrf.mxu0
  %v4380 = vadd.f32 %v4211, %v4379
  %v4381 = vpop.f32.mrf.mxu0
  %v4382 = vadd.f32 %v4213, %v4381
  %4383 = vmatmul.bf16.gmra.mxu0 %v3951
  %v4384 = vpop.f32.mrf.mxu0
  %v4385 = vadd.f32 %v4216, %v4384
  %v4386 = vpop.f32.mrf.mxu0
  %v4387 = vadd.f32 %v4218, %v4386
  %4388 = vmatmul.bf16.gmra.mxu0 %v3953
  %v4389 = vpop.f32.mrf.mxu0
  %v4390 = vadd.f32 %v4221, %v4389
  %v4391 = vpop.f32.mrf.mxu0
  %v4392 = vadd.f32 %v4223, %v4391
  %4393 = vmatmul.bf16.gmra.mxu0 %v3955
  %v4394 = vpop.f32.mrf.mxu0
  %v4395 = vadd.f32 %v4226, %v4394
  %v4396 = vpop.f32.mrf.mxu0
  %v4397 = vadd.f32 %v4228, %v4396
  %4398 = vmatmul.bf16.gmra.mxu0 %v3957
  %v4399 = vpop.f32.mrf.mxu0
  %v4400 = vadd.f32 %v4231, %v4399
  %v4401 = vpop.f32.mrf.mxu0
  %v4402 = vadd.f32 %v4233, %v4401
  %4403 = vmatmul.bf16.gmra.mxu0 %v3959
  %v4404 = vpop.f32.mrf.mxu0
  %v4405 = vadd.f32 %v4236, %v4404
  %v4406 = vpop.f32.mrf.mxu0
  %v4407 = vadd.f32 %v4238, %v4406
  %4408 = vmatmul.bf16.gmra.mxu0 %v3961
  %v4409 = vpop.f32.mrf.mxu0
  %v4410 = vadd.f32 %v4241, %v4409
  %v4411 = vpop.f32.mrf.mxu0
  %v4412 = vadd.f32 %v4243, %v4411
  %4413 = vmatmul.bf16.gmra.mxu0 %v3963
  %v4414 = vpop.f32.mrf.mxu0
  %v4415 = vadd.f32 %v4246, %v4414
  %v4416 = vpop.f32.mrf.mxu0
  %v4417 = vadd.f32 %v4248, %v4416
  %4418 = vmatmul.bf16.gmra.mxu0 %v3965
  %v4419 = vpop.f32.mrf.mxu0
  %v4420 = vadd.f32 %v4251, %v4419
  %v4421 = vpop.f32.mrf.mxu0
  %v4422 = vadd.f32 %v4253, %v4421
  %4423 = vmatmul.bf16.gmra.mxu0 %v3967
  %v4424 = vpop.f32.mrf.mxu0
  %v4425 = vadd.f32 %v4256, %v4424
  %v4426 = vpop.f32.mrf.mxu0
  %v4427 = vadd.f32 %v4258, %v4426
  %4428 = vmatmul.bf16.gmra.mxu0 %v3969
  %v4429 = vpop.f32.mrf.mxu0
  %v4430 = vadd.f32 %v4261, %v4429
  %v4431 = vpop.f32.mrf.mxu0
  %v4432 = vadd.f32 %v4263, %v4431
  %4433 = vmatmul.bf16.gmra.mxu0 %v3971
  %v4434 = vpop.f32.mrf.mxu0
  %v4435 = vadd.f32 %v4266, %v4434
  %v4436 = vpop.f32.mrf.mxu0
  %v4437 = vadd.f32 %v4268, %v4436
  %4438 = vmatmul.bf16.gmra.mxu0 %v3973
  %v4439 = vpop.f32.mrf.mxu0
  %v4440 = vadd.f32 %v4271, %v4439
  %v4441 = vpop.f32.mrf.mxu0
  %v4442 = vadd.f32 %v4273, %v4441
  %4443 = vdwg.mxu0
  %4444 = vst [vmem:[%s5] sm:$0xff] %v4285
  %4445 = vst [vmem:[%s5 + $0x8] sm:$0xff] %v4287
  %4446 = vst [vmem:[%s5 + $0x10] sm:$0xff] %v4290
  %4447 = vst [vmem:[%s5 + $0x18] sm:$0xff] %v4292
  %4448 = vst [vmem:[%s5 + $0x20] sm:$0xff] %v4295
  %4449 = vst [vmem:[%s5 + $0x28] sm:$0xff] %v4297
  %4450 = vst [vmem:[%s5 + $0x30] sm:$0xff] %v4300
  %4451 = vst [vmem:[%s5 + $0x38] sm:$0xff] %v4302
  %4452 = vst [vmem:[%s5 + $0x40] sm:$0xff] %v4305
  %4453 = vst [vmem:[%s5 + $0x48] sm:$0xff] %v4307
  %4454 = vst [vmem:[%s5 + $0x50] sm:$0xff] %v4310
  %4455 = vst [vmem:[%s5 + $0x58] sm:$0xff] %v4312
  %4456 = vst [vmem:[%s5 + $0x60] sm:$0xff] %v4315
  %4457 = vst [vmem:[%s5 + $0x68] sm:$0xff] %v4317
  %4458 = vst [vmem:[%s5 + $0x70] sm:$0xff] %v4320
  %4459 = vst [vmem:[%s5 + $0x78] sm:$0xff] %v4322
  %4460 = vst [vmem:[%s5 + $0x80] sm:$0xff] %v4325
  %4461 = vst [vmem:[%s5 + $0x88] sm:$0xff] %v4327
  %4462 = vst [vmem:[%s5 + $0x90] sm:$0xff] %v4330
  %4463 = vst [vmem:[%s5 + $0x98] sm:$0xff] %v4332
  %4464 = vst [vmem:[%s5 + $0xa0] sm:$0xff] %v4335
  %4465 = vst [vmem:[%s5 + $0xa8] sm:$0xff] %v4337
  %4466 = vst [vmem:[%s5 + $0xb0] sm:$0xff] %v4340
  %4467 = vst [vmem:[%s5 + $0xb8] sm:$0xff] %v4342
  %4468 = vst [vmem:[%s5 + $0xc0] sm:$0xff] %v4345
  %4469 = vst [vmem:[%s5 + $0xc8] sm:$0xff] %v4347
  %4470 = vst [vmem:[%s5 + $0xd0] sm:$0xff] %v4350
  %4471 = vst [vmem:[%s5 + $0xd8] sm:$0xff] %v4352
  %4472 = vst [vmem:[%s5 + $0xe0] sm:$0xff] %v4355
  %4473 = vst [vmem:[%s5 + $0xe8] sm:$0xff] %v4357
  %4474 = vst [vmem:[%s5 + $0xf0] sm:$0xff] %v4360
  %4475 = vst [vmem:[%s5 + $0xf8] sm:$0xff] %v4362
  %4476 = vst [vmem:[%s5 + $0x100] sm:$0xff] %v4365
  %4477 = vst [vmem:[%s5 + $0x108] sm:$0xff] %v4367
  %4478 = vst [vmem:[%s5 + $0x110] sm:$0xff] %v4370
  %4479 = vst [vmem:[%s5 + $0x118] sm:$0xff] %v4372
  %4480 = vst [vmem:[%s5 + $0x120] sm:$0xff] %v4375
  %4481 = vst [vmem:[%s5 + $0x128] sm:$0xff] %v4377
  %4482 = vst [vmem:[%s5 + $0x130] sm:$0xff] %v4380
  %4483 = vst [vmem:[%s5 + $0x138] sm:$0xff] %v4382
  %4484 = vst [vmem:[%s5 + $0x140] sm:$0xff] %v4385
  %4485 = vst [vmem:[%s5 + $0x148] sm:$0xff] %v4387
  %4486 = vst [vmem:[%s5 + $0x150] sm:$0xff] %v4390
  %4487 = vst [vmem:[%s5 + $0x158] sm:$0xff] %v4392
  %4488 = vst [vmem:[%s5 + $0x160] sm:$0xff] %v4395
  %4489 = vst [vmem:[%s5 + $0x168] sm:$0xff] %v4397
  %4490 = vst [vmem:[%s5 + $0x170] sm:$0xff] %v4400
  %4491 = vst [vmem:[%s5 + $0x178] sm:$0xff] %v4402
  %4492 = vst [vmem:[%s5 + $0x180] sm:$0xff] %v4405
  %4493 = vst [vmem:[%s5 + $0x188] sm:$0xff] %v4407
  %4494 = vst [vmem:[%s5 + $0x190] sm:$0xff] %v4410
  %4495 = vst [vmem:[%s5 + $0x198] sm:$0xff] %v4412
  %4496 = vst [vmem:[%s5 + $0x1a0] sm:$0xff] %v4415
  %4497 = vst [vmem:[%s5 + $0x1a8] sm:$0xff] %v4417
  %4498 = vst [vmem:[%s5 + $0x1b0] sm:$0xff] %v4420
  %4499 = vst [vmem:[%s5 + $0x1b8] sm:$0xff] %v4422
  %4500 = vst [vmem:[%s5 + $0x1c0] sm:$0xff] %v4425
  %4501 = vst [vmem:[%s5 + $0x1c8] sm:$0xff] %v4427
  %4502 = vst [vmem:[%s5 + $0x1d0] sm:$0xff] %v4430
  %4503 = vst [vmem:[%s5 + $0x1d8] sm:$0xff] %v4432
  %4504 = vst [vmem:[%s5 + $0x1e0] sm:$0xff] %v4435
  %4505 = vst [vmem:[%s5 + $0x1e8] sm:$0xff] %v4437
  %4506 = vst [vmem:[%s5 + $0x1f0] sm:$0xff] %v4440
  %4507 = vst [vmem:[%s5 + $0x1f8] sm:$0xff] %v4442
  // Predicated region
  $region22: #{ddno_forward.5} parent=0 // pred_check
    _
  $region23: #{ddno_forward.5} parent=0 // pred_check_branch
    %4509 = sbr.rel (0) target = $region25
  $region24: #{ddno_forward.5} parent=0 // pred_region
    _
  $region25: #{ddno_forward.5} parent=0 // pred_fallthru
    _
  // Predicated region
  $region26: #{ddno_forward.5} parent=0 // pred_check
    _
  $region27: #{ddno_forward.5} parent=0 // pred_check_branch
    %4511 = sbr.rel (0) target = $region29
  $region28: #{ddno_forward.5} parent=0 // pred_region
    _
  $region29: #{ddno_forward.5} parent=0 // pred_fallthru
    _

</llo_original>
